<compile_context>
chip_gen: v7x
topology: tpu7x:2x2x1
jax: 0.10.0
libtpu: 0.0.40
codegen_flags: <defaults>
</compile_context>

<pallas_src>
import functools

import jax
import jax.numpy as jnp
from jax.experimental import pallas as pl
from jax.experimental.pallas import tpu as pltpu


# ---------------------------------------------------------------------------
# Fused EC kernel: EMA gating + CA gating + 1x1 conv / BN / SiLU, one batch
# element per grid step, all math lane-dense on (channels, H*W).
# ---------------------------------------------------------------------------
def _ec_fused_kernel(x_ref, pool_ref, th_ref, tw_ref,
                     wc1_ref, bc1_ref, wch_ref, bch_ref, wcw_ref, bcw_ref,
                     wcvc_ref, wcve_ref, bcv_ref,
                     w1_ref, b1_ref, gng_ref, gnb_ref, w3_ref, b3_ref, a1_ref,
                     o_ref, *, groups: int, height: int, width: int,
                     gn_eps: float):
    f32 = jnp.float32
    H, W = height, width
    xf = x_ref[0].astype(f32)                      # (C, L) lane-dense
    C, L = xf.shape
    g = groups
    cg = C // g

    pool = pool_ref[...]                           # (L, H+W) directional-mean matrix
    t_h = th_ref[...]                              # (H, L)   row selector (0/1)
    t_w = tw_ref[...]                              # (W, L)   col selector (0/1)

    # ---- directional (H / W) average pooling for BOTH branches: one MXU dot ----
    pooled = jnp.dot(xf, pool, preferred_element_type=f32)        # (C, H+W)
    ph_all = pooled[:, :H]                                        # (C, H)
    pw_all = pooled[:, H:]                                        # (C, W)

    # ------------------------------ CA branch -------------------------------
    t = jnp.dot(wc1_ref[...], pooled, preferred_element_type=f32) + bc1_ref[...]
    t = t * jnp.clip(t + 3.0, 0.0, 6.0) * (1.0 / 6.0)             # h_swish, (mip,H+W)
    a_h = jax.nn.sigmoid(
        jnp.dot(wch_ref[...], t[:, :H], preferred_element_type=f32) + bch_ref[...])
    a_w = jax.nn.sigmoid(
        jnp.dot(wcw_ref[...], t[:, H:], preferred_element_type=f32) + bcw_ref[...])
    gate_ca = (jnp.dot(a_h, t_h, preferred_element_type=f32) *
               jnp.dot(a_w, t_w, preferred_element_type=f32))     # (C, L)

    # ------------------------------ EMA branch ------------------------------
    gxf = xf.reshape(g, cg, L)                     # (g, cg, L)
    phg = ph_all.reshape(g, cg, H)
    pwg = pw_all.reshape(g, cg, W)
    ph = [phg[:, ci] for ci in range(cg)]          # (g, H)
    pw = [pwg[:, ci] for ci in range(cg)]          # (g, W)

    # shared 1x1 conv (cg -> cg) on the pooled descriptors; scalar taps from SMEM.
    sig_h, sig_w = [], []
    for co in range(cg):
        hh = w1_ref[co * cg] * ph[0]
        ww = w1_ref[co * cg] * pw[0]
        for ci in range(1, cg):
            w1s = w1_ref[co * cg + ci]
            hh = hh + w1s * ph[ci]
            ww = ww + w1s * pw[ci]
        b1s = b1_ref[co]
        sig_h.append(jax.nn.sigmoid(hh + b1s))     # (g, H)
        sig_w.append(jax.nn.sigmoid(ww + b1s))     # (g, W)

    # gated input + per-channel GroupNorm (num_groups == num_channels), flat layout.
    x1_list = []
    for ci in range(cg):
        gate = (jnp.dot(sig_h[ci], t_h, preferred_element_type=f32) *
                jnp.dot(sig_w[ci], t_w, preferred_element_type=f32))  # (g, L)
        tm = gxf[:, ci] * gate                                        # (g, L)
        mu = jnp.mean(tm, axis=1, keepdims=True)                      # (g, 1)
        var = jnp.mean((tm - mu) ** 2, axis=1, keepdims=True)
        xn = (tm - mu) * jax.lax.rsqrt(var + gn_eps)
        x1_list.append(xn * gng_ref[ci] + gnb_ref[ci])                # (g, L)

    # 3x3 conv on the raw grouped input (zero padded); the 9 shifted slices are
    # computed once per INPUT channel (hoisted out of the output-channel loop).
    zr = jnp.zeros((g, 1, W), f32)
    zc = jnp.zeros((g, H + 2, 1), f32)
    shifts = []
    for ci in range(cg):
        xi3 = gxf[:, ci].reshape(g, H, W)
        p = jnp.concatenate([zr, xi3, zr], axis=1)                    # (g, H+2, W)
        p = jnp.concatenate([zc, p, zc], axis=2)                      # (g, H+2, W+2)
        shifts.append([p[:, ky:ky + H, kx:kx + W]
                       for ky in range(3) for kx in range(3)])
    x2_list = []
    for co in range(cg):
        acc = w3_ref[(co * cg) * 9] * shifts[0][0]
        for ci in range(cg):
            for kk in range(9):
                if ci == 0 and kk == 0:
                    continue
                acc = acc + w3_ref[(co * cg + ci) * 9 + kk] * shifts[ci][kk]
        x2_list.append((acc + b3_ref[co]).reshape(g, L))              # (g, L)

    # channel softmax of the pooled x2 descriptors; the x1 counterpart is the
    # data-independent constant softmax(gn_beta) = a1 (precomputed in the wrapper).
    m2 = [jnp.mean(x2, axis=1, keepdims=True) for x2 in x2_list]      # (g, 1)
    mx = m2[0]
    for m in m2[1:]:
        mx = jnp.maximum(mx, m)
    e2 = [jnp.exp(m - mx) for m in m2]
    den = e2[0]
    for e in e2[1:]:
        den = den + e
    inv = 1.0 / den
    a2 = [e * inv for e in e2]                                        # (g, 1)

    wmap = a1_ref[0] * x2_list[0] + a2[0] * x1_list[0]
    for ci in range(1, cg):
        wmap = wmap + a1_ref[ci] * x2_list[ci] + a2[ci] * x1_list[ci]
    gate_ema = jax.nn.sigmoid(wmap)                                   # (g, L)

    # -------- fused 1x1 conv + folded BN + SiLU, lane-dense (c2, L) output --------
    y = jnp.dot(wcvc_ref[...], xf * gate_ca,
                preferred_element_type=f32) + bcv_ref[...]            # (c2, L)
    for ci in range(cg):
        y = y + jnp.dot(wcve_ref[ci], gxf[:, ci] * gate_ema,
                        preferred_element_type=f32)
    o_ref[0] = (y * jax.nn.sigmoid(y)).astype(o_ref.dtype)            # SiLU


# ---------------------------------------------------------------------------
# Wrapper
# ---------------------------------------------------------------------------
def _ec_forward(x, params, *, groups=8, eps=1e-5, gn_eps=1e-5):
    b, c1, h, w = x.shape
    assert c1 % groups == 0, "in_channels must be divisible by EMA groups"
    cg = c1 // groups
    mip = params['ca_w1'].shape[0]
    c2 = params['cv_w'].shape[0]
    l = h * w
    f32 = jnp.float32

    # ---- fold eval-mode BatchNorms into the adjacent 1x1 convs ----
    s_ca = params['ca_bn_g'] * jax.lax.rsqrt(params['ca_bn_rv'] + eps)
    wc1 = (params['ca_w1'] * s_ca[:, None]).astype(f32)               # (mip, c1)
    bc1 = (s_ca * (params['ca_b1'] - params['ca_bn_rm'])
           + params['ca_bn_b']).astype(f32)
    s_cv = params['cv_bn_g'] * jax.lax.rsqrt(params['cv_bn_rv'] + eps)
    wcv = (params['cv_w'] * s_cv[:, None]).astype(f32)                # (c2, 2*c1)
    bcv = (params['cv_bn_b'] - s_cv * params['cv_bn_rm']).astype(f32)

    # split the fused conv into its EMA / CA halves; pre-slice the EMA half per
    # within-group channel so the kernel never rebuilds a (C, L) EMA slab.
    wcv_e = jnp.transpose(wcv[:, :c1].reshape(c2, groups, cg), (2, 0, 1))  # (cg,c2,g)
    wcv_c = wcv[:, c1:]                                                    # (c2, c1)

    # constant lane-dense helper matrices: directional mean + row/col selectors.
    lin = jnp.arange(l, dtype=jnp.int32)
    row = lin // w
    col = lin % w
    t_h = (row[None, :] == jnp.arange(h, dtype=jnp.int32)[:, None]).astype(f32)
    t_w = (col[None, :] == jnp.arange(w, dtype=jnp.int32)[:, None]).astype(f32)
    pool = jnp.concatenate([jnp.transpose(t_h) * (1.0 / w),
                            jnp.transpose(t_w) * (1.0 / h)], axis=1)  # (l, h+w)

    # EMA scalar parameters (SMEM) + the constant softmax(gn_beta) gate.
    ema_w1 = params['ema_w1'].reshape(-1).astype(f32)                 # (cg*cg,)
    ema_b1 = params['ema_b1'].astype(f32)
    gn_g = params['ema_gn_g'].astype(f32)
    gn_b = params['ema_gn_b'].astype(f32)
    ema_w3 = params['ema_w3'].reshape(-1).astype(f32)                 # (cg*cg*9,)
    ema_b3 = params['ema_b3'].astype(f32)
    a1 = jax.nn.softmax(gn_b)                                         # (cg,)

    # CA weight layouts for in-kernel matmuls.
    wch = params['ca_wh'].astype(f32)                                 # (c1, mip)
    wcw = params['ca_ww'].astype(f32)                                 # (c1, mip)
    bc1_r = bc1.reshape(mip, 1)
    bch_r = params['ca_bh'].reshape(c1, 1).astype(f32)
    bcw_r = params['ca_bw'].reshape(c1, 1).astype(f32)
    bcv_r = bcv.reshape(c2, 1)

    x_flat = x.reshape(b, c1, l)                  # lane-dense HBM view (free)

    def vmem(shape):
        return pl.BlockSpec(shape, lambda i, _s=len(shape): (0,) * _s)

    def smem():
        return pl.BlockSpec(memory_space=pltpu.MemorySpace.SMEM)

    out_flat = pl.pallas_call(
        functools.partial(_ec_fused_kernel, groups=groups, height=h, width=w,
                          gn_eps=gn_eps),
        out_shape=jax.ShapeDtypeStruct((b, c2, l), x.dtype),
        grid_spec=pltpu.PrefetchScalarGridSpec(
            num_scalar_prefetch=0,
            grid=(b,),
            in_specs=[
                pl.BlockSpec((1, c1, l), lambda i: (i, 0, 0)),   # x (lane dense)
                vmem((l, h + w)),                                # pooling matrix
                vmem((h, l)),                                    # row selector
                vmem((w, l)),                                    # col selector
                vmem((mip, c1)), vmem((mip, 1)),                 # CA conv1 (+BN)
                vmem((c1, mip)), vmem((c1, 1)),                  # CA conv_h
                vmem((c1, mip)), vmem((c1, 1)),                  # CA conv_w
                vmem((c2, c1)),                                  # cv: CA half
                vmem((cg, c2, groups)),                          # cv: EMA half
                vmem((c2, 1)),                                   # cv bias (BN)
                smem(), smem(), smem(), smem(), smem(), smem(), smem(),
            ],
            out_specs=pl.BlockSpec((1, c2, l), lambda i: (i, 0, 0)),
        ),
        compiler_params=pltpu.CompilerParams(
            dimension_semantics=("parallel",),
            vmem_limit_bytes=32 * 1024 * 1024),
        cost_estimate=pl.CostEstimate(
            flops=int(b * (2 * l * c1 * (h + w) + 4 * c1 * mip * (h + w)
                           + 4 * c1 * l * (h + w)
                           + 18 * cg * cg * groups * h * w
                           + 4 * c2 * c1 * l + 10 * c1 * l)),
            transcendentals=int(b * (2 * c1 * (h + w) + 2 * groups * l
                                     + groups * cg + c2 * l)),
            bytes_accessed=int(4 * (b * (c1 + c2) * l + 3 * l * (h + w)
                                    + 3 * c1 * mip + 3 * c2 * c1))),
    )(x_flat, pool, t_h, t_w, wc1, bc1_r, wch, bch_r, wcw, bcw_r,
      wcv_c, wcv_e, bcv_r, ema_w1, ema_b1, gn_g, gn_b, ema_w3, ema_b3, a1)

    return out_flat.reshape(b, c2, h, w)


ec_forward = jax.jit(_ec_forward, static_argnames=("groups", "eps", "gn_eps"))


# ---------------------------------------------------------------------------
# Deterministic parameter construction + pure-JAX reference
# ---------------------------------------------------------------------------
def init_ec_params(key, c1, c2, *, groups=8, reduction=32):
    cg = c1 // groups
    mip = max(8, c1 // reduction)
    ks = list(jax.random.split(key, 21))
    rn = lambda k, s, sc=0.1: (sc * jax.random.normal(k, s)).astype(jnp.float32)
    return {
        # EMA
        'ema_w1': rn(ks[0], (cg, cg), 0.3), 'ema_b1': rn(ks[1], (cg,)),
        'ema_gn_g': 1.0 + rn(ks[2], (cg,)), 'ema_gn_b': rn(ks[3], (cg,)),
        'ema_w3': rn(ks[4], (cg, cg, 3, 3), 0.2), 'ema_b3': rn(ks[5], (cg,)),
        # CA
        'ca_w1': rn(ks[6], (mip, c1), 0.2), 'ca_b1': rn(ks[7], (mip,)),
        'ca_bn_g': 1.0 + rn(ks[8], (mip,)), 'ca_bn_b': rn(ks[9], (mip,)),
        'ca_bn_rm': rn(ks[10], (mip,)),
        'ca_bn_rv': 1.0 + 0.1 * jnp.abs(jax.random.normal(ks[11], (mip,))).astype(jnp.float32),
        'ca_wh': rn(ks[12], (c1, mip), 0.2), 'ca_bh': rn(ks[13], (c1,)),
        'ca_ww': rn(ks[14], (c1, mip), 0.2), 'ca_bw': rn(ks[15], (c1,)),
        # cv = Conv(2*c1 -> c2, 1x1, bias=False) + BN + SiLU
        'cv_w': rn(ks[16], (c2, 2 * c1), 0.2),
        'cv_bn_g': 1.0 + rn(ks[17], (c2,)), 'cv_bn_b': rn(ks[18], (c2,)),
        'cv_bn_rm': rn(ks[19], (c2,)),
        'cv_bn_rv': 1.0 + 0.1 * jnp.abs(jax.random.normal(ks[20], (c2,))).astype(jnp.float32),
    }


def _ec_reference(x, p, *, groups=8, eps=1e-5):
    b, c, h, w = x.shape
    cg = c // groups
    # EMA
    gx = x.reshape(b * groups, cg, h, w)
    xh = jnp.mean(gx, axis=3, keepdims=True)
    xw = jnp.mean(gx, axis=2, keepdims=True)
    y = jnp.concatenate([xh, jnp.transpose(xw, (0, 1, 3, 2))], axis=2)
    hw_ = jnp.einsum('oc,bcls->bols', p['ema_w1'], y) + p['ema_b1'][None, :, None, None]
    t = gx * jax.nn.sigmoid(hw_[:, :, :h]) * jax.nn.sigmoid(
        jnp.transpose(hw_[:, :, h:], (0, 1, 3, 2)))
    mu = jnp.mean(t, axis=(2, 3), keepdims=True)
    var = jnp.var(t, axis=(2, 3), keepdims=True)
    x1 = (t - mu) / jnp.sqrt(var + 1e-5)
    x1 = x1 * p['ema_gn_g'][None, :, None, None] + p['ema_gn_b'][None, :, None, None]
    x2 = jax.lax.conv_general_dilated(
        gx, p['ema_w3'], window_strides=(1, 1), padding='SAME',
        dimension_numbers=('NCHW', 'OIHW', 'NCHW')) + p['ema_b3'][None, :, None, None]
    x11 = jax.nn.softmax(jnp.mean(x1, axis=(2, 3)), axis=-1)
    x21 = jax.nn.softmax(jnp.mean(x2, axis=(2, 3)), axis=-1)
    wmap = (jnp.einsum('bc,bcl->bl', x11, x2.reshape(b * groups, cg, h * w))
            + jnp.einsum('bc,bcl->bl', x21, x1.reshape(b * groups, cg, h * w)))
    ema = (gx * jax.nn.sigmoid(wmap.reshape(b * groups, 1, h, w))).reshape(b, c, h, w)
    # CA
    y2 = jnp.concatenate([jnp.mean(x, axis=3), jnp.mean(x, axis=2)], axis=2)
    y2 = jnp.einsum('mc,bcl->bml', p['ca_w1'], y2) + p['ca_b1'][None, :, None]
    s = p['ca_bn_g'] / jnp.sqrt(p['ca_bn_rv'] + eps)
    y2 = (y2 - p['ca_bn_rm'][None, :, None]) * s[None, :, None] + p['ca_bn_b'][None, :, None]
    y2 = y2 * jnp.clip(y2 + 3.0, 0.0, 6.0) / 6.0
    a_h = jax.nn.sigmoid(jnp.einsum('cm,bml->bcl', p['ca_wh'], y2[:, :, :h])
                         + p['ca_bh'][None, :, None])
    a_w = jax.nn.sigmoid(jnp.einsum('cm,bml->bcl', p['ca_ww'], y2[:, :, h:])
                         + p['ca_bw'][None, :, None])
    ca = x * a_w[:, :, None, :] * a_h[:, :, :, None]
    # concat + 1x1 conv + BN + SiLU
    yo = jnp.einsum('oc,bchw->bohw', p['cv_w'], jnp.concatenate([ema, ca], axis=1))
    s2 = p['cv_bn_g'] / jnp.sqrt(p['cv_bn_rv'] + eps)
    yo = (yo - p['cv_bn_rm'][None, :, None, None]) * s2[None, :, None, None] \
         + p['cv_bn_b'][None, :, None, None]
    return yo * jax.nn.sigmoid(yo)


if __name__ == "__main__":
    key = jax.random.PRNGKey(0)
    kx, kp = jax.random.split(key)
    B, C1, C2, H, W = 2, 16, 32, 16, 16        # C1 must be divisible by EMA groups (8)
    x = jax.random.normal(kx, (B, C1, H, W), dtype=jnp.float32)
    params = init_ec_params(kp, C1, C2)

    out = jax.block_until_ready(ec_forward(x, params))
    ref = _ec_reference(x, params)

    assert out.shape == ref.shape == (B, C2, H, W), (out.shape, ref.shape)
    assert out.dtype == ref.dtype, (out.dtype, ref.dtype)
    err = float(jnp.max(jnp.abs(out - ref)))
    assert err < 5e-3, f"Pallas EC kernel mismatch vs reference (max abs err {err})"
    print("KERNEL_OK")
</pallas_src>

<mosaic_0001>
module attributes {stable_mosaic.version = 11 : i64} {
  func.func @_ec_fused_kernel(%arg0: i32, %arg1: memref<1x16x256xf32, #tpu.memory_space<vmem>>, %arg2: memref<256x32xf32, #tpu.memory_space<vmem>>, %arg3: memref<16x256xf32, #tpu.memory_space<vmem>>, %arg4: memref<16x256xf32, #tpu.memory_space<vmem>>, %arg5: memref<8x16xf32, #tpu.memory_space<vmem>>, %arg6: memref<8x1xf32, #tpu.memory_space<vmem>>, %arg7: memref<16x8xf32, #tpu.memory_space<vmem>>, %arg8: memref<16x1xf32, #tpu.memory_space<vmem>>, %arg9: memref<16x8xf32, #tpu.memory_space<vmem>>, %arg10: memref<16x1xf32, #tpu.memory_space<vmem>>, %arg11: memref<32x16xf32, #tpu.memory_space<vmem>>, %arg12: memref<2x32x8xf32, #tpu.memory_space<vmem>>, %arg13: memref<32x1xf32, #tpu.memory_space<vmem>>, %arg14: memref<4xf32, #tpu.memory_space<smem>>, %arg15: memref<2xf32, #tpu.memory_space<smem>>, %arg16: memref<2xf32, #tpu.memory_space<smem>>, %arg17: memref<2xf32, #tpu.memory_space<smem>>, %arg18: memref<36xf32, #tpu.memory_space<smem>>, %arg19: memref<2xf32, #tpu.memory_space<smem>>, %arg20: memref<2xf32, #tpu.memory_space<smem>>, %arg21: memref<1x32x256xf32, #tpu.memory_space<vmem>>) attributes {dimension_semantics = [#tpu.dimension_semantics<parallel>], iteration_bounds = array<i64: 2>, scalar_prefetch = 0 : i64, scratch_operands = 0 : i64, tpu.core_type = #tpu.core_type<tc>, window_params = [{transform_indices = @transform_0, window_bounds = array<i64: 1, 16, 256>}, {pipeline_mode = #tpu.pipeline_mode<synchronous>, transform_indices = @transform_1, window_bounds = array<i64: 256, 32>}, {pipeline_mode = #tpu.pipeline_mode<synchronous>, transform_indices = @transform_2, window_bounds = array<i64: 16, 256>}, {pipeline_mode = #tpu.pipeline_mode<synchronous>, transform_indices = @transform_3, window_bounds = array<i64: 16, 256>}, {pipeline_mode = #tpu.pipeline_mode<synchronous>, transform_indices = @transform_4, window_bounds = array<i64: 8, 16>}, {pipeline_mode = #tpu.pipeline_mode<synchronous>, transform_indices = @transform_5, window_bounds = array<i64: 8, 1>}, {pipeline_mode = #tpu.pipeline_mode<synchronous>, transform_indices = @transform_6, window_bounds = array<i64: 16, 8>}, {pipeline_mode = #tpu.pipeline_mode<synchronous>, transform_indices = @transform_7, window_bounds = array<i64: 16, 1>}, {pipeline_mode = #tpu.pipeline_mode<synchronous>, transform_indices = @transform_8, window_bounds = array<i64: 16, 8>}, {pipeline_mode = #tpu.pipeline_mode<synchronous>, transform_indices = @transform_9, window_bounds = array<i64: 16, 1>}, {pipeline_mode = #tpu.pipeline_mode<synchronous>, transform_indices = @transform_10, window_bounds = array<i64: 32, 16>}, {pipeline_mode = #tpu.pipeline_mode<synchronous>, transform_indices = @transform_11, window_bounds = array<i64: 2, 32, 8>}, {pipeline_mode = #tpu.pipeline_mode<synchronous>, transform_indices = @transform_12, window_bounds = array<i64: 32, 1>}, {transform_indices = @transform_13, window_bounds = array<i64: 4>}, {transform_indices = @transform_14, window_bounds = array<i64: 2>}, {transform_indices = @transform_15, window_bounds = array<i64: 2>}, {transform_indices = @transform_16, window_bounds = array<i64: 2>}, {transform_indices = @transform_17, window_bounds = array<i64: 36>}, {transform_indices = @transform_18, window_bounds = array<i64: 2>}, {transform_indices = @transform_19, window_bounds = array<i64: 2>}, {transform_indices = @transform_20, window_bounds = array<i64: 1, 32, 256>}]} {
    %c0 = arith.constant 0 : index
    %c0_0 = arith.constant 0 : index
    %c0_1 = arith.constant 0 : index
    %0 = vector.load %arg1[%c0, %c0_0, %c0_1] : memref<1x16x256xf32, #tpu.memory_space<vmem>>, vector<1x16x256xf32>
    %1 = vector.shape_cast %0 : vector<1x16x256xf32> to vector<16x256xf32>
    %c0_2 = arith.constant 0 : index
    %c0_3 = arith.constant 0 : index
    %2 = vector.load %arg2[%c0_2, %c0_3] : memref<256x32xf32, #tpu.memory_space<vmem>>, vector<256x32xf32>
    %c0_4 = arith.constant 0 : index
    %c0_5 = arith.constant 0 : index
    %3 = vector.load %arg3[%c0_4, %c0_5] : memref<16x256xf32, #tpu.memory_space<vmem>>, vector<16x256xf32>
    %c0_6 = arith.constant 0 : index
    %c0_7 = arith.constant 0 : index
    %4 = vector.load %arg4[%c0_6, %c0_7] : memref<16x256xf32, #tpu.memory_space<vmem>>, vector<16x256xf32>
    %cst = arith.constant dense<0.000000e+00> : vector<16x32xf32>
    %5 = tpu.matmul %1, %2, %cst {dimension_numbers = #tpu.dot_dimension_numbers<[1], [0], [0], [1], [0, 0, 1, 1], [], []>} : vector<16x256xf32>, vector<256x32xf32>, vector<16x32xf32> -> vector<16x32xf32>
    %6 = vector.extract_strided_slice %5 {offsets = [0, 0], sizes = [16, 16], strides = [1, 1]} : vector<16x32xf32> to vector<16x16xf32>
    %7 = vector.extract_strided_slice %5 {offsets = [0, 16], sizes = [16, 16], strides = [1, 1]} : vector<16x32xf32> to vector<16x16xf32>
    %c0_8 = arith.constant 0 : index
    %c0_9 = arith.constant 0 : index
    %8 = vector.load %arg5[%c0_8, %c0_9] : memref<8x16xf32, #tpu.memory_space<vmem>>, vector<8x16xf32>
    %cst_10 = arith.constant dense<0.000000e+00> : vector<8x32xf32>
    %9 = tpu.matmul %8, %5, %cst_10 {dimension_numbers = #tpu.dot_dimension_numbers<[1], [0], [0], [1], [0, 0, 1, 1], [], []>} : vector<8x16xf32>, vector<16x32xf32>, vector<8x32xf32> -> vector<8x32xf32>
    %c0_11 = arith.constant 0 : index
    %c0_12 = arith.constant 0 : index
    %10 = vector.load %arg6[%c0_11, %c0_12] : memref<8x1xf32, #tpu.memory_space<vmem>>, vector<8x1xf32>
    %11 = vector.broadcast %10 : vector<8x1xf32> to vector<8x32xf32>
    %12 = arith.addf %9, %11 : vector<8x32xf32>
    %cst_13 = arith.constant 3.000000e+00 : f32
    %13 = vector.broadcast %cst_13 : f32 to vector<8x32xf32>
    %14 = arith.addf %12, %13 : vector<8x32xf32>
    %cst_14 = arith.constant 0.000000e+00 : f32
    %cst_15 = arith.constant 6.000000e+00 : f32
    %15 = vector.broadcast %cst_14 : f32 to vector<8x32xf32>
    %16 = arith.maximumf %15, %14 : vector<8x32xf32>
    %17 = vector.broadcast %cst_15 : f32 to vector<8x32xf32>
    %18 = arith.minimumf %17, %16 : vector<8x32xf32>
    %19 = arith.mulf %12, %18 : vector<8x32xf32>
    %cst_16 = arith.constant 0.166666672 : f32
    %20 = vector.broadcast %cst_16 : f32 to vector<8x32xf32>
    %21 = arith.mulf %19, %20 : vector<8x32xf32>
    %c0_17 = arith.constant 0 : index
    %c0_18 = arith.constant 0 : index
    %22 = vector.load %arg7[%c0_17, %c0_18] : memref<16x8xf32, #tpu.memory_space<vmem>>, vector<16x8xf32>
    %23 = vector.extract_strided_slice %21 {offsets = [0, 0], sizes = [8, 16], strides = [1, 1]} : vector<8x32xf32> to vector<8x16xf32>
    %cst_19 = arith.constant dense<0.000000e+00> : vector<16x16xf32>
    %24 = tpu.matmul %22, %23, %cst_19 {dimension_numbers = #tpu.dot_dimension_numbers<[1], [0], [0], [1], [0, 0, 1, 1], [], []>} : vector<16x8xf32>, vector<8x16xf32>, vector<16x16xf32> -> vector<16x16xf32>
    %c0_20 = arith.constant 0 : index
    %c0_21 = arith.constant 0 : index
    %25 = vector.load %arg8[%c0_20, %c0_21] : memref<16x1xf32, #tpu.memory_space<vmem>>, vector<16x1xf32>
    %26 = vector.broadcast %25 : vector<16x1xf32> to vector<16x16xf32>
    %27 = arith.addf %24, %26 : vector<16x16xf32>
    %28 = arith.negf %27 : vector<16x16xf32>
    %29 = math.exp %28 : vector<16x16xf32>
    %cst_22 = arith.constant 1.000000e+00 : f32
    %30 = vector.broadcast %cst_22 : f32 to vector<16x16xf32>
    %31 = arith.addf %30, %29 : vector<16x16xf32>
    %32 = arith.divf %30, %31 : vector<16x16xf32>
    %c0_23 = arith.constant 0 : index
    %c0_24 = arith.constant 0 : index
    %33 = vector.load %arg9[%c0_23, %c0_24] : memref<16x8xf32, #tpu.memory_space<vmem>>, vector<16x8xf32>
    %34 = vector.extract_strided_slice %21 {offsets = [0, 16], sizes = [8, 16], strides = [1, 1]} : vector<8x32xf32> to vector<8x16xf32>
    %cst_25 = arith.constant dense<0.000000e+00> : vector<16x16xf32>
    %35 = tpu.matmul %33, %34, %cst_25 {dimension_numbers = #tpu.dot_dimension_numbers<[1], [0], [0], [1], [0, 0, 1, 1], [], []>} : vector<16x8xf32>, vector<8x16xf32>, vector<16x16xf32> -> vector<16x16xf32>
    %c0_26 = arith.constant 0 : index
    %c0_27 = arith.constant 0 : index
    %36 = vector.load %arg10[%c0_26, %c0_27] : memref<16x1xf32, #tpu.memory_space<vmem>>, vector<16x1xf32>
    %37 = vector.broadcast %36 : vector<16x1xf32> to vector<16x16xf32>
    %38 = arith.addf %35, %37 : vector<16x16xf32>
    %39 = arith.negf %38 : vector<16x16xf32>
    %40 = math.exp %39 : vector<16x16xf32>
    %cst_28 = arith.constant 1.000000e+00 : f32
    %41 = vector.broadcast %cst_28 : f32 to vector<16x16xf32>
    %42 = arith.addf %41, %40 : vector<16x16xf32>
    %43 = arith.divf %41, %42 : vector<16x16xf32>
    %cst_29 = arith.constant dense<0.000000e+00> : vector<16x256xf32>
    %44 = tpu.matmul %32, %3, %cst_29 {dimension_numbers = #tpu.dot_dimension_numbers<[1], [0], [0], [1], [0, 0, 1, 1], [], []>} : vector<16x16xf32>, vector<16x256xf32>, vector<16x256xf32> -> vector<16x256xf32>
    %cst_30 = arith.constant dense<0.000000e+00> : vector<16x256xf32>
    %45 = tpu.matmul %43, %4, %cst_30 {dimension_numbers = #tpu.dot_dimension_numbers<[1], [0], [0], [1], [0, 0, 1, 1], [], []>} : vector<16x16xf32>, vector<16x256xf32>, vector<16x256xf32> -> vector<16x256xf32>
    %46 = arith.mulf %44, %45 : vector<16x256xf32>
    %47 = vector.shape_cast %1 : vector<16x256xf32> to vector<8x2x256xf32>
    %48 = vector.shape_cast %6 : vector<16x16xf32> to vector<8x2x16xf32>
    %49 = vector.shape_cast %7 : vector<16x16xf32> to vector<8x2x16xf32>
    %50 = vector.extract_strided_slice %48 {offsets = [0, 0, 0], sizes = [8, 1, 16], strides = [1, 1, 1]} : vector<8x2x16xf32> to vector<8x1x16xf32>
    %51 = vector.shape_cast %50 : vector<8x1x16xf32> to vector<8x16xf32>
    %52 = vector.extract_strided_slice %48 {offsets = [0, 1, 0], sizes = [8, 1, 16], strides = [1, 1, 1]} : vector<8x2x16xf32> to vector<8x1x16xf32>
    %53 = vector.shape_cast %52 : vector<8x1x16xf32> to vector<8x16xf32>
    %54 = vector.extract_strided_slice %49 {offsets = [0, 0, 0], sizes = [8, 1, 16], strides = [1, 1, 1]} : vector<8x2x16xf32> to vector<8x1x16xf32>
    %55 = vector.shape_cast %54 : vector<8x1x16xf32> to vector<8x16xf32>
    %56 = vector.extract_strided_slice %49 {offsets = [0, 1, 0], sizes = [8, 1, 16], strides = [1, 1, 1]} : vector<8x2x16xf32> to vector<8x1x16xf32>
    %57 = vector.shape_cast %56 : vector<8x1x16xf32> to vector<8x16xf32>
    %c0_31 = arith.constant 0 : index
    %58 = memref.load %arg14[%c0_31] : memref<4xf32, #tpu.memory_space<smem>>
    %59 = vector.broadcast %58 : f32 to vector<8x16xf32>
    %60 = arith.mulf %59, %51 : vector<8x16xf32>
    %c0_32 = arith.constant 0 : index
    %61 = memref.load %arg14[%c0_32] : memref<4xf32, #tpu.memory_space<smem>>
    %62 = vector.broadcast %61 : f32 to vector<8x16xf32>
    %63 = arith.mulf %62, %55 : vector<8x16xf32>
    %c1 = arith.constant 1 : index
    %64 = memref.load %arg14[%c1] : memref<4xf32, #tpu.memory_space<smem>>
    %65 = vector.broadcast %64 : f32 to vector<8x16xf32>
    %66 = arith.mulf %65, %53 : vector<8x16xf32>
    %67 = arith.addf %60, %66 : vector<8x16xf32>
    %68 = vector.broadcast %64 : f32 to vector<8x16xf32>
    %69 = arith.mulf %68, %57 : vector<8x16xf32>
    %70 = arith.addf %63, %69 : vector<8x16xf32>
    %c0_33 = arith.constant 0 : index
    %71 = memref.load %arg15[%c0_33] : memref<2xf32, #tpu.memory_space<smem>>
    %72 = vector.broadcast %71 : f32 to vector<8x16xf32>
    %73 = arith.addf %67, %72 : vector<8x16xf32>
    %74 = arith.negf %73 : vector<8x16xf32>
    %75 = math.exp %74 : vector<8x16xf32>
    %cst_34 = arith.constant 1.000000e+00 : f32
    %76 = vector.broadcast %cst_34 : f32 to vector<8x16xf32>
    %77 = arith.addf %76, %75 : vector<8x16xf32>
    %78 = arith.divf %76, %77 : vector<8x16xf32>
    %79 = vector.broadcast %71 : f32 to vector<8x16xf32>
    %80 = arith.addf %70, %79 : vector<8x16xf32>
    %81 = arith.negf %80 : vector<8x16xf32>
    %82 = math.exp %81 : vector<8x16xf32>
    %cst_35 = arith.constant 1.000000e+00 : f32
    %83 = vector.broadcast %cst_35 : f32 to vector<8x16xf32>
    %84 = arith.addf %83, %82 : vector<8x16xf32>
    %85 = arith.divf %83, %84 : vector<8x16xf32>
    %c2 = arith.constant 2 : index
    %86 = memref.load %arg14[%c2] : memref<4xf32, #tpu.memory_space<smem>>
    %87 = vector.broadcast %86 : f32 to vector<8x16xf32>
    %88 = arith.mulf %87, %51 : vector<8x16xf32>
    %c2_36 = arith.constant 2 : index
    %89 = memref.load %arg14[%c2_36] : memref<4xf32, #tpu.memory_space<smem>>
    %90 = vector.broadcast %89 : f32 to vector<8x16xf32>
    %91 = arith.mulf %90, %55 : vector<8x16xf32>
    %c3 = arith.constant 3 : index
    %92 = memref.load %arg14[%c3] : memref<4xf32, #tpu.memory_space<smem>>
    %93 = vector.broadcast %92 : f32 to vector<8x16xf32>
    %94 = arith.mulf %93, %53 : vector<8x16xf32>
    %95 = arith.addf %88, %94 : vector<8x16xf32>
    %96 = vector.broadcast %92 : f32 to vector<8x16xf32>
    %97 = arith.mulf %96, %57 : vector<8x16xf32>
    %98 = arith.addf %91, %97 : vector<8x16xf32>
    %c1_37 = arith.constant 1 : index
    %99 = memref.load %arg15[%c1_37] : memref<2xf32, #tpu.memory_space<smem>>
    %100 = vector.broadcast %99 : f32 to vector<8x16xf32>
    %101 = arith.addf %95, %100 : vector<8x16xf32>
    %102 = arith.negf %101 : vector<8x16xf32>
    %103 = math.exp %102 : vector<8x16xf32>
    %cst_38 = arith.constant 1.000000e+00 : f32
    %104 = vector.broadcast %cst_38 : f32 to vector<8x16xf32>
    %105 = arith.addf %104, %103 : vector<8x16xf32>
    %106 = arith.divf %104, %105 : vector<8x16xf32>
    %107 = vector.broadcast %99 : f32 to vector<8x16xf32>
    %108 = arith.addf %98, %107 : vector<8x16xf32>
    %109 = arith.negf %108 : vector<8x16xf32>
    %110 = math.exp %109 : vector<8x16xf32>
    %cst_39 = arith.constant 1.000000e+00 : f32
    %111 = vector.broadcast %cst_39 : f32 to vector<8x16xf32>
    %112 = arith.addf %111, %110 : vector<8x16xf32>
    %113 = arith.divf %111, %112 : vector<8x16xf32>
    %cst_40 = arith.constant dense<0.000000e+00> : vector<8x256xf32>
    %114 = tpu.matmul %78, %3, %cst_40 {dimension_numbers = #tpu.dot_dimension_numbers<[1], [0], [0], [1], [0, 0, 1, 1], [], []>} : vector<8x16xf32>, vector<16x256xf32>, vector<8x256xf32> -> vector<8x256xf32>
    %cst_41 = arith.constant dense<0.000000e+00> : vector<8x256xf32>
    %115 = tpu.matmul %85, %4, %cst_41 {dimension_numbers = #tpu.dot_dimension_numbers<[1], [0], [0], [1], [0, 0, 1, 1], [], []>} : vector<8x16xf32>, vector<16x256xf32>, vector<8x256xf32> -> vector<8x256xf32>
    %116 = arith.mulf %114, %115 : vector<8x256xf32>
    %117 = vector.extract_strided_slice %47 {offsets = [0, 0, 0], sizes = [8, 1, 256], strides = [1, 1, 1]} : vector<8x2x256xf32> to vector<8x1x256xf32>
    %118 = vector.shape_cast %117 : vector<8x1x256xf32> to vector<8x256xf32>
    %119 = arith.mulf %118, %116 : vector<8x256xf32>
    %cst_42 = arith.constant dense<0.000000e+00> : vector<8xf32>
    %120 = vector.multi_reduction <add>, %119, %cst_42 [1] : vector<8x256xf32> to vector<8xf32>
    %121 = vector.shape_cast %120 : vector<8xf32> to vector<8x1xf32>
    %cst_43 = arith.constant 2.560000e+02 : f32
    %122 = vector.broadcast %cst_43 : f32 to vector<8x1xf32>
    %123 = arith.divf %121, %122 : vector<8x1xf32>
    %124 = vector.broadcast %123 : vector<8x1xf32> to vector<8x256xf32>
    %125 = arith.subf %119, %124 : vector<8x256xf32>
    %126 = arith.mulf %125, %125 : vector<8x256xf32>
    %cst_44 = arith.constant dense<0.000000e+00> : vector<8xf32>
    %127 = vector.multi_reduction <add>, %126, %cst_44 [1] : vector<8x256xf32> to vector<8xf32>
    %128 = vector.shape_cast %127 : vector<8xf32> to vector<8x1xf32>
    %cst_45 = arith.constant 2.560000e+02 : f32
    %129 = vector.broadcast %cst_45 : f32 to vector<8x1xf32>
    %130 = arith.divf %128, %129 : vector<8x1xf32>
    %131 = vector.broadcast %123 : vector<8x1xf32> to vector<8x256xf32>
    %132 = arith.subf %119, %131 : vector<8x256xf32>
    %cst_46 = arith.constant 9.99999974E-6 : f32
    %133 = vector.broadcast %cst_46 : f32 to vector<8x1xf32>
    %134 = arith.addf %130, %133 : vector<8x1xf32>
    %135 = math.rsqrt %134 : vector<8x1xf32>
    %136 = vector.broadcast %135 : vector<8x1xf32> to vector<8x256xf32>
    %137 = arith.mulf %132, %136 : vector<8x256xf32>
    %c0_47 = arith.constant 0 : index
    %138 = memref.load %arg16[%c0_47] : memref<2xf32, #tpu.memory_space<smem>>
    %139 = vector.broadcast %138 : f32 to vector<8x256xf32>
    %140 = arith.mulf %137, %139 : vector<8x256xf32>
    %c0_48 = arith.constant 0 : index
    %141 = memref.load %arg17[%c0_48] : memref<2xf32, #tpu.memory_space<smem>>
    %142 = vector.broadcast %141 : f32 to vector<8x256xf32>
    %143 = arith.addf %140, %142 : vector<8x256xf32>
    %cst_49 = arith.constant dense<0.000000e+00> : vector<8x256xf32>
    %144 = tpu.matmul %106, %3, %cst_49 {dimension_numbers = #tpu.dot_dimension_numbers<[1], [0], [0], [1], [0, 0, 1, 1], [], []>} : vector<8x16xf32>, vector<16x256xf32>, vector<8x256xf32> -> vector<8x256xf32>
    %cst_50 = arith.constant dense<0.000000e+00> : vector<8x256xf32>
    %145 = tpu.matmul %113, %4, %cst_50 {dimension_numbers = #tpu.dot_dimension_numbers<[1], [0], [0], [1], [0, 0, 1, 1], [], []>} : vector<8x16xf32>, vector<16x256xf32>, vector<8x256xf32> -> vector<8x256xf32>
    %146 = arith.mulf %144, %145 : vector<8x256xf32>
    %147 = vector.extract_strided_slice %47 {offsets = [0, 1, 0], sizes = [8, 1, 256], strides = [1, 1, 1]} : vector<8x2x256xf32> to vector<8x1x256xf32>
    %148 = vector.shape_cast %147 : vector<8x1x256xf32> to vector<8x256xf32>
    %149 = arith.mulf %148, %146 : vector<8x256xf32>
    %cst_51 = arith.constant dense<0.000000e+00> : vector<8xf32>
    %150 = vector.multi_reduction <add>, %149, %cst_51 [1] : vector<8x256xf32> to vector<8xf32>
    %151 = vector.shape_cast %150 : vector<8xf32> to vector<8x1xf32>
    %cst_52 = arith.constant 2.560000e+02 : f32
    %152 = vector.broadcast %cst_52 : f32 to vector<8x1xf32>
    %153 = arith.divf %151, %152 : vector<8x1xf32>
    %154 = vector.broadcast %153 : vector<8x1xf32> to vector<8x256xf32>
    %155 = arith.subf %149, %154 : vector<8x256xf32>
    %156 = arith.mulf %155, %155 : vector<8x256xf32>
    %cst_53 = arith.constant dense<0.000000e+00> : vector<8xf32>
    %157 = vector.multi_reduction <add>, %156, %cst_53 [1] : vector<8x256xf32> to vector<8xf32>
    %158 = vector.shape_cast %157 : vector<8xf32> to vector<8x1xf32>
    %cst_54 = arith.constant 2.560000e+02 : f32
    %159 = vector.broadcast %cst_54 : f32 to vector<8x1xf32>
    %160 = arith.divf %158, %159 : vector<8x1xf32>
    %161 = vector.broadcast %153 : vector<8x1xf32> to vector<8x256xf32>
    %162 = arith.subf %149, %161 : vector<8x256xf32>
    %cst_55 = arith.constant 9.99999974E-6 : f32
    %163 = vector.broadcast %cst_55 : f32 to vector<8x1xf32>
    %164 = arith.addf %160, %163 : vector<8x1xf32>
    %165 = math.rsqrt %164 : vector<8x1xf32>
    %166 = vector.broadcast %165 : vector<8x1xf32> to vector<8x256xf32>
    %167 = arith.mulf %162, %166 : vector<8x256xf32>
    %c1_56 = arith.constant 1 : index
    %168 = memref.load %arg16[%c1_56] : memref<2xf32, #tpu.memory_space<smem>>
    %169 = vector.broadcast %168 : f32 to vector<8x256xf32>
    %170 = arith.mulf %167, %169 : vector<8x256xf32>
    %c1_57 = arith.constant 1 : index
    %171 = memref.load %arg17[%c1_57] : memref<2xf32, #tpu.memory_space<smem>>
    %172 = vector.broadcast %171 : f32 to vector<8x256xf32>
    %173 = arith.addf %170, %172 : vector<8x256xf32>
    %cst_58 = arith.constant 0.000000e+00 : f32
    %174 = vector.broadcast %cst_58 : f32 to vector<8x1x16xf32>
    %cst_59 = arith.constant 0.000000e+00 : f32
    %175 = vector.broadcast %cst_59 : f32 to vector<8x18x1xf32>
    %176 = vector.extract_strided_slice %47 {offsets = [0, 0, 0], sizes = [8, 1, 256], strides = [1, 1, 1]} : vector<8x2x256xf32> to vector<8x1x256xf32>
    %177 = vector.shape_cast %176 : vector<8x1x256xf32> to vector<8x256xf32>
    %178 = vector.shape_cast %177 : vector<8x256xf32> to vector<8x16x16xf32>
    %179 = tpu.concatenate %174, %178, %174 in 1 : vector<8x1x16xf32>, vector<8x16x16xf32>, vector<8x1x16xf32> -> vector<8x18x16xf32>
    %180 = tpu.concatenate %175, %179, %175 in 2 : vector<8x18x1xf32>, vector<8x18x16xf32>, vector<8x18x1xf32> -> vector<8x18x18xf32>
    %181 = vector.extract_strided_slice %180 {offsets = [0, 0, 0], sizes = [8, 16, 16], strides = [1, 1, 1]} : vector<8x18x18xf32> to vector<8x16x16xf32>
    %182 = vector.extract_strided_slice %180 {offsets = [0, 0, 1], sizes = [8, 16, 16], strides = [1, 1, 1]} : vector<8x18x18xf32> to vector<8x16x16xf32>
    %183 = vector.extract_strided_slice %180 {offsets = [0, 0, 2], sizes = [8, 16, 16], strides = [1, 1, 1]} : vector<8x18x18xf32> to vector<8x16x16xf32>
    %184 = vector.extract_strided_slice %180 {offsets = [0, 1, 0], sizes = [8, 16, 16], strides = [1, 1, 1]} : vector<8x18x18xf32> to vector<8x16x16xf32>
    %185 = vector.extract_strided_slice %180 {offsets = [0, 1, 1], sizes = [8, 16, 16], strides = [1, 1, 1]} : vector<8x18x18xf32> to vector<8x16x16xf32>
    %186 = vector.extract_strided_slice %180 {offsets = [0, 1, 2], sizes = [8, 16, 16], strides = [1, 1, 1]} : vector<8x18x18xf32> to vector<8x16x16xf32>
    %187 = vector.extract_strided_slice %180 {offsets = [0, 2, 0], sizes = [8, 16, 16], strides = [1, 1, 1]} : vector<8x18x18xf32> to vector<8x16x16xf32>
    %188 = vector.extract_strided_slice %180 {offsets = [0, 2, 1], sizes = [8, 16, 16], strides = [1, 1, 1]} : vector<8x18x18xf32> to vector<8x16x16xf32>
    %189 = vector.extract_strided_slice %180 {offsets = [0, 2, 2], sizes = [8, 16, 16], strides = [1, 1, 1]} : vector<8x18x18xf32> to vector<8x16x16xf32>
    %190 = vector.extract_strided_slice %47 {offsets = [0, 1, 0], sizes = [8, 1, 256], strides = [1, 1, 1]} : vector<8x2x256xf32> to vector<8x1x256xf32>
    %191 = vector.shape_cast %190 : vector<8x1x256xf32> to vector<8x256xf32>
    %192 = vector.shape_cast %191 : vector<8x256xf32> to vector<8x16x16xf32>
    %193 = tpu.concatenate %174, %192, %174 in 1 : vector<8x1x16xf32>, vector<8x16x16xf32>, vector<8x1x16xf32> -> vector<8x18x16xf32>
    %194 = tpu.concatenate %175, %193, %175 in 2 : vector<8x18x1xf32>, vector<8x18x16xf32>, vector<8x18x1xf32> -> vector<8x18x18xf32>
    %195 = vector.extract_strided_slice %194 {offsets = [0, 0, 0], sizes = [8, 16, 16], strides = [1, 1, 1]} : vector<8x18x18xf32> to vector<8x16x16xf32>
    %196 = vector.extract_strided_slice %194 {offsets = [0, 0, 1], sizes = [8, 16, 16], strides = [1, 1, 1]} : vector<8x18x18xf32> to vector<8x16x16xf32>
    %197 = vector.extract_strided_slice %194 {offsets = [0, 0, 2], sizes = [8, 16, 16], strides = [1, 1, 1]} : vector<8x18x18xf32> to vector<8x16x16xf32>
    %198 = vector.extract_strided_slice %194 {offsets = [0, 1, 0], sizes = [8, 16, 16], strides = [1, 1, 1]} : vector<8x18x18xf32> to vector<8x16x16xf32>
    %199 = vector.extract_strided_slice %194 {offsets = [0, 1, 1], sizes = [8, 16, 16], strides = [1, 1, 1]} : vector<8x18x18xf32> to vector<8x16x16xf32>
    %200 = vector.extract_strided_slice %194 {offsets = [0, 1, 2], sizes = [8, 16, 16], strides = [1, 1, 1]} : vector<8x18x18xf32> to vector<8x16x16xf32>
    %201 = vector.extract_strided_slice %194 {offsets = [0, 2, 0], sizes = [8, 16, 16], strides = [1, 1, 1]} : vector<8x18x18xf32> to vector<8x16x16xf32>
    %202 = vector.extract_strided_slice %194 {offsets = [0, 2, 1], sizes = [8, 16, 16], strides = [1, 1, 1]} : vector<8x18x18xf32> to vector<8x16x16xf32>
    %203 = vector.extract_strided_slice %194 {offsets = [0, 2, 2], sizes = [8, 16, 16], strides = [1, 1, 1]} : vector<8x18x18xf32> to vector<8x16x16xf32>
    %c0_60 = arith.constant 0 : index
    %204 = memref.load %arg18[%c0_60] : memref<36xf32, #tpu.memory_space<smem>>
    %205 = vector.broadcast %204 : f32 to vector<8x16x16xf32>
    %206 = arith.mulf %205, %181 : vector<8x16x16xf32>
    %c1_61 = arith.constant 1 : index
    %207 = memref.load %arg18[%c1_61] : memref<36xf32, #tpu.memory_space<smem>>
    %208 = vector.broadcast %207 : f32 to vector<8x16x16xf32>
    %209 = arith.mulf %208, %182 : vector<8x16x16xf32>
    %210 = arith.addf %206, %209 : vector<8x16x16xf32>
    %c2_62 = arith.constant 2 : index
    %211 = memref.load %arg18[%c2_62] : memref<36xf32, #tpu.memory_space<smem>>
    %212 = vector.broadcast %211 : f32 to vector<8x16x16xf32>
    %213 = arith.mulf %212, %183 : vector<8x16x16xf32>
    %214 = arith.addf %210, %213 : vector<8x16x16xf32>
    %c3_63 = arith.constant 3 : index
    %215 = memref.load %arg18[%c3_63] : memref<36xf32, #tpu.memory_space<smem>>
    %216 = vector.broadcast %215 : f32 to vector<8x16x16xf32>
    %217 = arith.mulf %216, %184 : vector<8x16x16xf32>
    %218 = arith.addf %214, %217 : vector<8x16x16xf32>
    %c4 = arith.constant 4 : index
    %219 = memref.load %arg18[%c4] : memref<36xf32, #tpu.memory_space<smem>>
    %220 = vector.broadcast %219 : f32 to vector<8x16x16xf32>
    %221 = arith.mulf %220, %185 : vector<8x16x16xf32>
    %222 = arith.addf %218, %221 : vector<8x16x16xf32>
    %c5 = arith.constant 5 : index
    %223 = memref.load %arg18[%c5] : memref<36xf32, #tpu.memory_space<smem>>
    %224 = vector.broadcast %223 : f32 to vector<8x16x16xf32>
    %225 = arith.mulf %224, %186 : vector<8x16x16xf32>
    %226 = arith.addf %222, %225 : vector<8x16x16xf32>
    %c6 = arith.constant 6 : index
    %227 = memref.load %arg18[%c6] : memref<36xf32, #tpu.memory_space<smem>>
    %228 = vector.broadcast %227 : f32 to vector<8x16x16xf32>
    %229 = arith.mulf %228, %187 : vector<8x16x16xf32>
    %230 = arith.addf %226, %229 : vector<8x16x16xf32>
    %c7 = arith.constant 7 : index
    %231 = memref.load %arg18[%c7] : memref<36xf32, #tpu.memory_space<smem>>
    %232 = vector.broadcast %231 : f32 to vector<8x16x16xf32>
    %233 = arith.mulf %232, %188 : vector<8x16x16xf32>
    %234 = arith.addf %230, %233 : vector<8x16x16xf32>
    %c8 = arith.constant 8 : index
    %235 = memref.load %arg18[%c8] : memref<36xf32, #tpu.memory_space<smem>>
    %236 = vector.broadcast %235 : f32 to vector<8x16x16xf32>
    %237 = arith.mulf %236, %189 : vector<8x16x16xf32>
    %238 = arith.addf %234, %237 : vector<8x16x16xf32>
    %c9 = arith.constant 9 : index
    %239 = memref.load %arg18[%c9] : memref<36xf32, #tpu.memory_space<smem>>
    %240 = vector.broadcast %239 : f32 to vector<8x16x16xf32>
    %241 = arith.mulf %240, %195 : vector<8x16x16xf32>
    %242 = arith.addf %238, %241 : vector<8x16x16xf32>
    %c10 = arith.constant 10 : index
    %243 = memref.load %arg18[%c10] : memref<36xf32, #tpu.memory_space<smem>>
    %244 = vector.broadcast %243 : f32 to vector<8x16x16xf32>
    %245 = arith.mulf %244, %196 : vector<8x16x16xf32>
    %246 = arith.addf %242, %245 : vector<8x16x16xf32>
    %c11 = arith.constant 11 : index
    %247 = memref.load %arg18[%c11] : memref<36xf32, #tpu.memory_space<smem>>
    %248 = vector.broadcast %247 : f32 to vector<8x16x16xf32>
    %249 = arith.mulf %248, %197 : vector<8x16x16xf32>
    %250 = arith.addf %246, %249 : vector<8x16x16xf32>
    %c12 = arith.constant 12 : index
    %251 = memref.load %arg18[%c12] : memref<36xf32, #tpu.memory_space<smem>>
    %252 = vector.broadcast %251 : f32 to vector<8x16x16xf32>
    %253 = arith.mulf %252, %198 : vector<8x16x16xf32>
    %254 = arith.addf %250, %253 : vector<8x16x16xf32>
    %c13 = arith.constant 13 : index
    %255 = memref.load %arg18[%c13] : memref<36xf32, #tpu.memory_space<smem>>
    %256 = vector.broadcast %255 : f32 to vector<8x16x16xf32>
    %257 = arith.mulf %256, %199 : vector<8x16x16xf32>
    %258 = arith.addf %254, %257 : vector<8x16x16xf32>
    %c14 = arith.constant 14 : index
    %259 = memref.load %arg18[%c14] : memref<36xf32, #tpu.memory_space<smem>>
    %260 = vector.broadcast %259 : f32 to vector<8x16x16xf32>
    %261 = arith.mulf %260, %200 : vector<8x16x16xf32>
    %262 = arith.addf %258, %261 : vector<8x16x16xf32>
    %c15 = arith.constant 15 : index
    %263 = memref.load %arg18[%c15] : memref<36xf32, #tpu.memory_space<smem>>
    %264 = vector.broadcast %263 : f32 to vector<8x16x16xf32>
    %265 = arith.mulf %264, %201 : vector<8x16x16xf32>
    %266 = arith.addf %262, %265 : vector<8x16x16xf32>
    %c16 = arith.constant 16 : index
    %267 = memref.load %arg18[%c16] : memref<36xf32, #tpu.memory_space<smem>>
    %268 = vector.broadcast %267 : f32 to vector<8x16x16xf32>
    %269 = arith.mulf %268, %202 : vector<8x16x16xf32>
    %270 = arith.addf %266, %269 : vector<8x16x16xf32>
    %c17 = arith.constant 17 : index
    %271 = memref.load %arg18[%c17] : memref<36xf32, #tpu.memory_space<smem>>
    %272 = vector.broadcast %271 : f32 to vector<8x16x16xf32>
    %273 = arith.mulf %272, %203 : vector<8x16x16xf32>
    %274 = arith.addf %270, %273 : vector<8x16x16xf32>
    %c0_64 = arith.constant 0 : index
    %275 = memref.load %arg19[%c0_64] : memref<2xf32, #tpu.memory_space<smem>>
    %276 = vector.broadcast %275 : f32 to vector<8x16x16xf32>
    %277 = arith.addf %274, %276 : vector<8x16x16xf32>
    %278 = vector.shape_cast %277 : vector<8x16x16xf32> to vector<8x256xf32>
    %c18 = arith.constant 18 : index
    %279 = memref.load %arg18[%c18] : memref<36xf32, #tpu.memory_space<smem>>
    %280 = vector.broadcast %279 : f32 to vector<8x16x16xf32>
    %281 = arith.mulf %280, %181 : vector<8x16x16xf32>
    %c19 = arith.constant 19 : index
    %282 = memref.load %arg18[%c19] : memref<36xf32, #tpu.memory_space<smem>>
    %283 = vector.broadcast %282 : f32 to vector<8x16x16xf32>
    %284 = arith.mulf %283, %182 : vector<8x16x16xf32>
    %285 = arith.addf %281, %284 : vector<8x16x16xf32>
    %c20 = arith.constant 20 : index
    %286 = memref.load %arg18[%c20] : memref<36xf32, #tpu.memory_space<smem>>
    %287 = vector.broadcast %286 : f32 to vector<8x16x16xf32>
    %288 = arith.mulf %287, %183 : vector<8x16x16xf32>
    %289 = arith.addf %285, %288 : vector<8x16x16xf32>
    %c21 = arith.constant 21 : index
    %290 = memref.load %arg18[%c21] : memref<36xf32, #tpu.memory_space<smem>>
    %291 = vector.broadcast %290 : f32 to vector<8x16x16xf32>
    %292 = arith.mulf %291, %184 : vector<8x16x16xf32>
    %293 = arith.addf %289, %292 : vector<8x16x16xf32>
    %c22 = arith.constant 22 : index
    %294 = memref.load %arg18[%c22] : memref<36xf32, #tpu.memory_space<smem>>
    %295 = vector.broadcast %294 : f32 to vector<8x16x16xf32>
    %296 = arith.mulf %295, %185 : vector<8x16x16xf32>
    %297 = arith.addf %293, %296 : vector<8x16x16xf32>
    %c23 = arith.constant 23 : index
    %298 = memref.load %arg18[%c23] : memref<36xf32, #tpu.memory_space<smem>>
    %299 = vector.broadcast %298 : f32 to vector<8x16x16xf32>
    %300 = arith.mulf %299, %186 : vector<8x16x16xf32>
    %301 = arith.addf %297, %300 : vector<8x16x16xf32>
    %c24 = arith.constant 24 : index
    %302 = memref.load %arg18[%c24] : memref<36xf32, #tpu.memory_space<smem>>
    %303 = vector.broadcast %302 : f32 to vector<8x16x16xf32>
    %304 = arith.mulf %303, %187 : vector<8x16x16xf32>
    %305 = arith.addf %301, %304 : vector<8x16x16xf32>
    %c25 = arith.constant 25 : index
    %306 = memref.load %arg18[%c25] : memref<36xf32, #tpu.memory_space<smem>>
    %307 = vector.broadcast %306 : f32 to vector<8x16x16xf32>
    %308 = arith.mulf %307, %188 : vector<8x16x16xf32>
    %309 = arith.addf %305, %308 : vector<8x16x16xf32>
    %c26 = arith.constant 26 : index
    %310 = memref.load %arg18[%c26] : memref<36xf32, #tpu.memory_space<smem>>
    %311 = vector.broadcast %310 : f32 to vector<8x16x16xf32>
    %312 = arith.mulf %311, %189 : vector<8x16x16xf32>
    %313 = arith.addf %309, %312 : vector<8x16x16xf32>
    %c27 = arith.constant 27 : index
    %314 = memref.load %arg18[%c27] : memref<36xf32, #tpu.memory_space<smem>>
    %315 = vector.broadcast %314 : f32 to vector<8x16x16xf32>
    %316 = arith.mulf %315, %195 : vector<8x16x16xf32>
    %317 = arith.addf %313, %316 : vector<8x16x16xf32>
    %c28 = arith.constant 28 : index
    %318 = memref.load %arg18[%c28] : memref<36xf32, #tpu.memory_space<smem>>
    %319 = vector.broadcast %318 : f32 to vector<8x16x16xf32>
    %320 = arith.mulf %319, %196 : vector<8x16x16xf32>
    %321 = arith.addf %317, %320 : vector<8x16x16xf32>
    %c29 = arith.constant 29 : index
    %322 = memref.load %arg18[%c29] : memref<36xf32, #tpu.memory_space<smem>>
    %323 = vector.broadcast %322 : f32 to vector<8x16x16xf32>
    %324 = arith.mulf %323, %197 : vector<8x16x16xf32>
    %325 = arith.addf %321, %324 : vector<8x16x16xf32>
    %c30 = arith.constant 30 : index
    %326 = memref.load %arg18[%c30] : memref<36xf32, #tpu.memory_space<smem>>
    %327 = vector.broadcast %326 : f32 to vector<8x16x16xf32>
    %328 = arith.mulf %327, %198 : vector<8x16x16xf32>
    %329 = arith.addf %325, %328 : vector<8x16x16xf32>
    %c31 = arith.constant 31 : index
    %330 = memref.load %arg18[%c31] : memref<36xf32, #tpu.memory_space<smem>>
    %331 = vector.broadcast %330 : f32 to vector<8x16x16xf32>
    %332 = arith.mulf %331, %199 : vector<8x16x16xf32>
    %333 = arith.addf %329, %332 : vector<8x16x16xf32>
    %c32 = arith.constant 32 : index
    %334 = memref.load %arg18[%c32] : memref<36xf32, #tpu.memory_space<smem>>
    %335 = vector.broadcast %334 : f32 to vector<8x16x16xf32>
    %336 = arith.mulf %335, %200 : vector<8x16x16xf32>
    %337 = arith.addf %333, %336 : vector<8x16x16xf32>
    %c33 = arith.constant 33 : index
    %338 = memref.load %arg18[%c33] : memref<36xf32, #tpu.memory_space<smem>>
    %339 = vector.broadcast %338 : f32 to vector<8x16x16xf32>
    %340 = arith.mulf %339, %201 : vector<8x16x16xf32>
    %341 = arith.addf %337, %340 : vector<8x16x16xf32>
    %c34 = arith.constant 34 : index
    %342 = memref.load %arg18[%c34] : memref<36xf32, #tpu.memory_space<smem>>
    %343 = vector.broadcast %342 : f32 to vector<8x16x16xf32>
    %344 = arith.mulf %343, %202 : vector<8x16x16xf32>
    %345 = arith.addf %341, %344 : vector<8x16x16xf32>
    %c35 = arith.constant 35 : index
    %346 = memref.load %arg18[%c35] : memref<36xf32, #tpu.memory_space<smem>>
    %347 = vector.broadcast %346 : f32 to vector<8x16x16xf32>
    %348 = arith.mulf %347, %203 : vector<8x16x16xf32>
    %349 = arith.addf %345, %348 : vector<8x16x16xf32>
    %c1_65 = arith.constant 1 : index
    %350 = memref.load %arg19[%c1_65] : memref<2xf32, #tpu.memory_space<smem>>
    %351 = vector.broadcast %350 : f32 to vector<8x16x16xf32>
    %352 = arith.addf %349, %351 : vector<8x16x16xf32>
    %353 = vector.shape_cast %352 : vector<8x16x16xf32> to vector<8x256xf32>
    %cst_66 = arith.constant dense<0.000000e+00> : vector<8xf32>
    %354 = vector.multi_reduction <add>, %278, %cst_66 [1] : vector<8x256xf32> to vector<8xf32>
    %355 = vector.shape_cast %354 : vector<8xf32> to vector<8x1xf32>
    %cst_67 = arith.constant 2.560000e+02 : f32
    %356 = vector.broadcast %cst_67 : f32 to vector<8x1xf32>
    %357 = arith.divf %355, %356 : vector<8x1xf32>
    %cst_68 = arith.constant dense<0.000000e+00> : vector<8xf32>
    %358 = vector.multi_reduction <add>, %353, %cst_68 [1] : vector<8x256xf32> to vector<8xf32>
    %359 = vector.shape_cast %358 : vector<8xf32> to vector<8x1xf32>
    %cst_69 = arith.constant 2.560000e+02 : f32
    %360 = vector.broadcast %cst_69 : f32 to vector<8x1xf32>
    %361 = arith.divf %359, %360 : vector<8x1xf32>
    %362 = arith.maximumf %357, %361 : vector<8x1xf32>
    %363 = arith.subf %357, %362 : vector<8x1xf32>
    %364 = math.exp %363 : vector<8x1xf32>
    %365 = arith.subf %361, %362 : vector<8x1xf32>
    %366 = math.exp %365 : vector<8x1xf32>
    %367 = arith.addf %364, %366 : vector<8x1xf32>
    %cst_70 = arith.constant 1.000000e+00 : f32
    %368 = vector.broadcast %cst_70 : f32 to vector<8x1xf32>
    %369 = arith.divf %368, %367 : vector<8x1xf32>
    %370 = arith.mulf %364, %369 : vector<8x1xf32>
    %371 = arith.mulf %366, %369 : vector<8x1xf32>
    %c0_71 = arith.constant 0 : index
    %372 = memref.load %arg20[%c0_71] : memref<2xf32, #tpu.memory_space<smem>>
    %373 = vector.broadcast %372 : f32 to vector<8x256xf32>
    %374 = arith.mulf %373, %278 : vector<8x256xf32>
    %375 = vector.broadcast %370 : vector<8x1xf32> to vector<8x256xf32>
    %376 = arith.mulf %375, %143 : vector<8x256xf32>
    %377 = arith.addf %374, %376 : vector<8x256xf32>
    %c1_72 = arith.constant 1 : index
    %378 = memref.load %arg20[%c1_72] : memref<2xf32, #tpu.memory_space<smem>>
    %379 = vector.broadcast %378 : f32 to vector<8x256xf32>
    %380 = arith.mulf %379, %353 : vector<8x256xf32>
    %381 = arith.addf %377, %380 : vector<8x256xf32>
    %382 = vector.broadcast %371 : vector<8x1xf32> to vector<8x256xf32>
    %383 = arith.mulf %382, %173 : vector<8x256xf32>
    %384 = arith.addf %381, %383 : vector<8x256xf32>
    %385 = arith.negf %384 : vector<8x256xf32>
    %386 = math.exp %385 : vector<8x256xf32>
    %cst_73 = arith.constant 1.000000e+00 : f32
    %387 = vector.broadcast %cst_73 : f32 to vector<8x256xf32>
    %388 = arith.addf %387, %386 : vector<8x256xf32>
    %389 = arith.divf %387, %388 : vector<8x256xf32>
    %c0_74 = arith.constant 0 : index
    %c0_75 = arith.constant 0 : index
    %390 = vector.load %arg11[%c0_74, %c0_75] : memref<32x16xf32, #tpu.memory_space<vmem>>, vector<32x16xf32>
    %391 = arith.mulf %1, %46 : vector<16x256xf32>
    %cst_76 = arith.constant dense<0.000000e+00> : vector<32x256xf32>
    %392 = tpu.matmul %390, %391, %cst_76 {dimension_numbers = #tpu.dot_dimension_numbers<[1], [0], [0], [1], [0, 0, 1, 1], [], []>} : vector<32x16xf32>, vector<16x256xf32>, vector<32x256xf32> -> vector<32x256xf32>
    %c0_77 = arith.constant 0 : index
    %c0_78 = arith.constant 0 : index
    %393 = vector.load %arg13[%c0_77, %c0_78] : memref<32x1xf32, #tpu.memory_space<vmem>>, vector<32x1xf32>
    %394 = vector.broadcast %393 : vector<32x1xf32> to vector<32x256xf32>
    %395 = arith.addf %392, %394 : vector<32x256xf32>
    %c0_79 = arith.constant 0 : index
    %c0_80 = arith.constant 0 : index
    %c0_81 = arith.constant 0 : index
    %396 = vector.load %arg12[%c0_79, %c0_80, %c0_81] : memref<2x32x8xf32, #tpu.memory_space<vmem>>, vector<1x32x8xf32>
    %397 = vector.shape_cast %396 : vector<1x32x8xf32> to vector<32x8xf32>
    %398 = vector.extract_strided_slice %47 {offsets = [0, 0, 0], sizes = [8, 1, 256], strides = [1, 1, 1]} : vector<8x2x256xf32> to vector<8x1x256xf32>
    %399 = vector.shape_cast %398 : vector<8x1x256xf32> to vector<8x256xf32>
    %400 = arith.mulf %399, %389 : vector<8x256xf32>
    %cst_82 = arith.constant dense<0.000000e+00> : vector<32x256xf32>
    %401 = tpu.matmul %397, %400, %cst_82 {dimension_numbers = #tpu.dot_dimension_numbers<[1], [0], [0], [1], [0, 0, 1, 1], [], []>} : vector<32x8xf32>, vector<8x256xf32>, vector<32x256xf32> -> vector<32x256xf32>
    %402 = arith.addf %395, %401 : vector<32x256xf32>
    %c1_83 = arith.constant 1 : index
    %c0_84 = arith.constant 0 : index
    %c0_85 = arith.constant 0 : index
    %403 = vector.load %arg12[%c1_83, %c0_84, %c0_85] : memref<2x32x8xf32, #tpu.memory_space<vmem>>, vector<1x32x8xf32>
    %404 = vector.shape_cast %403 : vector<1x32x8xf32> to vector<32x8xf32>
    %405 = vector.extract_strided_slice %47 {offsets = [0, 1, 0], sizes = [8, 1, 256], strides = [1, 1, 1]} : vector<8x2x256xf32> to vector<8x1x256xf32>
    %406 = vector.shape_cast %405 : vector<8x1x256xf32> to vector<8x256xf32>
    %407 = arith.mulf %406, %389 : vector<8x256xf32>
    %cst_86 = arith.constant dense<0.000000e+00> : vector<32x256xf32>
    %408 = tpu.matmul %404, %407, %cst_86 {dimension_numbers = #tpu.dot_dimension_numbers<[1], [0], [0], [1], [0, 0, 1, 1], [], []>} : vector<32x8xf32>, vector<8x256xf32>, vector<32x256xf32> -> vector<32x256xf32>
    %409 = arith.addf %402, %408 : vector<32x256xf32>
    %410 = arith.negf %409 : vector<32x256xf32>
    %411 = math.exp %410 : vector<32x256xf32>
    %cst_87 = arith.constant 1.000000e+00 : f32
    %412 = vector.broadcast %cst_87 : f32 to vector<32x256xf32>
    %413 = arith.addf %412, %411 : vector<32x256xf32>
    %414 = arith.divf %412, %413 : vector<32x256xf32>
    %415 = arith.mulf %409, %414 : vector<32x256xf32>
    %c0_88 = arith.constant 0 : index
    %c0_89 = arith.constant 0 : index
    %c0_90 = arith.constant 0 : index
    %416 = vector.load %arg21[%c0_88, %c0_89, %c0_90] : memref<1x32x256xf32, #tpu.memory_space<vmem>>, vector<1x32x256xf32>
    %417 = vector.shape_cast %416 : vector<1x32x256xf32> to vector<32x256xf32>
    %418 = vector.shape_cast %415 : vector<32x256xf32> to vector<1x32x256xf32>
    tpu.vector_store %arg21[%c0_88, %c0_89, %c0_90], %418 {strides = array<i32>} : memref<1x32x256xf32, #tpu.memory_space<vmem>>, vector<1x32x256xf32>,
    return
  }
  func.func @transform_0(%arg0: i32) -> (i32, i32, i32) {
    %c0_i32 = arith.constant 0 : i32
    %c0_i32_0 = arith.constant 0 : i32
    %c0_i32_1 = arith.constant 0 : i32
    return %arg0, %c0_i32, %c0_i32_0 : i32, i32, i32
  }
  func.func @transform_1(%arg0: i32) -> (i32, i32) {
    %c0_i32 = arith.constant 0 : i32
    %c0_i32_0 = arith.constant 0 : i32
    %c0_i32_1 = arith.constant 0 : i32
    return %c0_i32, %c0_i32_0 : i32, i32
  }
  func.func @transform_2(%arg0: i32) -> (i32, i32) {
    %c0_i32 = arith.constant 0 : i32
    %c0_i32_0 = arith.constant 0 : i32
    %c0_i32_1 = arith.constant 0 : i32
    return %c0_i32, %c0_i32_0 : i32, i32
  }
  func.func @transform_3(%arg0: i32) -> (i32, i32) {
    %c0_i32 = arith.constant 0 : i32
    %c0_i32_0 = arith.constant 0 : i32
    %c0_i32_1 = arith.constant 0 : i32
    return %c0_i32, %c0_i32_0 : i32, i32
  }
  func.func @transform_4(%arg0: i32) -> (i32, i32) {
    %c0_i32 = arith.constant 0 : i32
    %c0_i32_0 = arith.constant 0 : i32
    %c0_i32_1 = arith.constant 0 : i32
    return %c0_i32, %c0_i32_0 : i32, i32
  }
  func.func @transform_5(%arg0: i32) -> (i32, i32) {
    %c0_i32 = arith.constant 0 : i32
    %c0_i32_0 = arith.constant 0 : i32
    %c0_i32_1 = arith.constant 0 : i32
    return %c0_i32, %c0_i32_0 : i32, i32
  }
  func.func @transform_6(%arg0: i32) -> (i32, i32) {
    %c0_i32 = arith.constant 0 : i32
    %c0_i32_0 = arith.constant 0 : i32
    %c0_i32_1 = arith.constant 0 : i32
    return %c0_i32, %c0_i32_0 : i32, i32
  }
  func.func @transform_7(%arg0: i32) -> (i32, i32) {
    %c0_i32 = arith.constant 0 : i32
    %c0_i32_0 = arith.constant 0 : i32
    %c0_i32_1 = arith.constant 0 : i32
    return %c0_i32, %c0_i32_0 : i32, i32
  }
  func.func @transform_8(%arg0: i32) -> (i32, i32) {
    %c0_i32 = arith.constant 0 : i32
    %c0_i32_0 = arith.constant 0 : i32
    %c0_i32_1 = arith.constant 0 : i32
    return %c0_i32, %c0_i32_0 : i32, i32
  }
  func.func @transform_9(%arg0: i32) -> (i32, i32) {
    %c0_i32 = arith.constant 0 : i32
    %c0_i32_0 = arith.constant 0 : i32
    %c0_i32_1 = arith.constant 0 : i32
    return %c0_i32, %c0_i32_0 : i32, i32
  }
  func.func @transform_10(%arg0: i32) -> (i32, i32) {
    %c0_i32 = arith.constant 0 : i32
    %c0_i32_0 = arith.constant 0 : i32
    %c0_i32_1 = arith.constant 0 : i32
    return %c0_i32, %c0_i32_0 : i32, i32
  }
  func.func @transform_11(%arg0: i32) -> (i32, i32, i32) {
    %c0_i32 = arith.constant 0 : i32
    %c0_i32_0 = arith.constant 0 : i32
    %c0_i32_1 = arith.constant 0 : i32
    %c0_i32_2 = arith.constant 0 : i32
    return %c0_i32, %c0_i32_0, %c0_i32_1 : i32, i32, i32
  }
  func.func @transform_12(%arg0: i32) -> (i32, i32) {
    %c0_i32 = arith.constant 0 : i32
    %c0_i32_0 = arith.constant 0 : i32
    %c0_i32_1 = arith.constant 0 : i32
    return %c0_i32, %c0_i32_0 : i32, i32
  }
  func.func @transform_13(%arg0: i32) -> i32 {
    %c0_i32 = arith.constant 0 : i32
    %c0_i32_0 = arith.constant 0 : i32
    return %c0_i32 : i32
  }
  func.func @transform_14(%arg0: i32) -> i32 {
    %c0_i32 = arith.constant 0 : i32
    %c0_i32_0 = arith.constant 0 : i32
    return %c0_i32 : i32
  }
  func.func @transform_15(%arg0: i32) -> i32 {
    %c0_i32 = arith.constant 0 : i32
    %c0_i32_0 = arith.constant 0 : i32
    return %c0_i32 : i32
  }
  func.func @transform_16(%arg0: i32) -> i32 {
    %c0_i32 = arith.constant 0 : i32
    %c0_i32_0 = arith.constant 0 : i32
    return %c0_i32 : i32
  }
  func.func @transform_17(%arg0: i32) -> i32 {
    %c0_i32 = arith.constant 0 : i32
    %c0_i32_0 = arith.constant 0 : i32
    return %c0_i32 : i32
  }
  func.func @transform_18(%arg0: i32) -> i32 {
    %c0_i32 = arith.constant 0 : i32
    %c0_i32_0 = arith.constant 0 : i32
    return %c0_i32 : i32
  }
  func.func @transform_19(%arg0: i32) -> i32 {
    %c0_i32 = arith.constant 0 : i32
    %c0_i32_0 = arith.constant 0 : i32
    return %c0_i32 : i32
  }
  func.func @transform_20(%arg0: i32) -> (i32, i32, i32) {
    %c0_i32 = arith.constant 0 : i32
    %c0_i32_0 = arith.constant 0 : i32
    %c0_i32_1 = arith.constant 0 : i32
    return %arg0, %c0_i32, %c0_i32_0 : i32, i32, i32
  }
}

</mosaic_0001>

<llo_original>
// kernel: _ec_forward.1
$region0: #{_ec_forward.1}
  #allocation0 [shape = 'u32[]', space=smem, size = 0x4, offset = 0x4, fixed_abs, tag = 'smem constant byte address 0x4 - core index']
  #allocation1 [shape = 'u32[144,128]{1,0:T(1,128)}', space=vmem, size = 0x12000, scoped, tag = 'internal scratch']
  %s0 = inlined_call_operand.vmem [shape: f32[2,16,256], index: 0, kind: input, shape index: {}]
  %s1 = inlined_call_operand.vmem [shape: f32[256,32], index: 1, kind: input, shape index: {}]
  %s2 = inlined_call_operand.vmem [shape: f32[16,256], index: 2, kind: input, shape index: {}]
  %s3 = inlined_call_operand.vmem [shape: f32[16,256], index: 3, kind: input, shape index: {}]
  %s4 = inlined_call_operand.vmem [shape: f32[8,16], index: 4, kind: input, shape index: {}]
  %s5 = inlined_call_operand.vmem [shape: f32[8,1], index: 5, kind: input, shape index: {}]
  %s6 = inlined_call_operand.vmem [shape: f32[16,8], index: 6, kind: input, shape index: {}]
  %s7 = inlined_call_operand.vmem [shape: f32[16,1], index: 7, kind: input, shape index: {}]
  %s8 = inlined_call_operand.vmem [shape: f32[16,8], index: 8, kind: input, shape index: {}]
  %s9 = inlined_call_operand.vmem [shape: f32[16,1], index: 9, kind: input, shape index: {}]
  %s10 = inlined_call_operand.vmem [shape: f32[32,16], index: 10, kind: input, shape index: {}]
  %s11 = inlined_call_operand.vmem [shape: f32[2,32,8], index: 11, kind: input, shape index: {}]
  %s12 = inlined_call_operand.vmem [shape: f32[32,1], index: 12, kind: input, shape index: {}]
  %s13 = inlined_call_operand.vmem [shape: f32[4], index: 13, kind: input, shape index: {}]
  %s14 = inlined_call_operand.vmem [shape: f32[2], index: 14, kind: input, shape index: {}]
  %s15 = inlined_call_operand.vmem [shape: f32[2], index: 15, kind: input, shape index: {}]
  %s16 = inlined_call_operand.vmem [shape: f32[2], index: 16, kind: input, shape index: {}]
  %s17 = inlined_call_operand.vmem [shape: f32[36], index: 17, kind: input, shape index: {}]
  %s18 = inlined_call_operand.vmem [shape: f32[2], index: 18, kind: input, shape index: {}]
  %s19 = inlined_call_operand.vmem [shape: f32[2], index: 19, kind: input, shape index: {}]
  %s20 = inlined_call_operand.vmem [shape: f32[2,32,256], index: 20, kind: output, shape index: {}]
  %s21 = sld [smem:[#allocation0]]
  $region141: #{_ec_forward.1} parent=0
    _
  %s23 = ssub.s32 1, %s21
  %s24 = scalar_select 0, %s23, %s21
  $region1: #{_ec_forward.1} parent=0
    #allocation2 [shape = 'u8[512]{0}', space=smem, size = 0x200, scoped, tag = 'input window, operand 13, single buffered']
    #allocation3 [shape = 's32[2]{0}', space=sflag, size = 0x8, scoped, tag = 'scoped memory for _ec_forward.1']
    #allocation4 [shape = 'u8[512]{0}', space=smem, size = 0x200, scoped, tag = 'input window, operand 14, single buffered']
    #allocation5 [shape = 's32[1]{0}', space=sflag, size = 0x4, scoped, tag = 'scoped memory for _ec_forward.1']
    #allocation6 [shape = 'u8[512]{0}', space=smem, size = 0x200, scoped, tag = 'input window, operand 15, single buffered']
    #allocation7 [shape = 'u8[512]{0}', space=smem, size = 0x200, scoped, tag = 'input window, operand 16, single buffered']
    #allocation8 [shape = 's32[1]{0}', space=sflag, size = 0x4, scoped, tag = 'scoped memory for _ec_forward.1']
    #allocation9 [shape = 'u8[512]{0}', space=smem, size = 0x200, scoped, tag = 'input window, operand 17, single buffered']
    #allocation10 [shape = 'u8[512]{0}', space=smem, size = 0x200, scoped, tag = 'input window, operand 18, single buffered']
    #allocation11 [shape = 's32[1]{0}', space=sflag, size = 0x4, scoped, tag = 'scoped memory for _ec_forward.1']
    #allocation12 [shape = 'u8[512]{0}', space=smem, size = 0x200, scoped, tag = 'input window, operand 19, single buffered']
    %25 = vsyncpa [#allocation3], 0
    %26 = vsyncpa [#allocation5], 0
    %27 = vsyncpa [#allocation8], 0
    %28 = vsyncpa [#allocation11], 0
    loop: start=0, step=1, limit=4
    $region2: #{_ec_forward.1} parent=1 // loop_pre_header
      _
    $region3: #{_ec_forward.1} parent=1 // loop_header
      %s30 = sphi 0, %s34
      %p31 = scmp.ge.s32.totalorder %s30, 4
      %s40 = sphi 0, %s42
      %s43 = sphi 0, %s40
      %s44 = sphi 0, %s43
      %s60 = sphi 0, %s44
      %s64 = sphi 0, %s64
      %s66 = sphi 0, %s64
      %s67 = sphi 0, %s66
      %s81 = sphi 0, %s67
      %s85 = sphi 0, %s85
      %s87 = sphi 0, %s85
      %s88 = sphi 0, %s87
      %s102 = sphi 0, %s88
      %s106 = sphi 0, %s106
      %s108 = sphi 0, %s106
      %s109 = sphi 0, %s108
      %s123 = sphi 0, %s109
      %s127 = sphi 0, %s127
      %s129 = sphi 0, %s127
      %s130 = sphi 0, %s129
      %s144 = sphi 0, %s130
      %s148 = sphi 0, %s148
      %s150 = sphi 0, %s148
      %s151 = sphi 0, %s150
      %s165 = sphi 0, %s151
      %s169 = sphi 0, %s169
      %s171 = sphi 0, %s169
      %s172 = sphi 0, %s171
      %s186 = sphi 0, %s172
      %s190 = sphi 0, %s190
      %s192 = sphi 0, %s190
      %s193 = sphi 0, %s192
      %s207 = sphi 0, %s193
      %s211 = sphi 0, %s211
      %s213 = sphi 0, %s211
      %s214 = sphi 0, %s213
      %s228 = sphi 0, %s214
      %s232 = sphi 0, %s232
      %s234 = sphi 0, %s232
      %s235 = sphi 0, %s234
      %s249 = sphi 0, %s235
      %s253 = sphi 0, %s253
      %s255 = sphi 0, %s253
      %s256 = sphi 0, %s255
      %s270 = sphi 0, %s256
      %s274 = sphi 0, %s274
      %s276 = sphi 0, %s274
      %s277 = sphi 0, %s276
      %s291 = sphi 0, %s277
      %s295 = sphi 0, %s295
      %s297 = sphi 0, %s295
      %s298 = sphi 0, %s297
      %s312 = sphi 0, %s298
      %s316 = sphi 0, %s316
      %s318 = sphi 0, %s316
      %s319 = sphi 0, %s318
      %s333 = sphi 0, %s319
      %s337 = sphi 0, %s337
      %s339 = sphi 0, %s337
      %s340 = sphi 0, %s339
      %s354 = sphi 0, %s340
      %s358 = sphi 0, %s358
      %s360 = sphi 0, %s358
      %s361 = sphi 0, %s360
      %s375 = sphi 0, %s361
      %s379 = sphi 0, %s379
      %s381 = sphi 0, %s379
      %s382 = sphi 0, %s381
      %s396 = sphi 0, %s382
      %s400 = sphi 0, %s400
      %s402 = sphi 0, %s400
      %s403 = sphi 0, %s402
      %s417 = sphi 0, %s403
      %s421 = sphi 0, %s421
      %s423 = sphi 0, %s421
      %s424 = sphi 0, %s423
      %s438 = sphi 0, %s424
      %s442 = sphi 0, %s442
      %s444 = sphi 0, %s442
      %s445 = sphi 0, %s444
      %s459 = sphi 0, %s445
      %s465 = sphi 0, %s467
      %s468 = sphi 0, %s465
      %s469 = sphi 0, %s468
      %s485 = sphi 0, %s469
    $region4: #{_ec_forward.1} parent=1 // loop_header_branch
      %33 = sbr.rel (%p31) target = $region8
    $region5: #{_ec_forward.1} parent=1 // loop_body
      %s35 = ssub.s32 %s30, 1
      %s36 = ssub.s32 %s30, 2
      %s37 = sadd.s32 %s30, 1
      %s38 = ssub.s32 %s30, %s37
      %p39 = scmp.eq.s32.totalorder %s38, 0
      %s41 = sadd.s32 %s40, 1
      %s42 = scalar_select %p39, %s40, %s41
      %p45 = pneg %p39
      %p46 = scmp.eq.s32.totalorder %s30, 1
      %p47 = por %p45, %p46
      %p48 = scmp.ne.s32.totalorder %s40, %s43
      %p49 = scmp.eq.s32.totalorder %s30, 0
      %p50 = por %p48, %p49
      %p51 = scmp.ne.s32.totalorder %s40, %s43
      %p52 = scmp.eq.s32.totalorder %s35, 1
      %p53 = por %p51, %p52
      %p54 = scmp.ne.s32.totalorder %s43, %s44
      %p55 = scmp.eq.s32.totalorder %s35, 0
      %p56 = por %p54, %p55
      %p57 = scmp.ne.s32.totalorder %s43, %s44
      %p58 = scmp.eq.s32.totalorder %s36, 1
      %p59 = por %p57, %p58
      %p61 = scmp.ne.s32.totalorder %s44, %s60
      %p62 = scmp.eq.s32.totalorder %s36, 0
      %p63 = por %p61, %p62
      %s65 = sadd.s32 %s64, 1
      %p68 = scmp.eq.s32.totalorder %s30, 1
      %p69 = scmp.ne.s32.totalorder %s64, %s66
      %p70 = scmp.eq.s32.totalorder %s30, 0
      %p71 = por %p69, %p70
      %p72 = scmp.ne.s32.totalorder %s64, %s66
      %p73 = scmp.eq.s32.totalorder %s35, 1
      %p74 = por %p72, %p73
      %p75 = scmp.ne.s32.totalorder %s66, %s67
      %p76 = scmp.eq.s32.totalorder %s35, 0
      %p77 = por %p75, %p76
      %p78 = scmp.ne.s32.totalorder %s66, %s67
      %p79 = scmp.eq.s32.totalorder %s36, 1
      %p80 = por %p78, %p79
      %p82 = scmp.ne.s32.totalorder %s67, %s81
      %p83 = scmp.eq.s32.totalorder %s36, 0
      %p84 = por %p82, %p83
      %s86 = sadd.s32 %s85, 1
      %p89 = scmp.eq.s32.totalorder %s30, 1
      %p90 = scmp.ne.s32.totalorder %s85, %s87
      %p91 = scmp.eq.s32.totalorder %s30, 0
      %p92 = por %p90, %p91
      %p93 = scmp.ne.s32.totalorder %s85, %s87
      %p94 = scmp.eq.s32.totalorder %s35, 1
      %p95 = por %p93, %p94
      %p96 = scmp.ne.s32.totalorder %s87, %s88
      %p97 = scmp.eq.s32.totalorder %s35, 0
      %p98 = por %p96, %p97
      %p99 = scmp.ne.s32.totalorder %s87, %s88
      %p100 = scmp.eq.s32.totalorder %s36, 1
      %p101 = por %p99, %p100
      %p103 = scmp.ne.s32.totalorder %s88, %s102
      %p104 = scmp.eq.s32.totalorder %s36, 0
      %p105 = por %p103, %p104
      %s107 = sadd.s32 %s106, 1
      %p110 = scmp.eq.s32.totalorder %s30, 1
      %p111 = scmp.ne.s32.totalorder %s106, %s108
      %p112 = scmp.eq.s32.totalorder %s30, 0
      %p113 = por %p111, %p112
      %p114 = scmp.ne.s32.totalorder %s106, %s108
      %p115 = scmp.eq.s32.totalorder %s35, 1
      %p116 = por %p114, %p115
      %p117 = scmp.ne.s32.totalorder %s108, %s109
      %p118 = scmp.eq.s32.totalorder %s35, 0
      %p119 = por %p117, %p118
      %p120 = scmp.ne.s32.totalorder %s108, %s109
      %p121 = scmp.eq.s32.totalorder %s36, 1
      %p122 = por %p120, %p121
      %p124 = scmp.ne.s32.totalorder %s109, %s123
      %p125 = scmp.eq.s32.totalorder %s36, 0
      %p126 = por %p124, %p125
      %s128 = sadd.s32 %s127, 1
      %p131 = scmp.eq.s32.totalorder %s30, 1
      %p132 = scmp.ne.s32.totalorder %s127, %s129
      %p133 = scmp.eq.s32.totalorder %s30, 0
      %p134 = por %p132, %p133
      %p135 = scmp.ne.s32.totalorder %s127, %s129
      %p136 = scmp.eq.s32.totalorder %s35, 1
      %p137 = por %p135, %p136
      %p138 = scmp.ne.s32.totalorder %s129, %s130
      %p139 = scmp.eq.s32.totalorder %s35, 0
      %p140 = por %p138, %p139
      %p141 = scmp.ne.s32.totalorder %s129, %s130
      %p142 = scmp.eq.s32.totalorder %s36, 1
      %p143 = por %p141, %p142
      %p145 = scmp.ne.s32.totalorder %s130, %s144
      %p146 = scmp.eq.s32.totalorder %s36, 0
      %p147 = por %p145, %p146
      %s149 = sadd.s32 %s148, 1
      %p152 = scmp.eq.s32.totalorder %s30, 1
      %p153 = scmp.ne.s32.totalorder %s148, %s150
      %p154 = scmp.eq.s32.totalorder %s30, 0
      %p155 = por %p153, %p154
      %p156 = scmp.ne.s32.totalorder %s148, %s150
      %p157 = scmp.eq.s32.totalorder %s35, 1
      %p158 = por %p156, %p157
      %p159 = scmp.ne.s32.totalorder %s150, %s151
      %p160 = scmp.eq.s32.totalorder %s35, 0
      %p161 = por %p159, %p160
      %p162 = scmp.ne.s32.totalorder %s150, %s151
      %p163 = scmp.eq.s32.totalorder %s36, 1
      %p164 = por %p162, %p163
      %p166 = scmp.ne.s32.totalorder %s151, %s165
      %p167 = scmp.eq.s32.totalorder %s36, 0
      %p168 = por %p166, %p167
      %s170 = sadd.s32 %s169, 1
      %p173 = scmp.eq.s32.totalorder %s30, 1
      %p174 = scmp.ne.s32.totalorder %s169, %s171
      %p175 = scmp.eq.s32.totalorder %s30, 0
      %p176 = por %p174, %p175
      %p177 = scmp.ne.s32.totalorder %s169, %s171
      %p178 = scmp.eq.s32.totalorder %s35, 1
      %p179 = por %p177, %p178
      %p180 = scmp.ne.s32.totalorder %s171, %s172
      %p181 = scmp.eq.s32.totalorder %s35, 0
      %p182 = por %p180, %p181
      %p183 = scmp.ne.s32.totalorder %s171, %s172
      %p184 = scmp.eq.s32.totalorder %s36, 1
      %p185 = por %p183, %p184
      %p187 = scmp.ne.s32.totalorder %s172, %s186
      %p188 = scmp.eq.s32.totalorder %s36, 0
      %p189 = por %p187, %p188
      %s191 = sadd.s32 %s190, 1
      %p194 = scmp.eq.s32.totalorder %s30, 1
      %p195 = scmp.ne.s32.totalorder %s190, %s192
      %p196 = scmp.eq.s32.totalorder %s30, 0
      %p197 = por %p195, %p196
      %p198 = scmp.ne.s32.totalorder %s190, %s192
      %p199 = scmp.eq.s32.totalorder %s35, 1
      %p200 = por %p198, %p199
      %p201 = scmp.ne.s32.totalorder %s192, %s193
      %p202 = scmp.eq.s32.totalorder %s35, 0
      %p203 = por %p201, %p202
      %p204 = scmp.ne.s32.totalorder %s192, %s193
      %p205 = scmp.eq.s32.totalorder %s36, 1
      %p206 = por %p204, %p205
      %p208 = scmp.ne.s32.totalorder %s193, %s207
      %p209 = scmp.eq.s32.totalorder %s36, 0
      %p210 = por %p208, %p209
      %s212 = sadd.s32 %s211, 1
      %p215 = scmp.eq.s32.totalorder %s30, 1
      %p216 = scmp.ne.s32.totalorder %s211, %s213
      %p217 = scmp.eq.s32.totalorder %s30, 0
      %p218 = por %p216, %p217
      %p219 = scmp.ne.s32.totalorder %s211, %s213
      %p220 = scmp.eq.s32.totalorder %s35, 1
      %p221 = por %p219, %p220
      %p222 = scmp.ne.s32.totalorder %s213, %s214
      %p223 = scmp.eq.s32.totalorder %s35, 0
      %p224 = por %p222, %p223
      %p225 = scmp.ne.s32.totalorder %s213, %s214
      %p226 = scmp.eq.s32.totalorder %s36, 1
      %p227 = por %p225, %p226
      %p229 = scmp.ne.s32.totalorder %s214, %s228
      %p230 = scmp.eq.s32.totalorder %s36, 0
      %p231 = por %p229, %p230
      %s233 = sadd.s32 %s232, 1
      %p236 = scmp.eq.s32.totalorder %s30, 1
      %p237 = scmp.ne.s32.totalorder %s232, %s234
      %p238 = scmp.eq.s32.totalorder %s30, 0
      %p239 = por %p237, %p238
      %p240 = scmp.ne.s32.totalorder %s232, %s234
      %p241 = scmp.eq.s32.totalorder %s35, 1
      %p242 = por %p240, %p241
      %p243 = scmp.ne.s32.totalorder %s234, %s235
      %p244 = scmp.eq.s32.totalorder %s35, 0
      %p245 = por %p243, %p244
      %p246 = scmp.ne.s32.totalorder %s234, %s235
      %p247 = scmp.eq.s32.totalorder %s36, 1
      %p248 = por %p246, %p247
      %p250 = scmp.ne.s32.totalorder %s235, %s249
      %p251 = scmp.eq.s32.totalorder %s36, 0
      %p252 = por %p250, %p251
      %s254 = sadd.s32 %s253, 1
      %p257 = scmp.eq.s32.totalorder %s30, 1
      %p258 = scmp.ne.s32.totalorder %s253, %s255
      %p259 = scmp.eq.s32.totalorder %s30, 0
      %p260 = por %p258, %p259
      %p261 = scmp.ne.s32.totalorder %s253, %s255
      %p262 = scmp.eq.s32.totalorder %s35, 1
      %p263 = por %p261, %p262
      %p264 = scmp.ne.s32.totalorder %s255, %s256
      %p265 = scmp.eq.s32.totalorder %s35, 0
      %p266 = por %p264, %p265
      %p267 = scmp.ne.s32.totalorder %s255, %s256
      %p268 = scmp.eq.s32.totalorder %s36, 1
      %p269 = por %p267, %p268
      %p271 = scmp.ne.s32.totalorder %s256, %s270
      %p272 = scmp.eq.s32.totalorder %s36, 0
      %p273 = por %p271, %p272
      %s275 = sadd.s32 %s274, 1
      %p278 = scmp.eq.s32.totalorder %s30, 1
      %p279 = scmp.ne.s32.totalorder %s274, %s276
      %p280 = scmp.eq.s32.totalorder %s30, 0
      %p281 = por %p279, %p280
      %p282 = scmp.ne.s32.totalorder %s274, %s276
      %p283 = scmp.eq.s32.totalorder %s35, 1
      %p284 = por %p282, %p283
      %p285 = scmp.ne.s32.totalorder %s276, %s277
      %p286 = scmp.eq.s32.totalorder %s35, 0
      %p287 = por %p285, %p286
      %p288 = scmp.ne.s32.totalorder %s276, %s277
      %p289 = scmp.eq.s32.totalorder %s36, 1
      %p290 = por %p288, %p289
      %p292 = scmp.ne.s32.totalorder %s277, %s291
      %p293 = scmp.eq.s32.totalorder %s36, 0
      %p294 = por %p292, %p293
      %s296 = sadd.s32 %s295, 1
      %p299 = scmp.eq.s32.totalorder %s30, 1
      %p300 = scmp.ne.s32.totalorder %s295, %s297
      %p301 = scmp.eq.s32.totalorder %s30, 0
      %p302 = por %p300, %p301
      %p303 = scmp.ne.s32.totalorder %s295, %s297
      %p304 = scmp.eq.s32.totalorder %s35, 1
      %p305 = por %p303, %p304
      %p306 = scmp.ne.s32.totalorder %s297, %s298
      %p307 = scmp.eq.s32.totalorder %s35, 0
      %p308 = por %p306, %p307
      %p309 = scmp.ne.s32.totalorder %s297, %s298
      %p310 = scmp.eq.s32.totalorder %s36, 1
      %p311 = por %p309, %p310
      %p313 = scmp.ne.s32.totalorder %s298, %s312
      %p314 = scmp.eq.s32.totalorder %s36, 0
      %p315 = por %p313, %p314
      %s317 = sadd.s32 %s316, 1
      %p320 = scmp.eq.s32.totalorder %s30, 1
      %p321 = scmp.ne.s32.totalorder %s316, %s318
      %p322 = scmp.eq.s32.totalorder %s30, 0
      %p323 = por %p321, %p322
      %p324 = scmp.ne.s32.totalorder %s316, %s318
      %p325 = scmp.eq.s32.totalorder %s35, 1
      %p326 = por %p324, %p325
      %p327 = scmp.ne.s32.totalorder %s318, %s319
      %p328 = scmp.eq.s32.totalorder %s35, 0
      %p329 = por %p327, %p328
      %p330 = scmp.ne.s32.totalorder %s318, %s319
      %p331 = scmp.eq.s32.totalorder %s36, 1
      %p332 = por %p330, %p331
      %p334 = scmp.ne.s32.totalorder %s319, %s333
      %p335 = scmp.eq.s32.totalorder %s36, 0
      %p336 = por %p334, %p335
      %s338 = sadd.s32 %s337, 1
      %p341 = scmp.eq.s32.totalorder %s30, 1
      %p342 = scmp.ne.s32.totalorder %s337, %s339
      %p343 = scmp.eq.s32.totalorder %s30, 0
      %p344 = por %p342, %p343
      %p345 = scmp.ne.s32.totalorder %s337, %s339
      %p346 = scmp.eq.s32.totalorder %s35, 1
      %p347 = por %p345, %p346
      %p348 = scmp.ne.s32.totalorder %s339, %s340
      %p349 = scmp.eq.s32.totalorder %s35, 0
      %p350 = por %p348, %p349
      %p351 = scmp.ne.s32.totalorder %s339, %s340
      %p352 = scmp.eq.s32.totalorder %s36, 1
      %p353 = por %p351, %p352
      %p355 = scmp.ne.s32.totalorder %s340, %s354
      %p356 = scmp.eq.s32.totalorder %s36, 0
      %p357 = por %p355, %p356
      %s359 = sadd.s32 %s358, 1
      %p362 = scmp.eq.s32.totalorder %s30, 1
      %p363 = scmp.ne.s32.totalorder %s358, %s360
      %p364 = scmp.eq.s32.totalorder %s30, 0
      %p365 = por %p363, %p364
      %p366 = scmp.ne.s32.totalorder %s358, %s360
      %p367 = scmp.eq.s32.totalorder %s35, 1
      %p368 = por %p366, %p367
      %p369 = scmp.ne.s32.totalorder %s360, %s361
      %p370 = scmp.eq.s32.totalorder %s35, 0
      %p371 = por %p369, %p370
      %p372 = scmp.ne.s32.totalorder %s360, %s361
      %p373 = scmp.eq.s32.totalorder %s36, 1
      %p374 = por %p372, %p373
      %p376 = scmp.ne.s32.totalorder %s361, %s375
      %p377 = scmp.eq.s32.totalorder %s36, 0
      %p378 = por %p376, %p377
      %s380 = sadd.s32 %s379, 1
      %p383 = scmp.eq.s32.totalorder %s30, 1
      %p384 = scmp.ne.s32.totalorder %s379, %s381
      %p385 = scmp.eq.s32.totalorder %s30, 0
      %p386 = por %p384, %p385
      %p387 = scmp.ne.s32.totalorder %s379, %s381
      %p388 = scmp.eq.s32.totalorder %s35, 1
      %p389 = por %p387, %p388
      %p390 = scmp.ne.s32.totalorder %s381, %s382
      %p391 = scmp.eq.s32.totalorder %s35, 0
      %p392 = por %p390, %p391
      %p393 = scmp.ne.s32.totalorder %s381, %s382
      %p394 = scmp.eq.s32.totalorder %s36, 1
      %p395 = por %p393, %p394
      %p397 = scmp.ne.s32.totalorder %s382, %s396
      %p398 = scmp.eq.s32.totalorder %s36, 0
      %p399 = por %p397, %p398
      %s401 = sadd.s32 %s400, 1
      %p404 = scmp.eq.s32.totalorder %s30, 1
      %p405 = scmp.ne.s32.totalorder %s400, %s402
      %p406 = scmp.eq.s32.totalorder %s30, 0
      %p407 = por %p405, %p406
      %p408 = scmp.ne.s32.totalorder %s400, %s402
      %p409 = scmp.eq.s32.totalorder %s35, 1
      %p410 = por %p408, %p409
      %p411 = scmp.ne.s32.totalorder %s402, %s403
      %p412 = scmp.eq.s32.totalorder %s35, 0
      %p413 = por %p411, %p412
      %p414 = scmp.ne.s32.totalorder %s402, %s403
      %p415 = scmp.eq.s32.totalorder %s36, 1
      %p416 = por %p414, %p415
      %p418 = scmp.ne.s32.totalorder %s403, %s417
      %p419 = scmp.eq.s32.totalorder %s36, 0
      %p420 = por %p418, %p419
      %s422 = sadd.s32 %s421, 1
      %p425 = scmp.eq.s32.totalorder %s30, 1
      %p426 = scmp.ne.s32.totalorder %s421, %s423
      %p427 = scmp.eq.s32.totalorder %s30, 0
      %p428 = por %p426, %p427
      %p429 = scmp.ne.s32.totalorder %s421, %s423
      %p430 = scmp.eq.s32.totalorder %s35, 1
      %p431 = por %p429, %p430
      %p432 = scmp.ne.s32.totalorder %s423, %s424
      %p433 = scmp.eq.s32.totalorder %s35, 0
      %p434 = por %p432, %p433
      %p435 = scmp.ne.s32.totalorder %s423, %s424
      %p436 = scmp.eq.s32.totalorder %s36, 1
      %p437 = por %p435, %p436
      %p439 = scmp.ne.s32.totalorder %s424, %s438
      %p440 = scmp.eq.s32.totalorder %s36, 0
      %p441 = por %p439, %p440
      %s443 = sadd.s32 %s442, 1
      %p446 = scmp.eq.s32.totalorder %s30, 1
      %p447 = scmp.ne.s32.totalorder %s442, %s444
      %p448 = scmp.eq.s32.totalorder %s30, 0
      %p449 = por %p447, %p448
      %p450 = scmp.ne.s32.totalorder %s442, %s444
      %p451 = scmp.eq.s32.totalorder %s35, 1
      %p452 = por %p450, %p451
      %p453 = scmp.ne.s32.totalorder %s444, %s445
      %p454 = scmp.eq.s32.totalorder %s35, 0
      %p455 = por %p453, %p454
      %p456 = scmp.ne.s32.totalorder %s444, %s445
      %p457 = scmp.eq.s32.totalorder %s36, 1
      %p458 = por %p456, %p457
      %p460 = scmp.ne.s32.totalorder %s445, %s459
      %p461 = scmp.eq.s32.totalorder %s36, 0
      %p462 = por %p460, %p461
      %s463 = ssub.s32 %s30, %s37
      %p464 = scmp.eq.s32.totalorder %s463, 0
      %s466 = sadd.s32 %s465, 1
      %s467 = scalar_select %p464, %s465, %s466
      %p470 = pneg %p464
      %p471 = scmp.eq.s32.totalorder %s30, 1
      %p472 = por %p470, %p471
      %p473 = scmp.ne.s32.totalorder %s465, %s468
      %p474 = scmp.eq.s32.totalorder %s30, 0
      %p475 = por %p473, %p474
      %p476 = scmp.ne.s32.totalorder %s465, %s468
      %p477 = scmp.eq.s32.totalorder %s35, 1
      %p478 = por %p476, %p477
      %p479 = scmp.ne.s32.totalorder %s468, %s469
      %p480 = scmp.eq.s32.totalorder %s35, 0
      %p481 = por %p479, %p480
      %p482 = scmp.ne.s32.totalorder %s468, %s469
      %p483 = scmp.eq.s32.totalorder %s36, 1
      %p484 = por %p482, %p483
      %p486 = scmp.ne.s32.totalorder %s469, %s485
      %p487 = scmp.eq.s32.totalorder %s36, 0
      %p488 = por %p486, %p487
      %p489 = scmp.le.s32.totalorder 1, %s30
      %p490 = scmp.lt.s32.totalorder %s30, 3
      %p491 = pnand %p489, %p490
      %p492 = pneg %p491
      // Predicated region
      $region9: #{_ec_forward.1} parent=5 // pred_check
        _
      $region10: #{_ec_forward.1} parent=5 // pred_check_branch
        %494 = sbr.rel (%p491) target = $region12
      $region11: #{_ec_forward.1} parent=5 // pred_region
        %s495 = ssub.s32 %s30, 1
        // Predicated region
        $region13: #{_ec_forward.1} parent=11 // pred_check
          %p496 = pneg %p77
        $region14: #{_ec_forward.1} parent=11 // pred_check_branch
          %498 = sbr.rel (%p496) target = $region16
        $region15: #{_ec_forward.1} parent=11 // pred_region
          _
        $region16: #{_ec_forward.1} parent=11 // pred_fallthru
          _
        // Predicated region
        $region17: #{_ec_forward.1} parent=11 // pred_check
          %p499 = pneg %p98
        $region18: #{_ec_forward.1} parent=11 // pred_check_branch
          %501 = sbr.rel (%p499) target = $region20
        $region19: #{_ec_forward.1} parent=11 // pred_region
          _
        $region20: #{_ec_forward.1} parent=11 // pred_fallthru
          _
        // Predicated region
        $region21: #{_ec_forward.1} parent=11 // pred_check
          %p502 = pneg %p119
        $region22: #{_ec_forward.1} parent=11 // pred_check_branch
          %504 = sbr.rel (%p502) target = $region24
        $region23: #{_ec_forward.1} parent=11 // pred_region
          _
        $region24: #{_ec_forward.1} parent=11 // pred_fallthru
          _
        // Predicated region
        $region25: #{_ec_forward.1} parent=11 // pred_check
          %p505 = pneg %p140
        $region26: #{_ec_forward.1} parent=11 // pred_check_branch
          %507 = sbr.rel (%p505) target = $region28
        $region27: #{_ec_forward.1} parent=11 // pred_region
          _
        $region28: #{_ec_forward.1} parent=11 // pred_fallthru
          _
        // Predicated region
        $region29: #{_ec_forward.1} parent=11 // pred_check
          %p508 = pneg %p161
        $region30: #{_ec_forward.1} parent=11 // pred_check_branch
          %510 = sbr.rel (%p508) target = $region32
        $region31: #{_ec_forward.1} parent=11 // pred_region
          _
        $region32: #{_ec_forward.1} parent=11 // pred_fallthru
          _
        // Predicated region
        $region33: #{_ec_forward.1} parent=11 // pred_check
          %p511 = pneg %p182
        $region34: #{_ec_forward.1} parent=11 // pred_check_branch
          %513 = sbr.rel (%p511) target = $region36
        $region35: #{_ec_forward.1} parent=11 // pred_region
          _
        $region36: #{_ec_forward.1} parent=11 // pred_fallthru
          _
        // Predicated region
        $region37: #{_ec_forward.1} parent=11 // pred_check
          %p514 = pneg %p203
        $region38: #{_ec_forward.1} parent=11 // pred_check_branch
          %516 = sbr.rel (%p514) target = $region40
        $region39: #{_ec_forward.1} parent=11 // pred_region
          _
        $region40: #{_ec_forward.1} parent=11 // pred_fallthru
          _
        // Predicated region
        $region41: #{_ec_forward.1} parent=11 // pred_check
          %p517 = pneg %p224
        $region42: #{_ec_forward.1} parent=11 // pred_check_branch
          %519 = sbr.rel (%p517) target = $region44
        $region43: #{_ec_forward.1} parent=11 // pred_region
          _
        $region44: #{_ec_forward.1} parent=11 // pred_fallthru
          _
        // Predicated region
        $region45: #{_ec_forward.1} parent=11 // pred_check
          %p520 = pneg %p245
        $region46: #{_ec_forward.1} parent=11 // pred_check_branch
          %522 = sbr.rel (%p520) target = $region48
        $region47: #{_ec_forward.1} parent=11 // pred_region
          _
        $region48: #{_ec_forward.1} parent=11 // pred_fallthru
          _
        // Predicated region
        $region49: #{_ec_forward.1} parent=11 // pred_check
          %p523 = pneg %p266
        $region50: #{_ec_forward.1} parent=11 // pred_check_branch
          %525 = sbr.rel (%p523) target = $region52
        $region51: #{_ec_forward.1} parent=11 // pred_region
          _
        $region52: #{_ec_forward.1} parent=11 // pred_fallthru
          _
        // Predicated region
        $region53: #{_ec_forward.1} parent=11 // pred_check
          %p526 = pneg %p287
        $region54: #{_ec_forward.1} parent=11 // pred_check_branch
          %528 = sbr.rel (%p526) target = $region56
        $region55: #{_ec_forward.1} parent=11 // pred_region
          _
        $region56: #{_ec_forward.1} parent=11 // pred_fallthru
          _
        // Predicated region
        $region57: #{_ec_forward.1} parent=11 // pred_check
          %p529 = pneg %p308
        $region58: #{_ec_forward.1} parent=11 // pred_check_branch
          %531 = sbr.rel (%p529) target = $region60
        $region59: #{_ec_forward.1} parent=11 // pred_region
          _
        $region60: #{_ec_forward.1} parent=11 // pred_fallthru
          _
        // Predicated region
        $region61: #{_ec_forward.1} parent=11 // pred_check
          %p532 = pneg %p329
        $region62: #{_ec_forward.1} parent=11 // pred_check_branch
          %534 = sbr.rel (%p532) target = $region64
        $region63: #{_ec_forward.1} parent=11 // pred_region
          %s536 = ssub.s32 16, 16
          %537 = vsyncadd [#allocation3], %s536
          %s539 = sshll.u32 %s13, 4
          %s540 = int_to_ptr.vmem [resolvable:$true] %s539
          %542 = dma.vmem_to_smem %s540, 16, [#allocation2], [#allocation3]
        $region64: #{_ec_forward.1} parent=11 // pred_fallthru
          _
        // Predicated region
        $region65: #{_ec_forward.1} parent=11 // pred_check
          %p543 = pneg %p350
        $region66: #{_ec_forward.1} parent=11 // pred_check_branch
          %545 = sbr.rel (%p543) target = $region68
        $region67: #{_ec_forward.1} parent=11 // pred_region
          %s547 = ssub.s32 16, 16
          %548 = vsyncadd [#allocation5], %s547
          %s550 = sshll.u32 %s14, 4
          %s551 = int_to_ptr.vmem [resolvable:$true] %s550
          %553 = dma.vmem_to_smem %s551, 16, [#allocation4], [#allocation5]
        $region68: #{_ec_forward.1} parent=11 // pred_fallthru
          _
        // Predicated region
        $region69: #{_ec_forward.1} parent=11 // pred_check
          %p554 = pneg %p371
        $region70: #{_ec_forward.1} parent=11 // pred_check_branch
          %556 = sbr.rel (%p554) target = $region72
        $region71: #{_ec_forward.1} parent=11 // pred_region
          %s558 = ssub.s32 16, 16
          %559 = vsyncadd [#allocation5], %s558
          %s561 = sshll.u32 %s15, 4
          %s562 = int_to_ptr.vmem [resolvable:$true] %s561
          %564 = dma.vmem_to_smem %s562, 16, [#allocation6], [#allocation5]
        $region72: #{_ec_forward.1} parent=11 // pred_fallthru
          _
        // Predicated region
        $region73: #{_ec_forward.1} parent=11 // pred_check
          %p565 = pneg %p392
        $region74: #{_ec_forward.1} parent=11 // pred_check_branch
          %567 = sbr.rel (%p565) target = $region76
        $region75: #{_ec_forward.1} parent=11 // pred_region
          %s569 = ssub.s32 16, 16
          %570 = vsyncadd [#allocation8], %s569
          %s572 = sshll.u32 %s16, 4
          %s573 = int_to_ptr.vmem [resolvable:$true] %s572
          %575 = dma.vmem_to_smem %s573, 16, [#allocation7], [#allocation8]
        $region76: #{_ec_forward.1} parent=11 // pred_fallthru
          _
        // Predicated region
        $region77: #{_ec_forward.1} parent=11 // pred_check
          %p576 = pneg %p413
        $region78: #{_ec_forward.1} parent=11 // pred_check_branch
          %578 = sbr.rel (%p576) target = $region80
        $region79: #{_ec_forward.1} parent=11 // pred_region
          %s580 = ssub.s32 16, 16
          %581 = vsyncadd [#allocation8], %s580
          %s583 = sshll.u32 %s17, 4
          %s584 = int_to_ptr.vmem [resolvable:$true] %s583
          %586 = dma.vmem_to_smem %s584, 16, [#allocation9], [#allocation8]
        $region80: #{_ec_forward.1} parent=11 // pred_fallthru
          _
        // Predicated region
        $region81: #{_ec_forward.1} parent=11 // pred_check
          %p587 = pneg %p434
        $region82: #{_ec_forward.1} parent=11 // pred_check_branch
          %589 = sbr.rel (%p587) target = $region84
        $region83: #{_ec_forward.1} parent=11 // pred_region
          %s591 = ssub.s32 16, 16
          %592 = vsyncadd [#allocation11], %s591
          %s594 = sshll.u32 %s18, 4
          %s595 = int_to_ptr.vmem [resolvable:$true] %s594
          %597 = dma.vmem_to_smem %s595, 16, [#allocation10], [#allocation11]
        $region84: #{_ec_forward.1} parent=11 // pred_fallthru
          _
        // Predicated region
        $region85: #{_ec_forward.1} parent=11 // pred_check
          %p598 = pneg %p455
        $region86: #{_ec_forward.1} parent=11 // pred_check_branch
          %600 = sbr.rel (%p598) target = $region88
        $region87: #{_ec_forward.1} parent=11 // pred_region
          %s602 = ssub.s32 16, 16
          %603 = vsyncadd [#allocation11], %s602
          %s605 = sshll.u32 %s19, 4
          %s606 = int_to_ptr.vmem [resolvable:$true] %s605
          %608 = dma.vmem_to_smem %s606, 16, [#allocation12], [#allocation11]
        $region88: #{_ec_forward.1} parent=11 // pred_fallthru
          _
      $region12: #{_ec_forward.1} parent=5 // pred_fallthru
        _
      %p609 = scmp.lt.s32.totalorder %s30, 2
      // Predicated region
      $region89: #{_ec_forward.1} parent=5 // pred_check
        %p610 = pneg %p609
      $region90: #{_ec_forward.1} parent=5 // pred_check_branch
        %612 = sbr.rel (%p610) target = $region92
      $region91: #{_ec_forward.1} parent=5 // pred_region
        // Predicated region
        $region93: #{_ec_forward.1} parent=91 // pred_check
          %p613 = pneg %p50
        $region94: #{_ec_forward.1} parent=91 // pred_check_branch
          %615 = sbr.rel (%p613) target = $region96
        $region95: #{_ec_forward.1} parent=91 // pred_region
          %p616 = scmp.lt.s32.totalorder %s30, 1
          %s617 = scalar_select %p616, %s30, 1
          %s618 = smul.addr %s617, 4
          %s619 = smul.addr %s618, 8
          %s620 = scalar_lea.vmem %s0, %s619
        $region96: #{_ec_forward.1} parent=91 // pred_fallthru
          _
      $region92: #{_ec_forward.1} parent=5 // pred_fallthru
        _
      %p621 = scmp.le.s32.totalorder 1, %s30
      %p622 = scmp.lt.s32.totalorder %s30, 3
      %p623 = pnand %p621, %p622
      %p624 = pneg %p623
      // Predicated region
      $region97: #{_ec_forward.1} parent=5 // pred_check
        _
      $region98: #{_ec_forward.1} parent=5 // pred_check_branch
        %626 = sbr.rel (%p623) target = $region100
      $region99: #{_ec_forward.1} parent=5 // pred_region
        %s627 = ssub.s32 %s30, 1
        // Predicated region
        $region101: #{_ec_forward.1} parent=99 // pred_check
          %p628 = pneg %p329
        $region102: #{_ec_forward.1} parent=99 // pred_check_branch
          %630 = sbr.rel (%p628) target = $region104
        $region103: #{_ec_forward.1} parent=99 // pred_region
          %631 = dma.done [#allocation3], 16
        $region104: #{_ec_forward.1} parent=99 // pred_fallthru
          _
        // Predicated region
        $region105: #{_ec_forward.1} parent=99 // pred_check
          %p632 = pneg %p350
        $region106: #{_ec_forward.1} parent=99 // pred_check_branch
          %634 = sbr.rel (%p632) target = $region108
        $region107: #{_ec_forward.1} parent=99 // pred_region
          %635 = dma.done [#allocation5], 16
        $region108: #{_ec_forward.1} parent=99 // pred_fallthru
          _
        // Predicated region
        $region109: #{_ec_forward.1} parent=99 // pred_check
          %p636 = pneg %p371
        $region110: #{_ec_forward.1} parent=99 // pred_check_branch
          %638 = sbr.rel (%p636) target = $region112
        $region111: #{_ec_forward.1} parent=99 // pred_region
          %639 = dma.done [#allocation5], 16
        $region112: #{_ec_forward.1} parent=99 // pred_fallthru
          _
        // Predicated region
        $region113: #{_ec_forward.1} parent=99 // pred_check
          %p640 = pneg %p392
        $region114: #{_ec_forward.1} parent=99 // pred_check_branch
          %642 = sbr.rel (%p640) target = $region116
        $region115: #{_ec_forward.1} parent=99 // pred_region
          %643 = dma.done [#allocation8], 16
        $region116: #{_ec_forward.1} parent=99 // pred_fallthru
          _
        // Predicated region
        $region117: #{_ec_forward.1} parent=99 // pred_check
          %p644 = pneg %p413
        $region118: #{_ec_forward.1} parent=99 // pred_check_branch
          %646 = sbr.rel (%p644) target = $region120
        $region119: #{_ec_forward.1} parent=99 // pred_region
          %647 = dma.done [#allocation8], 16
        $region120: #{_ec_forward.1} parent=99 // pred_fallthru
          _
        // Predicated region
        $region121: #{_ec_forward.1} parent=99 // pred_check
          %p648 = pneg %p434
        $region122: #{_ec_forward.1} parent=99 // pred_check_branch
          %650 = sbr.rel (%p648) target = $region124
        $region123: #{_ec_forward.1} parent=99 // pred_region
          %651 = dma.done [#allocation11], 16
        $region124: #{_ec_forward.1} parent=99 // pred_fallthru
          _
        // Predicated region
        $region125: #{_ec_forward.1} parent=99 // pred_check
          %p652 = pneg %p455
        $region126: #{_ec_forward.1} parent=99 // pred_check_branch
          %654 = sbr.rel (%p652) target = $region128
        $region127: #{_ec_forward.1} parent=99 // pred_region
          %655 = dma.done [#allocation11], 16
        $region128: #{_ec_forward.1} parent=99 // pred_fallthru
          _
        %656 = sfence
        %p657 = scmp.lt.s32.totalorder %s35, 1
        %s658 = scalar_select %p657, %s35, 1
        %s659 = smul.addr %s658, 4
        %s660 = smul.addr %s659, 8
        %s661 = scalar_lea.vmem %s0, %s660
        %p662 = pneg %p56
        %p663 = pneg %p53
        %p664 = pneg %p77
        %p665 = pneg %p74
        %p666 = pneg %p98
        %p667 = pneg %p95
        %p668 = pneg %p119
        %p669 = pneg %p116
        %p670 = pneg %p140
        %p671 = pneg %p137
        %p672 = pneg %p161
        %p673 = pneg %p158
        %p674 = pneg %p182
        %p675 = pneg %p179
        %p676 = pneg %p203
        %p677 = pneg %p200
        %p678 = pneg %p224
        %p679 = pneg %p221
        %p680 = pneg %p245
        %p681 = pneg %p242
        %p682 = pneg %p266
        %p683 = pneg %p263
        %p684 = pneg %p287
        %p685 = pneg %p284
        %p686 = pneg %p308
        %p687 = pneg %p305
        %p688 = pneg %p329
        %p689 = pneg %p326
        %p690 = pneg %p350
        %p691 = pneg %p347
        %p692 = pneg %p371
        %p693 = pneg %p368
        %p694 = pneg %p392
        %p695 = pneg %p389
        %p696 = pneg %p413
        %p697 = pneg %p410
        %p698 = pneg %p434
        %p699 = pneg %p431
        %p700 = pneg %p455
        %p701 = pneg %p452
        %p702 = pneg %p481
        %p703 = pneg %p478
        %p704 = scmp.lt.s32.totalorder %s35, 1
        %s705 = scalar_select %p704, %s35, 1
        %s706 = smul.addr %s705, 8
        %s707 = smul.addr %s706, 8
        %s708 = scalar_lea.vmem %s20, %s707
        %p709 = scmp.lt.s32.totalorder %s35, 1
        %s710 = scalar_select %p709, %s35, 1
        %s711 = smul.addr %s710, 4
        %s712 = smul.addr %s711, 8
        %s713 = scalar_lea.vmem %s0, %s712
        %p714 = scmp.lt.s32.totalorder %s35, 1
        %s715 = scalar_select %p714, %s35, 1
        %s716 = smul.addr %s715, 8
        %s717 = smul.addr %s716, 8
        %s718 = scalar_lea.vmem %s20, %s717
        %v719 = vld [vmem:[%s713] sm:$0xff]
        %v720 = vld [vmem:[%s713 + $0x8] sm:$0xff]
        %v721 = vld [vmem:[%s713 + $0x10] sm:$0xff]
        %v722 = vld [vmem:[%s713 + $0x18] sm:$0xff]
        %v723 = vld [vmem:[%s1] sm:$0xff]
        %v724 = vld [vmem:[%s1 + $0x8] sm:$0xff]
        %v725 = vld [vmem:[%s1 + $0x10] sm:$0xff]
        %v726 = vld [vmem:[%s1 + $0x18] sm:$0xff]
        %v727 = vld [vmem:[%s1 + $0x20] sm:$0xff]
        %v728 = vld [vmem:[%s1 + $0x28] sm:$0xff]
        %v729 = vld [vmem:[%s1 + $0x30] sm:$0xff]
        %v730 = vld [vmem:[%s1 + $0x38] sm:$0xff]
        %v731 = vld [vmem:[%s1 + $0x40] sm:$0xff]
        %v732 = vld [vmem:[%s1 + $0x48] sm:$0xff]
        %v733 = vld [vmem:[%s1 + $0x50] sm:$0xff]
        %v734 = vld [vmem:[%s1 + $0x58] sm:$0xff]
        %v735 = vld [vmem:[%s1 + $0x60] sm:$0xff]
        %v736 = vld [vmem:[%s1 + $0x68] sm:$0xff]
        %v737 = vld [vmem:[%s1 + $0x70] sm:$0xff]
        %v738 = vld [vmem:[%s1 + $0x78] sm:$0xff]
        %v739 = vld [vmem:[%s1 + $0x80] sm:$0xff]
        %v740 = vld [vmem:[%s1 + $0x88] sm:$0xff]
        %v741 = vld [vmem:[%s1 + $0x90] sm:$0xff]
        %v742 = vld [vmem:[%s1 + $0x98] sm:$0xff]
        %v743 = vld [vmem:[%s1 + $0xa0] sm:$0xff]
        %v744 = vld [vmem:[%s1 + $0xa8] sm:$0xff]
        %v745 = vld [vmem:[%s1 + $0xb0] sm:$0xff]
        %v746 = vld [vmem:[%s1 + $0xb8] sm:$0xff]
        %v747 = vld [vmem:[%s1 + $0xc0] sm:$0xff]
        %v748 = vld [vmem:[%s1 + $0xc8] sm:$0xff]
        %v749 = vld [vmem:[%s1 + $0xd0] sm:$0xff]
        %v750 = vld [vmem:[%s1 + $0xd8] sm:$0xff]
        %v751 = vld [vmem:[%s1 + $0xe0] sm:$0xff]
        %v752 = vld [vmem:[%s1 + $0xe8] sm:$0xff]
        %v753 = vld [vmem:[%s1 + $0xf0] sm:$0xff]
        %v754 = vld [vmem:[%s1 + $0xf8] sm:$0xff]
        %v755 = vld [vmem:[%s2] sm:$0xff]
        %v756 = vld [vmem:[%s2 + $0x8] sm:$0xff]
        %v757 = vld [vmem:[%s2 + $0x10] sm:$0xff]
        %v758 = vld [vmem:[%s2 + $0x18] sm:$0xff]
        %v759 = vld [vmem:[%s3] sm:$0xff]
        %v760 = vld [vmem:[%s3 + $0x8] sm:$0xff]
        %v761 = vld [vmem:[%s3 + $0x10] sm:$0xff]
        %v762 = vld [vmem:[%s3 + $0x18] sm:$0xff]
        %763 = vmatprep.subr.mxu0 0.0
        %764 = vmatpush1.msra.mxu0 %v723
        %765 = vmatprep.subr.mxu0 0.0
        %766 = vmatpush1.msra.mxu0 %v724
        %767 = vmatprep.subr.mxu0 0.0
        %768 = vmatpush1.msra.mxu0 %v725
        %769 = vmatprep.subr.mxu0 0.0
        %770 = vmatpush1.msra.mxu0 %v726
        %771 = vmatprep.subr.mxu0 0.0
        %772 = vmatpush1.msra.mxu0 %v727
        %773 = vmatprep.subr.mxu0 0.0
        %774 = vmatpush1.msra.mxu0 %v728
        %775 = vmatprep.subr.mxu0 0.0
        %776 = vmatpush1.msra.mxu0 %v729
        %777 = vmatprep.subr.mxu0 0.0
        %778 = vmatpush1.msra.mxu0 %v730
        %779 = vmatprep.subr.mxu0 0.0
        %780 = vmatpush1.msra.mxu0 %v731
        %781 = vmatprep.subr.mxu0 0.0
        %782 = vmatpush1.msra.mxu0 %v732
        %783 = vmatprep.subr.mxu0 0.0
        %784 = vmatpush1.msra.mxu0 %v733
        %785 = vmatprep.subr.mxu0 0.0
        %786 = vmatpush1.msra.mxu0 %v734
        %787 = vmatprep.subr.mxu0 0.0
        %788 = vmatpush1.msra.mxu0 %v735
        %789 = vmatprep.subr.mxu0 0.0
        %790 = vmatpush1.msra.mxu0 %v736
        %791 = vmatprep.subr.mxu0 0.0
        %792 = vmatpush1.msra.mxu0 %v737
        %793 = vmatprep.subr.mxu0 0.0
        %794 = vmatpush1.msra.mxu0 %v738
        %795 = vmatprep.subr.mxu0 0.0
        %796 = vmatpush1.msra.mxu0 %v739
        %797 = vmatprep.subr.mxu0 0.0
        %798 = vmatpush1.msra.mxu0 %v740
        %799 = vmatprep.subr.mxu0 0.0
        %800 = vmatpush1.msra.mxu0 %v741
        %801 = vmatprep.subr.mxu0 0.0
        %802 = vmatpush1.msra.mxu0 %v742
        %803 = vmatprep.subr.mxu0 0.0
        %804 = vmatpush1.msra.mxu0 %v743
        %805 = vmatprep.subr.mxu0 0.0
        %806 = vmatpush1.msra.mxu0 %v744
        %807 = vmatprep.subr.mxu0 0.0
        %808 = vmatpush1.msra.mxu0 %v745
        %809 = vmatprep.subr.mxu0 0.0
        %810 = vmatpush1.msra.mxu0 %v746
        %811 = vmatprep.subr.mxu0 0.0
        %812 = vmatpush1.msra.mxu0 %v747
        %813 = vmatprep.subr.mxu0 0.0
        %814 = vmatpush1.msra.mxu0 %v748
        %815 = vmatprep.subr.mxu0 0.0
        %816 = vmatpush1.msra.mxu0 %v749
        %817 = vmatprep.subr.mxu0 0.0
        %818 = vmatpush1.msra.mxu0 %v750
        %819 = vmatprep.subr.mxu0 0.0
        %820 = vmatpush1.msra.mxu0 %v751
        %821 = vmatprep.subr.mxu0 0.0
        %822 = vmatpush1.msra.mxu0 %v752
        %823 = vmatprep.subr.mxu0 0.0
        %824 = vmatpush1.msra.mxu0 %v753
        %825 = vmatprep.subr.mxu0 0.0
        %826 = vmatpush1.msra.mxu0 %v754
        %827 = vmatprep.mubr.f32.mxu0 %v720
        %828 = vmatmul.mubr.f32.gmra.mrb[0].mxu0 %v719
        %v829 = vpop.f32.mrb[0].mxu0
        %v830 = vadd.f32 0.0, %v829
        %v831 = vpop.f32.mrb[0].mxu0
        %832 = vmatprep.mubr.f32.mxu0 %v722
        %833 = vmatmul.mubr.f32.gmra.mrb[0].mxu0 %v721
        %v834 = vpop.f32.mrb[0].mxu0
        %v835 = vadd.f32 0.0, %v834
        %v836 = vpop.f32.mrb[0].mxu0
        %837 = vdwg.mxu0
        %v838 = vld [vmem:[%s4] sm:$0xff]
        %v839 = vld [vmem:[%s5] sm:$0xff]
        %841 = vset.pattern.permute.xlu0 0
        %842 = vperm.xlu0 %841, %v839
        %v843 = vpop.permute.xlu0 %842
        %vm845 = vcmask 130048
        %v847 = vsel %vm845, %v838, 0
        %849 = vmatprep.subr.mxu0 0.0
        %850 = vmatpush1.msra.mxu0 %v830
        %851 = vmatprep.subr.mxu0 0.0
        %852 = vmatpush1.msra.mxu0 %v835
        %853 = vmatprep.subr.mxu0 0.0
        %854 = vmatpush1.msra.mxu0 0.0
        %855 = vmatprep.subr.mxu0 0.0
        %856 = vmatpush1.msra.mxu0 0.0
        %857 = vmatprep.subr.mxu0 0.0
        %858 = vmatpush1.msra.mxu0 0.0
        %859 = vmatprep.subr.mxu0 0.0
        %860 = vmatpush1.msra.mxu0 0.0
        %861 = vmatprep.subr.mxu0 0.0
        %862 = vmatpush1.msra.mxu0 0.0
        %863 = vmatprep.subr.mxu0 0.0
        %864 = vmatpush1.msra.mxu0 0.0
        %865 = vmatprep.subr.mxu0 0.0
        %866 = vmatpush1.msra.mxu0 0.0
        %867 = vmatprep.subr.mxu0 0.0
        %868 = vmatpush1.msra.mxu0 0.0
        %869 = vmatprep.subr.mxu0 0.0
        %870 = vmatpush1.msra.mxu0 0.0
        %871 = vmatprep.subr.mxu0 0.0
        %872 = vmatpush1.msra.mxu0 0.0
        %873 = vmatprep.subr.mxu0 0.0
        %874 = vmatpush1.msra.mxu0 0.0
        %875 = vmatprep.subr.mxu0 0.0
        %876 = vmatpush1.msra.mxu0 0.0
        %877 = vmatprep.subr.mxu0 0.0
        %878 = vmatpush1.msra.mxu0 0.0
        %879 = vmatprep.subr.mxu0 0.0
        %880 = vmatpush1.msra.mxu0 0.0
        %881 = vmatprep.subr.mxu0 0.0
        %882 = vmatpush1.msra.mxu0 0.0
        %883 = vmatprep.subr.mxu0 0.0
        %884 = vmatpush1.msra.mxu0 0.0
        %885 = vmatprep.subr.mxu0 0.0
        %886 = vmatpush1.msra.mxu0 0.0
        %887 = vmatprep.subr.mxu0 0.0
        %888 = vmatpush1.msra.mxu0 0.0
        %889 = vmatprep.subr.mxu0 0.0
        %890 = vmatpush1.msra.mxu0 0.0
        %891 = vmatprep.subr.mxu0 0.0
        %892 = vmatpush1.msra.mxu0 0.0
        %893 = vmatprep.subr.mxu0 0.0
        %894 = vmatpush1.msra.mxu0 0.0
        %895 = vmatprep.subr.mxu0 0.0
        %896 = vmatpush1.msra.mxu0 0.0
        %897 = vmatprep.subr.mxu0 0.0
        %898 = vmatpush1.msra.mxu0 0.0
        %899 = vmatprep.subr.mxu0 0.0
        %900 = vmatpush1.msra.mxu0 0.0
        %901 = vmatprep.subr.mxu0 0.0
        %902 = vmatpush1.msra.mxu0 0.0
        %903 = vmatprep.subr.mxu0 0.0
        %904 = vmatpush1.msra.mxu0 0.0
        %905 = vmatprep.subr.mxu0 0.0
        %906 = vmatpush1.msra.mxu0 0.0
        %907 = vmatprep.subr.mxu0 0.0
        %908 = vmatpush1.msra.mxu0 0.0
        %909 = vmatprep.subr.mxu0 0.0
        %910 = vmatpush1.msra.mxu0 0.0
        %911 = vmatprep.subr.mxu0 0.0
        %912 = vmatpush1.msra.mxu0 0.0
        %913 = vmatprep.mubr.f32.mxu0 0.0
        %914 = vmatmul.mubr.f32.gmra.mrb[0].mxu0 %v847
        %v915 = vpop.f32.mrb[0].mxu0
        %v916 = vadd.f32 %v843, %v915
        %v917 = vpop.f32.mrb[0].mxu0
        %918 = vdwg.mxu0
        %v919 = vadd.f32 %v916, 3.0
        %v920 = vmax.f32 %v919, 0.0
        %v921 = vmin.f32 %v920, 6.0
        %v922 = vmul.f32 %v916, %v921
        %v923 = vmul.f32 %v922, 0.16666667
        %v924 = vld [vmem:[%s6] sm:$0xff]
        %v925 = vld [vmem:[%s6 + $0x8] sm:$0xff]
        %v926 = vld [vmem:[%s7] sm:$0xff]
        %v927 = vld [vmem:[%s7 + $0x8] sm:$0xff]
        %929 = vset.pattern.permute.xlu0 0
        %930 = vperm.xlu0 %929, %v926
        %v931 = vpop.permute.xlu0 %930
        %934 = vset.pattern.permute.xlu0 0
        %935 = vperm.xlu0 %934, %v927
        %v936 = vpop.permute.xlu0 %935
        %vm938 = vcmask 64512
        %v940 = vsel %vm938, %v924, 0
        %v943 = vsel %vm938, %v925, 0
        %945 = vmatprep.subr.mxu0 0.0
        %946 = vmatpush1.msra.mxu0 %v923
        %947 = vmatprep.subr.mxu0 0.0
        %948 = vmatpush1.msra.mxu0 0.0
        %949 = vmatprep.subr.mxu0 0.0
        %950 = vmatpush1.msra.mxu0 0.0
        %951 = vmatprep.subr.mxu0 0.0
        %952 = vmatpush1.msra.mxu0 0.0
        %953 = vmatprep.subr.mxu0 0.0
        %954 = vmatpush1.msra.mxu0 0.0
        %955 = vmatprep.subr.mxu0 0.0
        %956 = vmatpush1.msra.mxu0 0.0
        %957 = vmatprep.subr.mxu0 0.0
        %958 = vmatpush1.msra.mxu0 0.0
        %959 = vmatprep.subr.mxu0 0.0
        %960 = vmatpush1.msra.mxu0 0.0
        %961 = vmatprep.subr.mxu0 0.0
        %962 = vmatpush1.msra.mxu0 0.0
        %963 = vmatprep.subr.mxu0 0.0
        %964 = vmatpush1.msra.mxu0 0.0
        %965 = vmatprep.subr.mxu0 0.0
        %966 = vmatpush1.msra.mxu0 0.0
        %967 = vmatprep.subr.mxu0 0.0
        %968 = vmatpush1.msra.mxu0 0.0
        %969 = vmatprep.subr.mxu0 0.0
        %970 = vmatpush1.msra.mxu0 0.0
        %971 = vmatprep.subr.mxu0 0.0
        %972 = vmatpush1.msra.mxu0 0.0
        %973 = vmatprep.subr.mxu0 0.0
        %974 = vmatpush1.msra.mxu0 0.0
        %975 = vmatprep.subr.mxu0 0.0
        %976 = vmatpush1.msra.mxu0 0.0
        %977 = vmatprep.subr.mxu0 0.0
        %978 = vmatpush1.msra.mxu0 0.0
        %979 = vmatprep.subr.mxu0 0.0
        %980 = vmatpush1.msra.mxu0 0.0
        %981 = vmatprep.subr.mxu0 0.0
        %982 = vmatpush1.msra.mxu0 0.0
        %983 = vmatprep.subr.mxu0 0.0
        %984 = vmatpush1.msra.mxu0 0.0
        %985 = vmatprep.subr.mxu0 0.0
        %986 = vmatpush1.msra.mxu0 0.0
        %987 = vmatprep.subr.mxu0 0.0
        %988 = vmatpush1.msra.mxu0 0.0
        %989 = vmatprep.subr.mxu0 0.0
        %990 = vmatpush1.msra.mxu0 0.0
        %991 = vmatprep.subr.mxu0 0.0
        %992 = vmatpush1.msra.mxu0 0.0
        %993 = vmatprep.subr.mxu0 0.0
        %994 = vmatpush1.msra.mxu0 0.0
        %995 = vmatprep.subr.mxu0 0.0
        %996 = vmatpush1.msra.mxu0 0.0
        %997 = vmatprep.subr.mxu0 0.0
        %998 = vmatpush1.msra.mxu0 0.0
        %999 = vmatprep.subr.mxu0 0.0
        %1000 = vmatpush1.msra.mxu0 0.0
        %1001 = vmatprep.subr.mxu0 0.0
        %1002 = vmatpush1.msra.mxu0 0.0
        %1003 = vmatprep.subr.mxu0 0.0
        %1004 = vmatpush1.msra.mxu0 0.0
        %1005 = vmatprep.subr.mxu0 0.0
        %1006 = vmatpush1.msra.mxu0 0.0
        %1007 = vmatprep.subr.mxu0 0.0
        %1008 = vmatpush1.msra.mxu0 0.0
        %1009 = vmatprep.mubr.f32.mxu0 0.0
        %1010 = vmatmul.mubr.f32.gmra.mrb[0].mxu0 %v940
        %v1011 = vpop.f32.mrb[0].mxu0
        %v1012 = vadd.f32 %v931, %v1011
        %v1013 = vpop.f32.mrb[0].mxu0
        %1014 = vmatprep.mubr.f32.mxu0 0.0
        %1015 = vmatmul.mubr.f32.gmra.mrb[0].mxu0 %v943
        %v1016 = vpop.f32.mrb[0].mxu0
        %v1017 = vadd.f32 %v936, %v1016
        %v1018 = vpop.f32.mrb[0].mxu0
        %1019 = vdwg.mxu0
        %v1020 = vxor.u32 %v1012, 2147483648
        %v1021 = vxor.u32 %v1017, 2147483648
        %v1022 = vmul.f32 %v1020, 1.442695
        %v1023 = vpow.pop %v1022
        %v1024 = vmul.f32 %v1021, 1.442695
        %v1025 = vpow.pop %v1024
        %v1026 = vadd.f32 %v1023, 1.0
        %v1027 = vadd.f32 %v1025, 1.0
        %v1028 = vrcp.pop %v1026
        %v1029 = vmul.f32 1.0, %v1028
        %v1030 = vrcp.pop %v1027
        %v1031 = vmul.f32 1.0, %v1030
        %v1032 = vld [vmem:[%s8] sm:$0xff]
        %v1033 = vld [vmem:[%s8 + $0x8] sm:$0xff]
        %v1034 = vld [vmem:[%s9] sm:$0xff]
        %v1035 = vld [vmem:[%s9 + $0x8] sm:$0xff]
        %1037 = vset.pattern.permute.xlu0 0
        %1038 = vperm.xlu0 %1037, %v1034
        %v1039 = vpop.permute.xlu0 %1038
        %1042 = vset.pattern.permute.xlu0 0
        %1043 = vperm.xlu0 %1042, %v1035
        %v1044 = vpop.permute.xlu0 %1043
        %1047 = vrot.lane.b32.xlu0 %v923, 112
        %v1048 = vpop.permute.xlu0 %1047
        %v1051 = vsel %vm938, %v1032, 0
        %v1054 = vsel %vm938, %v1033, 0
        %1056 = vmatprep.subr.mxu0 0.0
        %1057 = vmatpush1.msra.mxu0 %v1048
        %1058 = vmatprep.subr.mxu0 0.0
        %1059 = vmatpush1.msra.mxu0 0.0
        %1060 = vmatprep.subr.mxu0 0.0
        %1061 = vmatpush1.msra.mxu0 0.0
        %1062 = vmatprep.subr.mxu0 0.0
        %1063 = vmatpush1.msra.mxu0 0.0
        %1064 = vmatprep.subr.mxu0 0.0
        %1065 = vmatpush1.msra.mxu0 0.0
        %1066 = vmatprep.subr.mxu0 0.0
        %1067 = vmatpush1.msra.mxu0 0.0
        %1068 = vmatprep.subr.mxu0 0.0
        %1069 = vmatpush1.msra.mxu0 0.0
        %1070 = vmatprep.subr.mxu0 0.0
        %1071 = vmatpush1.msra.mxu0 0.0
        %1072 = vmatprep.subr.mxu0 0.0
        %1073 = vmatpush1.msra.mxu0 0.0
        %1074 = vmatprep.subr.mxu0 0.0
        %1075 = vmatpush1.msra.mxu0 0.0
        %1076 = vmatprep.subr.mxu0 0.0
        %1077 = vmatpush1.msra.mxu0 0.0
        %1078 = vmatprep.subr.mxu0 0.0
        %1079 = vmatpush1.msra.mxu0 0.0
        %1080 = vmatprep.subr.mxu0 0.0
        %1081 = vmatpush1.msra.mxu0 0.0
        %1082 = vmatprep.subr.mxu0 0.0
        %1083 = vmatpush1.msra.mxu0 0.0
        %1084 = vmatprep.subr.mxu0 0.0
        %1085 = vmatpush1.msra.mxu0 0.0
        %1086 = vmatprep.subr.mxu0 0.0
        %1087 = vmatpush1.msra.mxu0 0.0
        %1088 = vmatprep.subr.mxu0 0.0
        %1089 = vmatpush1.msra.mxu0 0.0
        %1090 = vmatprep.subr.mxu0 0.0
        %1091 = vmatpush1.msra.mxu0 0.0
        %1092 = vmatprep.subr.mxu0 0.0
        %1093 = vmatpush1.msra.mxu0 0.0
        %1094 = vmatprep.subr.mxu0 0.0
        %1095 = vmatpush1.msra.mxu0 0.0
        %1096 = vmatprep.subr.mxu0 0.0
        %1097 = vmatpush1.msra.mxu0 0.0
        %1098 = vmatprep.subr.mxu0 0.0
        %1099 = vmatpush1.msra.mxu0 0.0
        %1100 = vmatprep.subr.mxu0 0.0
        %1101 = vmatpush1.msra.mxu0 0.0
        %1102 = vmatprep.subr.mxu0 0.0
        %1103 = vmatpush1.msra.mxu0 0.0
        %1104 = vmatprep.subr.mxu0 0.0
        %1105 = vmatpush1.msra.mxu0 0.0
        %1106 = vmatprep.subr.mxu0 0.0
        %1107 = vmatpush1.msra.mxu0 0.0
        %1108 = vmatprep.subr.mxu0 0.0
        %1109 = vmatpush1.msra.mxu0 0.0
        %1110 = vmatprep.subr.mxu0 0.0
        %1111 = vmatpush1.msra.mxu0 0.0
        %1112 = vmatprep.subr.mxu0 0.0
        %1113 = vmatpush1.msra.mxu0 0.0
        %1114 = vmatprep.subr.mxu0 0.0
        %1115 = vmatpush1.msra.mxu0 0.0
        %1116 = vmatprep.subr.mxu0 0.0
        %1117 = vmatpush1.msra.mxu0 0.0
        %1118 = vmatprep.subr.mxu0 0.0
        %1119 = vmatpush1.msra.mxu0 0.0
        %1120 = vmatprep.mubr.f32.mxu0 0.0
        %1121 = vmatmul.mubr.f32.gmra.mrb[0].mxu0 %v1051
        %v1122 = vpop.f32.mrb[0].mxu0
        %v1123 = vadd.f32 %v1039, %v1122
        %v1124 = vpop.f32.mrb[0].mxu0
        %1125 = vmatprep.mubr.f32.mxu0 0.0
        %1126 = vmatmul.mubr.f32.gmra.mrb[0].mxu0 %v1054
        %v1127 = vpop.f32.mrb[0].mxu0
        %v1128 = vadd.f32 %v1044, %v1127
        %v1129 = vpop.f32.mrb[0].mxu0
        %1130 = vdwg.mxu0
        %v1131 = vxor.u32 %v1123, 2147483648
        %v1132 = vxor.u32 %v1128, 2147483648
        %v1133 = vmul.f32 %v1131, 1.442695
        %v1134 = vpow.pop %v1133
        %v1135 = vmul.f32 %v1132, 1.442695
        %v1136 = vpow.pop %v1135
        %v1137 = vadd.f32 %v1134, 1.0
        %v1138 = vadd.f32 %v1136, 1.0
        %v1139 = vrcp.pop %v1137
        %v1140 = vmul.f32 1.0, %v1139
        %v1141 = vrcp.pop %v1138
        %v1142 = vmul.f32 1.0, %v1141
        %v1144 = vsel %vm845, %v1029, 0
        %v1147 = vsel %vm845, %v1031, 0
        %1149 = vmatprep.subr.mxu0 %v756
        %1150 = vmatpush1.msra.mxu0 %v755
        %1151 = vmatprep.subr.mxu0 %v758
        %1152 = vmatpush1.msra.mxu0 %v757
        %1153 = vmatprep.subr.mxu0 0.0
        %1154 = vmatpush1.msra.mxu0 0.0
        %1155 = vmatprep.subr.mxu0 0.0
        %1156 = vmatpush1.msra.mxu0 0.0
        %1157 = vmatprep.subr.mxu0 0.0
        %1158 = vmatpush1.msra.mxu0 0.0
        %1159 = vmatprep.subr.mxu0 0.0
        %1160 = vmatpush1.msra.mxu0 0.0
        %1161 = vmatprep.subr.mxu0 0.0
        %1162 = vmatpush1.msra.mxu0 0.0
        %1163 = vmatprep.subr.mxu0 0.0
        %1164 = vmatpush1.msra.mxu0 0.0
        %1165 = vmatprep.subr.mxu0 0.0
        %1166 = vmatpush1.msra.mxu0 0.0
        %1167 = vmatprep.subr.mxu0 0.0
        %1168 = vmatpush1.msra.mxu0 0.0
        %1169 = vmatprep.subr.mxu0 0.0
        %1170 = vmatpush1.msra.mxu0 0.0
        %1171 = vmatprep.subr.mxu0 0.0
        %1172 = vmatpush1.msra.mxu0 0.0
        %1173 = vmatprep.subr.mxu0 0.0
        %1174 = vmatpush1.msra.mxu0 0.0
        %1175 = vmatprep.subr.mxu0 0.0
        %1176 = vmatpush1.msra.mxu0 0.0
        %1177 = vmatprep.subr.mxu0 0.0
        %1178 = vmatpush1.msra.mxu0 0.0
        %1179 = vmatprep.subr.mxu0 0.0
        %1180 = vmatpush1.msra.mxu0 0.0
        %1181 = vmatprep.subr.mxu0 0.0
        %1182 = vmatpush1.msra.mxu0 0.0
        %1183 = vmatprep.subr.mxu0 0.0
        %1184 = vmatpush1.msra.mxu0 0.0
        %1185 = vmatprep.subr.mxu0 0.0
        %1186 = vmatpush1.msra.mxu0 0.0
        %1187 = vmatprep.subr.mxu0 0.0
        %1188 = vmatpush1.msra.mxu0 0.0
        %1189 = vmatprep.subr.mxu0 0.0
        %1190 = vmatpush1.msra.mxu0 0.0
        %1191 = vmatprep.subr.mxu0 0.0
        %1192 = vmatpush1.msra.mxu0 0.0
        %1193 = vmatprep.subr.mxu0 0.0
        %1194 = vmatpush1.msra.mxu0 0.0
        %1195 = vmatprep.subr.mxu0 0.0
        %1196 = vmatpush1.msra.mxu0 0.0
        %1197 = vmatprep.subr.mxu0 0.0
        %1198 = vmatpush1.msra.mxu0 0.0
        %1199 = vmatprep.subr.mxu0 0.0
        %1200 = vmatpush1.msra.mxu0 0.0
        %1201 = vmatprep.subr.mxu0 0.0
        %1202 = vmatpush1.msra.mxu0 0.0
        %1203 = vmatprep.subr.mxu0 0.0
        %1204 = vmatpush1.msra.mxu0 0.0
        %1205 = vmatprep.subr.mxu0 0.0
        %1206 = vmatpush1.msra.mxu0 0.0
        %1207 = vmatprep.subr.mxu0 0.0
        %1208 = vmatpush1.msra.mxu0 0.0
        %1209 = vmatprep.subr.mxu0 0.0
        %1210 = vmatpush1.msra.mxu0 0.0
        %1211 = vmatprep.subr.mxu0 0.0
        %1212 = vmatpush1.msra.mxu0 0.0
        %1213 = vmatprep.mubr.f32.mxu0 0.0
        %1214 = vmatmul.mubr.f32.gmra.mrb[0].mxu0 %v1144
        %v1215 = vpop.f32.mrb[0].mxu0
        %v1216 = vadd.f32 0.0, %v1215
        %v1217 = vpop.f32.mrb[0].mxu0
        %v1218 = vadd.f32 0.0, %v1217
        %1219 = vmatprep.mubr.f32.mxu0 0.0
        %1220 = vmatmul.mubr.f32.gmra.mrb[0].mxu0 %v1147
        %v1221 = vpop.f32.mrb[0].mxu0
        %v1222 = vadd.f32 0.0, %v1221
        %v1223 = vpop.f32.mrb[0].mxu0
        %v1224 = vadd.f32 0.0, %v1223
        %1225 = vdwg.mxu0
        %v1227 = vsel %vm845, %v1140, 0
        %v1230 = vsel %vm845, %v1142, 0
        %1232 = vmatprep.subr.mxu0 %v760
        %1233 = vmatpush1.msra.mxu0 %v759
        %1234 = vmatprep.subr.mxu0 %v762
        %1235 = vmatpush1.msra.mxu0 %v761
        %1236 = vmatprep.subr.mxu0 0.0
        %1237 = vmatpush1.msra.mxu0 0.0
        %1238 = vmatprep.subr.mxu0 0.0
        %1239 = vmatpush1.msra.mxu0 0.0
        %1240 = vmatprep.subr.mxu0 0.0
        %1241 = vmatpush1.msra.mxu0 0.0
        %1242 = vmatprep.subr.mxu0 0.0
        %1243 = vmatpush1.msra.mxu0 0.0
        %1244 = vmatprep.subr.mxu0 0.0
        %1245 = vmatpush1.msra.mxu0 0.0
        %1246 = vmatprep.subr.mxu0 0.0
        %1247 = vmatpush1.msra.mxu0 0.0
        %1248 = vmatprep.subr.mxu0 0.0
        %1249 = vmatpush1.msra.mxu0 0.0
        %1250 = vmatprep.subr.mxu0 0.0
        %1251 = vmatpush1.msra.mxu0 0.0
        %1252 = vmatprep.subr.mxu0 0.0
        %1253 = vmatpush1.msra.mxu0 0.0
        %1254 = vmatprep.subr.mxu0 0.0
        %1255 = vmatpush1.msra.mxu0 0.0
        %1256 = vmatprep.subr.mxu0 0.0
        %1257 = vmatpush1.msra.mxu0 0.0
        %1258 = vmatprep.subr.mxu0 0.0
        %1259 = vmatpush1.msra.mxu0 0.0
        %1260 = vmatprep.subr.mxu0 0.0
        %1261 = vmatpush1.msra.mxu0 0.0
        %1262 = vmatprep.subr.mxu0 0.0
        %1263 = vmatpush1.msra.mxu0 0.0
        %1264 = vmatprep.subr.mxu0 0.0
        %1265 = vmatpush1.msra.mxu0 0.0
        %1266 = vmatprep.subr.mxu0 0.0
        %1267 = vmatpush1.msra.mxu0 0.0
        %1268 = vmatprep.subr.mxu0 0.0
        %1269 = vmatpush1.msra.mxu0 0.0
        %1270 = vmatprep.subr.mxu0 0.0
        %1271 = vmatpush1.msra.mxu0 0.0
        %1272 = vmatprep.subr.mxu0 0.0
        %1273 = vmatpush1.msra.mxu0 0.0
        %1274 = vmatprep.subr.mxu0 0.0
        %1275 = vmatpush1.msra.mxu0 0.0
        %1276 = vmatprep.subr.mxu0 0.0
        %1277 = vmatpush1.msra.mxu0 0.0
        %1278 = vmatprep.subr.mxu0 0.0
        %1279 = vmatpush1.msra.mxu0 0.0
        %1280 = vmatprep.subr.mxu0 0.0
        %1281 = vmatpush1.msra.mxu0 0.0
        %1282 = vmatprep.subr.mxu0 0.0
        %1283 = vmatpush1.msra.mxu0 0.0
        %1284 = vmatprep.subr.mxu0 0.0
        %1285 = vmatpush1.msra.mxu0 0.0
        %1286 = vmatprep.subr.mxu0 0.0
        %1287 = vmatpush1.msra.mxu0 0.0
        %1288 = vmatprep.subr.mxu0 0.0
        %1289 = vmatpush1.msra.mxu0 0.0
        %1290 = vmatprep.subr.mxu0 0.0
        %1291 = vmatpush1.msra.mxu0 0.0
        %1292 = vmatprep.subr.mxu0 0.0
        %1293 = vmatpush1.msra.mxu0 0.0
        %1294 = vmatprep.subr.mxu0 0.0
        %1295 = vmatpush1.msra.mxu0 0.0
        %1296 = vmatprep.mubr.f32.mxu0 0.0
        %1297 = vmatmul.mubr.f32.gmra.mrb[0].mxu0 %v1227
        %v1298 = vpop.f32.mrb[0].mxu0
        %v1299 = vadd.f32 0.0, %v1298
        %v1300 = vpop.f32.mrb[0].mxu0
        %v1301 = vadd.f32 0.0, %v1300
        %1302 = vmatprep.mubr.f32.mxu0 0.0
        %1303 = vmatmul.mubr.f32.gmra.mrb[0].mxu0 %v1230
        %v1304 = vpop.f32.mrb[0].mxu0
        %v1305 = vadd.f32 0.0, %v1304
        %v1306 = vpop.f32.mrb[0].mxu0
        %v1307 = vadd.f32 0.0, %v1306
        %1308 = vdwg.mxu0
        %v1309 = vmul.f32 %v1216, %v1299
        %v1310 = vmul.f32 %v1218, %v1301
        %v1311 = vmul.f32 %v1222, %v1305
        %v1312 = vmul.f32 %v1224, %v1307
        %v1317 = vcombine.low %v719, %v720
        %v1318 = vcombine.high %v719, %v720
        %v1320 = vunpack.c.l.s4 1983009808
        %v1321 = vunpack.c.0.s8 %v1320
        %v1322 = vlaneseq
        %v1323 = vshrl.u32 %v1322, 7
        %v1324 = vsub.s32 %v1321, %v1323
        %v1325 = vrot.slane %v1317, %v1324
        %v1327 = vunpack.c.l.s4 1983009808
        %v1328 = vunpack.c.0.s8 %v1327
        %v1329 = vlaneseq
        %v1330 = vshrl.u32 %v1329, 7
        %v1331 = vsub.s32 %v1328, %v1330
        %v1332 = vrot.slane %v1318, %v1331
        %v1333 = vcombine.high %v1325, %v1325
        %v1334 = vcombine.high %v1332, %v1332
        %v1335 = vcombine.low %v721, %v722
        %v1336 = vcombine.high %v721, %v722
        %v1338 = vunpack.c.l.s4 1983009808
        %v1339 = vunpack.c.0.s8 %v1338
        %v1340 = vlaneseq
        %v1341 = vshrl.u32 %v1340, 7
        %v1342 = vsub.s32 %v1339, %v1341
        %v1343 = vrot.slane %v1335, %v1342
        %v1345 = vunpack.c.l.s4 1983009808
        %v1346 = vunpack.c.0.s8 %v1345
        %v1347 = vlaneseq
        %v1348 = vshrl.u32 %v1347, 7
        %v1349 = vsub.s32 %v1346, %v1348
        %v1350 = vrot.slane %v1336, %v1349
        %v1351 = vcombine.high %v1343, %v1343
        %v1352 = vcombine.high %v1350, %v1350
        %v1363 = vcombine.high %v830, %v830
        %v1365 = vunpack.c.l.s4 1983009808
        %v1366 = vunpack.c.0.s8 %v1365
        %v1367 = vlaneseq
        %v1368 = vshrl.u32 %v1367, 7
        %v1369 = vsub.s32 %v1366, %v1368
        %v1370 = vrot.slane %v830, %v1369
        %v1372 = vunpack.c.l.s4 1983009808
        %v1373 = vunpack.c.0.s8 %v1372
        %v1374 = vlaneseq
        %v1375 = vshrl.u32 %v1374, 7
        %v1376 = vsub.s32 %v1373, %v1375
        %v1377 = vrot.slane %v1363, %v1376
        %v1378 = vcombine.high %v1370, %v1370
        %v1379 = vcombine.high %v1377, %v1377
        %v1380 = vcombine.high %v835, %v835
        %v1382 = vunpack.c.l.s4 1983009808
        %v1383 = vunpack.c.0.s8 %v1382
        %v1384 = vlaneseq
        %v1385 = vshrl.u32 %v1384, 7
        %v1386 = vsub.s32 %v1383, %v1385
        %v1387 = vrot.slane %v835, %v1386
        %v1389 = vunpack.c.l.s4 1983009808
        %v1390 = vunpack.c.0.s8 %v1389
        %v1391 = vlaneseq
        %v1392 = vshrl.u32 %v1391, 7
        %v1393 = vsub.s32 %v1390, %v1392
        %v1394 = vrot.slane %v1380, %v1393
        %v1395 = vcombine.high %v1387, %v1387
        %v1396 = vcombine.high %v1394, %v1394
        %s1405 = sld [smem:[#allocation2]]
        %v1406 = vstv %s1405
        %v1407 = vmul.f32 %v1406, %v1370
        %v1408 = vmul.f32 %v1406, %v1378
        %v1409 = vmul.f32 %v1406, %v1377
        %v1410 = vmul.f32 %v1406, %v1379
        %v1411 = vmul.f32 %v1406, %v1387
        %v1412 = vmul.f32 %v1406, %v1395
        %v1413 = vmul.f32 %v1406, %v1394
        %v1414 = vmul.f32 %v1406, %v1396
        %s1415 = sld [smem:[#allocation2 + $0x1]]
        %v1416 = vstv %s1415
        %v1417 = vmul.f32 %v1416, %v1370
        %v1418 = vmul.f32 %v1416, %v1378
        %v1419 = vmul.f32 %v1416, %v1377
        %v1420 = vmul.f32 %v1416, %v1379
        %v1421 = vmul.f32 %v1416, %v1387
        %v1422 = vmul.f32 %v1416, %v1395
        %v1423 = vmul.f32 %v1416, %v1394
        %v1424 = vmul.f32 %v1416, %v1396
        %v1433 = vrot.slane %v1417, 7
        %v1434 = vrot.slane %v1433, 2
        %v1435 = vrot.slane %v1418, 7
        %v1436 = vrot.slane %v1435, 2
        %v1437 = vrot.slane %v1419, 7
        %v1438 = vrot.slane %v1437, 2
        %v1439 = vrot.slane %v1420, 7
        %v1440 = vrot.slane %v1439, 2
        %v1441 = vrot.slane %v1421, 7
        %v1442 = vrot.slane %v1441, 2
        %v1443 = vrot.slane %v1422, 7
        %v1444 = vrot.slane %v1443, 2
        %v1445 = vrot.slane %v1423, 7
        %v1446 = vrot.slane %v1445, 2
        %v1447 = vrot.slane %v1424, 7
        %v1448 = vrot.slane %v1447, 2
        %v1457 = vadd.f32 %v1407, %v1434
        %v1458 = vadd.f32 %v1408, %v1436
        %v1459 = vadd.f32 %v1409, %v1438
        %v1460 = vadd.f32 %v1410, %v1440
        %v1461 = vadd.f32 %v1411, %v1442
        %v1462 = vadd.f32 %v1412, %v1444
        %v1463 = vadd.f32 %v1413, %v1446
        %v1464 = vadd.f32 %v1414, %v1448
        %s1465 = sld [smem:[#allocation4]]
        %v1466 = vstv %s1465
        %v1467 = vadd.f32 %v1457, %v1466
        %v1468 = vadd.f32 %v1458, %v1466
        %v1469 = vadd.f32 %v1459, %v1466
        %v1470 = vadd.f32 %v1460, %v1466
        %v1471 = vadd.f32 %v1461, %v1466
        %v1472 = vadd.f32 %v1462, %v1466
        %v1473 = vadd.f32 %v1463, %v1466
        %v1474 = vadd.f32 %v1464, %v1466
        %v1475 = vxor.u32 %v1467, 2147483648
        %v1476 = vxor.u32 %v1468, 2147483648
        %v1477 = vxor.u32 %v1469, 2147483648
        %v1478 = vxor.u32 %v1470, 2147483648
        %v1479 = vxor.u32 %v1471, 2147483648
        %v1480 = vxor.u32 %v1472, 2147483648
        %v1481 = vxor.u32 %v1473, 2147483648
        %v1482 = vxor.u32 %v1474, 2147483648
        %v1483 = vmul.f32 %v1475, 1.442695
        %v1484 = vpow.pop %v1483
        %v1485 = vmul.f32 %v1476, 1.442695
        %v1486 = vpow.pop %v1485
        %v1487 = vmul.f32 %v1477, 1.442695
        %v1488 = vpow.pop %v1487
        %v1489 = vmul.f32 %v1478, 1.442695
        %v1490 = vpow.pop %v1489
        %v1491 = vmul.f32 %v1479, 1.442695
        %v1492 = vpow.pop %v1491
        %v1493 = vmul.f32 %v1480, 1.442695
        %v1494 = vpow.pop %v1493
        %v1495 = vmul.f32 %v1481, 1.442695
        %v1496 = vpow.pop %v1495
        %v1497 = vmul.f32 %v1482, 1.442695
        %v1498 = vpow.pop %v1497
        %v1499 = vadd.f32 %v1484, 1.0
        %v1500 = vadd.f32 %v1486, 1.0
        %v1501 = vadd.f32 %v1488, 1.0
        %v1502 = vadd.f32 %v1490, 1.0
        %v1503 = vadd.f32 %v1492, 1.0
        %v1504 = vadd.f32 %v1494, 1.0
        %v1505 = vadd.f32 %v1496, 1.0
        %v1506 = vadd.f32 %v1498, 1.0
        %v1507 = vrcp.pop %v1499
        %v1508 = vmul.f32 1.0, %v1507
        %v1509 = vrcp.pop %v1500
        %v1510 = vmul.f32 1.0, %v1509
        %v1511 = vrcp.pop %v1501
        %v1512 = vmul.f32 1.0, %v1511
        %v1513 = vrcp.pop %v1502
        %v1514 = vmul.f32 1.0, %v1513
        %v1515 = vrcp.pop %v1503
        %v1516 = vmul.f32 1.0, %v1515
        %v1517 = vrcp.pop %v1504
        %v1518 = vmul.f32 1.0, %v1517
        %v1519 = vrcp.pop %v1505
        %v1520 = vmul.f32 1.0, %v1519
        %v1521 = vrcp.pop %v1506
        %v1522 = vmul.f32 1.0, %v1521
        %s1523 = sld [smem:[#allocation2 + $0x2]]
        %v1524 = vstv %s1523
        %v1525 = vmul.f32 %v1524, %v1370
        %v1526 = vmul.f32 %v1524, %v1378
        %v1527 = vmul.f32 %v1524, %v1377
        %v1528 = vmul.f32 %v1524, %v1379
        %v1529 = vmul.f32 %v1524, %v1387
        %v1530 = vmul.f32 %v1524, %v1395
        %v1531 = vmul.f32 %v1524, %v1394
        %v1532 = vmul.f32 %v1524, %v1396
        %s1533 = sld [smem:[#allocation2 + $0x3]]
        %v1534 = vstv %s1533
        %v1535 = vmul.f32 %v1534, %v1370
        %v1536 = vmul.f32 %v1534, %v1378
        %v1537 = vmul.f32 %v1534, %v1377
        %v1538 = vmul.f32 %v1534, %v1379
        %v1539 = vmul.f32 %v1534, %v1387
        %v1540 = vmul.f32 %v1534, %v1395
        %v1541 = vmul.f32 %v1534, %v1394
        %v1542 = vmul.f32 %v1534, %v1396
        %v1551 = vrot.slane %v1535, 7
        %v1552 = vrot.slane %v1551, 2
        %v1553 = vrot.slane %v1536, 7
        %v1554 = vrot.slane %v1553, 2
        %v1555 = vrot.slane %v1537, 7
        %v1556 = vrot.slane %v1555, 2
        %v1557 = vrot.slane %v1538, 7
        %v1558 = vrot.slane %v1557, 2
        %v1559 = vrot.slane %v1539, 7
        %v1560 = vrot.slane %v1559, 2
        %v1561 = vrot.slane %v1540, 7
        %v1562 = vrot.slane %v1561, 2
        %v1563 = vrot.slane %v1541, 7
        %v1564 = vrot.slane %v1563, 2
        %v1565 = vrot.slane %v1542, 7
        %v1566 = vrot.slane %v1565, 2
        %v1575 = vadd.f32 %v1525, %v1552
        %v1576 = vadd.f32 %v1526, %v1554
        %v1577 = vadd.f32 %v1527, %v1556
        %v1578 = vadd.f32 %v1528, %v1558
        %v1579 = vadd.f32 %v1529, %v1560
        %v1580 = vadd.f32 %v1530, %v1562
        %v1581 = vadd.f32 %v1531, %v1564
        %v1582 = vadd.f32 %v1532, %v1566
        %s1583 = sld [smem:[#allocation4 + $0x1]]
        %v1584 = vstv %s1583
        %v1585 = vadd.f32 %v1575, %v1584
        %v1586 = vadd.f32 %v1576, %v1584
        %v1587 = vadd.f32 %v1577, %v1584
        %v1588 = vadd.f32 %v1578, %v1584
        %v1589 = vadd.f32 %v1579, %v1584
        %v1590 = vadd.f32 %v1580, %v1584
        %v1591 = vadd.f32 %v1581, %v1584
        %v1592 = vadd.f32 %v1582, %v1584
        %v1593 = vxor.u32 %v1585, 2147483648
        %v1594 = vxor.u32 %v1586, 2147483648
        %v1595 = vxor.u32 %v1587, 2147483648
        %v1596 = vxor.u32 %v1588, 2147483648
        %v1597 = vxor.u32 %v1589, 2147483648
        %v1598 = vxor.u32 %v1590, 2147483648
        %v1599 = vxor.u32 %v1591, 2147483648
        %v1600 = vxor.u32 %v1592, 2147483648
        %v1601 = vmul.f32 %v1593, 1.442695
        %v1602 = vpow.pop %v1601
        %v1603 = vmul.f32 %v1594, 1.442695
        %v1604 = vpow.pop %v1603
        %v1605 = vmul.f32 %v1595, 1.442695
        %v1606 = vpow.pop %v1605
        %v1607 = vmul.f32 %v1596, 1.442695
        %v1608 = vpow.pop %v1607
        %v1609 = vmul.f32 %v1597, 1.442695
        %v1610 = vpow.pop %v1609
        %v1611 = vmul.f32 %v1598, 1.442695
        %v1612 = vpow.pop %v1611
        %v1613 = vmul.f32 %v1599, 1.442695
        %v1614 = vpow.pop %v1613
        %v1615 = vmul.f32 %v1600, 1.442695
        %v1616 = vpow.pop %v1615
        %v1617 = vadd.f32 %v1602, 1.0
        %v1618 = vadd.f32 %v1604, 1.0
        %v1619 = vadd.f32 %v1606, 1.0
        %v1620 = vadd.f32 %v1608, 1.0
        %v1621 = vadd.f32 %v1610, 1.0
        %v1622 = vadd.f32 %v1612, 1.0
        %v1623 = vadd.f32 %v1614, 1.0
        %v1624 = vadd.f32 %v1616, 1.0
        %v1625 = vrcp.pop %v1617
        %v1626 = vmul.f32 1.0, %v1625
        %v1627 = vrcp.pop %v1618
        %v1628 = vmul.f32 1.0, %v1627
        %v1629 = vrcp.pop %v1619
        %v1630 = vmul.f32 1.0, %v1629
        %v1631 = vrcp.pop %v1620
        %v1632 = vmul.f32 1.0, %v1631
        %v1633 = vrcp.pop %v1621
        %v1634 = vmul.f32 1.0, %v1633
        %v1635 = vrcp.pop %v1622
        %v1636 = vmul.f32 1.0, %v1635
        %v1637 = vrcp.pop %v1623
        %v1638 = vmul.f32 1.0, %v1637
        %v1639 = vrcp.pop %v1624
        %v1640 = vmul.f32 1.0, %v1639
        %v1649 = vlaneseq
        %v1650 = vshrl.u32 %v1649, 7
        %v1651 = vsub.s32 0, %v1650
        %v1652 = vrot.slane %v1508, %v1651
        %v1653 = vlaneseq
        %v1654 = vshrl.u32 %v1653, 7
        %v1655 = vsub.s32 0, %v1654
        %v1656 = vrot.slane %v1510, %v1655
        %v1657 = vlaneseq
        %v1658 = vshrl.u32 %v1657, 7
        %v1659 = vsub.s32 0, %v1658
        %v1660 = vrot.slane %v1512, %v1659
        %v1661 = vlaneseq
        %v1662 = vshrl.u32 %v1661, 7
        %v1663 = vsub.s32 0, %v1662
        %v1664 = vrot.slane %v1514, %v1663
        %v1665 = vlaneseq
        %v1666 = vshrl.u32 %v1665, 7
        %v1667 = vsub.s32 0, %v1666
        %v1668 = vrot.slane %v1516, %v1667
        %v1669 = vlaneseq
        %v1670 = vshrl.u32 %v1669, 7
        %v1671 = vsub.s32 0, %v1670
        %v1672 = vrot.slane %v1518, %v1671
        %v1673 = vlaneseq
        %v1674 = vshrl.u32 %v1673, 7
        %v1675 = vsub.s32 0, %v1674
        %v1676 = vrot.slane %v1520, %v1675
        %v1677 = vlaneseq
        %v1678 = vshrl.u32 %v1677, 7
        %v1679 = vsub.s32 0, %v1678
        %v1680 = vrot.slane %v1522, %v1679
        %vm1681 = vcmask 1041409
        %v1682 = vsel %vm1681, %v1656, %v1652
        %vm1683 = vcmask 1042434
        %v1684 = vsel %vm1683, %v1660, %v1682
        %vm1685 = vcmask 1043459
        %v1686 = vsel %vm1685, %v1664, %v1684
        %vm1687 = vcmask 1044484
        %v1688 = vsel %vm1687, %v1668, %v1686
        %vm1689 = vcmask 1045509
        %v1690 = vsel %vm1689, %v1672, %v1688
        %vm1691 = vcmask 1046534
        %v1692 = vsel %vm1691, %v1676, %v1690
        %vm1693 = vcmask 1047559
        %v1694 = vsel %vm1693, %v1680, %v1692
        %v1695 = vsel %vm845, %v1694, 0
        %1697 = vmatprep.subr.mxu0 %v756
        %1698 = vmatpush1.msra.mxu0 %v755
        %1699 = vmatprep.subr.mxu0 %v758
        %1700 = vmatpush1.msra.mxu0 %v757
        %1701 = vmatprep.subr.mxu0 0.0
        %1702 = vmatpush1.msra.mxu0 0.0
        %1703 = vmatprep.subr.mxu0 0.0
        %1704 = vmatpush1.msra.mxu0 0.0
        %1705 = vmatprep.subr.mxu0 0.0
        %1706 = vmatpush1.msra.mxu0 0.0
        %1707 = vmatprep.subr.mxu0 0.0
        %1708 = vmatpush1.msra.mxu0 0.0
        %1709 = vmatprep.subr.mxu0 0.0
        %1710 = vmatpush1.msra.mxu0 0.0
        %1711 = vmatprep.subr.mxu0 0.0
        %1712 = vmatpush1.msra.mxu0 0.0
        %1713 = vmatprep.subr.mxu0 0.0
        %1714 = vmatpush1.msra.mxu0 0.0
        %1715 = vmatprep.subr.mxu0 0.0
        %1716 = vmatpush1.msra.mxu0 0.0
        %1717 = vmatprep.subr.mxu0 0.0
        %1718 = vmatpush1.msra.mxu0 0.0
        %1719 = vmatprep.subr.mxu0 0.0
        %1720 = vmatpush1.msra.mxu0 0.0
        %1721 = vmatprep.subr.mxu0 0.0
        %1722 = vmatpush1.msra.mxu0 0.0
        %1723 = vmatprep.subr.mxu0 0.0
        %1724 = vmatpush1.msra.mxu0 0.0
        %1725 = vmatprep.subr.mxu0 0.0
        %1726 = vmatpush1.msra.mxu0 0.0
        %1727 = vmatprep.subr.mxu0 0.0
        %1728 = vmatpush1.msra.mxu0 0.0
        %1729 = vmatprep.subr.mxu0 0.0
        %1730 = vmatpush1.msra.mxu0 0.0
        %1731 = vmatprep.subr.mxu0 0.0
        %1732 = vmatpush1.msra.mxu0 0.0
        %1733 = vmatprep.subr.mxu0 0.0
        %1734 = vmatpush1.msra.mxu0 0.0
        %1735 = vmatprep.subr.mxu0 0.0
        %1736 = vmatpush1.msra.mxu0 0.0
        %1737 = vmatprep.subr.mxu0 0.0
        %1738 = vmatpush1.msra.mxu0 0.0
        %1739 = vmatprep.subr.mxu0 0.0
        %1740 = vmatpush1.msra.mxu0 0.0
        %1741 = vmatprep.subr.mxu0 0.0
        %1742 = vmatpush1.msra.mxu0 0.0
        %1743 = vmatprep.subr.mxu0 0.0
        %1744 = vmatpush1.msra.mxu0 0.0
        %1745 = vmatprep.subr.mxu0 0.0
        %1746 = vmatpush1.msra.mxu0 0.0
        %1747 = vmatprep.subr.mxu0 0.0
        %1748 = vmatpush1.msra.mxu0 0.0
        %1749 = vmatprep.subr.mxu0 0.0
        %1750 = vmatpush1.msra.mxu0 0.0
        %1751 = vmatprep.subr.mxu0 0.0
        %1752 = vmatpush1.msra.mxu0 0.0
        %1753 = vmatprep.subr.mxu0 0.0
        %1754 = vmatpush1.msra.mxu0 0.0
        %1755 = vmatprep.subr.mxu0 0.0
        %1756 = vmatpush1.msra.mxu0 0.0
        %1757 = vmatprep.subr.mxu0 0.0
        %1758 = vmatpush1.msra.mxu0 0.0
        %1759 = vmatprep.subr.mxu0 0.0
        %1760 = vmatpush1.msra.mxu0 0.0
        %1761 = vmatprep.mubr.f32.mxu0 0.0
        %1762 = vmatmul.mubr.f32.gmra.mrb[0].mxu0 %v1695
        %v1763 = vpop.f32.mrb[0].mxu0
        %v1764 = vadd.f32 0.0, %v1763
        %v1765 = vpop.f32.mrb[0].mxu0
        %v1766 = vadd.f32 0.0, %v1765
        %1767 = vdwg.mxu0
        %1768 = vrot.lane.b32.xlu0 %v1694, 112
        %v1769 = vpop.permute.xlu0 %1768
        %v1770 = vsel %vm845, %v1769, 0
        %1772 = vmatprep.subr.mxu0 %v760
        %1773 = vmatpush1.msra.mxu0 %v759
        %1774 = vmatprep.subr.mxu0 %v762
        %1775 = vmatpush1.msra.mxu0 %v761
        %1776 = vmatprep.subr.mxu0 0.0
        %1777 = vmatpush1.msra.mxu0 0.0
        %1778 = vmatprep.subr.mxu0 0.0
        %1779 = vmatpush1.msra.mxu0 0.0
        %1780 = vmatprep.subr.mxu0 0.0
        %1781 = vmatpush1.msra.mxu0 0.0
        %1782 = vmatprep.subr.mxu0 0.0
        %1783 = vmatpush1.msra.mxu0 0.0
        %1784 = vmatprep.subr.mxu0 0.0
        %1785 = vmatpush1.msra.mxu0 0.0
        %1786 = vmatprep.subr.mxu0 0.0
        %1787 = vmatpush1.msra.mxu0 0.0
        %1788 = vmatprep.subr.mxu0 0.0
        %1789 = vmatpush1.msra.mxu0 0.0
        %1790 = vmatprep.subr.mxu0 0.0
        %1791 = vmatpush1.msra.mxu0 0.0
        %1792 = vmatprep.subr.mxu0 0.0
        %1793 = vmatpush1.msra.mxu0 0.0
        %1794 = vmatprep.subr.mxu0 0.0
        %1795 = vmatpush1.msra.mxu0 0.0
        %1796 = vmatprep.subr.mxu0 0.0
        %1797 = vmatpush1.msra.mxu0 0.0
        %1798 = vmatprep.subr.mxu0 0.0
        %1799 = vmatpush1.msra.mxu0 0.0
        %1800 = vmatprep.subr.mxu0 0.0
        %1801 = vmatpush1.msra.mxu0 0.0
        %1802 = vmatprep.subr.mxu0 0.0
        %1803 = vmatpush1.msra.mxu0 0.0
        %1804 = vmatprep.subr.mxu0 0.0
        %1805 = vmatpush1.msra.mxu0 0.0
        %1806 = vmatprep.subr.mxu0 0.0
        %1807 = vmatpush1.msra.mxu0 0.0
        %1808 = vmatprep.subr.mxu0 0.0
        %1809 = vmatpush1.msra.mxu0 0.0
        %1810 = vmatprep.subr.mxu0 0.0
        %1811 = vmatpush1.msra.mxu0 0.0
        %1812 = vmatprep.subr.mxu0 0.0
        %1813 = vmatpush1.msra.mxu0 0.0
        %1814 = vmatprep.subr.mxu0 0.0
        %1815 = vmatpush1.msra.mxu0 0.0
        %1816 = vmatprep.subr.mxu0 0.0
        %1817 = vmatpush1.msra.mxu0 0.0
        %1818 = vmatprep.subr.mxu0 0.0
        %1819 = vmatpush1.msra.mxu0 0.0
        %1820 = vmatprep.subr.mxu0 0.0
        %1821 = vmatpush1.msra.mxu0 0.0
        %1822 = vmatprep.subr.mxu0 0.0
        %1823 = vmatpush1.msra.mxu0 0.0
        %1824 = vmatprep.subr.mxu0 0.0
        %1825 = vmatpush1.msra.mxu0 0.0
        %1826 = vmatprep.subr.mxu0 0.0
        %1827 = vmatpush1.msra.mxu0 0.0
        %1828 = vmatprep.subr.mxu0 0.0
        %1829 = vmatpush1.msra.mxu0 0.0
        %1830 = vmatprep.subr.mxu0 0.0
        %1831 = vmatpush1.msra.mxu0 0.0
        %1832 = vmatprep.subr.mxu0 0.0
        %1833 = vmatpush1.msra.mxu0 0.0
        %1834 = vmatprep.subr.mxu0 0.0
        %1835 = vmatpush1.msra.mxu0 0.0
        %1836 = vmatprep.mubr.f32.mxu0 0.0
        %1837 = vmatmul.mubr.f32.gmra.mrb[0].mxu0 %v1770
        %v1838 = vpop.f32.mrb[0].mxu0
        %v1839 = vadd.f32 0.0, %v1838
        %v1840 = vpop.f32.mrb[0].mxu0
        %v1841 = vadd.f32 0.0, %v1840
        %1842 = vdwg.mxu0
        %v1843 = vmul.f32 %v1764, %v1839
        %v1844 = vmul.f32 %v1766, %v1841
        %v1847 = vcombine.low %v1843, %v1844
        %v1848 = vcombine.high %v1843, %v1844
        %v1850 = vunpack.c.l.s4 1983009808
        %v1851 = vunpack.c.0.s8 %v1850
        %v1852 = vlaneseq
        %v1853 = vshrl.u32 %v1852, 7
        %v1854 = vsub.s32 %v1851, %v1853
        %v1855 = vrot.slane %v1847, %v1854
        %v1857 = vunpack.c.l.s4 1983009808
        %v1858 = vunpack.c.0.s8 %v1857
        %v1859 = vlaneseq
        %v1860 = vshrl.u32 %v1859, 7
        %v1861 = vsub.s32 %v1858, %v1860
        %v1862 = vrot.slane %v1848, %v1861
        %v1863 = vcombine.high %v1855, %v1855
        %v1864 = vcombine.high %v1862, %v1862
        %v1865 = vrot.slane %v1855, 1
        %v1866 = vrot.slane %v1863, 1
        %v1867 = vrot.slane %v1862, 1
        %v1868 = vrot.slane %v1864, 1
        %v1877 = vmul.f32 %v1325, %v1855
        %v1878 = vmul.f32 %v1333, %v1865
        %v1879 = vmul.f32 %v1332, %v1863
        %v1880 = vmul.f32 %v1334, %v1866
        %v1881 = vmul.f32 %v1343, %v1862
        %v1882 = vmul.f32 %v1351, %v1867
        %v1883 = vmul.f32 %v1350, %v1864
        %v1884 = vmul.f32 %v1352, %v1868
        %v1893 = vlaneseq
        %v1894 = vshrl.u32 %v1893, 7
        %v1895 = vsub.s32 0, %v1894
        %v1896 = vrot.slane %v1877, %v1895
        %v1897 = vlaneseq
        %v1898 = vshrl.u32 %v1897, 7
        %v1899 = vsub.s32 2, %v1898
        %v1900 = vrot.slane %v1877, %v1899
        %v1901 = vlaneseq
        %v1902 = vshrl.u32 %v1901, 7
        %v1903 = vsub.s32 0, %v1902
        %v1904 = vrot.slane %v1878, %v1903
        %v1905 = vlaneseq
        %v1906 = vshrl.u32 %v1905, 7
        %v1907 = vsub.s32 2, %v1906
        %v1908 = vrot.slane %v1878, %v1907
        %v1909 = vlaneseq
        %v1910 = vshrl.u32 %v1909, 7
        %v1911 = vsub.s32 0, %v1910
        %v1912 = vrot.slane %v1879, %v1911
        %v1913 = vlaneseq
        %v1914 = vshrl.u32 %v1913, 7
        %v1915 = vsub.s32 2, %v1914
        %v1916 = vrot.slane %v1879, %v1915
        %v1917 = vlaneseq
        %v1918 = vshrl.u32 %v1917, 7
        %v1919 = vsub.s32 0, %v1918
        %v1920 = vrot.slane %v1880, %v1919
        %v1921 = vlaneseq
        %v1922 = vshrl.u32 %v1921, 7
        %v1923 = vsub.s32 2, %v1922
        %v1924 = vrot.slane %v1880, %v1923
        %v1925 = vlaneseq
        %v1926 = vshrl.u32 %v1925, 7
        %v1927 = vsub.s32 0, %v1926
        %v1928 = vrot.slane %v1881, %v1927
        %v1929 = vlaneseq
        %v1930 = vshrl.u32 %v1929, 7
        %v1931 = vsub.s32 2, %v1930
        %v1932 = vrot.slane %v1881, %v1931
        %v1933 = vlaneseq
        %v1934 = vshrl.u32 %v1933, 7
        %v1935 = vsub.s32 0, %v1934
        %v1936 = vrot.slane %v1882, %v1935
        %v1937 = vlaneseq
        %v1938 = vshrl.u32 %v1937, 7
        %v1939 = vsub.s32 2, %v1938
        %v1940 = vrot.slane %v1882, %v1939
        %v1941 = vlaneseq
        %v1942 = vshrl.u32 %v1941, 7
        %v1943 = vsub.s32 0, %v1942
        %v1944 = vrot.slane %v1883, %v1943
        %v1945 = vlaneseq
        %v1946 = vshrl.u32 %v1945, 7
        %v1947 = vsub.s32 2, %v1946
        %v1948 = vrot.slane %v1883, %v1947
        %v1949 = vlaneseq
        %v1950 = vshrl.u32 %v1949, 7
        %v1951 = vsub.s32 0, %v1950
        %v1952 = vrot.slane %v1884, %v1951
        %v1953 = vlaneseq
        %v1954 = vshrl.u32 %v1953, 7
        %v1955 = vsub.s32 2, %v1954
        %v1956 = vrot.slane %v1884, %v1955
        %v1957 = vsel %vm1681, %v1904, %v1896
        %v1958 = vsel %vm1683, %v1912, %v1957
        %v1959 = vsel %vm1685, %v1920, %v1958
        %v1960 = vsel %vm1687, %v1928, %v1959
        %v1961 = vsel %vm1689, %v1936, %v1960
        %v1962 = vsel %vm1691, %v1944, %v1961
        %v1963 = vsel %vm1693, %v1952, %v1962
        %v1964 = vsel %vm1681, %v1908, %v1900
        %v1965 = vsel %vm1683, %v1916, %v1964
        %v1966 = vsel %vm1685, %v1924, %v1965
        %v1967 = vsel %vm1687, %v1932, %v1966
        %v1968 = vsel %vm1689, %v1940, %v1967
        %v1969 = vsel %vm1691, %v1948, %v1968
        %v1970 = vsel %vm1693, %v1956, %v1969
        %v1973 = vadd.f32 %v1963, %v1970
        %1974 = vadd.xlane.f32.xlu0 %v1973
        %v1975 = vpop.xlane.xlu0 %1974
        %v1976 = vrcp.pop 256.0
        %v1977 = vmul.f32 %v1975, %v1976
        %v1980 = vunpack.c.l.s4 269488144
        %v1981 = vunpack.c.0.s8 %v1980
        %v1982 = vlaneseq
        %v1983 = vshrl.u32 %v1982, 7
        %v1984 = vsub.s32 %v1981, %v1983
        %v1985 = vrot.slane %v1977, %v1984
        %v1987 = vunpack.c.l.s4 842150450
        %v1988 = vunpack.c.0.s8 %v1987
        %v1989 = vlaneseq
        %v1990 = vshrl.u32 %v1989, 7
        %v1991 = vsub.s32 %v1988, %v1990
        %v1992 = vrot.slane %v1977, %v1991
        %v1994 = vunpack.c.l.s4 1414812756
        %v1995 = vunpack.c.0.s8 %v1994
        %v1996 = vlaneseq
        %v1997 = vshrl.u32 %v1996, 7
        %v1998 = vsub.s32 %v1995, %v1997
        %v1999 = vrot.slane %v1977, %v1998
        %v2001 = vunpack.c.l.s4 1987475062
        %v2002 = vunpack.c.0.s8 %v2001
        %v2003 = vlaneseq
        %v2004 = vshrl.u32 %v2003, 7
        %v2005 = vsub.s32 %v2002, %v2004
        %v2006 = vrot.slane %v1977, %v2005
        %v2007 = vrot.slane %v1985, 1
        %v2008 = vrot.slane %v1992, 1
        %v2009 = vrot.slane %v1999, 1
        %v2010 = vrot.slane %v2006, 1
        %v2019 = vsub.f32 %v1877, %v1985
        %v2020 = vsub.f32 %v1878, %v2007
        %v2021 = vsub.f32 %v1879, %v1992
        %v2022 = vsub.f32 %v1880, %v2008
        %v2023 = vsub.f32 %v1881, %v1999
        %v2024 = vsub.f32 %v1882, %v2009
        %v2025 = vsub.f32 %v1883, %v2006
        %v2026 = vsub.f32 %v1884, %v2010
        %v2027 = vmul.f32 %v2019, %v2019
        %v2028 = vmul.f32 %v2020, %v2020
        %v2029 = vmul.f32 %v2021, %v2021
        %v2030 = vmul.f32 %v2022, %v2022
        %v2031 = vmul.f32 %v2023, %v2023
        %v2032 = vmul.f32 %v2024, %v2024
        %v2033 = vmul.f32 %v2025, %v2025
        %v2034 = vmul.f32 %v2026, %v2026
        %v2043 = vlaneseq
        %v2044 = vshrl.u32 %v2043, 7
        %v2045 = vsub.s32 0, %v2044
        %v2046 = vrot.slane %v2027, %v2045
        %v2047 = vlaneseq
        %v2048 = vshrl.u32 %v2047, 7
        %v2049 = vsub.s32 2, %v2048
        %v2050 = vrot.slane %v2027, %v2049
        %v2051 = vlaneseq
        %v2052 = vshrl.u32 %v2051, 7
        %v2053 = vsub.s32 0, %v2052
        %v2054 = vrot.slane %v2028, %v2053
        %v2055 = vlaneseq
        %v2056 = vshrl.u32 %v2055, 7
        %v2057 = vsub.s32 2, %v2056
        %v2058 = vrot.slane %v2028, %v2057
        %v2059 = vlaneseq
        %v2060 = vshrl.u32 %v2059, 7
        %v2061 = vsub.s32 0, %v2060
        %v2062 = vrot.slane %v2029, %v2061
        %v2063 = vlaneseq
        %v2064 = vshrl.u32 %v2063, 7
        %v2065 = vsub.s32 2, %v2064
        %v2066 = vrot.slane %v2029, %v2065
        %v2067 = vlaneseq
        %v2068 = vshrl.u32 %v2067, 7
        %v2069 = vsub.s32 0, %v2068
        %v2070 = vrot.slane %v2030, %v2069
        %v2071 = vlaneseq
        %v2072 = vshrl.u32 %v2071, 7
        %v2073 = vsub.s32 2, %v2072
        %v2074 = vrot.slane %v2030, %v2073
        %v2075 = vlaneseq
        %v2076 = vshrl.u32 %v2075, 7
        %v2077 = vsub.s32 0, %v2076
        %v2078 = vrot.slane %v2031, %v2077
        %v2079 = vlaneseq
        %v2080 = vshrl.u32 %v2079, 7
        %v2081 = vsub.s32 2, %v2080
        %v2082 = vrot.slane %v2031, %v2081
        %v2083 = vlaneseq
        %v2084 = vshrl.u32 %v2083, 7
        %v2085 = vsub.s32 0, %v2084
        %v2086 = vrot.slane %v2032, %v2085
        %v2087 = vlaneseq
        %v2088 = vshrl.u32 %v2087, 7
        %v2089 = vsub.s32 2, %v2088
        %v2090 = vrot.slane %v2032, %v2089
        %v2091 = vlaneseq
        %v2092 = vshrl.u32 %v2091, 7
        %v2093 = vsub.s32 0, %v2092
        %v2094 = vrot.slane %v2033, %v2093
        %v2095 = vlaneseq
        %v2096 = vshrl.u32 %v2095, 7
        %v2097 = vsub.s32 2, %v2096
        %v2098 = vrot.slane %v2033, %v2097
        %v2099 = vlaneseq
        %v2100 = vshrl.u32 %v2099, 7
        %v2101 = vsub.s32 0, %v2100
        %v2102 = vrot.slane %v2034, %v2101
        %v2103 = vlaneseq
        %v2104 = vshrl.u32 %v2103, 7
        %v2105 = vsub.s32 2, %v2104
        %v2106 = vrot.slane %v2034, %v2105
        %v2107 = vsel %vm1681, %v2054, %v2046
        %v2108 = vsel %vm1683, %v2062, %v2107
        %v2109 = vsel %vm1685, %v2070, %v2108
        %v2110 = vsel %vm1687, %v2078, %v2109
        %v2111 = vsel %vm1689, %v2086, %v2110
        %v2112 = vsel %vm1691, %v2094, %v2111
        %v2113 = vsel %vm1693, %v2102, %v2112
        %v2114 = vsel %vm1681, %v2058, %v2050
        %v2115 = vsel %vm1683, %v2066, %v2114
        %v2116 = vsel %vm1685, %v2074, %v2115
        %v2117 = vsel %vm1687, %v2082, %v2116
        %v2118 = vsel %vm1689, %v2090, %v2117
        %v2119 = vsel %vm1691, %v2098, %v2118
        %v2120 = vsel %vm1693, %v2106, %v2119
        %v2123 = vadd.f32 %v2113, %v2120
        %2124 = vadd.xlane.f32.xlu0 %v2123
        %v2125 = vpop.xlane.xlu0 %2124
        %v2126 = vmul.f32 %v2125, %v1976
        %v2127 = vadd.f32 %v2126, 1e-05
        %v2128 = vrsqrt.pop %v2127
        %v2131 = vunpack.c.l.s4 269488144
        %v2132 = vunpack.c.0.s8 %v2131
        %v2133 = vlaneseq
        %v2134 = vshrl.u32 %v2133, 7
        %v2135 = vsub.s32 %v2132, %v2134
        %v2136 = vrot.slane %v2128, %v2135
        %v2138 = vunpack.c.l.s4 842150450
        %v2139 = vunpack.c.0.s8 %v2138
        %v2140 = vlaneseq
        %v2141 = vshrl.u32 %v2140, 7
        %v2142 = vsub.s32 %v2139, %v2141
        %v2143 = vrot.slane %v2128, %v2142
        %v2145 = vunpack.c.l.s4 1414812756
        %v2146 = vunpack.c.0.s8 %v2145
        %v2147 = vlaneseq
        %v2148 = vshrl.u32 %v2147, 7
        %v2149 = vsub.s32 %v2146, %v2148
        %v2150 = vrot.slane %v2128, %v2149
        %v2152 = vunpack.c.l.s4 1987475062
        %v2153 = vunpack.c.0.s8 %v2152
        %v2154 = vlaneseq
        %v2155 = vshrl.u32 %v2154, 7
        %v2156 = vsub.s32 %v2153, %v2155
        %v2157 = vrot.slane %v2128, %v2156
        %v2158 = vrot.slane %v2136, 1
        %v2159 = vrot.slane %v2143, 1
        %v2160 = vrot.slane %v2150, 1
        %v2161 = vrot.slane %v2157, 1
        %v2170 = vmul.f32 %v2019, %v2136
        %v2171 = vmul.f32 %v2020, %v2158
        %v2172 = vmul.f32 %v2021, %v2143
        %v2173 = vmul.f32 %v2022, %v2159
        %v2174 = vmul.f32 %v2023, %v2150
        %v2175 = vmul.f32 %v2024, %v2160
        %v2176 = vmul.f32 %v2025, %v2157
        %v2177 = vmul.f32 %v2026, %v2161
        %s2178 = sld [smem:[#allocation6]]
        %v2179 = vstv %s2178
        %v2180 = vmul.f32 %v2170, %v2179
        %v2181 = vmul.f32 %v2171, %v2179
        %v2182 = vmul.f32 %v2172, %v2179
        %v2183 = vmul.f32 %v2173, %v2179
        %v2184 = vmul.f32 %v2174, %v2179
        %v2185 = vmul.f32 %v2175, %v2179
        %v2186 = vmul.f32 %v2176, %v2179
        %v2187 = vmul.f32 %v2177, %v2179
        %s2188 = sld [smem:[#allocation7]]
        %v2189 = vstv %s2188
        %v2190 = vadd.f32 %v2180, %v2189
        %v2191 = vadd.f32 %v2181, %v2189
        %v2192 = vadd.f32 %v2182, %v2189
        %v2193 = vadd.f32 %v2183, %v2189
        %v2194 = vadd.f32 %v2184, %v2189
        %v2195 = vadd.f32 %v2185, %v2189
        %v2196 = vadd.f32 %v2186, %v2189
        %v2197 = vadd.f32 %v2187, %v2189
        %v2206 = vlaneseq
        %v2207 = vshrl.u32 %v2206, 7
        %v2208 = vsub.s32 0, %v2207
        %v2209 = vrot.slane %v1626, %v2208
        %v2210 = vlaneseq
        %v2211 = vshrl.u32 %v2210, 7
        %v2212 = vsub.s32 0, %v2211
        %v2213 = vrot.slane %v1628, %v2212
        %v2214 = vlaneseq
        %v2215 = vshrl.u32 %v2214, 7
        %v2216 = vsub.s32 0, %v2215
        %v2217 = vrot.slane %v1630, %v2216
        %v2218 = vlaneseq
        %v2219 = vshrl.u32 %v2218, 7
        %v2220 = vsub.s32 0, %v2219
        %v2221 = vrot.slane %v1632, %v2220
        %v2222 = vlaneseq
        %v2223 = vshrl.u32 %v2222, 7
        %v2224 = vsub.s32 0, %v2223
        %v2225 = vrot.slane %v1634, %v2224
        %v2226 = vlaneseq
        %v2227 = vshrl.u32 %v2226, 7
        %v2228 = vsub.s32 0, %v2227
        %v2229 = vrot.slane %v1636, %v2228
        %v2230 = vlaneseq
        %v2231 = vshrl.u32 %v2230, 7
        %v2232 = vsub.s32 0, %v2231
        %v2233 = vrot.slane %v1638, %v2232
        %v2234 = vlaneseq
        %v2235 = vshrl.u32 %v2234, 7
        %v2236 = vsub.s32 0, %v2235
        %v2237 = vrot.slane %v1640, %v2236
        %v2238 = vsel %vm1681, %v2213, %v2209
        %v2239 = vsel %vm1683, %v2217, %v2238
        %v2240 = vsel %vm1685, %v2221, %v2239
        %v2241 = vsel %vm1687, %v2225, %v2240
        %v2242 = vsel %vm1689, %v2229, %v2241
        %v2243 = vsel %vm1691, %v2233, %v2242
        %v2244 = vsel %vm1693, %v2237, %v2243
        %v2245 = vsel %vm845, %v2244, 0
        %2247 = vmatprep.subr.mxu0 %v756
        %2248 = vmatpush1.msra.mxu0 %v755
        %2249 = vmatprep.subr.mxu0 %v758
        %2250 = vmatpush1.msra.mxu0 %v757
        %2251 = vmatprep.subr.mxu0 0.0
        %2252 = vmatpush1.msra.mxu0 0.0
        %2253 = vmatprep.subr.mxu0 0.0
        %2254 = vmatpush1.msra.mxu0 0.0
        %2255 = vmatprep.subr.mxu0 0.0
        %2256 = vmatpush1.msra.mxu0 0.0
        %2257 = vmatprep.subr.mxu0 0.0
        %2258 = vmatpush1.msra.mxu0 0.0
        %2259 = vmatprep.subr.mxu0 0.0
        %2260 = vmatpush1.msra.mxu0 0.0
        %2261 = vmatprep.subr.mxu0 0.0
        %2262 = vmatpush1.msra.mxu0 0.0
        %2263 = vmatprep.subr.mxu0 0.0
        %2264 = vmatpush1.msra.mxu0 0.0
        %2265 = vmatprep.subr.mxu0 0.0
        %2266 = vmatpush1.msra.mxu0 0.0
        %2267 = vmatprep.subr.mxu0 0.0
        %2268 = vmatpush1.msra.mxu0 0.0
        %2269 = vmatprep.subr.mxu0 0.0
        %2270 = vmatpush1.msra.mxu0 0.0
        %2271 = vmatprep.subr.mxu0 0.0
        %2272 = vmatpush1.msra.mxu0 0.0
        %2273 = vmatprep.subr.mxu0 0.0
        %2274 = vmatpush1.msra.mxu0 0.0
        %2275 = vmatprep.subr.mxu0 0.0
        %2276 = vmatpush1.msra.mxu0 0.0
        %2277 = vmatprep.subr.mxu0 0.0
        %2278 = vmatpush1.msra.mxu0 0.0
        %2279 = vmatprep.subr.mxu0 0.0
        %2280 = vmatpush1.msra.mxu0 0.0
        %2281 = vmatprep.subr.mxu0 0.0
        %2282 = vmatpush1.msra.mxu0 0.0
        %2283 = vmatprep.subr.mxu0 0.0
        %2284 = vmatpush1.msra.mxu0 0.0
        %2285 = vmatprep.subr.mxu0 0.0
        %2286 = vmatpush1.msra.mxu0 0.0
        %2287 = vmatprep.subr.mxu0 0.0
        %2288 = vmatpush1.msra.mxu0 0.0
        %2289 = vmatprep.subr.mxu0 0.0
        %2290 = vmatpush1.msra.mxu0 0.0
        %2291 = vmatprep.subr.mxu0 0.0
        %2292 = vmatpush1.msra.mxu0 0.0
        %2293 = vmatprep.subr.mxu0 0.0
        %2294 = vmatpush1.msra.mxu0 0.0
        %2295 = vmatprep.subr.mxu0 0.0
        %2296 = vmatpush1.msra.mxu0 0.0
        %2297 = vmatprep.subr.mxu0 0.0
        %2298 = vmatpush1.msra.mxu0 0.0
        %2299 = vmatprep.subr.mxu0 0.0
        %2300 = vmatpush1.msra.mxu0 0.0
        %2301 = vmatprep.subr.mxu0 0.0
        %2302 = vmatpush1.msra.mxu0 0.0
        %2303 = vmatprep.subr.mxu0 0.0
        %2304 = vmatpush1.msra.mxu0 0.0
        %2305 = vmatprep.subr.mxu0 0.0
        %2306 = vmatpush1.msra.mxu0 0.0
        %2307 = vmatprep.subr.mxu0 0.0
        %2308 = vmatpush1.msra.mxu0 0.0
        %2309 = vmatprep.subr.mxu0 0.0
        %2310 = vmatpush1.msra.mxu0 0.0
        %2311 = vmatprep.mubr.f32.mxu0 0.0
        %2312 = vmatmul.mubr.f32.gmra.mrb[0].mxu0 %v2245
        %v2313 = vpop.f32.mrb[0].mxu0
        %v2314 = vadd.f32 0.0, %v2313
        %v2315 = vpop.f32.mrb[0].mxu0
        %v2316 = vadd.f32 0.0, %v2315
        %2317 = vdwg.mxu0
        %2318 = vrot.lane.b32.xlu0 %v2244, 112
        %v2319 = vpop.permute.xlu0 %2318
        %v2320 = vsel %vm845, %v2319, 0
        %2322 = vmatprep.subr.mxu0 %v760
        %2323 = vmatpush1.msra.mxu0 %v759
        %2324 = vmatprep.subr.mxu0 %v762
        %2325 = vmatpush1.msra.mxu0 %v761
        %2326 = vmatprep.subr.mxu0 0.0
        %2327 = vmatpush1.msra.mxu0 0.0
        %2328 = vmatprep.subr.mxu0 0.0
        %2329 = vmatpush1.msra.mxu0 0.0
        %2330 = vmatprep.subr.mxu0 0.0
        %2331 = vmatpush1.msra.mxu0 0.0
        %2332 = vmatprep.subr.mxu0 0.0
        %2333 = vmatpush1.msra.mxu0 0.0
        %2334 = vmatprep.subr.mxu0 0.0
        %2335 = vmatpush1.msra.mxu0 0.0
        %2336 = vmatprep.subr.mxu0 0.0
        %2337 = vmatpush1.msra.mxu0 0.0
        %2338 = vmatprep.subr.mxu0 0.0
        %2339 = vmatpush1.msra.mxu0 0.0
        %2340 = vmatprep.subr.mxu0 0.0
        %2341 = vmatpush1.msra.mxu0 0.0
        %2342 = vmatprep.subr.mxu0 0.0
        %2343 = vmatpush1.msra.mxu0 0.0
        %2344 = vmatprep.subr.mxu0 0.0
        %2345 = vmatpush1.msra.mxu0 0.0
        %2346 = vmatprep.subr.mxu0 0.0
        %2347 = vmatpush1.msra.mxu0 0.0
        %2348 = vmatprep.subr.mxu0 0.0
        %2349 = vmatpush1.msra.mxu0 0.0
        %2350 = vmatprep.subr.mxu0 0.0
        %2351 = vmatpush1.msra.mxu0 0.0
        %2352 = vmatprep.subr.mxu0 0.0
        %2353 = vmatpush1.msra.mxu0 0.0
        %2354 = vmatprep.subr.mxu0 0.0
        %2355 = vmatpush1.msra.mxu0 0.0
        %2356 = vmatprep.subr.mxu0 0.0
        %2357 = vmatpush1.msra.mxu0 0.0
        %2358 = vmatprep.subr.mxu0 0.0
        %2359 = vmatpush1.msra.mxu0 0.0
        %2360 = vmatprep.subr.mxu0 0.0
        %2361 = vmatpush1.msra.mxu0 0.0
        %2362 = vmatprep.subr.mxu0 0.0
        %2363 = vmatpush1.msra.mxu0 0.0
        %2364 = vmatprep.subr.mxu0 0.0
        %2365 = vmatpush1.msra.mxu0 0.0
        %2366 = vmatprep.subr.mxu0 0.0
        %2367 = vmatpush1.msra.mxu0 0.0
        %2368 = vmatprep.subr.mxu0 0.0
        %2369 = vmatpush1.msra.mxu0 0.0
        %2370 = vmatprep.subr.mxu0 0.0
        %2371 = vmatpush1.msra.mxu0 0.0
        %2372 = vmatprep.subr.mxu0 0.0
        %2373 = vmatpush1.msra.mxu0 0.0
        %2374 = vmatprep.subr.mxu0 0.0
        %2375 = vmatpush1.msra.mxu0 0.0
        %2376 = vmatprep.subr.mxu0 0.0
        %2377 = vmatpush1.msra.mxu0 0.0
        %2378 = vmatprep.subr.mxu0 0.0
        %2379 = vmatpush1.msra.mxu0 0.0
        %2380 = vmatprep.subr.mxu0 0.0
        %2381 = vmatpush1.msra.mxu0 0.0
        %2382 = vmatprep.subr.mxu0 0.0
        %2383 = vmatpush1.msra.mxu0 0.0
        %2384 = vmatprep.subr.mxu0 0.0
        %2385 = vmatpush1.msra.mxu0 0.0
        %2386 = vmatprep.mubr.f32.mxu0 0.0
        %2387 = vmatmul.mubr.f32.gmra.mrb[0].mxu0 %v2320
        %v2388 = vpop.f32.mrb[0].mxu0
        %v2389 = vadd.f32 0.0, %v2388
        %v2390 = vpop.f32.mrb[0].mxu0
        %v2391 = vadd.f32 0.0, %v2390
        %2392 = vdwg.mxu0
        %v2393 = vmul.f32 %v2314, %v2389
        %v2394 = vmul.f32 %v2316, %v2391
        %v2397 = vcombine.low %v2393, %v2394
        %v2398 = vcombine.high %v2393, %v2394
        %v2400 = vunpack.c.l.s4 1983009808
        %v2401 = vunpack.c.0.s8 %v2400
        %v2402 = vlaneseq
        %v2403 = vshrl.u32 %v2402, 7
        %v2404 = vsub.s32 %v2401, %v2403
        %v2405 = vrot.slane %v2397, %v2404
        %v2407 = vunpack.c.l.s4 1983009808
        %v2408 = vunpack.c.0.s8 %v2407
        %v2409 = vlaneseq
        %v2410 = vshrl.u32 %v2409, 7
        %v2411 = vsub.s32 %v2408, %v2410
        %v2412 = vrot.slane %v2398, %v2411
        %v2413 = vcombine.high %v2405, %v2405
        %v2414 = vcombine.high %v2412, %v2412
        %v2415 = vrot.slane %v2405, 7
        %v2416 = vrot.slane %v2413, 7
        %v2417 = vrot.slane %v2412, 7
        %v2418 = vrot.slane %v2414, 7
        %v2427 = vmul.f32 %v1325, %v2415
        %v2428 = vmul.f32 %v1333, %v2405
        %v2429 = vmul.f32 %v1332, %v2416
        %v2430 = vmul.f32 %v1334, %v2413
        %v2431 = vmul.f32 %v1343, %v2417
        %v2432 = vmul.f32 %v1351, %v2412
        %v2433 = vmul.f32 %v1350, %v2418
        %v2434 = vmul.f32 %v1352, %v2414
        %v2443 = vlaneseq
        %v2444 = vshrl.u32 %v2443, 7
        %v2445 = vsub.s32 1, %v2444
        %v2446 = vrot.slane %v2427, %v2445
        %v2447 = vlaneseq
        %v2448 = vshrl.u32 %v2447, 7
        %v2449 = vsub.s32 3, %v2448
        %v2450 = vrot.slane %v2427, %v2449
        %v2451 = vlaneseq
        %v2452 = vshrl.u32 %v2451, 7
        %v2453 = vsub.s32 1, %v2452
        %v2454 = vrot.slane %v2428, %v2453
        %v2455 = vlaneseq
        %v2456 = vshrl.u32 %v2455, 7
        %v2457 = vsub.s32 3, %v2456
        %v2458 = vrot.slane %v2428, %v2457
        %v2459 = vlaneseq
        %v2460 = vshrl.u32 %v2459, 7
        %v2461 = vsub.s32 1, %v2460
        %v2462 = vrot.slane %v2429, %v2461
        %v2463 = vlaneseq
        %v2464 = vshrl.u32 %v2463, 7
        %v2465 = vsub.s32 3, %v2464
        %v2466 = vrot.slane %v2429, %v2465
        %v2467 = vlaneseq
        %v2468 = vshrl.u32 %v2467, 7
        %v2469 = vsub.s32 1, %v2468
        %v2470 = vrot.slane %v2430, %v2469
        %v2471 = vlaneseq
        %v2472 = vshrl.u32 %v2471, 7
        %v2473 = vsub.s32 3, %v2472
        %v2474 = vrot.slane %v2430, %v2473
        %v2475 = vlaneseq
        %v2476 = vshrl.u32 %v2475, 7
        %v2477 = vsub.s32 1, %v2476
        %v2478 = vrot.slane %v2431, %v2477
        %v2479 = vlaneseq
        %v2480 = vshrl.u32 %v2479, 7
        %v2481 = vsub.s32 3, %v2480
        %v2482 = vrot.slane %v2431, %v2481
        %v2483 = vlaneseq
        %v2484 = vshrl.u32 %v2483, 7
        %v2485 = vsub.s32 1, %v2484
        %v2486 = vrot.slane %v2432, %v2485
        %v2487 = vlaneseq
        %v2488 = vshrl.u32 %v2487, 7
        %v2489 = vsub.s32 3, %v2488
        %v2490 = vrot.slane %v2432, %v2489
        %v2491 = vlaneseq
        %v2492 = vshrl.u32 %v2491, 7
        %v2493 = vsub.s32 1, %v2492
        %v2494 = vrot.slane %v2433, %v2493
        %v2495 = vlaneseq
        %v2496 = vshrl.u32 %v2495, 7
        %v2497 = vsub.s32 3, %v2496
        %v2498 = vrot.slane %v2433, %v2497
        %v2499 = vlaneseq
        %v2500 = vshrl.u32 %v2499, 7
        %v2501 = vsub.s32 1, %v2500
        %v2502 = vrot.slane %v2434, %v2501
        %v2503 = vlaneseq
        %v2504 = vshrl.u32 %v2503, 7
        %v2505 = vsub.s32 3, %v2504
        %v2506 = vrot.slane %v2434, %v2505
        %v2507 = vsel %vm1683, %v2454, %v2446
        %v2508 = vsel %vm1685, %v2462, %v2507
        %v2509 = vsel %vm1687, %v2470, %v2508
        %v2510 = vsel %vm1689, %v2478, %v2509
        %v2511 = vsel %vm1691, %v2486, %v2510
        %v2512 = vsel %vm1693, %v2494, %v2511
        %v2513 = vsel %vm1683, %v2458, %v2450
        %v2514 = vsel %vm1685, %v2466, %v2513
        %v2515 = vsel %vm1687, %v2474, %v2514
        %v2516 = vsel %vm1689, %v2482, %v2515
        %v2517 = vsel %vm1691, %v2490, %v2516
        %v2518 = vsel %vm1693, %v2498, %v2517
        %vm2523 = vcmask 1047553
        %v2524 = vsel %vm2523, %v2512, 0.0
        %v2525 = vsel %vm2523, %v2518, 0.0
        %v2526 = vadd.f32 %v2524, %v2525
        %2527 = vadd.xlane.f32.xlu0 %v2526
        %v2528 = vpop.xlane.xlu0 %2527
        %vm2529 = vcmask 1040384
        %v2530 = vsel %vm2529, %v2502, 0.0
        %v2531 = vsel %vm2529, %v2506, 0.0
        %v2532 = vadd.f32 %v2530, %v2531
        %2533 = vadd.xlane.f32.xlu0 %v2532
        %v2534 = vpop.xlane.xlu0 %2533
        %v2535 = vmul.f32 %v2528, %v1976
        %v2536 = vmul.f32 %v2534, %v1976
        %v2540 = vunpack.c.l.s4 269488144
        %v2541 = vunpack.c.0.s8 %v2540
        %v2542 = vlaneseq
        %v2543 = vshrl.u32 %v2542, 7
        %v2544 = vsub.s32 %v2541, %v2543
        %v2545 = vrot.slane %v2535, %v2544
        %v2547 = vunpack.c.l.s4 842150450
        %v2548 = vunpack.c.0.s8 %v2547
        %v2549 = vlaneseq
        %v2550 = vshrl.u32 %v2549, 7
        %v2551 = vsub.s32 %v2548, %v2550
        %v2552 = vrot.slane %v2535, %v2551
        %v2554 = vunpack.c.l.s4 1414812756
        %v2555 = vunpack.c.0.s8 %v2554
        %v2556 = vlaneseq
        %v2557 = vshrl.u32 %v2556, 7
        %v2558 = vsub.s32 %v2555, %v2557
        %v2559 = vrot.slane %v2535, %v2558
        %v2561 = vunpack.c.l.s4 1987475062
        %v2562 = vunpack.c.0.s8 %v2561
        %v2563 = vlaneseq
        %v2564 = vshrl.u32 %v2563, 7
        %v2565 = vsub.s32 %v2562, %v2564
        %v2566 = vrot.slane %v2535, %v2565
        %v2568 = vunpack.c.l.s4 269488144
        %v2569 = vunpack.c.0.s8 %v2568
        %v2570 = vlaneseq
        %v2571 = vshrl.u32 %v2570, 7
        %v2572 = vsub.s32 %v2569, %v2571
        %v2573 = vrot.slane %v2536, %v2572
        %v2574 = vrot.slane %v2552, 7
        %v2575 = vrot.slane %v2559, 7
        %v2576 = vrot.slane %v2566, 7
        %v2577 = vrot.slane %v2573, 7
        %v2586 = vsub.f32 %v2427, %v2545
        %v2587 = vsub.f32 %v2428, %v2574
        %v2588 = vsub.f32 %v2429, %v2552
        %v2589 = vsub.f32 %v2430, %v2575
        %v2590 = vsub.f32 %v2431, %v2559
        %v2591 = vsub.f32 %v2432, %v2576
        %v2592 = vsub.f32 %v2433, %v2566
        %v2593 = vsub.f32 %v2434, %v2577
        %v2594 = vmul.f32 %v2586, %v2586
        %v2595 = vmul.f32 %v2587, %v2587
        %v2596 = vmul.f32 %v2588, %v2588
        %v2597 = vmul.f32 %v2589, %v2589
        %v2598 = vmul.f32 %v2590, %v2590
        %v2599 = vmul.f32 %v2591, %v2591
        %v2600 = vmul.f32 %v2592, %v2592
        %v2601 = vmul.f32 %v2593, %v2593
        %v2610 = vlaneseq
        %v2611 = vshrl.u32 %v2610, 7
        %v2612 = vsub.s32 1, %v2611
        %v2613 = vrot.slane %v2594, %v2612
        %v2614 = vlaneseq
        %v2615 = vshrl.u32 %v2614, 7
        %v2616 = vsub.s32 3, %v2615
        %v2617 = vrot.slane %v2594, %v2616
        %v2618 = vlaneseq
        %v2619 = vshrl.u32 %v2618, 7
        %v2620 = vsub.s32 1, %v2619
        %v2621 = vrot.slane %v2595, %v2620
        %v2622 = vlaneseq
        %v2623 = vshrl.u32 %v2622, 7
        %v2624 = vsub.s32 3, %v2623
        %v2625 = vrot.slane %v2595, %v2624
        %v2626 = vlaneseq
        %v2627 = vshrl.u32 %v2626, 7
        %v2628 = vsub.s32 1, %v2627
        %v2629 = vrot.slane %v2596, %v2628
        %v2630 = vlaneseq
        %v2631 = vshrl.u32 %v2630, 7
        %v2632 = vsub.s32 3, %v2631
        %v2633 = vrot.slane %v2596, %v2632
        %v2634 = vlaneseq
        %v2635 = vshrl.u32 %v2634, 7
        %v2636 = vsub.s32 1, %v2635
        %v2637 = vrot.slane %v2597, %v2636
        %v2638 = vlaneseq
        %v2639 = vshrl.u32 %v2638, 7
        %v2640 = vsub.s32 3, %v2639
        %v2641 = vrot.slane %v2597, %v2640
        %v2642 = vlaneseq
        %v2643 = vshrl.u32 %v2642, 7
        %v2644 = vsub.s32 1, %v2643
        %v2645 = vrot.slane %v2598, %v2644
        %v2646 = vlaneseq
        %v2647 = vshrl.u32 %v2646, 7
        %v2648 = vsub.s32 3, %v2647
        %v2649 = vrot.slane %v2598, %v2648
        %v2650 = vlaneseq
        %v2651 = vshrl.u32 %v2650, 7
        %v2652 = vsub.s32 1, %v2651
        %v2653 = vrot.slane %v2599, %v2652
        %v2654 = vlaneseq
        %v2655 = vshrl.u32 %v2654, 7
        %v2656 = vsub.s32 3, %v2655
        %v2657 = vrot.slane %v2599, %v2656
        %v2658 = vlaneseq
        %v2659 = vshrl.u32 %v2658, 7
        %v2660 = vsub.s32 1, %v2659
        %v2661 = vrot.slane %v2600, %v2660
        %v2662 = vlaneseq
        %v2663 = vshrl.u32 %v2662, 7
        %v2664 = vsub.s32 3, %v2663
        %v2665 = vrot.slane %v2600, %v2664
        %v2666 = vlaneseq
        %v2667 = vshrl.u32 %v2666, 7
        %v2668 = vsub.s32 1, %v2667
        %v2669 = vrot.slane %v2601, %v2668
        %v2670 = vlaneseq
        %v2671 = vshrl.u32 %v2670, 7
        %v2672 = vsub.s32 3, %v2671
        %v2673 = vrot.slane %v2601, %v2672
        %v2674 = vsel %vm1683, %v2621, %v2613
        %v2675 = vsel %vm1685, %v2629, %v2674
        %v2676 = vsel %vm1687, %v2637, %v2675
        %v2677 = vsel %vm1689, %v2645, %v2676
        %v2678 = vsel %vm1691, %v2653, %v2677
        %v2679 = vsel %vm1693, %v2661, %v2678
        %v2680 = vsel %vm1683, %v2625, %v2617
        %v2681 = vsel %vm1685, %v2633, %v2680
        %v2682 = vsel %vm1687, %v2641, %v2681
        %v2683 = vsel %vm1689, %v2649, %v2682
        %v2684 = vsel %vm1691, %v2657, %v2683
        %v2685 = vsel %vm1693, %v2665, %v2684
        %v2690 = vsel %vm2523, %v2679, 0.0
        %v2691 = vsel %vm2523, %v2685, 0.0
        %v2692 = vadd.f32 %v2690, %v2691
        %2693 = vadd.xlane.f32.xlu0 %v2692
        %v2694 = vpop.xlane.xlu0 %2693
        %v2695 = vsel %vm2529, %v2669, 0.0
        %v2696 = vsel %vm2529, %v2673, 0.0
        %v2697 = vadd.f32 %v2695, %v2696
        %2698 = vadd.xlane.f32.xlu0 %v2697
        %v2699 = vpop.xlane.xlu0 %2698
        %v2700 = vmul.f32 %v2694, %v1976
        %v2701 = vmul.f32 %v2699, %v1976
        %v2702 = vadd.f32 %v2700, 1e-05
        %v2703 = vadd.f32 %v2701, 1e-05
        %v2704 = vrsqrt.pop %v2702
        %v2705 = vrsqrt.pop %v2703
        %v2709 = vunpack.c.l.s4 269488144
        %v2710 = vunpack.c.0.s8 %v2709
        %v2711 = vlaneseq
        %v2712 = vshrl.u32 %v2711, 7
        %v2713 = vsub.s32 %v2710, %v2712
        %v2714 = vrot.slane %v2704, %v2713
        %v2716 = vunpack.c.l.s4 842150450
        %v2717 = vunpack.c.0.s8 %v2716
        %v2718 = vlaneseq
        %v2719 = vshrl.u32 %v2718, 7
        %v2720 = vsub.s32 %v2717, %v2719
        %v2721 = vrot.slane %v2704, %v2720
        %v2723 = vunpack.c.l.s4 1414812756
        %v2724 = vunpack.c.0.s8 %v2723
        %v2725 = vlaneseq
        %v2726 = vshrl.u32 %v2725, 7
        %v2727 = vsub.s32 %v2724, %v2726
        %v2728 = vrot.slane %v2704, %v2727
        %v2730 = vunpack.c.l.s4 1987475062
        %v2731 = vunpack.c.0.s8 %v2730
        %v2732 = vlaneseq
        %v2733 = vshrl.u32 %v2732, 7
        %v2734 = vsub.s32 %v2731, %v2733
        %v2735 = vrot.slane %v2704, %v2734
        %v2737 = vunpack.c.l.s4 269488144
        %v2738 = vunpack.c.0.s8 %v2737
        %v2739 = vlaneseq
        %v2740 = vshrl.u32 %v2739, 7
        %v2741 = vsub.s32 %v2738, %v2740
        %v2742 = vrot.slane %v2705, %v2741
        %v2743 = vrot.slane %v2721, 7
        %v2744 = vrot.slane %v2728, 7
        %v2745 = vrot.slane %v2735, 7
        %v2746 = vrot.slane %v2742, 7
        %v2755 = vmul.f32 %v2586, %v2714
        %v2756 = vmul.f32 %v2587, %v2743
        %v2757 = vmul.f32 %v2588, %v2721
        %v2758 = vmul.f32 %v2589, %v2744
        %v2759 = vmul.f32 %v2590, %v2728
        %v2760 = vmul.f32 %v2591, %v2745
        %v2761 = vmul.f32 %v2592, %v2735
        %v2762 = vmul.f32 %v2593, %v2746
        %s2763 = sld [smem:[#allocation6 + $0x1]]
        %v2764 = vstv %s2763
        %v2765 = vmul.f32 %v2755, %v2764
        %v2766 = vmul.f32 %v2756, %v2764
        %v2767 = vmul.f32 %v2757, %v2764
        %v2768 = vmul.f32 %v2758, %v2764
        %v2769 = vmul.f32 %v2759, %v2764
        %v2770 = vmul.f32 %v2760, %v2764
        %v2771 = vmul.f32 %v2761, %v2764
        %v2772 = vmul.f32 %v2762, %v2764
        %s2773 = sld [smem:[#allocation7 + $0x1]]
        %v2774 = vstv %s2773
        %v2775 = vadd.f32 %v2765, %v2774
        %v2776 = vadd.f32 %v2766, %v2774
        %v2777 = vadd.f32 %v2767, %v2774
        %v2778 = vadd.f32 %v2768, %v2774
        %v2779 = vadd.f32 %v2769, %v2774
        %v2780 = vadd.f32 %v2770, %v2774
        %v2781 = vadd.f32 %v2771, %v2774
        %v2782 = vadd.f32 %v2772, %v2774
        %v2783 = vrot.slane %v1325, 2
        %v2784 = vrot.slane %v1333, 2
        %v2785 = vrot.slane %v1332, 2
        %v2786 = vrot.slane %v1334, 2
        %v2787 = vrot.slane %v1343, 2
        %v2788 = vrot.slane %v1351, 2
        %v2789 = vrot.slane %v1350, 2
        %v2790 = vrot.slane %v1352, 2
        %2799 = vrot.lane.b32.xlu0 %v1325, 112
        %v2800 = vpop.permute.xlu0 %2799
        %2801 = vrot.lane.b32.xlu0 %v1333, 112
        %v2802 = vpop.permute.xlu0 %2801
        %2803 = vrot.lane.b32.xlu0 %v1332, 112
        %v2804 = vpop.permute.xlu0 %2803
        %2805 = vrot.lane.b32.xlu0 %v1334, 112
        %v2806 = vpop.permute.xlu0 %2805
        %2807 = vrot.lane.b32.xlu0 %v1343, 112
        %v2808 = vpop.permute.xlu0 %2807
        %2809 = vrot.lane.b32.xlu0 %v1351, 112
        %v2810 = vpop.permute.xlu0 %2809
        %2811 = vrot.lane.b32.xlu0 %v1350, 112
        %v2812 = vpop.permute.xlu0 %2811
        %2813 = vrot.lane.b32.xlu0 %v1352, 112
        %v2814 = vpop.permute.xlu0 %2813
        %v2815 = vrot.slane %v2800, 2
        %v2816 = vrot.slane %v2802, 2
        %v2817 = vrot.slane %v2804, 2
        %v2818 = vrot.slane %v2806, 2
        %v2819 = vrot.slane %v2808, 2
        %v2820 = vrot.slane %v2810, 2
        %v2821 = vrot.slane %v2812, 2
        %v2822 = vrot.slane %v2814, 2
        %2831 = vrot.lane.b32.xlu0 %v1325, 96
        %v2832 = vpop.permute.xlu0 %2831
        %2833 = vrot.lane.b32.xlu0 %v1333, 96
        %v2834 = vpop.permute.xlu0 %2833
        %2835 = vrot.lane.b32.xlu0 %v1332, 96
        %v2836 = vpop.permute.xlu0 %2835
        %2837 = vrot.lane.b32.xlu0 %v1334, 96
        %v2838 = vpop.permute.xlu0 %2837
        %2839 = vrot.lane.b32.xlu0 %v1343, 96
        %v2840 = vpop.permute.xlu0 %2839
        %2841 = vrot.lane.b32.xlu0 %v1351, 96
        %v2842 = vpop.permute.xlu0 %2841
        %2843 = vrot.lane.b32.xlu0 %v1350, 96
        %v2844 = vpop.permute.xlu0 %2843
        %2845 = vrot.lane.b32.xlu0 %v1352, 96
        %v2846 = vpop.permute.xlu0 %2845
        %v2847 = vrot.slane %v2832, 2
        %v2848 = vrot.slane %v2834, 2
        %v2849 = vrot.slane %v2836, 2
        %v2850 = vrot.slane %v2838, 2
        %v2851 = vrot.slane %v2840, 2
        %v2852 = vrot.slane %v2842, 2
        %v2853 = vrot.slane %v2844, 2
        %v2854 = vrot.slane %v2846, 2
        %2863 = vrot.lane.b32.xlu0 %v1325, 80
        %v2864 = vpop.permute.xlu0 %2863
        %2865 = vrot.lane.b32.xlu0 %v1333, 80
        %v2866 = vpop.permute.xlu0 %2865
        %2867 = vrot.lane.b32.xlu0 %v1332, 80
        %v2868 = vpop.permute.xlu0 %2867
        %2869 = vrot.lane.b32.xlu0 %v1334, 80
        %v2870 = vpop.permute.xlu0 %2869
        %2871 = vrot.lane.b32.xlu0 %v1343, 80
        %v2872 = vpop.permute.xlu0 %2871
        %2873 = vrot.lane.b32.xlu0 %v1351, 80
        %v2874 = vpop.permute.xlu0 %2873
        %2875 = vrot.lane.b32.xlu0 %v1350, 80
        %v2876 = vpop.permute.xlu0 %2875
        %2877 = vrot.lane.b32.xlu0 %v1352, 80
        %v2878 = vpop.permute.xlu0 %2877
        %v2879 = vrot.slane %v2864, 2
        %v2880 = vrot.slane %v2866, 2
        %v2881 = vrot.slane %v2868, 2
        %v2882 = vrot.slane %v2870, 2
        %v2883 = vrot.slane %v2872, 2
        %v2884 = vrot.slane %v2874, 2
        %v2885 = vrot.slane %v2876, 2
        %v2886 = vrot.slane %v2878, 2
        %2895 = vrot.lane.b32.xlu0 %v1325, 64
        %v2896 = vpop.permute.xlu0 %2895
        %2897 = vrot.lane.b32.xlu0 %v1333, 64
        %v2898 = vpop.permute.xlu0 %2897
        %2899 = vrot.lane.b32.xlu0 %v1332, 64
        %v2900 = vpop.permute.xlu0 %2899
        %2901 = vrot.lane.b32.xlu0 %v1334, 64
        %v2902 = vpop.permute.xlu0 %2901
        %2903 = vrot.lane.b32.xlu0 %v1343, 64
        %v2904 = vpop.permute.xlu0 %2903
        %2905 = vrot.lane.b32.xlu0 %v1351, 64
        %v2906 = vpop.permute.xlu0 %2905
        %2907 = vrot.lane.b32.xlu0 %v1350, 64
        %v2908 = vpop.permute.xlu0 %2907
        %2909 = vrot.lane.b32.xlu0 %v1352, 64
        %v2910 = vpop.permute.xlu0 %2909
        %v2911 = vrot.slane %v2896, 2
        %v2912 = vrot.slane %v2898, 2
        %v2913 = vrot.slane %v2900, 2
        %v2914 = vrot.slane %v2902, 2
        %v2915 = vrot.slane %v2904, 2
        %v2916 = vrot.slane %v2906, 2
        %v2917 = vrot.slane %v2908, 2
        %v2918 = vrot.slane %v2910, 2
        %2927 = vrot.lane.b32.xlu0 %v1325, 48
        %v2928 = vpop.permute.xlu0 %2927
        %2929 = vrot.lane.b32.xlu0 %v1333, 48
        %v2930 = vpop.permute.xlu0 %2929
        %2931 = vrot.lane.b32.xlu0 %v1332, 48
        %v2932 = vpop.permute.xlu0 %2931
        %2933 = vrot.lane.b32.xlu0 %v1334, 48
        %v2934 = vpop.permute.xlu0 %2933
        %2935 = vrot.lane.b32.xlu0 %v1343, 48
        %v2936 = vpop.permute.xlu0 %2935
        %2937 = vrot.lane.b32.xlu0 %v1351, 48
        %v2938 = vpop.permute.xlu0 %2937
        %2939 = vrot.lane.b32.xlu0 %v1350, 48
        %v2940 = vpop.permute.xlu0 %2939
        %2941 = vrot.lane.b32.xlu0 %v1352, 48
        %v2942 = vpop.permute.xlu0 %2941
        %v2943 = vrot.slane %v2928, 2
        %v2944 = vrot.slane %v2930, 2
        %v2945 = vrot.slane %v2932, 2
        %v2946 = vrot.slane %v2934, 2
        %v2947 = vrot.slane %v2936, 2
        %v2948 = vrot.slane %v2938, 2
        %v2949 = vrot.slane %v2940, 2
        %v2950 = vrot.slane %v2942, 2
        %2959 = vrot.lane.b32.xlu0 %v1325, 32
        %v2960 = vpop.permute.xlu0 %2959
        %2961 = vrot.lane.b32.xlu0 %v1333, 32
        %v2962 = vpop.permute.xlu0 %2961
        %2963 = vrot.lane.b32.xlu0 %v1332, 32
        %v2964 = vpop.permute.xlu0 %2963
        %2965 = vrot.lane.b32.xlu0 %v1334, 32
        %v2966 = vpop.permute.xlu0 %2965
        %2967 = vrot.lane.b32.xlu0 %v1343, 32
        %v2968 = vpop.permute.xlu0 %2967
        %2969 = vrot.lane.b32.xlu0 %v1351, 32
        %v2970 = vpop.permute.xlu0 %2969
        %2971 = vrot.lane.b32.xlu0 %v1350, 32
        %v2972 = vpop.permute.xlu0 %2971
        %2973 = vrot.lane.b32.xlu0 %v1352, 32
        %v2974 = vpop.permute.xlu0 %2973
        %v2975 = vrot.slane %v2960, 2
        %v2976 = vrot.slane %v2962, 2
        %v2977 = vrot.slane %v2964, 2
        %v2978 = vrot.slane %v2966, 2
        %v2979 = vrot.slane %v2968, 2
        %v2980 = vrot.slane %v2970, 2
        %v2981 = vrot.slane %v2972, 2
        %v2982 = vrot.slane %v2974, 2
        %2991 = vrot.lane.b32.xlu0 %v1325, 16
        %v2992 = vpop.permute.xlu0 %2991
        %2993 = vrot.lane.b32.xlu0 %v1333, 16
        %v2994 = vpop.permute.xlu0 %2993
        %2995 = vrot.lane.b32.xlu0 %v1332, 16
        %v2996 = vpop.permute.xlu0 %2995
        %2997 = vrot.lane.b32.xlu0 %v1334, 16
        %v2998 = vpop.permute.xlu0 %2997
        %2999 = vrot.lane.b32.xlu0 %v1343, 16
        %v3000 = vpop.permute.xlu0 %2999
        %3001 = vrot.lane.b32.xlu0 %v1351, 16
        %v3002 = vpop.permute.xlu0 %3001
        %3003 = vrot.lane.b32.xlu0 %v1350, 16
        %v3004 = vpop.permute.xlu0 %3003
        %3005 = vrot.lane.b32.xlu0 %v1352, 16
        %v3006 = vpop.permute.xlu0 %3005
        %v3007 = vrot.slane %v2992, 2
        %v3008 = vrot.slane %v2994, 2
        %v3009 = vrot.slane %v2996, 2
        %v3010 = vrot.slane %v2998, 2
        %v3011 = vrot.slane %v3000, 2
        %v3012 = vrot.slane %v3002, 2
        %v3013 = vrot.slane %v3004, 2
        %v3014 = vrot.slane %v3006, 2
        %v3079 = vcombine.low %v1325, %v2800
        %v3081 = vunpack.c.l.s4 1934713408
        %v3082 = vunpack.c.0.s8 %v3081
        %v3083 = vlaneseq
        %v3084 = vshrl.u32 %v3083, 7
        %v3085 = vsub.s32 %v3082, %v3084
        %v3086 = vrot.slane %v3079, %v3085
        %v3087 = vcombine.low %v2832, %v2864
        %v3089 = vunpack.c.l.s4 1934713408
        %v3090 = vunpack.c.0.s8 %v3089
        %v3091 = vlaneseq
        %v3092 = vshrl.u32 %v3091, 7
        %v3093 = vsub.s32 %v3090, %v3092
        %v3094 = vrot.slane %v3087, %v3093
        %v3095 = vcombine.low %v2896, %v2928
        %v3097 = vunpack.c.l.s4 1934713408
        %v3098 = vunpack.c.0.s8 %v3097
        %v3099 = vlaneseq
        %v3100 = vshrl.u32 %v3099, 7
        %v3101 = vsub.s32 %v3098, %v3100
        %v3102 = vrot.slane %v3095, %v3101
        %v3103 = vcombine.low %v2960, %v2992
        %v3105 = vunpack.c.l.s4 1934713408
        %v3106 = vunpack.c.0.s8 %v3105
        %v3107 = vlaneseq
        %v3108 = vshrl.u32 %v3107, 7
        %v3109 = vsub.s32 %v3106, %v3108
        %v3110 = vrot.slane %v3103, %v3109
        %v3111 = vcombine.low %v2783, %v2815
        %v3113 = vunpack.c.l.s4 1934713408
        %v3114 = vunpack.c.0.s8 %v3113
        %v3115 = vlaneseq
        %v3116 = vshrl.u32 %v3115, 7
        %v3117 = vsub.s32 %v3114, %v3116
        %v3118 = vrot.slane %v3111, %v3117
        %v3119 = vcombine.low %v2847, %v2879
        %v3121 = vunpack.c.l.s4 1934713408
        %v3122 = vunpack.c.0.s8 %v3121
        %v3123 = vlaneseq
        %v3124 = vshrl.u32 %v3123, 7
        %v3125 = vsub.s32 %v3122, %v3124
        %v3126 = vrot.slane %v3119, %v3125
        %v3127 = vcombine.low %v2911, %v2943
        %v3129 = vunpack.c.l.s4 1934713408
        %v3130 = vunpack.c.0.s8 %v3129
        %v3131 = vlaneseq
        %v3132 = vshrl.u32 %v3131, 7
        %v3133 = vsub.s32 %v3130, %v3132
        %v3134 = vrot.slane %v3127, %v3133
        %v3135 = vcombine.low %v2975, %v3007
        %v3137 = vunpack.c.l.s4 1934713408
        %v3138 = vunpack.c.0.s8 %v3137
        %v3139 = vlaneseq
        %v3140 = vshrl.u32 %v3139, 7
        %v3141 = vsub.s32 %v3138, %v3140
        %v3142 = vrot.slane %v3135, %v3141
        %v3143 = vcombine.low %v1333, %v2802
        %v3145 = vunpack.c.l.s4 1934713408
        %v3146 = vunpack.c.0.s8 %v3145
        %v3147 = vlaneseq
        %v3148 = vshrl.u32 %v3147, 7
        %v3149 = vsub.s32 %v3146, %v3148
        %v3150 = vrot.slane %v3143, %v3149
        %v3151 = vcombine.low %v2834, %v2866
        %v3153 = vunpack.c.l.s4 1934713408
        %v3154 = vunpack.c.0.s8 %v3153
        %v3155 = vlaneseq
        %v3156 = vshrl.u32 %v3155, 7
        %v3157 = vsub.s32 %v3154, %v3156
        %v3158 = vrot.slane %v3151, %v3157
        %v3159 = vcombine.low %v2898, %v2930
        %v3161 = vunpack.c.l.s4 1934713408
        %v3162 = vunpack.c.0.s8 %v3161
        %v3163 = vlaneseq
        %v3164 = vshrl.u32 %v3163, 7
        %v3165 = vsub.s32 %v3162, %v3164
        %v3166 = vrot.slane %v3159, %v3165
        %v3167 = vcombine.low %v2962, %v2994
        %v3169 = vunpack.c.l.s4 1934713408
        %v3170 = vunpack.c.0.s8 %v3169
        %v3171 = vlaneseq
        %v3172 = vshrl.u32 %v3171, 7
        %v3173 = vsub.s32 %v3170, %v3172
        %v3174 = vrot.slane %v3167, %v3173
        %v3175 = vcombine.low %v2784, %v2816
        %v3177 = vunpack.c.l.s4 1934713408
        %v3178 = vunpack.c.0.s8 %v3177
        %v3179 = vlaneseq
        %v3180 = vshrl.u32 %v3179, 7
        %v3181 = vsub.s32 %v3178, %v3180
        %v3182 = vrot.slane %v3175, %v3181
        %v3183 = vcombine.low %v2848, %v2880
        %v3185 = vunpack.c.l.s4 1934713408
        %v3186 = vunpack.c.0.s8 %v3185
        %v3187 = vlaneseq
        %v3188 = vshrl.u32 %v3187, 7
        %v3189 = vsub.s32 %v3186, %v3188
        %v3190 = vrot.slane %v3183, %v3189
        %v3191 = vcombine.low %v2912, %v2944
        %v3193 = vunpack.c.l.s4 1934713408
        %v3194 = vunpack.c.0.s8 %v3193
        %v3195 = vlaneseq
        %v3196 = vshrl.u32 %v3195, 7
        %v3197 = vsub.s32 %v3194, %v3196
        %v3198 = vrot.slane %v3191, %v3197
        %v3199 = vcombine.low %v2976, %v3008
        %v3201 = vunpack.c.l.s4 1934713408
        %v3202 = vunpack.c.0.s8 %v3201
        %v3203 = vlaneseq
        %v3204 = vshrl.u32 %v3203, 7
        %v3205 = vsub.s32 %v3202, %v3204
        %v3206 = vrot.slane %v3199, %v3205
        %v3207 = vcombine.low %v1332, %v2804
        %v3209 = vunpack.c.l.s4 1934713408
        %v3210 = vunpack.c.0.s8 %v3209
        %v3211 = vlaneseq
        %v3212 = vshrl.u32 %v3211, 7
        %v3213 = vsub.s32 %v3210, %v3212
        %v3214 = vrot.slane %v3207, %v3213
        %v3215 = vcombine.low %v2836, %v2868
        %v3217 = vunpack.c.l.s4 1934713408
        %v3218 = vunpack.c.0.s8 %v3217
        %v3219 = vlaneseq
        %v3220 = vshrl.u32 %v3219, 7
        %v3221 = vsub.s32 %v3218, %v3220
        %v3222 = vrot.slane %v3215, %v3221
        %v3223 = vcombine.low %v2900, %v2932
        %v3225 = vunpack.c.l.s4 1934713408
        %v3226 = vunpack.c.0.s8 %v3225
        %v3227 = vlaneseq
        %v3228 = vshrl.u32 %v3227, 7
        %v3229 = vsub.s32 %v3226, %v3228
        %v3230 = vrot.slane %v3223, %v3229
        %v3231 = vcombine.low %v2964, %v2996
        %v3233 = vunpack.c.l.s4 1934713408
        %v3234 = vunpack.c.0.s8 %v3233
        %v3235 = vlaneseq
        %v3236 = vshrl.u32 %v3235, 7
        %v3237 = vsub.s32 %v3234, %v3236
        %v3238 = vrot.slane %v3231, %v3237
        %v3239 = vcombine.low %v2785, %v2817
        %v3241 = vunpack.c.l.s4 1934713408
        %v3242 = vunpack.c.0.s8 %v3241
        %v3243 = vlaneseq
        %v3244 = vshrl.u32 %v3243, 7
        %v3245 = vsub.s32 %v3242, %v3244
        %v3246 = vrot.slane %v3239, %v3245
        %v3247 = vcombine.low %v2849, %v2881
        %v3249 = vunpack.c.l.s4 1934713408
        %v3250 = vunpack.c.0.s8 %v3249
        %v3251 = vlaneseq
        %v3252 = vshrl.u32 %v3251, 7
        %v3253 = vsub.s32 %v3250, %v3252
        %v3254 = vrot.slane %v3247, %v3253
        %v3255 = vcombine.low %v2913, %v2945
        %v3257 = vunpack.c.l.s4 1934713408
        %v3258 = vunpack.c.0.s8 %v3257
        %v3259 = vlaneseq
        %v3260 = vshrl.u32 %v3259, 7
        %v3261 = vsub.s32 %v3258, %v3260
        %v3262 = vrot.slane %v3255, %v3261
        %v3263 = vcombine.low %v2977, %v3009
        %v3265 = vunpack.c.l.s4 1934713408
        %v3266 = vunpack.c.0.s8 %v3265
        %v3267 = vlaneseq
        %v3268 = vshrl.u32 %v3267, 7
        %v3269 = vsub.s32 %v3266, %v3268
        %v3270 = vrot.slane %v3263, %v3269
        %v3271 = vcombine.low %v1334, %v2806
        %v3273 = vunpack.c.l.s4 1934713408
        %v3274 = vunpack.c.0.s8 %v3273
        %v3275 = vlaneseq
        %v3276 = vshrl.u32 %v3275, 7
        %v3277 = vsub.s32 %v3274, %v3276
        %v3278 = vrot.slane %v3271, %v3277
        %v3279 = vcombine.low %v2838, %v2870
        %v3281 = vunpack.c.l.s4 1934713408
        %v3282 = vunpack.c.0.s8 %v3281
        %v3283 = vlaneseq
        %v3284 = vshrl.u32 %v3283, 7
        %v3285 = vsub.s32 %v3282, %v3284
        %v3286 = vrot.slane %v3279, %v3285
        %v3287 = vcombine.low %v2902, %v2934
        %v3289 = vunpack.c.l.s4 1934713408
        %v3290 = vunpack.c.0.s8 %v3289
        %v3291 = vlaneseq
        %v3292 = vshrl.u32 %v3291, 7
        %v3293 = vsub.s32 %v3290, %v3292
        %v3294 = vrot.slane %v3287, %v3293
        %v3295 = vcombine.low %v2966, %v2998
        %v3297 = vunpack.c.l.s4 1934713408
        %v3298 = vunpack.c.0.s8 %v3297
        %v3299 = vlaneseq
        %v3300 = vshrl.u32 %v3299, 7
        %v3301 = vsub.s32 %v3298, %v3300
        %v3302 = vrot.slane %v3295, %v3301
        %v3303 = vcombine.low %v2786, %v2818
        %v3305 = vunpack.c.l.s4 1934713408
        %v3306 = vunpack.c.0.s8 %v3305
        %v3307 = vlaneseq
        %v3308 = vshrl.u32 %v3307, 7
        %v3309 = vsub.s32 %v3306, %v3308
        %v3310 = vrot.slane %v3303, %v3309
        %v3311 = vcombine.low %v2850, %v2882
        %v3313 = vunpack.c.l.s4 1934713408
        %v3314 = vunpack.c.0.s8 %v3313
        %v3315 = vlaneseq
        %v3316 = vshrl.u32 %v3315, 7
        %v3317 = vsub.s32 %v3314, %v3316
        %v3318 = vrot.slane %v3311, %v3317
        %v3319 = vcombine.low %v2914, %v2946
        %v3321 = vunpack.c.l.s4 1934713408
        %v3322 = vunpack.c.0.s8 %v3321
        %v3323 = vlaneseq
        %v3324 = vshrl.u32 %v3323, 7
        %v3325 = vsub.s32 %v3322, %v3324
        %v3326 = vrot.slane %v3319, %v3325
        %v3327 = vcombine.low %v2978, %v3010
        %v3329 = vunpack.c.l.s4 1934713408
        %v3330 = vunpack.c.0.s8 %v3329
        %v3331 = vlaneseq
        %v3332 = vshrl.u32 %v3331, 7
        %v3333 = vsub.s32 %v3330, %v3332
        %v3334 = vrot.slane %v3327, %v3333
        %v3335 = vcombine.low %v1343, %v2808
        %v3337 = vunpack.c.l.s4 1934713408
        %v3338 = vunpack.c.0.s8 %v3337
        %v3339 = vlaneseq
        %v3340 = vshrl.u32 %v3339, 7
        %v3341 = vsub.s32 %v3338, %v3340
        %v3342 = vrot.slane %v3335, %v3341
        %v3343 = vcombine.low %v2840, %v2872
        %v3345 = vunpack.c.l.s4 1934713408
        %v3346 = vunpack.c.0.s8 %v3345
        %v3347 = vlaneseq
        %v3348 = vshrl.u32 %v3347, 7
        %v3349 = vsub.s32 %v3346, %v3348
        %v3350 = vrot.slane %v3343, %v3349
        %v3351 = vcombine.low %v2904, %v2936
        %v3353 = vunpack.c.l.s4 1934713408
        %v3354 = vunpack.c.0.s8 %v3353
        %v3355 = vlaneseq
        %v3356 = vshrl.u32 %v3355, 7
        %v3357 = vsub.s32 %v3354, %v3356
        %v3358 = vrot.slane %v3351, %v3357
        %v3359 = vcombine.low %v2968, %v3000
        %v3361 = vunpack.c.l.s4 1934713408
        %v3362 = vunpack.c.0.s8 %v3361
        %v3363 = vlaneseq
        %v3364 = vshrl.u32 %v3363, 7
        %v3365 = vsub.s32 %v3362, %v3364
        %v3366 = vrot.slane %v3359, %v3365
        %v3367 = vcombine.low %v2787, %v2819
        %v3369 = vunpack.c.l.s4 1934713408
        %v3370 = vunpack.c.0.s8 %v3369
        %v3371 = vlaneseq
        %v3372 = vshrl.u32 %v3371, 7
        %v3373 = vsub.s32 %v3370, %v3372
        %v3374 = vrot.slane %v3367, %v3373
        %v3375 = vcombine.low %v2851, %v2883
        %v3377 = vunpack.c.l.s4 1934713408
        %v3378 = vunpack.c.0.s8 %v3377
        %v3379 = vlaneseq
        %v3380 = vshrl.u32 %v3379, 7
        %v3381 = vsub.s32 %v3378, %v3380
        %v3382 = vrot.slane %v3375, %v3381
        %v3383 = vcombine.low %v2915, %v2947
        %v3385 = vunpack.c.l.s4 1934713408
        %v3386 = vunpack.c.0.s8 %v3385
        %v3387 = vlaneseq
        %v3388 = vshrl.u32 %v3387, 7
        %v3389 = vsub.s32 %v3386, %v3388
        %v3390 = vrot.slane %v3383, %v3389
        %v3391 = vcombine.low %v2979, %v3011
        %v3393 = vunpack.c.l.s4 1934713408
        %v3394 = vunpack.c.0.s8 %v3393
        %v3395 = vlaneseq
        %v3396 = vshrl.u32 %v3395, 7
        %v3397 = vsub.s32 %v3394, %v3396
        %v3398 = vrot.slane %v3391, %v3397
        %v3399 = vcombine.low %v1351, %v2810
        %v3401 = vunpack.c.l.s4 1934713408
        %v3402 = vunpack.c.0.s8 %v3401
        %v3403 = vlaneseq
        %v3404 = vshrl.u32 %v3403, 7
        %v3405 = vsub.s32 %v3402, %v3404
        %v3406 = vrot.slane %v3399, %v3405
        %v3407 = vcombine.low %v2842, %v2874
        %v3409 = vunpack.c.l.s4 1934713408
        %v3410 = vunpack.c.0.s8 %v3409
        %v3411 = vlaneseq
        %v3412 = vshrl.u32 %v3411, 7
        %v3413 = vsub.s32 %v3410, %v3412
        %v3414 = vrot.slane %v3407, %v3413
        %v3415 = vcombine.low %v2906, %v2938
        %v3417 = vunpack.c.l.s4 1934713408
        %v3418 = vunpack.c.0.s8 %v3417
        %v3419 = vlaneseq
        %v3420 = vshrl.u32 %v3419, 7
        %v3421 = vsub.s32 %v3418, %v3420
        %v3422 = vrot.slane %v3415, %v3421
        %v3423 = vcombine.low %v2970, %v3002
        %v3425 = vunpack.c.l.s4 1934713408
        %v3426 = vunpack.c.0.s8 %v3425
        %v3427 = vlaneseq
        %v3428 = vshrl.u32 %v3427, 7
        %v3429 = vsub.s32 %v3426, %v3428
        %v3430 = vrot.slane %v3423, %v3429
        %v3431 = vcombine.low %v2788, %v2820
        %v3433 = vunpack.c.l.s4 1934713408
        %v3434 = vunpack.c.0.s8 %v3433
        %v3435 = vlaneseq
        %v3436 = vshrl.u32 %v3435, 7
        %v3437 = vsub.s32 %v3434, %v3436
        %v3438 = vrot.slane %v3431, %v3437
        %v3439 = vcombine.low %v2852, %v2884
        %v3441 = vunpack.c.l.s4 1934713408
        %v3442 = vunpack.c.0.s8 %v3441
        %v3443 = vlaneseq
        %v3444 = vshrl.u32 %v3443, 7
        %v3445 = vsub.s32 %v3442, %v3444
        %v3446 = vrot.slane %v3439, %v3445
        %v3447 = vcombine.low %v2916, %v2948
        %v3449 = vunpack.c.l.s4 1934713408
        %v3450 = vunpack.c.0.s8 %v3449
        %v3451 = vlaneseq
        %v3452 = vshrl.u32 %v3451, 7
        %v3453 = vsub.s32 %v3450, %v3452
        %v3454 = vrot.slane %v3447, %v3453
        %v3455 = vcombine.low %v2980, %v3012
        %v3457 = vunpack.c.l.s4 1934713408
        %v3458 = vunpack.c.0.s8 %v3457
        %v3459 = vlaneseq
        %v3460 = vshrl.u32 %v3459, 7
        %v3461 = vsub.s32 %v3458, %v3460
        %v3462 = vrot.slane %v3455, %v3461
        %v3463 = vcombine.low %v1350, %v2812
        %v3465 = vunpack.c.l.s4 1934713408
        %v3466 = vunpack.c.0.s8 %v3465
        %v3467 = vlaneseq
        %v3468 = vshrl.u32 %v3467, 7
        %v3469 = vsub.s32 %v3466, %v3468
        %v3470 = vrot.slane %v3463, %v3469
        %v3471 = vcombine.low %v2844, %v2876
        %v3473 = vunpack.c.l.s4 1934713408
        %v3474 = vunpack.c.0.s8 %v3473
        %v3475 = vlaneseq
        %v3476 = vshrl.u32 %v3475, 7
        %v3477 = vsub.s32 %v3474, %v3476
        %v3478 = vrot.slane %v3471, %v3477
        %v3479 = vcombine.low %v2908, %v2940
        %v3481 = vunpack.c.l.s4 1934713408
        %v3482 = vunpack.c.0.s8 %v3481
        %v3483 = vlaneseq
        %v3484 = vshrl.u32 %v3483, 7
        %v3485 = vsub.s32 %v3482, %v3484
        %v3486 = vrot.slane %v3479, %v3485
        %v3487 = vcombine.low %v2972, %v3004
        %v3489 = vunpack.c.l.s4 1934713408
        %v3490 = vunpack.c.0.s8 %v3489
        %v3491 = vlaneseq
        %v3492 = vshrl.u32 %v3491, 7
        %v3493 = vsub.s32 %v3490, %v3492
        %v3494 = vrot.slane %v3487, %v3493
        %v3495 = vcombine.low %v2789, %v2821
        %v3497 = vunpack.c.l.s4 1934713408
        %v3498 = vunpack.c.0.s8 %v3497
        %v3499 = vlaneseq
        %v3500 = vshrl.u32 %v3499, 7
        %v3501 = vsub.s32 %v3498, %v3500
        %v3502 = vrot.slane %v3495, %v3501
        %v3503 = vcombine.low %v2853, %v2885
        %v3505 = vunpack.c.l.s4 1934713408
        %v3506 = vunpack.c.0.s8 %v3505
        %v3507 = vlaneseq
        %v3508 = vshrl.u32 %v3507, 7
        %v3509 = vsub.s32 %v3506, %v3508
        %v3510 = vrot.slane %v3503, %v3509
        %v3511 = vcombine.low %v2917, %v2949
        %v3513 = vunpack.c.l.s4 1934713408
        %v3514 = vunpack.c.0.s8 %v3513
        %v3515 = vlaneseq
        %v3516 = vshrl.u32 %v3515, 7
        %v3517 = vsub.s32 %v3514, %v3516
        %v3518 = vrot.slane %v3511, %v3517
        %v3519 = vcombine.low %v2981, %v3013
        %v3521 = vunpack.c.l.s4 1934713408
        %v3522 = vunpack.c.0.s8 %v3521
        %v3523 = vlaneseq
        %v3524 = vshrl.u32 %v3523, 7
        %v3525 = vsub.s32 %v3522, %v3524
        %v3526 = vrot.slane %v3519, %v3525
        %v3527 = vcombine.low %v1352, %v2814
        %v3529 = vunpack.c.l.s4 1934713408
        %v3530 = vunpack.c.0.s8 %v3529
        %v3531 = vlaneseq
        %v3532 = vshrl.u32 %v3531, 7
        %v3533 = vsub.s32 %v3530, %v3532
        %v3534 = vrot.slane %v3527, %v3533
        %v3535 = vcombine.low %v2846, %v2878
        %v3537 = vunpack.c.l.s4 1934713408
        %v3538 = vunpack.c.0.s8 %v3537
        %v3539 = vlaneseq
        %v3540 = vshrl.u32 %v3539, 7
        %v3541 = vsub.s32 %v3538, %v3540
        %v3542 = vrot.slane %v3535, %v3541
        %v3543 = vcombine.low %v2910, %v2942
        %v3545 = vunpack.c.l.s4 1934713408
        %v3546 = vunpack.c.0.s8 %v3545
        %v3547 = vlaneseq
        %v3548 = vshrl.u32 %v3547, 7
        %v3549 = vsub.s32 %v3546, %v3548
        %v3550 = vrot.slane %v3543, %v3549
        %v3551 = vcombine.low %v2974, %v3006
        %v3553 = vunpack.c.l.s4 1934713408
        %v3554 = vunpack.c.0.s8 %v3553
        %v3555 = vlaneseq
        %v3556 = vshrl.u32 %v3555, 7
        %v3557 = vsub.s32 %v3554, %v3556
        %v3558 = vrot.slane %v3551, %v3557
        %v3559 = vcombine.low %v2790, %v2822
        %v3561 = vunpack.c.l.s4 1934713408
        %v3562 = vunpack.c.0.s8 %v3561
        %v3563 = vlaneseq
        %v3564 = vshrl.u32 %v3563, 7
        %v3565 = vsub.s32 %v3562, %v3564
        %v3566 = vrot.slane %v3559, %v3565
        %v3567 = vcombine.low %v2854, %v2886
        %v3569 = vunpack.c.l.s4 1934713408
        %v3570 = vunpack.c.0.s8 %v3569
        %v3571 = vlaneseq
        %v3572 = vshrl.u32 %v3571, 7
        %v3573 = vsub.s32 %v3570, %v3572
        %v3574 = vrot.slane %v3567, %v3573
        %v3575 = vcombine.low %v2918, %v2950
        %v3577 = vunpack.c.l.s4 1934713408
        %v3578 = vunpack.c.0.s8 %v3577
        %v3579 = vlaneseq
        %v3580 = vshrl.u32 %v3579, 7
        %v3581 = vsub.s32 %v3578, %v3580
        %v3582 = vrot.slane %v3575, %v3581
        %v3583 = vcombine.low %v2982, %v3014
        %v3585 = vunpack.c.l.s4 1934713408
        %v3586 = vunpack.c.0.s8 %v3585
        %v3587 = vlaneseq
        %v3588 = vshrl.u32 %v3587, 7
        %v3589 = vsub.s32 %v3586, %v3588
        %v3590 = vrot.slane %v3583, %v3589
        %v3655 = vcombine.low %v3086, %v3094
        %v3656 = vcombine.low %v3102, %v3110
        %v3658 = vunpack.c.l.s4 1983009808
        %v3659 = vunpack.c.0.s8 %v3658
        %v3660 = vlaneseq
        %v3661 = vshrl.u32 %v3660, 7
        %v3662 = vsub.s32 %v3659, %v3661
        %v3663 = vrot.slane %v3655, %v3662
        %v3665 = vunpack.c.l.s4 1983009808
        %v3666 = vunpack.c.0.s8 %v3665
        %v3667 = vlaneseq
        %v3668 = vshrl.u32 %v3667, 7
        %v3669 = vsub.s32 %v3666, %v3668
        %v3670 = vrot.slane %v3656, %v3669
        %v3671 = vcombine.low %v3663, %v3670
        %v3672 = vcombine.low %v3118, %v3126
        %v3673 = vcombine.low %v3134, %v3142
        %v3675 = vunpack.c.l.s4 1983009808
        %v3676 = vunpack.c.0.s8 %v3675
        %v3677 = vlaneseq
        %v3678 = vshrl.u32 %v3677, 7
        %v3679 = vsub.s32 %v3676, %v3678
        %v3680 = vrot.slane %v3672, %v3679
        %v3682 = vunpack.c.l.s4 1983009808
        %v3683 = vunpack.c.0.s8 %v3682
        %v3684 = vlaneseq
        %v3685 = vshrl.u32 %v3684, 7
        %v3686 = vsub.s32 %v3683, %v3685
        %v3687 = vrot.slane %v3673, %v3686
        %v3688 = vcombine.low %v3680, %v3687
        %v3689 = vcombine.low %v3150, %v3158
        %v3690 = vcombine.low %v3166, %v3174
        %v3692 = vunpack.c.l.s4 1983009808
        %v3693 = vunpack.c.0.s8 %v3692
        %v3694 = vlaneseq
        %v3695 = vshrl.u32 %v3694, 7
        %v3696 = vsub.s32 %v3693, %v3695
        %v3697 = vrot.slane %v3689, %v3696
        %v3699 = vunpack.c.l.s4 1983009808
        %v3700 = vunpack.c.0.s8 %v3699
        %v3701 = vlaneseq
        %v3702 = vshrl.u32 %v3701, 7
        %v3703 = vsub.s32 %v3700, %v3702
        %v3704 = vrot.slane %v3690, %v3703
        %v3705 = vcombine.low %v3697, %v3704
        %v3706 = vcombine.low %v3182, %v3190
        %v3707 = vcombine.low %v3198, %v3206
        %v3709 = vunpack.c.l.s4 1983009808
        %v3710 = vunpack.c.0.s8 %v3709
        %v3711 = vlaneseq
        %v3712 = vshrl.u32 %v3711, 7
        %v3713 = vsub.s32 %v3710, %v3712
        %v3714 = vrot.slane %v3706, %v3713
        %v3716 = vunpack.c.l.s4 1983009808
        %v3717 = vunpack.c.0.s8 %v3716
        %v3718 = vlaneseq
        %v3719 = vshrl.u32 %v3718, 7
        %v3720 = vsub.s32 %v3717, %v3719
        %v3721 = vrot.slane %v3707, %v3720
        %v3722 = vcombine.low %v3714, %v3721
        %v3723 = vcombine.low %v3214, %v3222
        %v3724 = vcombine.low %v3230, %v3238
        %v3726 = vunpack.c.l.s4 1983009808
        %v3727 = vunpack.c.0.s8 %v3726
        %v3728 = vlaneseq
        %v3729 = vshrl.u32 %v3728, 7
        %v3730 = vsub.s32 %v3727, %v3729
        %v3731 = vrot.slane %v3723, %v3730
        %v3733 = vunpack.c.l.s4 1983009808
        %v3734 = vunpack.c.0.s8 %v3733
        %v3735 = vlaneseq
        %v3736 = vshrl.u32 %v3735, 7
        %v3737 = vsub.s32 %v3734, %v3736
        %v3738 = vrot.slane %v3724, %v3737
        %v3739 = vcombine.low %v3731, %v3738
        %v3740 = vcombine.low %v3246, %v3254
        %v3741 = vcombine.low %v3262, %v3270
        %v3743 = vunpack.c.l.s4 1983009808
        %v3744 = vunpack.c.0.s8 %v3743
        %v3745 = vlaneseq
        %v3746 = vshrl.u32 %v3745, 7
        %v3747 = vsub.s32 %v3744, %v3746
        %v3748 = vrot.slane %v3740, %v3747
        %v3750 = vunpack.c.l.s4 1983009808
        %v3751 = vunpack.c.0.s8 %v3750
        %v3752 = vlaneseq
        %v3753 = vshrl.u32 %v3752, 7
        %v3754 = vsub.s32 %v3751, %v3753
        %v3755 = vrot.slane %v3741, %v3754
        %v3756 = vcombine.low %v3748, %v3755
        %v3757 = vcombine.low %v3278, %v3286
        %v3758 = vcombine.low %v3294, %v3302
        %v3760 = vunpack.c.l.s4 1983009808
        %v3761 = vunpack.c.0.s8 %v3760
        %v3762 = vlaneseq
        %v3763 = vshrl.u32 %v3762, 7
        %v3764 = vsub.s32 %v3761, %v3763
        %v3765 = vrot.slane %v3757, %v3764
        %v3767 = vunpack.c.l.s4 1983009808
        %v3768 = vunpack.c.0.s8 %v3767
        %v3769 = vlaneseq
        %v3770 = vshrl.u32 %v3769, 7
        %v3771 = vsub.s32 %v3768, %v3770
        %v3772 = vrot.slane %v3758, %v3771
        %v3773 = vcombine.low %v3765, %v3772
        %v3774 = vcombine.low %v3310, %v3318
        %v3775 = vcombine.low %v3326, %v3334
        %v3777 = vunpack.c.l.s4 1983009808
        %v3778 = vunpack.c.0.s8 %v3777
        %v3779 = vlaneseq
        %v3780 = vshrl.u32 %v3779, 7
        %v3781 = vsub.s32 %v3778, %v3780
        %v3782 = vrot.slane %v3774, %v3781
        %v3784 = vunpack.c.l.s4 1983009808
        %v3785 = vunpack.c.0.s8 %v3784
        %v3786 = vlaneseq
        %v3787 = vshrl.u32 %v3786, 7
        %v3788 = vsub.s32 %v3785, %v3787
        %v3789 = vrot.slane %v3775, %v3788
        %v3790 = vcombine.low %v3782, %v3789
        %v3791 = vcombine.low %v3342, %v3350
        %v3792 = vcombine.low %v3358, %v3366
        %v3794 = vunpack.c.l.s4 1983009808
        %v3795 = vunpack.c.0.s8 %v3794
        %v3796 = vlaneseq
        %v3797 = vshrl.u32 %v3796, 7
        %v3798 = vsub.s32 %v3795, %v3797
        %v3799 = vrot.slane %v3791, %v3798
        %v3801 = vunpack.c.l.s4 1983009808
        %v3802 = vunpack.c.0.s8 %v3801
        %v3803 = vlaneseq
        %v3804 = vshrl.u32 %v3803, 7
        %v3805 = vsub.s32 %v3802, %v3804
        %v3806 = vrot.slane %v3792, %v3805
        %v3807 = vcombine.low %v3799, %v3806
        %v3808 = vcombine.low %v3374, %v3382
        %v3809 = vcombine.low %v3390, %v3398
        %v3811 = vunpack.c.l.s4 1983009808
        %v3812 = vunpack.c.0.s8 %v3811
        %v3813 = vlaneseq
        %v3814 = vshrl.u32 %v3813, 7
        %v3815 = vsub.s32 %v3812, %v3814
        %v3816 = vrot.slane %v3808, %v3815
        %v3818 = vunpack.c.l.s4 1983009808
        %v3819 = vunpack.c.0.s8 %v3818
        %v3820 = vlaneseq
        %v3821 = vshrl.u32 %v3820, 7
        %v3822 = vsub.s32 %v3819, %v3821
        %v3823 = vrot.slane %v3809, %v3822
        %v3824 = vcombine.low %v3816, %v3823
        %v3825 = vcombine.low %v3406, %v3414
        %v3826 = vcombine.low %v3422, %v3430
        %v3828 = vunpack.c.l.s4 1983009808
        %v3829 = vunpack.c.0.s8 %v3828
        %v3830 = vlaneseq
        %v3831 = vshrl.u32 %v3830, 7
        %v3832 = vsub.s32 %v3829, %v3831
        %v3833 = vrot.slane %v3825, %v3832
        %v3835 = vunpack.c.l.s4 1983009808
        %v3836 = vunpack.c.0.s8 %v3835
        %v3837 = vlaneseq
        %v3838 = vshrl.u32 %v3837, 7
        %v3839 = vsub.s32 %v3836, %v3838
        %v3840 = vrot.slane %v3826, %v3839
        %v3841 = vcombine.low %v3833, %v3840
        %v3842 = vcombine.low %v3438, %v3446
        %v3843 = vcombine.low %v3454, %v3462
        %v3845 = vunpack.c.l.s4 1983009808
        %v3846 = vunpack.c.0.s8 %v3845
        %v3847 = vlaneseq
        %v3848 = vshrl.u32 %v3847, 7
        %v3849 = vsub.s32 %v3846, %v3848
        %v3850 = vrot.slane %v3842, %v3849
        %v3852 = vunpack.c.l.s4 1983009808
        %v3853 = vunpack.c.0.s8 %v3852
        %v3854 = vlaneseq
        %v3855 = vshrl.u32 %v3854, 7
        %v3856 = vsub.s32 %v3853, %v3855
        %v3857 = vrot.slane %v3843, %v3856
        %v3858 = vcombine.low %v3850, %v3857
        %v3859 = vcombine.low %v3470, %v3478
        %v3860 = vcombine.low %v3486, %v3494
        %v3862 = vunpack.c.l.s4 1983009808
        %v3863 = vunpack.c.0.s8 %v3862
        %v3864 = vlaneseq
        %v3865 = vshrl.u32 %v3864, 7
        %v3866 = vsub.s32 %v3863, %v3865
        %v3867 = vrot.slane %v3859, %v3866
        %v3869 = vunpack.c.l.s4 1983009808
        %v3870 = vunpack.c.0.s8 %v3869
        %v3871 = vlaneseq
        %v3872 = vshrl.u32 %v3871, 7
        %v3873 = vsub.s32 %v3870, %v3872
        %v3874 = vrot.slane %v3860, %v3873
        %v3875 = vcombine.low %v3867, %v3874
        %v3876 = vcombine.low %v3502, %v3510
        %v3877 = vcombine.low %v3518, %v3526
        %v3879 = vunpack.c.l.s4 1983009808
        %v3880 = vunpack.c.0.s8 %v3879
        %v3881 = vlaneseq
        %v3882 = vshrl.u32 %v3881, 7
        %v3883 = vsub.s32 %v3880, %v3882
        %v3884 = vrot.slane %v3876, %v3883
        %v3886 = vunpack.c.l.s4 1983009808
        %v3887 = vunpack.c.0.s8 %v3886
        %v3888 = vlaneseq
        %v3889 = vshrl.u32 %v3888, 7
        %v3890 = vsub.s32 %v3887, %v3889
        %v3891 = vrot.slane %v3877, %v3890
        %v3892 = vcombine.low %v3884, %v3891
        %v3893 = vcombine.low %v3534, %v3542
        %v3894 = vcombine.low %v3550, %v3558
        %v3896 = vunpack.c.l.s4 1983009808
        %v3897 = vunpack.c.0.s8 %v3896
        %v3898 = vlaneseq
        %v3899 = vshrl.u32 %v3898, 7
        %v3900 = vsub.s32 %v3897, %v3899
        %v3901 = vrot.slane %v3893, %v3900
        %v3903 = vunpack.c.l.s4 1983009808
        %v3904 = vunpack.c.0.s8 %v3903
        %v3905 = vlaneseq
        %v3906 = vshrl.u32 %v3905, 7
        %v3907 = vsub.s32 %v3904, %v3906
        %v3908 = vrot.slane %v3894, %v3907
        %v3909 = vcombine.low %v3901, %v3908
        %v3910 = vcombine.low %v3566, %v3574
        %v3911 = vcombine.low %v3582, %v3590
        %v3913 = vunpack.c.l.s4 1983009808
        %v3914 = vunpack.c.0.s8 %v3913
        %v3915 = vlaneseq
        %v3916 = vshrl.u32 %v3915, 7
        %v3917 = vsub.s32 %v3914, %v3916
        %v3918 = vrot.slane %v3910, %v3917
        %v3920 = vunpack.c.l.s4 1983009808
        %v3921 = vunpack.c.0.s8 %v3920
        %v3922 = vlaneseq
        %v3923 = vshrl.u32 %v3922, 7
        %v3924 = vsub.s32 %v3921, %v3923
        %v3925 = vrot.slane %v3911, %v3924
        %v3926 = vcombine.low %v3918, %v3925
        %v3927 = vrot.slane %v3671, 7
        %v3928 = vrot.slane %v3688, 7
        %v3929 = vsel %vm2529, %v3927, %v3928
        %v3930 = vrot.slane %v3705, 7
        %v3931 = vrot.slane %v3722, 7
        %v3932 = vsel %vm2529, %v3930, %v3931
        %v3933 = vrot.slane %v3739, 7
        %v3934 = vrot.slane %v3756, 7
        %v3935 = vsel %vm2529, %v3933, %v3934
        %v3936 = vrot.slane %v3773, 7
        %v3937 = vrot.slane %v3790, 7
        %v3938 = vsel %vm2529, %v3936, %v3937
        %v3939 = vrot.slane %v3807, 7
        %v3940 = vrot.slane %v3824, 7
        %v3941 = vsel %vm2529, %v3939, %v3940
        %v3942 = vrot.slane %v3841, 7
        %v3943 = vrot.slane %v3858, 7
        %v3944 = vsel %vm2529, %v3942, %v3943
        %v3945 = vrot.slane %v3875, 7
        %v3946 = vrot.slane %v3892, 7
        %v3947 = vsel %vm2529, %v3945, %v3946
        %v3948 = vrot.slane %v3909, 7
        %v3949 = vrot.slane %v3926, 7
        %v3950 = vsel %vm2529, %v3948, %v3949
        %v3967 = vsel %vm2529, 0.0, %v3927
        %v3968 = vsel %vm2529, 0.0, %v3930
        %v3969 = vsel %vm2529, 0.0, %v3933
        %v3970 = vsel %vm2529, 0.0, %v3936
        %v3971 = vsel %vm2529, 0.0, %v3939
        %v3972 = vsel %vm2529, 0.0, %v3942
        %v3973 = vsel %vm2529, 0.0, %v3945
        %v3974 = vsel %vm2529, 0.0, %v3948
        %v3975 = vsel %vm2529, %v3928, 0.0
        %v3976 = vsel %vm2529, %v3931, 0.0
        %v3977 = vsel %vm2529, %v3934, 0.0
        %v3978 = vsel %vm2529, %v3937, 0.0
        %v3979 = vsel %vm2529, %v3940, 0.0
        %v3980 = vsel %vm2529, %v3943, 0.0
        %v3981 = vsel %vm2529, %v3946, 0.0
        %v3982 = vsel %vm2529, %v3949, 0.0
        %3999 = vrot.lane.b32.xlu0 %v3967, 1
        %v4000 = vpop.permute.xlu0 %3999
        %4001 = vrot.lane.b32.xlu0 %v3929, 1
        %v4002 = vpop.permute.xlu0 %4001
        %4003 = vrot.lane.b32.xlu0 %v3975, 1
        %v4004 = vpop.permute.xlu0 %4003
        %4005 = vrot.lane.b32.xlu0 %v3968, 1
        %v4006 = vpop.permute.xlu0 %4005
        %4007 = vrot.lane.b32.xlu0 %v3932, 1
        %v4008 = vpop.permute.xlu0 %4007
        %4009 = vrot.lane.b32.xlu0 %v3976, 1
        %v4010 = vpop.permute.xlu0 %4009
        %4011 = vrot.lane.b32.xlu0 %v3969, 1
        %v4012 = vpop.permute.xlu0 %4011
        %4013 = vrot.lane.b32.xlu0 %v3935, 1
        %v4014 = vpop.permute.xlu0 %4013
        %4015 = vrot.lane.b32.xlu0 %v3977, 1
        %v4016 = vpop.permute.xlu0 %4015
        %4017 = vrot.lane.b32.xlu0 %v3970, 1
        %v4018 = vpop.permute.xlu0 %4017
        %4019 = vrot.lane.b32.xlu0 %v3938, 1
        %v4020 = vpop.permute.xlu0 %4019
        %4021 = vrot.lane.b32.xlu0 %v3978, 1
        %v4022 = vpop.permute.xlu0 %4021
        %4023 = vrot.lane.b32.xlu0 %v3971, 1
        %v4024 = vpop.permute.xlu0 %4023
        %4025 = vrot.lane.b32.xlu0 %v3941, 1
        %v4026 = vpop.permute.xlu0 %4025
        %4027 = vrot.lane.b32.xlu0 %v3979, 1
        %v4028 = vpop.permute.xlu0 %4027
        %4029 = vrot.lane.b32.xlu0 %v3972, 1
        %v4030 = vpop.permute.xlu0 %4029
        %4031 = vrot.lane.b32.xlu0 %v3944, 1
        %v4032 = vpop.permute.xlu0 %4031
        %4033 = vrot.lane.b32.xlu0 %v3980, 1
        %v4034 = vpop.permute.xlu0 %4033
        %4035 = vrot.lane.b32.xlu0 %v3973, 1
        %v4036 = vpop.permute.xlu0 %4035
        %4037 = vrot.lane.b32.xlu0 %v3947, 1
        %v4038 = vpop.permute.xlu0 %4037
        %4039 = vrot.lane.b32.xlu0 %v3981, 1
        %v4040 = vpop.permute.xlu0 %4039
        %4041 = vrot.lane.b32.xlu0 %v3974, 1
        %v4042 = vpop.permute.xlu0 %4041
        %4043 = vrot.lane.b32.xlu0 %v3950, 1
        %v4044 = vpop.permute.xlu0 %4043
        %4045 = vrot.lane.b32.xlu0 %v3982, 1
        %v4046 = vpop.permute.xlu0 %4045
        %vm4071 = vcmask 7168
        %v4072 = vsel %vm4071, 0.0, %v4000
        %v4073 = vsel %vm4071, 0.0, %v4002
        %v4074 = vsel %vm4071, 0.0, %v4004
        %v4075 = vsel %vm4071, 0.0, %v4006
        %v4076 = vsel %vm4071, 0.0, %v4008
        %v4077 = vsel %vm4071, 0.0, %v4010
        %v4078 = vsel %vm4071, 0.0, %v4012
        %v4079 = vsel %vm4071, 0.0, %v4014
        %v4080 = vsel %vm4071, 0.0, %v4016
        %v4081 = vsel %vm4071, 0.0, %v4018
        %v4082 = vsel %vm4071, 0.0, %v4020
        %v4083 = vsel %vm4071, 0.0, %v4022
        %v4084 = vsel %vm4071, 0.0, %v4024
        %v4085 = vsel %vm4071, 0.0, %v4026
        %v4086 = vsel %vm4071, 0.0, %v4028
        %v4087 = vsel %vm4071, 0.0, %v4030
        %v4088 = vsel %vm4071, 0.0, %v4032
        %v4089 = vsel %vm4071, 0.0, %v4034
        %v4090 = vsel %vm4071, 0.0, %v4036
        %v4091 = vsel %vm4071, 0.0, %v4038
        %v4092 = vsel %vm4071, 0.0, %v4040
        %v4093 = vsel %vm4071, 0.0, %v4042
        %v4094 = vsel %vm4071, 0.0, %v4044
        %v4095 = vsel %vm4071, 0.0, %v4046
        %vm4096 = vcmask 138240
        %v4097 = vsel %vm4096, %v4072, 0.0
        %v4098 = vsel %vm4096, %v4073, 0.0
        %v4099 = vsel %vm4096, %v4074, 0.0
        %v4100 = vsel %vm4096, %v4075, 0.0
        %v4101 = vsel %vm4096, %v4076, 0.0
        %v4102 = vsel %vm4096, %v4077, 0.0
        %v4103 = vsel %vm4096, %v4078, 0.0
        %v4104 = vsel %vm4096, %v4079, 0.0
        %v4105 = vsel %vm4096, %v4080, 0.0
        %v4106 = vsel %vm4096, %v4081, 0.0
        %v4107 = vsel %vm4096, %v4082, 0.0
        %v4108 = vsel %vm4096, %v4083, 0.0
        %v4109 = vsel %vm4096, %v4084, 0.0
        %v4110 = vsel %vm4096, %v4085, 0.0
        %v4111 = vsel %vm4096, %v4086, 0.0
        %v4112 = vsel %vm4096, %v4087, 0.0
        %v4113 = vsel %vm4096, %v4088, 0.0
        %v4114 = vsel %vm4096, %v4089, 0.0
        %v4115 = vsel %vm4096, %v4090, 0.0
        %v4116 = vsel %vm4096, %v4091, 0.0
        %v4117 = vsel %vm4096, %v4092, 0.0
        %v4118 = vsel %vm4096, %v4093, 0.0
        %v4119 = vsel %vm4096, %v4094, 0.0
        %v4120 = vsel %vm4096, %v4095, 0.0
        %v4121 = vrot.slane %v1325, 7
        %v4122 = vrot.slane %v4121, 2
        %v4123 = vrot.slane %v2800, 7
        %v4124 = vrot.slane %v4123, 2
        %v4125 = vrot.slane %v2832, 7
        %v4126 = vrot.slane %v4125, 2
        %v4127 = vrot.slane %v2864, 7
        %v4128 = vrot.slane %v4127, 2
        %v4129 = vrot.slane %v2896, 7
        %v4130 = vrot.slane %v4129, 2
        %v4131 = vrot.slane %v2928, 7
        %v4132 = vrot.slane %v4131, 2
        %v4133 = vrot.slane %v2960, 7
        %v4134 = vrot.slane %v4133, 2
        %v4135 = vrot.slane %v2992, 7
        %v4136 = vrot.slane %v4135, 2
        %v4137 = vrot.slane %v2783, 7
        %v4138 = vrot.slane %v4137, 2
        %v4139 = vrot.slane %v2815, 7
        %v4140 = vrot.slane %v4139, 2
        %v4141 = vrot.slane %v2847, 7
        %v4142 = vrot.slane %v4141, 2
        %v4143 = vrot.slane %v2879, 7
        %v4144 = vrot.slane %v4143, 2
        %v4145 = vrot.slane %v2911, 7
        %v4146 = vrot.slane %v4145, 2
        %v4147 = vrot.slane %v2943, 7
        %v4148 = vrot.slane %v4147, 2
        %v4149 = vrot.slane %v2975, 7
        %v4150 = vrot.slane %v4149, 2
        %v4151 = vrot.slane %v3007, 7
        %v4152 = vrot.slane %v4151, 2
        %v4153 = vrot.slane %v1333, 7
        %v4154 = vrot.slane %v4153, 2
        %v4155 = vrot.slane %v2802, 7
        %v4156 = vrot.slane %v4155, 2
        %v4157 = vrot.slane %v2834, 7
        %v4158 = vrot.slane %v4157, 2
        %v4159 = vrot.slane %v2866, 7
        %v4160 = vrot.slane %v4159, 2
        %v4161 = vrot.slane %v2898, 7
        %v4162 = vrot.slane %v4161, 2
        %v4163 = vrot.slane %v2930, 7
        %v4164 = vrot.slane %v4163, 2
        %v4165 = vrot.slane %v2962, 7
        %v4166 = vrot.slane %v4165, 2
        %v4167 = vrot.slane %v2994, 7
        %v4168 = vrot.slane %v4167, 2
        %v4169 = vrot.slane %v2784, 7
        %v4170 = vrot.slane %v4169, 2
        %v4171 = vrot.slane %v2816, 7
        %v4172 = vrot.slane %v4171, 2
        %v4173 = vrot.slane %v2848, 7
        %v4174 = vrot.slane %v4173, 2
        %v4175 = vrot.slane %v2880, 7
        %v4176 = vrot.slane %v4175, 2
        %v4177 = vrot.slane %v2912, 7
        %v4178 = vrot.slane %v4177, 2
        %v4179 = vrot.slane %v2944, 7
        %v4180 = vrot.slane %v4179, 2
        %v4181 = vrot.slane %v2976, 7
        %v4182 = vrot.slane %v4181, 2
        %v4183 = vrot.slane %v3008, 7
        %v4184 = vrot.slane %v4183, 2
        %v4185 = vrot.slane %v1332, 7
        %v4186 = vrot.slane %v4185, 2
        %v4187 = vrot.slane %v2804, 7
        %v4188 = vrot.slane %v4187, 2
        %v4189 = vrot.slane %v2836, 7
        %v4190 = vrot.slane %v4189, 2
        %v4191 = vrot.slane %v2868, 7
        %v4192 = vrot.slane %v4191, 2
        %v4193 = vrot.slane %v2900, 7
        %v4194 = vrot.slane %v4193, 2
        %v4195 = vrot.slane %v2932, 7
        %v4196 = vrot.slane %v4195, 2
        %v4197 = vrot.slane %v2964, 7
        %v4198 = vrot.slane %v4197, 2
        %v4199 = vrot.slane %v2996, 7
        %v4200 = vrot.slane %v4199, 2
        %v4201 = vrot.slane %v2785, 7
        %v4202 = vrot.slane %v4201, 2
        %v4203 = vrot.slane %v2817, 7
        %v4204 = vrot.slane %v4203, 2
        %v4205 = vrot.slane %v2849, 7
        %v4206 = vrot.slane %v4205, 2
        %v4207 = vrot.slane %v2881, 7
        %v4208 = vrot.slane %v4207, 2
        %v4209 = vrot.slane %v2913, 7
        %v4210 = vrot.slane %v4209, 2
        %v4211 = vrot.slane %v2945, 7
        %v4212 = vrot.slane %v4211, 2
        %v4213 = vrot.slane %v2977, 7
        %v4214 = vrot.slane %v4213, 2
        %v4215 = vrot.slane %v3009, 7
        %v4216 = vrot.slane %v4215, 2
        %v4217 = vrot.slane %v1334, 7
        %v4218 = vrot.slane %v4217, 2
        %v4219 = vrot.slane %v2806, 7
        %v4220 = vrot.slane %v4219, 2
        %v4221 = vrot.slane %v2838, 7
        %v4222 = vrot.slane %v4221, 2
        %v4223 = vrot.slane %v2870, 7
        %v4224 = vrot.slane %v4223, 2
        %v4225 = vrot.slane %v2902, 7
        %v4226 = vrot.slane %v4225, 2
        %v4227 = vrot.slane %v2934, 7
        %v4228 = vrot.slane %v4227, 2
        %v4229 = vrot.slane %v2966, 7
        %v4230 = vrot.slane %v4229, 2
        %v4231 = vrot.slane %v2998, 7
        %v4232 = vrot.slane %v4231, 2
        %v4233 = vrot.slane %v2786, 7
        %v4234 = vrot.slane %v4233, 2
        %v4235 = vrot.slane %v2818, 7
        %v4236 = vrot.slane %v4235, 2
        %v4237 = vrot.slane %v2850, 7
        %v4238 = vrot.slane %v4237, 2
        %v4239 = vrot.slane %v2882, 7
        %v4240 = vrot.slane %v4239, 2
        %v4241 = vrot.slane %v2914, 7
        %v4242 = vrot.slane %v4241, 2
        %v4243 = vrot.slane %v2946, 7
        %v4244 = vrot.slane %v4243, 2
        %v4245 = vrot.slane %v2978, 7
        %v4246 = vrot.slane %v4245, 2
        %v4247 = vrot.slane %v3010, 7
        %v4248 = vrot.slane %v4247, 2
        %v4249 = vrot.slane %v1343, 7
        %v4250 = vrot.slane %v4249, 2
        %v4251 = vrot.slane %v2808, 7
        %v4252 = vrot.slane %v4251, 2
        %v4253 = vrot.slane %v2840, 7
        %v4254 = vrot.slane %v4253, 2
        %v4255 = vrot.slane %v2872, 7
        %v4256 = vrot.slane %v4255, 2
        %v4257 = vrot.slane %v2904, 7
        %v4258 = vrot.slane %v4257, 2
        %v4259 = vrot.slane %v2936, 7
        %v4260 = vrot.slane %v4259, 2
        %v4261 = vrot.slane %v2968, 7
        %v4262 = vrot.slane %v4261, 2
        %v4263 = vrot.slane %v3000, 7
        %v4264 = vrot.slane %v4263, 2
        %v4265 = vrot.slane %v2787, 7
        %v4266 = vrot.slane %v4265, 2
        %v4267 = vrot.slane %v2819, 7
        %v4268 = vrot.slane %v4267, 2
        %v4269 = vrot.slane %v2851, 7
        %v4270 = vrot.slane %v4269, 2
        %v4271 = vrot.slane %v2883, 7
        %v4272 = vrot.slane %v4271, 2
        %v4273 = vrot.slane %v2915, 7
        %v4274 = vrot.slane %v4273, 2
        %v4275 = vrot.slane %v2947, 7
        %v4276 = vrot.slane %v4275, 2
        %v4277 = vrot.slane %v2979, 7
        %v4278 = vrot.slane %v4277, 2
        %v4279 = vrot.slane %v3011, 7
        %v4280 = vrot.slane %v4279, 2
        %v4281 = vrot.slane %v1351, 7
        %v4282 = vrot.slane %v4281, 2
        %v4283 = vrot.slane %v2810, 7
        %v4284 = vrot.slane %v4283, 2
        %v4285 = vrot.slane %v2842, 7
        %v4286 = vrot.slane %v4285, 2
        %v4287 = vrot.slane %v2874, 7
        %v4288 = vrot.slane %v4287, 2
        %v4289 = vrot.slane %v2906, 7
        %v4290 = vrot.slane %v4289, 2
        %v4291 = vrot.slane %v2938, 7
        %v4292 = vrot.slane %v4291, 2
        %v4293 = vrot.slane %v2970, 7
        %v4294 = vrot.slane %v4293, 2
        %v4295 = vrot.slane %v3002, 7
        %v4296 = vrot.slane %v4295, 2
        %v4297 = vrot.slane %v2788, 7
        %v4298 = vrot.slane %v4297, 2
        %v4299 = vrot.slane %v2820, 7
        %v4300 = vrot.slane %v4299, 2
        %v4301 = vrot.slane %v2852, 7
        %v4302 = vrot.slane %v4301, 2
        %v4303 = vrot.slane %v2884, 7
        %v4304 = vrot.slane %v4303, 2
        %v4305 = vrot.slane %v2916, 7
        %v4306 = vrot.slane %v4305, 2
        %v4307 = vrot.slane %v2948, 7
        %v4308 = vrot.slane %v4307, 2
        %v4309 = vrot.slane %v2980, 7
        %v4310 = vrot.slane %v4309, 2
        %v4311 = vrot.slane %v3012, 7
        %v4312 = vrot.slane %v4311, 2
        %v4313 = vrot.slane %v1350, 7
        %v4314 = vrot.slane %v4313, 2
        %v4315 = vrot.slane %v2812, 7
        %v4316 = vrot.slane %v4315, 2
        %v4317 = vrot.slane %v2844, 7
        %v4318 = vrot.slane %v4317, 2
        %v4319 = vrot.slane %v2876, 7
        %v4320 = vrot.slane %v4319, 2
        %v4321 = vrot.slane %v2908, 7
        %v4322 = vrot.slane %v4321, 2
        %v4323 = vrot.slane %v2940, 7
        %v4324 = vrot.slane %v4323, 2
        %v4325 = vrot.slane %v2972, 7
        %v4326 = vrot.slane %v4325, 2
        %v4327 = vrot.slane %v3004, 7
        %v4328 = vrot.slane %v4327, 2
        %v4329 = vrot.slane %v2789, 7
        %v4330 = vrot.slane %v4329, 2
        %v4331 = vrot.slane %v2821, 7
        %v4332 = vrot.slane %v4331, 2
        %v4333 = vrot.slane %v2853, 7
        %v4334 = vrot.slane %v4333, 2
        %v4335 = vrot.slane %v2885, 7
        %v4336 = vrot.slane %v4335, 2
        %v4337 = vrot.slane %v2917, 7
        %v4338 = vrot.slane %v4337, 2
        %v4339 = vrot.slane %v2949, 7
        %v4340 = vrot.slane %v4339, 2
        %v4341 = vrot.slane %v2981, 7
        %v4342 = vrot.slane %v4341, 2
        %v4343 = vrot.slane %v3013, 7
        %v4344 = vrot.slane %v4343, 2
        %v4345 = vrot.slane %v1352, 7
        %v4346 = vrot.slane %v4345, 2
        %v4347 = vrot.slane %v2814, 7
        %v4348 = vrot.slane %v4347, 2
        %v4349 = vrot.slane %v2846, 7
        %v4350 = vrot.slane %v4349, 2
        %v4351 = vrot.slane %v2878, 7
        %v4352 = vrot.slane %v4351, 2
        %v4353 = vrot.slane %v2910, 7
        %v4354 = vrot.slane %v4353, 2
        %v4355 = vrot.slane %v2942, 7
        %v4356 = vrot.slane %v4355, 2
        %v4357 = vrot.slane %v2974, 7
        %v4358 = vrot.slane %v4357, 2
        %v4359 = vrot.slane %v3006, 7
        %v4360 = vrot.slane %v4359, 2
        %v4361 = vrot.slane %v2790, 7
        %v4362 = vrot.slane %v4361, 2
        %v4363 = vrot.slane %v2822, 7
        %v4364 = vrot.slane %v4363, 2
        %v4365 = vrot.slane %v2854, 7
        %v4366 = vrot.slane %v4365, 2
        %v4367 = vrot.slane %v2886, 7
        %v4368 = vrot.slane %v4367, 2
        %v4369 = vrot.slane %v2918, 7
        %v4370 = vrot.slane %v4369, 2
        %v4371 = vrot.slane %v2950, 7
        %v4372 = vrot.slane %v4371, 2
        %v4373 = vrot.slane %v2982, 7
        %v4374 = vrot.slane %v4373, 2
        %v4375 = vrot.slane %v3014, 7
        %v4376 = vrot.slane %v4375, 2
        %v4505 = vcombine.low %v4122, %v4124
        %v4507 = vunpack.c.l.s4 1934713408
        %v4508 = vunpack.c.0.s8 %v4507
        %v4509 = vlaneseq
        %v4510 = vshrl.u32 %v4509, 7
        %v4511 = vsub.s32 %v4508, %v4510
        %v4512 = vrot.slane %v4505, %v4511
        %v4513 = vcombine.low %v4126, %v4128
        %v4515 = vunpack.c.l.s4 1934713408
        %v4516 = vunpack.c.0.s8 %v4515
        %v4517 = vlaneseq
        %v4518 = vshrl.u32 %v4517, 7
        %v4519 = vsub.s32 %v4516, %v4518
        %v4520 = vrot.slane %v4513, %v4519
        %v4521 = vcombine.low %v4130, %v4132
        %v4523 = vunpack.c.l.s4 1934713408
        %v4524 = vunpack.c.0.s8 %v4523
        %v4525 = vlaneseq
        %v4526 = vshrl.u32 %v4525, 7
        %v4527 = vsub.s32 %v4524, %v4526
        %v4528 = vrot.slane %v4521, %v4527
        %v4529 = vcombine.low %v4134, %v4136
        %v4531 = vunpack.c.l.s4 1934713408
        %v4532 = vunpack.c.0.s8 %v4531
        %v4533 = vlaneseq
        %v4534 = vshrl.u32 %v4533, 7
        %v4535 = vsub.s32 %v4532, %v4534
        %v4536 = vrot.slane %v4529, %v4535
        %v4537 = vcombine.low %v4138, %v4140
        %v4539 = vunpack.c.l.s4 1934713408
        %v4540 = vunpack.c.0.s8 %v4539
        %v4541 = vlaneseq
        %v4542 = vshrl.u32 %v4541, 7
        %v4543 = vsub.s32 %v4540, %v4542
        %v4544 = vrot.slane %v4537, %v4543
        %v4545 = vcombine.low %v4142, %v4144
        %v4547 = vunpack.c.l.s4 1934713408
        %v4548 = vunpack.c.0.s8 %v4547
        %v4549 = vlaneseq
        %v4550 = vshrl.u32 %v4549, 7
        %v4551 = vsub.s32 %v4548, %v4550
        %v4552 = vrot.slane %v4545, %v4551
        %v4553 = vcombine.low %v4146, %v4148
        %v4555 = vunpack.c.l.s4 1934713408
        %v4556 = vunpack.c.0.s8 %v4555
        %v4557 = vlaneseq
        %v4558 = vshrl.u32 %v4557, 7
        %v4559 = vsub.s32 %v4556, %v4558
        %v4560 = vrot.slane %v4553, %v4559
        %v4561 = vcombine.low %v4150, %v4152
        %v4563 = vunpack.c.l.s4 1934713408
        %v4564 = vunpack.c.0.s8 %v4563
        %v4565 = vlaneseq
        %v4566 = vshrl.u32 %v4565, 7
        %v4567 = vsub.s32 %v4564, %v4566
        %v4568 = vrot.slane %v4561, %v4567
        %v4569 = vcombine.low %v4154, %v4156
        %v4571 = vunpack.c.l.s4 1934713408
        %v4572 = vunpack.c.0.s8 %v4571
        %v4573 = vlaneseq
        %v4574 = vshrl.u32 %v4573, 7
        %v4575 = vsub.s32 %v4572, %v4574
        %v4576 = vrot.slane %v4569, %v4575
        %v4577 = vcombine.low %v4158, %v4160
        %v4579 = vunpack.c.l.s4 1934713408
        %v4580 = vunpack.c.0.s8 %v4579
        %v4581 = vlaneseq
        %v4582 = vshrl.u32 %v4581, 7
        %v4583 = vsub.s32 %v4580, %v4582
        %v4584 = vrot.slane %v4577, %v4583
        %v4585 = vcombine.low %v4162, %v4164
        %v4587 = vunpack.c.l.s4 1934713408
        %v4588 = vunpack.c.0.s8 %v4587
        %v4589 = vlaneseq
        %v4590 = vshrl.u32 %v4589, 7
        %v4591 = vsub.s32 %v4588, %v4590
        %v4592 = vrot.slane %v4585, %v4591
        %v4593 = vcombine.low %v4166, %v4168
        %v4595 = vunpack.c.l.s4 1934713408
        %v4596 = vunpack.c.0.s8 %v4595
        %v4597 = vlaneseq
        %v4598 = vshrl.u32 %v4597, 7
        %v4599 = vsub.s32 %v4596, %v4598
        %v4600 = vrot.slane %v4593, %v4599
        %v4601 = vcombine.low %v4170, %v4172
        %v4603 = vunpack.c.l.s4 1934713408
        %v4604 = vunpack.c.0.s8 %v4603
        %v4605 = vlaneseq
        %v4606 = vshrl.u32 %v4605, 7
        %v4607 = vsub.s32 %v4604, %v4606
        %v4608 = vrot.slane %v4601, %v4607
        %v4609 = vcombine.low %v4174, %v4176
        %v4611 = vunpack.c.l.s4 1934713408
        %v4612 = vunpack.c.0.s8 %v4611
        %v4613 = vlaneseq
        %v4614 = vshrl.u32 %v4613, 7
        %v4615 = vsub.s32 %v4612, %v4614
        %v4616 = vrot.slane %v4609, %v4615
        %v4617 = vcombine.low %v4178, %v4180
        %v4619 = vunpack.c.l.s4 1934713408
        %v4620 = vunpack.c.0.s8 %v4619
        %v4621 = vlaneseq
        %v4622 = vshrl.u32 %v4621, 7
        %v4623 = vsub.s32 %v4620, %v4622
        %v4624 = vrot.slane %v4617, %v4623
        %v4625 = vcombine.low %v4182, %v4184
        %v4627 = vunpack.c.l.s4 1934713408
        %v4628 = vunpack.c.0.s8 %v4627
        %v4629 = vlaneseq
        %v4630 = vshrl.u32 %v4629, 7
        %v4631 = vsub.s32 %v4628, %v4630
        %v4632 = vrot.slane %v4625, %v4631
        %v4633 = vcombine.low %v4186, %v4188
        %v4635 = vunpack.c.l.s4 1934713408
        %v4636 = vunpack.c.0.s8 %v4635
        %v4637 = vlaneseq
        %v4638 = vshrl.u32 %v4637, 7
        %v4639 = vsub.s32 %v4636, %v4638
        %v4640 = vrot.slane %v4633, %v4639
        %v4641 = vcombine.low %v4190, %v4192
        %v4643 = vunpack.c.l.s4 1934713408
        %v4644 = vunpack.c.0.s8 %v4643
        %v4645 = vlaneseq
        %v4646 = vshrl.u32 %v4645, 7
        %v4647 = vsub.s32 %v4644, %v4646
        %v4648 = vrot.slane %v4641, %v4647
        %v4649 = vcombine.low %v4194, %v4196
        %v4651 = vunpack.c.l.s4 1934713408
        %v4652 = vunpack.c.0.s8 %v4651
        %v4653 = vlaneseq
        %v4654 = vshrl.u32 %v4653, 7
        %v4655 = vsub.s32 %v4652, %v4654
        %v4656 = vrot.slane %v4649, %v4655
        %v4657 = vcombine.low %v4198, %v4200
        %v4659 = vunpack.c.l.s4 1934713408
        %v4660 = vunpack.c.0.s8 %v4659
        %v4661 = vlaneseq
        %v4662 = vshrl.u32 %v4661, 7
        %v4663 = vsub.s32 %v4660, %v4662
        %v4664 = vrot.slane %v4657, %v4663
        %v4665 = vcombine.low %v4202, %v4204
        %v4667 = vunpack.c.l.s4 1934713408
        %v4668 = vunpack.c.0.s8 %v4667
        %v4669 = vlaneseq
        %v4670 = vshrl.u32 %v4669, 7
        %v4671 = vsub.s32 %v4668, %v4670
        %v4672 = vrot.slane %v4665, %v4671
        %v4673 = vcombine.low %v4206, %v4208
        %v4675 = vunpack.c.l.s4 1934713408
        %v4676 = vunpack.c.0.s8 %v4675
        %v4677 = vlaneseq
        %v4678 = vshrl.u32 %v4677, 7
        %v4679 = vsub.s32 %v4676, %v4678
        %v4680 = vrot.slane %v4673, %v4679
        %v4681 = vcombine.low %v4210, %v4212
        %v4683 = vunpack.c.l.s4 1934713408
        %v4684 = vunpack.c.0.s8 %v4683
        %v4685 = vlaneseq
        %v4686 = vshrl.u32 %v4685, 7
        %v4687 = vsub.s32 %v4684, %v4686
        %v4688 = vrot.slane %v4681, %v4687
        %v4689 = vcombine.low %v4214, %v4216
        %v4691 = vunpack.c.l.s4 1934713408
        %v4692 = vunpack.c.0.s8 %v4691
        %v4693 = vlaneseq
        %v4694 = vshrl.u32 %v4693, 7
        %v4695 = vsub.s32 %v4692, %v4694
        %v4696 = vrot.slane %v4689, %v4695
        %v4697 = vcombine.low %v4218, %v4220
        %v4699 = vunpack.c.l.s4 1934713408
        %v4700 = vunpack.c.0.s8 %v4699
        %v4701 = vlaneseq
        %v4702 = vshrl.u32 %v4701, 7
        %v4703 = vsub.s32 %v4700, %v4702
        %v4704 = vrot.slane %v4697, %v4703
        %v4705 = vcombine.low %v4222, %v4224
        %v4707 = vunpack.c.l.s4 1934713408
        %v4708 = vunpack.c.0.s8 %v4707
        %v4709 = vlaneseq
        %v4710 = vshrl.u32 %v4709, 7
        %v4711 = vsub.s32 %v4708, %v4710
        %v4712 = vrot.slane %v4705, %v4711
        %v4713 = vcombine.low %v4226, %v4228
        %v4715 = vunpack.c.l.s4 1934713408
        %v4716 = vunpack.c.0.s8 %v4715
        %v4717 = vlaneseq
        %v4718 = vshrl.u32 %v4717, 7
        %v4719 = vsub.s32 %v4716, %v4718
        %v4720 = vrot.slane %v4713, %v4719
        %v4721 = vcombine.low %v4230, %v4232
        %v4723 = vunpack.c.l.s4 1934713408
        %v4724 = vunpack.c.0.s8 %v4723
        %v4725 = vlaneseq
        %v4726 = vshrl.u32 %v4725, 7
        %v4727 = vsub.s32 %v4724, %v4726
        %v4728 = vrot.slane %v4721, %v4727
        %v4729 = vcombine.low %v4234, %v4236
        %v4731 = vunpack.c.l.s4 1934713408
        %v4732 = vunpack.c.0.s8 %v4731
        %v4733 = vlaneseq
        %v4734 = vshrl.u32 %v4733, 7
        %v4735 = vsub.s32 %v4732, %v4734
        %v4736 = vrot.slane %v4729, %v4735
        %v4737 = vcombine.low %v4238, %v4240
        %v4739 = vunpack.c.l.s4 1934713408
        %v4740 = vunpack.c.0.s8 %v4739
        %v4741 = vlaneseq
        %v4742 = vshrl.u32 %v4741, 7
        %v4743 = vsub.s32 %v4740, %v4742
        %v4744 = vrot.slane %v4737, %v4743
        %v4745 = vcombine.low %v4242, %v4244
        %v4747 = vunpack.c.l.s4 1934713408
        %v4748 = vunpack.c.0.s8 %v4747
        %v4749 = vlaneseq
        %v4750 = vshrl.u32 %v4749, 7
        %v4751 = vsub.s32 %v4748, %v4750
        %v4752 = vrot.slane %v4745, %v4751
        %v4753 = vcombine.low %v4246, %v4248
        %v4755 = vunpack.c.l.s4 1934713408
        %v4756 = vunpack.c.0.s8 %v4755
        %v4757 = vlaneseq
        %v4758 = vshrl.u32 %v4757, 7
        %v4759 = vsub.s32 %v4756, %v4758
        %v4760 = vrot.slane %v4753, %v4759
        %v4761 = vcombine.low %v4250, %v4252
        %v4763 = vunpack.c.l.s4 1934713408
        %v4764 = vunpack.c.0.s8 %v4763
        %v4765 = vlaneseq
        %v4766 = vshrl.u32 %v4765, 7
        %v4767 = vsub.s32 %v4764, %v4766
        %v4768 = vrot.slane %v4761, %v4767
        %v4769 = vcombine.low %v4254, %v4256
        %v4771 = vunpack.c.l.s4 1934713408
        %v4772 = vunpack.c.0.s8 %v4771
        %v4773 = vlaneseq
        %v4774 = vshrl.u32 %v4773, 7
        %v4775 = vsub.s32 %v4772, %v4774
        %v4776 = vrot.slane %v4769, %v4775
        %v4777 = vcombine.low %v4258, %v4260
        %v4779 = vunpack.c.l.s4 1934713408
        %v4780 = vunpack.c.0.s8 %v4779
        %v4781 = vlaneseq
        %v4782 = vshrl.u32 %v4781, 7
        %v4783 = vsub.s32 %v4780, %v4782
        %v4784 = vrot.slane %v4777, %v4783
        %v4785 = vcombine.low %v4262, %v4264
        %v4787 = vunpack.c.l.s4 1934713408
        %v4788 = vunpack.c.0.s8 %v4787
        %v4789 = vlaneseq
        %v4790 = vshrl.u32 %v4789, 7
        %v4791 = vsub.s32 %v4788, %v4790
        %v4792 = vrot.slane %v4785, %v4791
        %v4793 = vcombine.low %v4266, %v4268
        %v4795 = vunpack.c.l.s4 1934713408
        %v4796 = vunpack.c.0.s8 %v4795
        %v4797 = vlaneseq
        %v4798 = vshrl.u32 %v4797, 7
        %v4799 = vsub.s32 %v4796, %v4798
        %v4800 = vrot.slane %v4793, %v4799
        %v4801 = vcombine.low %v4270, %v4272
        %v4803 = vunpack.c.l.s4 1934713408
        %v4804 = vunpack.c.0.s8 %v4803
        %v4805 = vlaneseq
        %v4806 = vshrl.u32 %v4805, 7
        %v4807 = vsub.s32 %v4804, %v4806
        %v4808 = vrot.slane %v4801, %v4807
        %v4809 = vcombine.low %v4274, %v4276
        %v4811 = vunpack.c.l.s4 1934713408
        %v4812 = vunpack.c.0.s8 %v4811
        %v4813 = vlaneseq
        %v4814 = vshrl.u32 %v4813, 7
        %v4815 = vsub.s32 %v4812, %v4814
        %v4816 = vrot.slane %v4809, %v4815
        %v4817 = vcombine.low %v4278, %v4280
        %v4819 = vunpack.c.l.s4 1934713408
        %v4820 = vunpack.c.0.s8 %v4819
        %v4821 = vlaneseq
        %v4822 = vshrl.u32 %v4821, 7
        %v4823 = vsub.s32 %v4820, %v4822
        %v4824 = vrot.slane %v4817, %v4823
        %v4825 = vcombine.low %v4282, %v4284
        %v4827 = vunpack.c.l.s4 1934713408
        %v4828 = vunpack.c.0.s8 %v4827
        %v4829 = vlaneseq
        %v4830 = vshrl.u32 %v4829, 7
        %v4831 = vsub.s32 %v4828, %v4830
        %v4832 = vrot.slane %v4825, %v4831
        %v4833 = vcombine.low %v4286, %v4288
        %v4835 = vunpack.c.l.s4 1934713408
        %v4836 = vunpack.c.0.s8 %v4835
        %v4837 = vlaneseq
        %v4838 = vshrl.u32 %v4837, 7
        %v4839 = vsub.s32 %v4836, %v4838
        %v4840 = vrot.slane %v4833, %v4839
        %v4841 = vcombine.low %v4290, %v4292
        %v4843 = vunpack.c.l.s4 1934713408
        %v4844 = vunpack.c.0.s8 %v4843
        %v4845 = vlaneseq
        %v4846 = vshrl.u32 %v4845, 7
        %v4847 = vsub.s32 %v4844, %v4846
        %v4848 = vrot.slane %v4841, %v4847
        %v4849 = vcombine.low %v4294, %v4296
        %v4851 = vunpack.c.l.s4 1934713408
        %v4852 = vunpack.c.0.s8 %v4851
        %v4853 = vlaneseq
        %v4854 = vshrl.u32 %v4853, 7
        %v4855 = vsub.s32 %v4852, %v4854
        %v4856 = vrot.slane %v4849, %v4855
        %v4857 = vcombine.low %v4298, %v4300
        %v4859 = vunpack.c.l.s4 1934713408
        %v4860 = vunpack.c.0.s8 %v4859
        %v4861 = vlaneseq
        %v4862 = vshrl.u32 %v4861, 7
        %v4863 = vsub.s32 %v4860, %v4862
        %v4864 = vrot.slane %v4857, %v4863
        %v4865 = vcombine.low %v4302, %v4304
        %v4867 = vunpack.c.l.s4 1934713408
        %v4868 = vunpack.c.0.s8 %v4867
        %v4869 = vlaneseq
        %v4870 = vshrl.u32 %v4869, 7
        %v4871 = vsub.s32 %v4868, %v4870
        %v4872 = vrot.slane %v4865, %v4871
        %v4873 = vcombine.low %v4306, %v4308
        %v4875 = vunpack.c.l.s4 1934713408
        %v4876 = vunpack.c.0.s8 %v4875
        %v4877 = vlaneseq
        %v4878 = vshrl.u32 %v4877, 7
        %v4879 = vsub.s32 %v4876, %v4878
        %v4880 = vrot.slane %v4873, %v4879
        %v4881 = vcombine.low %v4310, %v4312
        %v4883 = vunpack.c.l.s4 1934713408
        %v4884 = vunpack.c.0.s8 %v4883
        %v4885 = vlaneseq
        %v4886 = vshrl.u32 %v4885, 7
        %v4887 = vsub.s32 %v4884, %v4886
        %v4888 = vrot.slane %v4881, %v4887
        %v4889 = vcombine.low %v4314, %v4316
        %v4891 = vunpack.c.l.s4 1934713408
        %v4892 = vunpack.c.0.s8 %v4891
        %v4893 = vlaneseq
        %v4894 = vshrl.u32 %v4893, 7
        %v4895 = vsub.s32 %v4892, %v4894
        %v4896 = vrot.slane %v4889, %v4895
        %v4897 = vcombine.low %v4318, %v4320
        %v4899 = vunpack.c.l.s4 1934713408
        %v4900 = vunpack.c.0.s8 %v4899
        %v4901 = vlaneseq
        %v4902 = vshrl.u32 %v4901, 7
        %v4903 = vsub.s32 %v4900, %v4902
        %v4904 = vrot.slane %v4897, %v4903
        %v4905 = vcombine.low %v4322, %v4324
        %v4907 = vunpack.c.l.s4 1934713408
        %v4908 = vunpack.c.0.s8 %v4907
        %v4909 = vlaneseq
        %v4910 = vshrl.u32 %v4909, 7
        %v4911 = vsub.s32 %v4908, %v4910
        %v4912 = vrot.slane %v4905, %v4911
        %v4913 = vcombine.low %v4326, %v4328
        %v4915 = vunpack.c.l.s4 1934713408
        %v4916 = vunpack.c.0.s8 %v4915
        %v4917 = vlaneseq
        %v4918 = vshrl.u32 %v4917, 7
        %v4919 = vsub.s32 %v4916, %v4918
        %v4920 = vrot.slane %v4913, %v4919
        %v4921 = vcombine.low %v4330, %v4332
        %v4923 = vunpack.c.l.s4 1934713408
        %v4924 = vunpack.c.0.s8 %v4923
        %v4925 = vlaneseq
        %v4926 = vshrl.u32 %v4925, 7
        %v4927 = vsub.s32 %v4924, %v4926
        %v4928 = vrot.slane %v4921, %v4927
        %v4929 = vcombine.low %v4334, %v4336
        %v4931 = vunpack.c.l.s4 1934713408
        %v4932 = vunpack.c.0.s8 %v4931
        %v4933 = vlaneseq
        %v4934 = vshrl.u32 %v4933, 7
        %v4935 = vsub.s32 %v4932, %v4934
        %v4936 = vrot.slane %v4929, %v4935
        %v4937 = vcombine.low %v4338, %v4340
        %v4939 = vunpack.c.l.s4 1934713408
        %v4940 = vunpack.c.0.s8 %v4939
        %v4941 = vlaneseq
        %v4942 = vshrl.u32 %v4941, 7
        %v4943 = vsub.s32 %v4940, %v4942
        %v4944 = vrot.slane %v4937, %v4943
        %v4945 = vcombine.low %v4342, %v4344
        %v4947 = vunpack.c.l.s4 1934713408
        %v4948 = vunpack.c.0.s8 %v4947
        %v4949 = vlaneseq
        %v4950 = vshrl.u32 %v4949, 7
        %v4951 = vsub.s32 %v4948, %v4950
        %v4952 = vrot.slane %v4945, %v4951
        %v4953 = vcombine.low %v4346, %v4348
        %v4955 = vunpack.c.l.s4 1934713408
        %v4956 = vunpack.c.0.s8 %v4955
        %v4957 = vlaneseq
        %v4958 = vshrl.u32 %v4957, 7
        %v4959 = vsub.s32 %v4956, %v4958
        %v4960 = vrot.slane %v4953, %v4959
        %v4961 = vcombine.low %v4350, %v4352
        %v4963 = vunpack.c.l.s4 1934713408
        %v4964 = vunpack.c.0.s8 %v4963
        %v4965 = vlaneseq
        %v4966 = vshrl.u32 %v4965, 7
        %v4967 = vsub.s32 %v4964, %v4966
        %v4968 = vrot.slane %v4961, %v4967
        %v4969 = vcombine.low %v4354, %v4356
        %v4971 = vunpack.c.l.s4 1934713408
        %v4972 = vunpack.c.0.s8 %v4971
        %v4973 = vlaneseq
        %v4974 = vshrl.u32 %v4973, 7
        %v4975 = vsub.s32 %v4972, %v4974
        %v4976 = vrot.slane %v4969, %v4975
        %v4977 = vcombine.low %v4358, %v4360
        %v4979 = vunpack.c.l.s4 1934713408
        %v4980 = vunpack.c.0.s8 %v4979
        %v4981 = vlaneseq
        %v4982 = vshrl.u32 %v4981, 7
        %v4983 = vsub.s32 %v4980, %v4982
        %v4984 = vrot.slane %v4977, %v4983
        %v4985 = vcombine.low %v4362, %v4364
        %v4987 = vunpack.c.l.s4 1934713408
        %v4988 = vunpack.c.0.s8 %v4987
        %v4989 = vlaneseq
        %v4990 = vshrl.u32 %v4989, 7
        %v4991 = vsub.s32 %v4988, %v4990
        %v4992 = vrot.slane %v4985, %v4991
        %v4993 = vcombine.low %v4366, %v4368
        %v4995 = vunpack.c.l.s4 1934713408
        %v4996 = vunpack.c.0.s8 %v4995
        %v4997 = vlaneseq
        %v4998 = vshrl.u32 %v4997, 7
        %v4999 = vsub.s32 %v4996, %v4998
        %v5000 = vrot.slane %v4993, %v4999
        %v5001 = vcombine.low %v4370, %v4372
        %v5003 = vunpack.c.l.s4 1934713408
        %v5004 = vunpack.c.0.s8 %v5003
        %v5005 = vlaneseq
        %v5006 = vshrl.u32 %v5005, 7
        %v5007 = vsub.s32 %v5004, %v5006
        %v5008 = vrot.slane %v5001, %v5007
        %v5009 = vcombine.low %v4374, %v4376
        %v5011 = vunpack.c.l.s4 1934713408
        %v5012 = vunpack.c.0.s8 %v5011
        %v5013 = vlaneseq
        %v5014 = vshrl.u32 %v5013, 7
        %v5015 = vsub.s32 %v5012, %v5014
        %v5016 = vrot.slane %v5009, %v5015
        %v5081 = vcombine.low %v4512, %v4520
        %v5082 = vcombine.low %v4528, %v4536
        %v5084 = vunpack.c.l.s4 1983009808
        %v5085 = vunpack.c.0.s8 %v5084
        %v5086 = vlaneseq
        %v5087 = vshrl.u32 %v5086, 7
        %v5088 = vsub.s32 %v5085, %v5087
        %v5089 = vrot.slane %v5081, %v5088
        %v5091 = vunpack.c.l.s4 1983009808
        %v5092 = vunpack.c.0.s8 %v5091
        %v5093 = vlaneseq
        %v5094 = vshrl.u32 %v5093, 7
        %v5095 = vsub.s32 %v5092, %v5094
        %v5096 = vrot.slane %v5082, %v5095
        %v5097 = vcombine.low %v5089, %v5096
        %v5098 = vcombine.low %v4544, %v4552
        %v5099 = vcombine.low %v4560, %v4568
        %v5101 = vunpack.c.l.s4 1983009808
        %v5102 = vunpack.c.0.s8 %v5101
        %v5103 = vlaneseq
        %v5104 = vshrl.u32 %v5103, 7
        %v5105 = vsub.s32 %v5102, %v5104
        %v5106 = vrot.slane %v5098, %v5105
        %v5108 = vunpack.c.l.s4 1983009808
        %v5109 = vunpack.c.0.s8 %v5108
        %v5110 = vlaneseq
        %v5111 = vshrl.u32 %v5110, 7
        %v5112 = vsub.s32 %v5109, %v5111
        %v5113 = vrot.slane %v5099, %v5112
        %v5114 = vcombine.low %v5106, %v5113
        %v5115 = vcombine.low %v4576, %v4584
        %v5116 = vcombine.low %v4592, %v4600
        %v5118 = vunpack.c.l.s4 1983009808
        %v5119 = vunpack.c.0.s8 %v5118
        %v5120 = vlaneseq
        %v5121 = vshrl.u32 %v5120, 7
        %v5122 = vsub.s32 %v5119, %v5121
        %v5123 = vrot.slane %v5115, %v5122
        %v5125 = vunpack.c.l.s4 1983009808
        %v5126 = vunpack.c.0.s8 %v5125
        %v5127 = vlaneseq
        %v5128 = vshrl.u32 %v5127, 7
        %v5129 = vsub.s32 %v5126, %v5128
        %v5130 = vrot.slane %v5116, %v5129
        %v5131 = vcombine.low %v5123, %v5130
        %v5132 = vcombine.low %v4608, %v4616
        %v5133 = vcombine.low %v4624, %v4632
        %v5135 = vunpack.c.l.s4 1983009808
        %v5136 = vunpack.c.0.s8 %v5135
        %v5137 = vlaneseq
        %v5138 = vshrl.u32 %v5137, 7
        %v5139 = vsub.s32 %v5136, %v5138
        %v5140 = vrot.slane %v5132, %v5139
        %v5142 = vunpack.c.l.s4 1983009808
        %v5143 = vunpack.c.0.s8 %v5142
        %v5144 = vlaneseq
        %v5145 = vshrl.u32 %v5144, 7
        %v5146 = vsub.s32 %v5143, %v5145
        %v5147 = vrot.slane %v5133, %v5146
        %v5148 = vcombine.low %v5140, %v5147
        %v5149 = vcombine.low %v4640, %v4648
        %v5150 = vcombine.low %v4656, %v4664
        %v5152 = vunpack.c.l.s4 1983009808
        %v5153 = vunpack.c.0.s8 %v5152
        %v5154 = vlaneseq
        %v5155 = vshrl.u32 %v5154, 7
        %v5156 = vsub.s32 %v5153, %v5155
        %v5157 = vrot.slane %v5149, %v5156
        %v5159 = vunpack.c.l.s4 1983009808
        %v5160 = vunpack.c.0.s8 %v5159
        %v5161 = vlaneseq
        %v5162 = vshrl.u32 %v5161, 7
        %v5163 = vsub.s32 %v5160, %v5162
        %v5164 = vrot.slane %v5150, %v5163
        %v5165 = vcombine.low %v5157, %v5164
        %v5166 = vcombine.low %v4672, %v4680
        %v5167 = vcombine.low %v4688, %v4696
        %v5169 = vunpack.c.l.s4 1983009808
        %v5170 = vunpack.c.0.s8 %v5169
        %v5171 = vlaneseq
        %v5172 = vshrl.u32 %v5171, 7
        %v5173 = vsub.s32 %v5170, %v5172
        %v5174 = vrot.slane %v5166, %v5173
        %v5176 = vunpack.c.l.s4 1983009808
        %v5177 = vunpack.c.0.s8 %v5176
        %v5178 = vlaneseq
        %v5179 = vshrl.u32 %v5178, 7
        %v5180 = vsub.s32 %v5177, %v5179
        %v5181 = vrot.slane %v5167, %v5180
        %v5182 = vcombine.low %v5174, %v5181
        %v5183 = vcombine.low %v4704, %v4712
        %v5184 = vcombine.low %v4720, %v4728
        %v5186 = vunpack.c.l.s4 1983009808
        %v5187 = vunpack.c.0.s8 %v5186
        %v5188 = vlaneseq
        %v5189 = vshrl.u32 %v5188, 7
        %v5190 = vsub.s32 %v5187, %v5189
        %v5191 = vrot.slane %v5183, %v5190
        %v5193 = vunpack.c.l.s4 1983009808
        %v5194 = vunpack.c.0.s8 %v5193
        %v5195 = vlaneseq
        %v5196 = vshrl.u32 %v5195, 7
        %v5197 = vsub.s32 %v5194, %v5196
        %v5198 = vrot.slane %v5184, %v5197
        %v5199 = vcombine.low %v5191, %v5198
        %v5200 = vcombine.low %v4736, %v4744
        %v5201 = vcombine.low %v4752, %v4760
        %v5203 = vunpack.c.l.s4 1983009808
        %v5204 = vunpack.c.0.s8 %v5203
        %v5205 = vlaneseq
        %v5206 = vshrl.u32 %v5205, 7
        %v5207 = vsub.s32 %v5204, %v5206
        %v5208 = vrot.slane %v5200, %v5207
        %v5210 = vunpack.c.l.s4 1983009808
        %v5211 = vunpack.c.0.s8 %v5210
        %v5212 = vlaneseq
        %v5213 = vshrl.u32 %v5212, 7
        %v5214 = vsub.s32 %v5211, %v5213
        %v5215 = vrot.slane %v5201, %v5214
        %v5216 = vcombine.low %v5208, %v5215
        %v5217 = vcombine.low %v4768, %v4776
        %v5218 = vcombine.low %v4784, %v4792
        %v5220 = vunpack.c.l.s4 1983009808
        %v5221 = vunpack.c.0.s8 %v5220
        %v5222 = vlaneseq
        %v5223 = vshrl.u32 %v5222, 7
        %v5224 = vsub.s32 %v5221, %v5223
        %v5225 = vrot.slane %v5217, %v5224
        %v5227 = vunpack.c.l.s4 1983009808
        %v5228 = vunpack.c.0.s8 %v5227
        %v5229 = vlaneseq
        %v5230 = vshrl.u32 %v5229, 7
        %v5231 = vsub.s32 %v5228, %v5230
        %v5232 = vrot.slane %v5218, %v5231
        %v5233 = vcombine.low %v5225, %v5232
        %v5234 = vcombine.low %v4800, %v4808
        %v5235 = vcombine.low %v4816, %v4824
        %v5237 = vunpack.c.l.s4 1983009808
        %v5238 = vunpack.c.0.s8 %v5237
        %v5239 = vlaneseq
        %v5240 = vshrl.u32 %v5239, 7
        %v5241 = vsub.s32 %v5238, %v5240
        %v5242 = vrot.slane %v5234, %v5241
        %v5244 = vunpack.c.l.s4 1983009808
        %v5245 = vunpack.c.0.s8 %v5244
        %v5246 = vlaneseq
        %v5247 = vshrl.u32 %v5246, 7
        %v5248 = vsub.s32 %v5245, %v5247
        %v5249 = vrot.slane %v5235, %v5248
        %v5250 = vcombine.low %v5242, %v5249
        %v5251 = vcombine.low %v4832, %v4840
        %v5252 = vcombine.low %v4848, %v4856
        %v5254 = vunpack.c.l.s4 1983009808
        %v5255 = vunpack.c.0.s8 %v5254
        %v5256 = vlaneseq
        %v5257 = vshrl.u32 %v5256, 7
        %v5258 = vsub.s32 %v5255, %v5257
        %v5259 = vrot.slane %v5251, %v5258
        %v5261 = vunpack.c.l.s4 1983009808
        %v5262 = vunpack.c.0.s8 %v5261
        %v5263 = vlaneseq
        %v5264 = vshrl.u32 %v5263, 7
        %v5265 = vsub.s32 %v5262, %v5264
        %v5266 = vrot.slane %v5252, %v5265
        %v5267 = vcombine.low %v5259, %v5266
        %v5268 = vcombine.low %v4864, %v4872
        %v5269 = vcombine.low %v4880, %v4888
        %v5271 = vunpack.c.l.s4 1983009808
        %v5272 = vunpack.c.0.s8 %v5271
        %v5273 = vlaneseq
        %v5274 = vshrl.u32 %v5273, 7
        %v5275 = vsub.s32 %v5272, %v5274
        %v5276 = vrot.slane %v5268, %v5275
        %v5278 = vunpack.c.l.s4 1983009808
        %v5279 = vunpack.c.0.s8 %v5278
        %v5280 = vlaneseq
        %v5281 = vshrl.u32 %v5280, 7
        %v5282 = vsub.s32 %v5279, %v5281
        %v5283 = vrot.slane %v5269, %v5282
        %v5284 = vcombine.low %v5276, %v5283
        %v5285 = vcombine.low %v4896, %v4904
        %v5286 = vcombine.low %v4912, %v4920
        %v5288 = vunpack.c.l.s4 1983009808
        %v5289 = vunpack.c.0.s8 %v5288
        %v5290 = vlaneseq
        %v5291 = vshrl.u32 %v5290, 7
        %v5292 = vsub.s32 %v5289, %v5291
        %v5293 = vrot.slane %v5285, %v5292
        %v5295 = vunpack.c.l.s4 1983009808
        %v5296 = vunpack.c.0.s8 %v5295
        %v5297 = vlaneseq
        %v5298 = vshrl.u32 %v5297, 7
        %v5299 = vsub.s32 %v5296, %v5298
        %v5300 = vrot.slane %v5286, %v5299
        %v5301 = vcombine.low %v5293, %v5300
        %v5302 = vcombine.low %v4928, %v4936
        %v5303 = vcombine.low %v4944, %v4952
        %v5305 = vunpack.c.l.s4 1983009808
        %v5306 = vunpack.c.0.s8 %v5305
        %v5307 = vlaneseq
        %v5308 = vshrl.u32 %v5307, 7
        %v5309 = vsub.s32 %v5306, %v5308
        %v5310 = vrot.slane %v5302, %v5309
        %v5312 = vunpack.c.l.s4 1983009808
        %v5313 = vunpack.c.0.s8 %v5312
        %v5314 = vlaneseq
        %v5315 = vshrl.u32 %v5314, 7
        %v5316 = vsub.s32 %v5313, %v5315
        %v5317 = vrot.slane %v5303, %v5316
        %v5318 = vcombine.low %v5310, %v5317
        %v5319 = vcombine.low %v4960, %v4968
        %v5320 = vcombine.low %v4976, %v4984
        %v5322 = vunpack.c.l.s4 1983009808
        %v5323 = vunpack.c.0.s8 %v5322
        %v5324 = vlaneseq
        %v5325 = vshrl.u32 %v5324, 7
        %v5326 = vsub.s32 %v5323, %v5325
        %v5327 = vrot.slane %v5319, %v5326
        %v5329 = vunpack.c.l.s4 1983009808
        %v5330 = vunpack.c.0.s8 %v5329
        %v5331 = vlaneseq
        %v5332 = vshrl.u32 %v5331, 7
        %v5333 = vsub.s32 %v5330, %v5332
        %v5334 = vrot.slane %v5320, %v5333
        %v5335 = vcombine.low %v5327, %v5334
        %v5336 = vcombine.low %v4992, %v5000
        %v5337 = vcombine.low %v5008, %v5016
        %v5339 = vunpack.c.l.s4 1983009808
        %v5340 = vunpack.c.0.s8 %v5339
        %v5341 = vlaneseq
        %v5342 = vshrl.u32 %v5341, 7
        %v5343 = vsub.s32 %v5340, %v5342
        %v5344 = vrot.slane %v5336, %v5343
        %v5346 = vunpack.c.l.s4 1983009808
        %v5347 = vunpack.c.0.s8 %v5346
        %v5348 = vlaneseq
        %v5349 = vshrl.u32 %v5348, 7
        %v5350 = vsub.s32 %v5347, %v5349
        %v5351 = vrot.slane %v5337, %v5350
        %v5352 = vcombine.low %v5344, %v5351
        %v5353 = vrot.slane %v5097, 7
        %v5354 = vrot.slane %v5114, 7
        %v5355 = vsel %vm2529, %v5353, %v5354
        %v5356 = vrot.slane %v5131, 7
        %v5357 = vrot.slane %v5148, 7
        %v5358 = vsel %vm2529, %v5356, %v5357
        %v5359 = vrot.slane %v5165, 7
        %v5360 = vrot.slane %v5182, 7
        %v5361 = vsel %vm2529, %v5359, %v5360
        %v5362 = vrot.slane %v5199, 7
        %v5363 = vrot.slane %v5216, 7
        %v5364 = vsel %vm2529, %v5362, %v5363
        %v5365 = vrot.slane %v5233, 7
        %v5366 = vrot.slane %v5250, 7
        %v5367 = vsel %vm2529, %v5365, %v5366
        %v5368 = vrot.slane %v5267, 7
        %v5369 = vrot.slane %v5284, 7
        %v5370 = vsel %vm2529, %v5368, %v5369
        %v5371 = vrot.slane %v5301, 7
        %v5372 = vrot.slane %v5318, 7
        %v5373 = vsel %vm2529, %v5371, %v5372
        %v5374 = vrot.slane %v5335, 7
        %v5375 = vrot.slane %v5352, 7
        %v5376 = vsel %vm2529, %v5374, %v5375
        %v5393 = vsel %vm2529, 0.0, %v5353
        %v5394 = vsel %vm2529, 0.0, %v5356
        %v5395 = vsel %vm2529, 0.0, %v5359
        %v5396 = vsel %vm2529, 0.0, %v5362
        %v5397 = vsel %vm2529, 0.0, %v5365
        %v5398 = vsel %vm2529, 0.0, %v5368
        %v5399 = vsel %vm2529, 0.0, %v5371
        %v5400 = vsel %vm2529, 0.0, %v5374
        %v5401 = vsel %vm2529, %v5354, 0.0
        %v5402 = vsel %vm2529, %v5357, 0.0
        %v5403 = vsel %vm2529, %v5360, 0.0
        %v5404 = vsel %vm2529, %v5363, 0.0
        %v5405 = vsel %vm2529, %v5366, 0.0
        %v5406 = vsel %vm2529, %v5369, 0.0
        %v5407 = vsel %vm2529, %v5372, 0.0
        %v5408 = vsel %vm2529, %v5375, 0.0
        %5425 = vrot.lane.b32.xlu0 %v5393, 1
        %v5426 = vpop.permute.xlu0 %5425
        %5427 = vrot.lane.b32.xlu0 %v5355, 1
        %v5428 = vpop.permute.xlu0 %5427
        %5429 = vrot.lane.b32.xlu0 %v5401, 1
        %v5430 = vpop.permute.xlu0 %5429
        %5431 = vrot.lane.b32.xlu0 %v5394, 1
        %v5432 = vpop.permute.xlu0 %5431
        %5433 = vrot.lane.b32.xlu0 %v5358, 1
        %v5434 = vpop.permute.xlu0 %5433
        %5435 = vrot.lane.b32.xlu0 %v5402, 1
        %v5436 = vpop.permute.xlu0 %5435
        %5437 = vrot.lane.b32.xlu0 %v5395, 1
        %v5438 = vpop.permute.xlu0 %5437
        %5439 = vrot.lane.b32.xlu0 %v5361, 1
        %v5440 = vpop.permute.xlu0 %5439
        %5441 = vrot.lane.b32.xlu0 %v5403, 1
        %v5442 = vpop.permute.xlu0 %5441
        %5443 = vrot.lane.b32.xlu0 %v5396, 1
        %v5444 = vpop.permute.xlu0 %5443
        %5445 = vrot.lane.b32.xlu0 %v5364, 1
        %v5446 = vpop.permute.xlu0 %5445
        %5447 = vrot.lane.b32.xlu0 %v5404, 1
        %v5448 = vpop.permute.xlu0 %5447
        %5449 = vrot.lane.b32.xlu0 %v5397, 1
        %v5450 = vpop.permute.xlu0 %5449
        %5451 = vrot.lane.b32.xlu0 %v5367, 1
        %v5452 = vpop.permute.xlu0 %5451
        %5453 = vrot.lane.b32.xlu0 %v5405, 1
        %v5454 = vpop.permute.xlu0 %5453
        %5455 = vrot.lane.b32.xlu0 %v5398, 1
        %v5456 = vpop.permute.xlu0 %5455
        %5457 = vrot.lane.b32.xlu0 %v5370, 1
        %v5458 = vpop.permute.xlu0 %5457
        %5459 = vrot.lane.b32.xlu0 %v5406, 1
        %v5460 = vpop.permute.xlu0 %5459
        %5461 = vrot.lane.b32.xlu0 %v5399, 1
        %v5462 = vpop.permute.xlu0 %5461
        %5463 = vrot.lane.b32.xlu0 %v5373, 1
        %v5464 = vpop.permute.xlu0 %5463
        %5465 = vrot.lane.b32.xlu0 %v5407, 1
        %v5466 = vpop.permute.xlu0 %5465
        %5467 = vrot.lane.b32.xlu0 %v5400, 1
        %v5468 = vpop.permute.xlu0 %5467
        %5469 = vrot.lane.b32.xlu0 %v5376, 1
        %v5470 = vpop.permute.xlu0 %5469
        %5471 = vrot.lane.b32.xlu0 %v5408, 1
        %v5472 = vpop.permute.xlu0 %5471
        %v5497 = vsel %vm4071, 0.0, %v5426
        %v5498 = vsel %vm4071, 0.0, %v5428
        %v5499 = vsel %vm4071, 0.0, %v5430
        %v5500 = vsel %vm4071, 0.0, %v5432
        %v5501 = vsel %vm4071, 0.0, %v5434
        %v5502 = vsel %vm4071, 0.0, %v5436
        %v5503 = vsel %vm4071, 0.0, %v5438
        %v5504 = vsel %vm4071, 0.0, %v5440
        %v5505 = vsel %vm4071, 0.0, %v5442
        %v5506 = vsel %vm4071, 0.0, %v5444
        %v5507 = vsel %vm4071, 0.0, %v5446
        %v5508 = vsel %vm4071, 0.0, %v5448
        %v5509 = vsel %vm4071, 0.0, %v5450
        %v5510 = vsel %vm4071, 0.0, %v5452
        %v5511 = vsel %vm4071, 0.0, %v5454
        %v5512 = vsel %vm4071, 0.0, %v5456
        %v5513 = vsel %vm4071, 0.0, %v5458
        %v5514 = vsel %vm4071, 0.0, %v5460
        %v5515 = vsel %vm4071, 0.0, %v5462
        %v5516 = vsel %vm4071, 0.0, %v5464
        %v5517 = vsel %vm4071, 0.0, %v5466
        %v5518 = vsel %vm4071, 0.0, %v5468
        %v5519 = vsel %vm4071, 0.0, %v5470
        %v5520 = vsel %vm4071, 0.0, %v5472
        %v5521 = vsel %vm4096, %v5497, 0.0
        %v5522 = vsel %vm4096, %v5498, 0.0
        %v5523 = vsel %vm4096, %v5499, 0.0
        %v5524 = vsel %vm4096, %v5500, 0.0
        %v5525 = vsel %vm4096, %v5501, 0.0
        %v5526 = vsel %vm4096, %v5502, 0.0
        %v5527 = vsel %vm4096, %v5503, 0.0
        %v5528 = vsel %vm4096, %v5504, 0.0
        %v5529 = vsel %vm4096, %v5505, 0.0
        %v5530 = vsel %vm4096, %v5506, 0.0
        %v5531 = vsel %vm4096, %v5507, 0.0
        %v5532 = vsel %vm4096, %v5508, 0.0
        %v5533 = vsel %vm4096, %v5509, 0.0
        %v5534 = vsel %vm4096, %v5510, 0.0
        %v5535 = vsel %vm4096, %v5511, 0.0
        %v5536 = vsel %vm4096, %v5512, 0.0
        %v5537 = vsel %vm4096, %v5513, 0.0
        %v5538 = vsel %vm4096, %v5514, 0.0
        %v5539 = vsel %vm4096, %v5515, 0.0
        %v5540 = vsel %vm4096, %v5516, 0.0
        %v5541 = vsel %vm4096, %v5517, 0.0
        %v5542 = vsel %vm4096, %v5518, 0.0
        %v5543 = vsel %vm4096, %v5519, 0.0
        %v5544 = vsel %vm4096, %v5520, 0.0
        %s5545 = sld [smem:[#allocation9]]
        %v5546 = vstv %s5545
        %v5547 = vmul.f32 %v5546, %v4097
        %v5548 = vmul.f32 %v5546, %v4098
        %v5549 = vmul.f32 %v5546, %v4100
        %v5550 = vmul.f32 %v5546, %v4101
        %v5551 = vmul.f32 %v5546, %v4103
        %v5552 = vmul.f32 %v5546, %v4104
        %v5553 = vmul.f32 %v5546, %v4106
        %v5554 = vmul.f32 %v5546, %v4107
        %v5555 = vmul.f32 %v5546, %v4109
        %v5556 = vmul.f32 %v5546, %v4110
        %v5557 = vmul.f32 %v5546, %v4112
        %v5558 = vmul.f32 %v5546, %v4113
        %v5559 = vmul.f32 %v5546, %v4115
        %v5560 = vmul.f32 %v5546, %v4116
        %v5561 = vmul.f32 %v5546, %v4118
        %v5562 = vmul.f32 %v5546, %v4119
        %s5563 = sld [smem:[#allocation9 + $0x1]]
        %v5564 = vstv %s5563
        %v5565 = vmul.f32 %v5564, %v4097
        %v5566 = vmul.f32 %v5564, %v4098
        %v5567 = vmul.f32 %v5564, %v4100
        %v5568 = vmul.f32 %v5564, %v4101
        %v5569 = vmul.f32 %v5564, %v4103
        %v5570 = vmul.f32 %v5564, %v4104
        %v5571 = vmul.f32 %v5564, %v4106
        %v5572 = vmul.f32 %v5564, %v4107
        %v5573 = vmul.f32 %v5564, %v4109
        %v5574 = vmul.f32 %v5564, %v4110
        %v5575 = vmul.f32 %v5564, %v4112
        %v5576 = vmul.f32 %v5564, %v4113
        %v5577 = vmul.f32 %v5564, %v4115
        %v5578 = vmul.f32 %v5564, %v4116
        %v5579 = vmul.f32 %v5564, %v4118
        %v5580 = vmul.f32 %v5564, %v4119
        %5597 = vrot.lane.b32.xlu0 %v5565, 127
        %v5598 = vpop.permute.xlu0 %5597
        %5599 = vrot.lane.b32.xlu0 %v5566, 127
        %v5600 = vpop.permute.xlu0 %5599
        %5601 = vrot.lane.b32.xlu0 %v5567, 127
        %v5602 = vpop.permute.xlu0 %5601
        %5603 = vrot.lane.b32.xlu0 %v5568, 127
        %v5604 = vpop.permute.xlu0 %5603
        %5605 = vrot.lane.b32.xlu0 %v5569, 127
        %v5606 = vpop.permute.xlu0 %5605
        %5607 = vrot.lane.b32.xlu0 %v5570, 127
        %v5608 = vpop.permute.xlu0 %5607
        %5609 = vrot.lane.b32.xlu0 %v5571, 127
        %v5610 = vpop.permute.xlu0 %5609
        %5611 = vrot.lane.b32.xlu0 %v5572, 127
        %v5612 = vpop.permute.xlu0 %5611
        %5613 = vrot.lane.b32.xlu0 %v5573, 127
        %v5614 = vpop.permute.xlu0 %5613
        %5615 = vrot.lane.b32.xlu0 %v5574, 127
        %v5616 = vpop.permute.xlu0 %5615
        %5617 = vrot.lane.b32.xlu0 %v5575, 127
        %v5618 = vpop.permute.xlu0 %5617
        %5619 = vrot.lane.b32.xlu0 %v5576, 127
        %v5620 = vpop.permute.xlu0 %5619
        %5621 = vrot.lane.b32.xlu0 %v5577, 127
        %v5622 = vpop.permute.xlu0 %5621
        %5623 = vrot.lane.b32.xlu0 %v5578, 127
        %v5624 = vpop.permute.xlu0 %5623
        %5625 = vrot.lane.b32.xlu0 %v5579, 127
        %v5626 = vpop.permute.xlu0 %5625
        %5627 = vrot.lane.b32.xlu0 %v5580, 127
        %v5628 = vpop.permute.xlu0 %5627
        %v5645 = vadd.f32 %v5547, %v5598
        %v5646 = vadd.f32 %v5548, %v5600
        %v5647 = vadd.f32 %v5549, %v5602
        %v5648 = vadd.f32 %v5550, %v5604
        %v5649 = vadd.f32 %v5551, %v5606
        %v5650 = vadd.f32 %v5552, %v5608
        %v5651 = vadd.f32 %v5553, %v5610
        %v5652 = vadd.f32 %v5554, %v5612
        %v5653 = vadd.f32 %v5555, %v5614
        %v5654 = vadd.f32 %v5556, %v5616
        %v5655 = vadd.f32 %v5557, %v5618
        %v5656 = vadd.f32 %v5558, %v5620
        %v5657 = vadd.f32 %v5559, %v5622
        %v5658 = vadd.f32 %v5560, %v5624
        %v5659 = vadd.f32 %v5561, %v5626
        %v5660 = vadd.f32 %v5562, %v5628
        %s5661 = sld [smem:[#allocation9 + $0x2]]
        %v5662 = vstv %s5661
        %v5663 = vmul.f32 %v5662, %v4097
        %v5664 = vmul.f32 %v5662, %v4098
        %v5665 = vmul.f32 %v5662, %v4100
        %v5666 = vmul.f32 %v5662, %v4101
        %v5667 = vmul.f32 %v5662, %v4103
        %v5668 = vmul.f32 %v5662, %v4104
        %v5669 = vmul.f32 %v5662, %v4106
        %v5670 = vmul.f32 %v5662, %v4107
        %v5671 = vmul.f32 %v5662, %v4109
        %v5672 = vmul.f32 %v5662, %v4110
        %v5673 = vmul.f32 %v5662, %v4112
        %v5674 = vmul.f32 %v5662, %v4113
        %v5675 = vmul.f32 %v5662, %v4115
        %v5676 = vmul.f32 %v5662, %v4116
        %v5677 = vmul.f32 %v5662, %v4118
        %v5678 = vmul.f32 %v5662, %v4119
        %5695 = vrot.lane.b32.xlu0 %v5663, 126
        %v5696 = vpop.permute.xlu0 %5695
        %5697 = vrot.lane.b32.xlu0 %v5664, 126
        %v5698 = vpop.permute.xlu0 %5697
        %5699 = vrot.lane.b32.xlu0 %v5665, 126
        %v5700 = vpop.permute.xlu0 %5699
        %5701 = vrot.lane.b32.xlu0 %v5666, 126
        %v5702 = vpop.permute.xlu0 %5701
        %5703 = vrot.lane.b32.xlu0 %v5667, 126
        %v5704 = vpop.permute.xlu0 %5703
        %5705 = vrot.lane.b32.xlu0 %v5668, 126
        %v5706 = vpop.permute.xlu0 %5705
        %5707 = vrot.lane.b32.xlu0 %v5669, 126
        %v5708 = vpop.permute.xlu0 %5707
        %5709 = vrot.lane.b32.xlu0 %v5670, 126
        %v5710 = vpop.permute.xlu0 %5709
        %5711 = vrot.lane.b32.xlu0 %v5671, 126
        %v5712 = vpop.permute.xlu0 %5711
        %5713 = vrot.lane.b32.xlu0 %v5672, 126
        %v5714 = vpop.permute.xlu0 %5713
        %5715 = vrot.lane.b32.xlu0 %v5673, 126
        %v5716 = vpop.permute.xlu0 %5715
        %5717 = vrot.lane.b32.xlu0 %v5674, 126
        %v5718 = vpop.permute.xlu0 %5717
        %5719 = vrot.lane.b32.xlu0 %v5675, 126
        %v5720 = vpop.permute.xlu0 %5719
        %5721 = vrot.lane.b32.xlu0 %v5676, 126
        %v5722 = vpop.permute.xlu0 %5721
        %5723 = vrot.lane.b32.xlu0 %v5677, 126
        %v5724 = vpop.permute.xlu0 %5723
        %5725 = vrot.lane.b32.xlu0 %v5678, 126
        %v5726 = vpop.permute.xlu0 %5725
        %v5743 = vadd.f32 %v5645, %v5696
        %v5744 = vadd.f32 %v5646, %v5698
        %v5745 = vadd.f32 %v5647, %v5700
        %v5746 = vadd.f32 %v5648, %v5702
        %v5747 = vadd.f32 %v5649, %v5704
        %v5748 = vadd.f32 %v5650, %v5706
        %v5749 = vadd.f32 %v5651, %v5708
        %v5750 = vadd.f32 %v5652, %v5710
        %v5751 = vadd.f32 %v5653, %v5712
        %v5752 = vadd.f32 %v5654, %v5714
        %v5753 = vadd.f32 %v5655, %v5716
        %v5754 = vadd.f32 %v5656, %v5718
        %v5755 = vadd.f32 %v5657, %v5720
        %v5756 = vadd.f32 %v5658, %v5722
        %v5757 = vadd.f32 %v5659, %v5724
        %v5758 = vadd.f32 %v5660, %v5726
        %s5759 = sld [smem:[#allocation9 + $0x3]]
        %v5760 = vstv %s5759
        %v5761 = vmul.f32 %v5760, %v4097
        %v5762 = vmul.f32 %v5760, %v4098
        %v5763 = vmul.f32 %v5760, %v4099
        %v5764 = vmul.f32 %v5760, %v4100
        %v5765 = vmul.f32 %v5760, %v4101
        %v5766 = vmul.f32 %v5760, %v4102
        %v5767 = vmul.f32 %v5760, %v4103
        %v5768 = vmul.f32 %v5760, %v4104
        %v5769 = vmul.f32 %v5760, %v4105
        %v5770 = vmul.f32 %v5760, %v4106
        %v5771 = vmul.f32 %v5760, %v4107
        %v5772 = vmul.f32 %v5760, %v4108
        %v5773 = vmul.f32 %v5760, %v4109
        %v5774 = vmul.f32 %v5760, %v4110
        %v5775 = vmul.f32 %v5760, %v4111
        %v5776 = vmul.f32 %v5760, %v4112
        %v5777 = vmul.f32 %v5760, %v4113
        %v5778 = vmul.f32 %v5760, %v4114
        %v5779 = vmul.f32 %v5760, %v4115
        %v5780 = vmul.f32 %v5760, %v4116
        %v5781 = vmul.f32 %v5760, %v4117
        %v5782 = vmul.f32 %v5760, %v4118
        %v5783 = vmul.f32 %v5760, %v4119
        %v5784 = vmul.f32 %v5760, %v4120
        %vm5809 = vcmask 1046528
        %v5810 = vrot.slane %v5761, 1
        %v5811 = vrot.slane %v5762, 1
        %v5812 = vsel %vm5809, %v5810, %v5811
        %v5813 = vrot.slane %v5763, 1
        %v5814 = vsel %vm5809, %v5811, %v5813
        %v5815 = vrot.slane %v5764, 1
        %v5816 = vrot.slane %v5765, 1
        %v5817 = vsel %vm5809, %v5815, %v5816
        %v5818 = vrot.slane %v5766, 1
        %v5819 = vsel %vm5809, %v5816, %v5818
        %v5820 = vrot.slane %v5767, 1
        %v5821 = vrot.slane %v5768, 1
        %v5822 = vsel %vm5809, %v5820, %v5821
        %v5823 = vrot.slane %v5769, 1
        %v5824 = vsel %vm5809, %v5821, %v5823
        %v5825 = vrot.slane %v5770, 1
        %v5826 = vrot.slane %v5771, 1
        %v5827 = vsel %vm5809, %v5825, %v5826
        %v5828 = vrot.slane %v5772, 1
        %v5829 = vsel %vm5809, %v5826, %v5828
        %v5830 = vrot.slane %v5773, 1
        %v5831 = vrot.slane %v5774, 1
        %v5832 = vsel %vm5809, %v5830, %v5831
        %v5833 = vrot.slane %v5775, 1
        %v5834 = vsel %vm5809, %v5831, %v5833
        %v5835 = vrot.slane %v5776, 1
        %v5836 = vrot.slane %v5777, 1
        %v5837 = vsel %vm5809, %v5835, %v5836
        %v5838 = vrot.slane %v5778, 1
        %v5839 = vsel %vm5809, %v5836, %v5838
        %v5840 = vrot.slane %v5779, 1
        %v5841 = vrot.slane %v5780, 1
        %v5842 = vsel %vm5809, %v5840, %v5841
        %v5843 = vrot.slane %v5781, 1
        %v5844 = vsel %vm5809, %v5841, %v5843
        %v5845 = vrot.slane %v5782, 1
        %v5846 = vrot.slane %v5783, 1
        %v5847 = vsel %vm5809, %v5845, %v5846
        %v5848 = vrot.slane %v5784, 1
        %v5849 = vsel %vm5809, %v5846, %v5848
        %v5866 = vadd.f32 %v5743, %v5812
        %v5867 = vadd.f32 %v5744, %v5814
        %v5868 = vadd.f32 %v5745, %v5817
        %v5869 = vadd.f32 %v5746, %v5819
        %v5870 = vadd.f32 %v5747, %v5822
        %v5871 = vadd.f32 %v5748, %v5824
        %v5872 = vadd.f32 %v5749, %v5827
        %v5873 = vadd.f32 %v5750, %v5829
        %v5874 = vadd.f32 %v5751, %v5832
        %v5875 = vadd.f32 %v5752, %v5834
        %v5876 = vadd.f32 %v5753, %v5837
        %v5877 = vadd.f32 %v5754, %v5839
        %v5878 = vadd.f32 %v5755, %v5842
        %v5879 = vadd.f32 %v5756, %v5844
        %v5880 = vadd.f32 %v5757, %v5847
        %v5881 = vadd.f32 %v5758, %v5849
        %s5882 = sld [smem:[#allocation9 + $0x4]]
        %v5883 = vstv %s5882
        %v5884 = vmul.f32 %v5883, %v4097
        %v5885 = vmul.f32 %v5883, %v4098
        %v5886 = vmul.f32 %v5883, %v4099
        %v5887 = vmul.f32 %v5883, %v4100
        %v5888 = vmul.f32 %v5883, %v4101
        %v5889 = vmul.f32 %v5883, %v4102
        %v5890 = vmul.f32 %v5883, %v4103
        %v5891 = vmul.f32 %v5883, %v4104
        %v5892 = vmul.f32 %v5883, %v4105
        %v5893 = vmul.f32 %v5883, %v4106
        %v5894 = vmul.f32 %v5883, %v4107
        %v5895 = vmul.f32 %v5883, %v4108
        %v5896 = vmul.f32 %v5883, %v4109
        %v5897 = vmul.f32 %v5883, %v4110
        %v5898 = vmul.f32 %v5883, %v4111
        %v5899 = vmul.f32 %v5883, %v4112
        %v5900 = vmul.f32 %v5883, %v4113
        %v5901 = vmul.f32 %v5883, %v4114
        %v5902 = vmul.f32 %v5883, %v4115
        %v5903 = vmul.f32 %v5883, %v4116
        %v5904 = vmul.f32 %v5883, %v4117
        %v5905 = vmul.f32 %v5883, %v4118
        %v5906 = vmul.f32 %v5883, %v4119
        %v5907 = vmul.f32 %v5883, %v4120
        %v5932 = vrot.slane %v5884, 1
        %v5933 = vrot.slane %v5885, 1
        %v5934 = vsel %vm5809, %v5932, %v5933
        %v5935 = vrot.slane %v5886, 1
        %v5936 = vsel %vm5809, %v5933, %v5935
        %v5937 = vrot.slane %v5887, 1
        %v5938 = vrot.slane %v5888, 1
        %v5939 = vsel %vm5809, %v5937, %v5938
        %v5940 = vrot.slane %v5889, 1
        %v5941 = vsel %vm5809, %v5938, %v5940
        %v5942 = vrot.slane %v5890, 1
        %v5943 = vrot.slane %v5891, 1
        %v5944 = vsel %vm5809, %v5942, %v5943
        %v5945 = vrot.slane %v5892, 1
        %v5946 = vsel %vm5809, %v5943, %v5945
        %v5947 = vrot.slane %v5893, 1
        %v5948 = vrot.slane %v5894, 1
        %v5949 = vsel %vm5809, %v5947, %v5948
        %v5950 = vrot.slane %v5895, 1
        %v5951 = vsel %vm5809, %v5948, %v5950
        %v5952 = vrot.slane %v5896, 1
        %v5953 = vrot.slane %v5897, 1
        %v5954 = vsel %vm5809, %v5952, %v5953
        %v5955 = vrot.slane %v5898, 1
        %v5956 = vsel %vm5809, %v5953, %v5955
        %v5957 = vrot.slane %v5899, 1
        %v5958 = vrot.slane %v5900, 1
        %v5959 = vsel %vm5809, %v5957, %v5958
        %v5960 = vrot.slane %v5901, 1
        %v5961 = vsel %vm5809, %v5958, %v5960
        %v5962 = vrot.slane %v5902, 1
        %v5963 = vrot.slane %v5903, 1
        %v5964 = vsel %vm5809, %v5962, %v5963
        %v5965 = vrot.slane %v5904, 1
        %v5966 = vsel %vm5809, %v5963, %v5965
        %v5967 = vrot.slane %v5905, 1
        %v5968 = vrot.slane %v5906, 1
        %v5969 = vsel %vm5809, %v5967, %v5968
        %v5970 = vrot.slane %v5907, 1
        %v5971 = vsel %vm5809, %v5968, %v5970
        %5972 = vrot.lane.b32.xlu0 %v5934, 127
        %v5973 = vpop.permute.xlu0 %5972
        %5974 = vrot.lane.b32.xlu0 %v5936, 127
        %v5975 = vpop.permute.xlu0 %5974
        %5976 = vrot.lane.b32.xlu0 %v5939, 127
        %v5977 = vpop.permute.xlu0 %5976
        %5978 = vrot.lane.b32.xlu0 %v5941, 127
        %v5979 = vpop.permute.xlu0 %5978
        %5980 = vrot.lane.b32.xlu0 %v5944, 127
        %v5981 = vpop.permute.xlu0 %5980
        %5982 = vrot.lane.b32.xlu0 %v5946, 127
        %v5983 = vpop.permute.xlu0 %5982
        %5984 = vrot.lane.b32.xlu0 %v5949, 127
        %v5985 = vpop.permute.xlu0 %5984
        %5986 = vrot.lane.b32.xlu0 %v5951, 127
        %v5987 = vpop.permute.xlu0 %5986
        %5988 = vrot.lane.b32.xlu0 %v5954, 127
        %v5989 = vpop.permute.xlu0 %5988
        %5990 = vrot.lane.b32.xlu0 %v5956, 127
        %v5991 = vpop.permute.xlu0 %5990
        %5992 = vrot.lane.b32.xlu0 %v5959, 127
        %v5993 = vpop.permute.xlu0 %5992
        %5994 = vrot.lane.b32.xlu0 %v5961, 127
        %v5995 = vpop.permute.xlu0 %5994
        %5996 = vrot.lane.b32.xlu0 %v5964, 127
        %v5997 = vpop.permute.xlu0 %5996
        %5998 = vrot.lane.b32.xlu0 %v5966, 127
        %v5999 = vpop.permute.xlu0 %5998
        %6000 = vrot.lane.b32.xlu0 %v5969, 127
        %v6001 = vpop.permute.xlu0 %6000
        %6002 = vrot.lane.b32.xlu0 %v5971, 127
        %v6003 = vpop.permute.xlu0 %6002
        %v6020 = vadd.f32 %v5866, %v5973
        %v6021 = vadd.f32 %v5867, %v5975
        %v6022 = vadd.f32 %v5868, %v5977
        %v6023 = vadd.f32 %v5869, %v5979
        %v6024 = vadd.f32 %v5870, %v5981
        %v6025 = vadd.f32 %v5871, %v5983
        %v6026 = vadd.f32 %v5872, %v5985
        %v6027 = vadd.f32 %v5873, %v5987
        %v6028 = vadd.f32 %v5874, %v5989
        %v6029 = vadd.f32 %v5875, %v5991
        %v6030 = vadd.f32 %v5876, %v5993
        %v6031 = vadd.f32 %v5877, %v5995
        %v6032 = vadd.f32 %v5878, %v5997
        %v6033 = vadd.f32 %v5879, %v5999
        %v6034 = vadd.f32 %v5880, %v6001
        %v6035 = vadd.f32 %v5881, %v6003
        %s6036 = sld [smem:[#allocation9 + $0x5]]
        %v6037 = vstv %s6036
        %v6038 = vmul.f32 %v6037, %v4097
        %v6039 = vmul.f32 %v6037, %v4098
        %v6040 = vmul.f32 %v6037, %v4099
        %v6041 = vmul.f32 %v6037, %v4100
        %v6042 = vmul.f32 %v6037, %v4101
        %v6043 = vmul.f32 %v6037, %v4102
        %v6044 = vmul.f32 %v6037, %v4103
        %v6045 = vmul.f32 %v6037, %v4104
        %v6046 = vmul.f32 %v6037, %v4105
        %v6047 = vmul.f32 %v6037, %v4106
        %v6048 = vmul.f32 %v6037, %v4107
        %v6049 = vmul.f32 %v6037, %v4108
        %v6050 = vmul.f32 %v6037, %v4109
        %v6051 = vmul.f32 %v6037, %v4110
        %v6052 = vmul.f32 %v6037, %v4111
        %v6053 = vmul.f32 %v6037, %v4112
        %v6054 = vmul.f32 %v6037, %v4113
        %v6055 = vmul.f32 %v6037, %v4114
        %v6056 = vmul.f32 %v6037, %v4115
        %v6057 = vmul.f32 %v6037, %v4116
        %v6058 = vmul.f32 %v6037, %v4117
        %v6059 = vmul.f32 %v6037, %v4118
        %v6060 = vmul.f32 %v6037, %v4119
        %v6061 = vmul.f32 %v6037, %v4120
        %v6086 = vrot.slane %v6038, 1
        %v6087 = vrot.slane %v6039, 1
        %v6088 = vsel %vm5809, %v6086, %v6087
        %v6089 = vrot.slane %v6040, 1
        %v6090 = vsel %vm5809, %v6087, %v6089
        %v6091 = vrot.slane %v6041, 1
        %v6092 = vrot.slane %v6042, 1
        %v6093 = vsel %vm5809, %v6091, %v6092
        %v6094 = vrot.slane %v6043, 1
        %v6095 = vsel %vm5809, %v6092, %v6094
        %v6096 = vrot.slane %v6044, 1
        %v6097 = vrot.slane %v6045, 1
        %v6098 = vsel %vm5809, %v6096, %v6097
        %v6099 = vrot.slane %v6046, 1
        %v6100 = vsel %vm5809, %v6097, %v6099
        %v6101 = vrot.slane %v6047, 1
        %v6102 = vrot.slane %v6048, 1
        %v6103 = vsel %vm5809, %v6101, %v6102
        %v6104 = vrot.slane %v6049, 1
        %v6105 = vsel %vm5809, %v6102, %v6104
        %v6106 = vrot.slane %v6050, 1
        %v6107 = vrot.slane %v6051, 1
        %v6108 = vsel %vm5809, %v6106, %v6107
        %v6109 = vrot.slane %v6052, 1
        %v6110 = vsel %vm5809, %v6107, %v6109
        %v6111 = vrot.slane %v6053, 1
        %v6112 = vrot.slane %v6054, 1
        %v6113 = vsel %vm5809, %v6111, %v6112
        %v6114 = vrot.slane %v6055, 1
        %v6115 = vsel %vm5809, %v6112, %v6114
        %v6116 = vrot.slane %v6056, 1
        %v6117 = vrot.slane %v6057, 1
        %v6118 = vsel %vm5809, %v6116, %v6117
        %v6119 = vrot.slane %v6058, 1
        %v6120 = vsel %vm5809, %v6117, %v6119
        %v6121 = vrot.slane %v6059, 1
        %v6122 = vrot.slane %v6060, 1
        %v6123 = vsel %vm5809, %v6121, %v6122
        %v6124 = vrot.slane %v6061, 1
        %v6125 = vsel %vm5809, %v6122, %v6124
        %6126 = vrot.lane.b32.xlu0 %v6088, 126
        %v6127 = vpop.permute.xlu0 %6126
        %6128 = vrot.lane.b32.xlu0 %v6090, 126
        %v6129 = vpop.permute.xlu0 %6128
        %6130 = vrot.lane.b32.xlu0 %v6093, 126
        %v6131 = vpop.permute.xlu0 %6130
        %6132 = vrot.lane.b32.xlu0 %v6095, 126
        %v6133 = vpop.permute.xlu0 %6132
        %6134 = vrot.lane.b32.xlu0 %v6098, 126
        %v6135 = vpop.permute.xlu0 %6134
        %6136 = vrot.lane.b32.xlu0 %v6100, 126
        %v6137 = vpop.permute.xlu0 %6136
        %6138 = vrot.lane.b32.xlu0 %v6103, 126
        %v6139 = vpop.permute.xlu0 %6138
        %6140 = vrot.lane.b32.xlu0 %v6105, 126
        %v6141 = vpop.permute.xlu0 %6140
        %6142 = vrot.lane.b32.xlu0 %v6108, 126
        %v6143 = vpop.permute.xlu0 %6142
        %6144 = vrot.lane.b32.xlu0 %v6110, 126
        %v6145 = vpop.permute.xlu0 %6144
        %6146 = vrot.lane.b32.xlu0 %v6113, 126
        %v6147 = vpop.permute.xlu0 %6146
        %6148 = vrot.lane.b32.xlu0 %v6115, 126
        %v6149 = vpop.permute.xlu0 %6148
        %6150 = vrot.lane.b32.xlu0 %v6118, 126
        %v6151 = vpop.permute.xlu0 %6150
        %6152 = vrot.lane.b32.xlu0 %v6120, 126
        %v6153 = vpop.permute.xlu0 %6152
        %6154 = vrot.lane.b32.xlu0 %v6123, 126
        %v6155 = vpop.permute.xlu0 %6154
        %6156 = vrot.lane.b32.xlu0 %v6125, 126
        %v6157 = vpop.permute.xlu0 %6156
        %v6174 = vadd.f32 %v6020, %v6127
        %v6175 = vadd.f32 %v6021, %v6129
        %v6176 = vadd.f32 %v6022, %v6131
        %v6177 = vadd.f32 %v6023, %v6133
        %v6178 = vadd.f32 %v6024, %v6135
        %v6179 = vadd.f32 %v6025, %v6137
        %v6180 = vadd.f32 %v6026, %v6139
        %v6181 = vadd.f32 %v6027, %v6141
        %v6182 = vadd.f32 %v6028, %v6143
        %v6183 = vadd.f32 %v6029, %v6145
        %v6184 = vadd.f32 %v6030, %v6147
        %v6185 = vadd.f32 %v6031, %v6149
        %v6186 = vadd.f32 %v6032, %v6151
        %v6187 = vadd.f32 %v6033, %v6153
        %v6188 = vadd.f32 %v6034, %v6155
        %v6189 = vadd.f32 %v6035, %v6157
        %s6190 = sld [smem:[#allocation9 + $0x6]]
        %v6191 = vstv %s6190
        %v6192 = vmul.f32 %v6191, %v4097
        %v6193 = vmul.f32 %v6191, %v4098
        %v6194 = vmul.f32 %v6191, %v4099
        %v6195 = vmul.f32 %v6191, %v4100
        %v6196 = vmul.f32 %v6191, %v4101
        %v6197 = vmul.f32 %v6191, %v4102
        %v6198 = vmul.f32 %v6191, %v4103
        %v6199 = vmul.f32 %v6191, %v4104
        %v6200 = vmul.f32 %v6191, %v4105
        %v6201 = vmul.f32 %v6191, %v4106
        %v6202 = vmul.f32 %v6191, %v4107
        %v6203 = vmul.f32 %v6191, %v4108
        %v6204 = vmul.f32 %v6191, %v4109
        %v6205 = vmul.f32 %v6191, %v4110
        %v6206 = vmul.f32 %v6191, %v4111
        %v6207 = vmul.f32 %v6191, %v4112
        %v6208 = vmul.f32 %v6191, %v4113
        %v6209 = vmul.f32 %v6191, %v4114
        %v6210 = vmul.f32 %v6191, %v4115
        %v6211 = vmul.f32 %v6191, %v4116
        %v6212 = vmul.f32 %v6191, %v4117
        %v6213 = vmul.f32 %v6191, %v4118
        %v6214 = vmul.f32 %v6191, %v4119
        %v6215 = vmul.f32 %v6191, %v4120
        %vm6240 = vcmask 1045504
        %v6241 = vrot.slane %v6192, 2
        %v6242 = vrot.slane %v6193, 2
        %v6243 = vsel %vm6240, %v6241, %v6242
        %v6244 = vrot.slane %v6194, 2
        %v6245 = vsel %vm6240, %v6242, %v6244
        %v6246 = vrot.slane %v6195, 2
        %v6247 = vrot.slane %v6196, 2
        %v6248 = vsel %vm6240, %v6246, %v6247
        %v6249 = vrot.slane %v6197, 2
        %v6250 = vsel %vm6240, %v6247, %v6249
        %v6251 = vrot.slane %v6198, 2
        %v6252 = vrot.slane %v6199, 2
        %v6253 = vsel %vm6240, %v6251, %v6252
        %v6254 = vrot.slane %v6200, 2
        %v6255 = vsel %vm6240, %v6252, %v6254
        %v6256 = vrot.slane %v6201, 2
        %v6257 = vrot.slane %v6202, 2
        %v6258 = vsel %vm6240, %v6256, %v6257
        %v6259 = vrot.slane %v6203, 2
        %v6260 = vsel %vm6240, %v6257, %v6259
        %v6261 = vrot.slane %v6204, 2
        %v6262 = vrot.slane %v6205, 2
        %v6263 = vsel %vm6240, %v6261, %v6262
        %v6264 = vrot.slane %v6206, 2
        %v6265 = vsel %vm6240, %v6262, %v6264
        %v6266 = vrot.slane %v6207, 2
        %v6267 = vrot.slane %v6208, 2
        %v6268 = vsel %vm6240, %v6266, %v6267
        %v6269 = vrot.slane %v6209, 2
        %v6270 = vsel %vm6240, %v6267, %v6269
        %v6271 = vrot.slane %v6210, 2
        %v6272 = vrot.slane %v6211, 2
        %v6273 = vsel %vm6240, %v6271, %v6272
        %v6274 = vrot.slane %v6212, 2
        %v6275 = vsel %vm6240, %v6272, %v6274
        %v6276 = vrot.slane %v6213, 2
        %v6277 = vrot.slane %v6214, 2
        %v6278 = vsel %vm6240, %v6276, %v6277
        %v6279 = vrot.slane %v6215, 2
        %v6280 = vsel %vm6240, %v6277, %v6279
        %v6297 = vadd.f32 %v6174, %v6243
        %v6298 = vadd.f32 %v6175, %v6245
        %v6299 = vadd.f32 %v6176, %v6248
        %v6300 = vadd.f32 %v6177, %v6250
        %v6301 = vadd.f32 %v6178, %v6253
        %v6302 = vadd.f32 %v6179, %v6255
        %v6303 = vadd.f32 %v6180, %v6258
        %v6304 = vadd.f32 %v6181, %v6260
        %v6305 = vadd.f32 %v6182, %v6263
        %v6306 = vadd.f32 %v6183, %v6265
        %v6307 = vadd.f32 %v6184, %v6268
        %v6308 = vadd.f32 %v6185, %v6270
        %v6309 = vadd.f32 %v6186, %v6273
        %v6310 = vadd.f32 %v6187, %v6275
        %v6311 = vadd.f32 %v6188, %v6278
        %v6312 = vadd.f32 %v6189, %v6280
        %s6313 = sld [smem:[#allocation9 + $0x7]]
        %v6314 = vstv %s6313
        %v6315 = vmul.f32 %v6314, %v4097
        %v6316 = vmul.f32 %v6314, %v4098
        %v6317 = vmul.f32 %v6314, %v4099
        %v6318 = vmul.f32 %v6314, %v4100
        %v6319 = vmul.f32 %v6314, %v4101
        %v6320 = vmul.f32 %v6314, %v4102
        %v6321 = vmul.f32 %v6314, %v4103
        %v6322 = vmul.f32 %v6314, %v4104
        %v6323 = vmul.f32 %v6314, %v4105
        %v6324 = vmul.f32 %v6314, %v4106
        %v6325 = vmul.f32 %v6314, %v4107
        %v6326 = vmul.f32 %v6314, %v4108
        %v6327 = vmul.f32 %v6314, %v4109
        %v6328 = vmul.f32 %v6314, %v4110
        %v6329 = vmul.f32 %v6314, %v4111
        %v6330 = vmul.f32 %v6314, %v4112
        %v6331 = vmul.f32 %v6314, %v4113
        %v6332 = vmul.f32 %v6314, %v4114
        %v6333 = vmul.f32 %v6314, %v4115
        %v6334 = vmul.f32 %v6314, %v4116
        %v6335 = vmul.f32 %v6314, %v4117
        %v6336 = vmul.f32 %v6314, %v4118
        %v6337 = vmul.f32 %v6314, %v4119
        %v6338 = vmul.f32 %v6314, %v4120
        %v6363 = vrot.slane %v6315, 2
        %v6364 = vrot.slane %v6316, 2
        %v6365 = vsel %vm6240, %v6363, %v6364
        %v6366 = vrot.slane %v6317, 2
        %v6367 = vsel %vm6240, %v6364, %v6366
        %v6368 = vrot.slane %v6318, 2
        %v6369 = vrot.slane %v6319, 2
        %v6370 = vsel %vm6240, %v6368, %v6369
        %v6371 = vrot.slane %v6320, 2
        %v6372 = vsel %vm6240, %v6369, %v6371
        %v6373 = vrot.slane %v6321, 2
        %v6374 = vrot.slane %v6322, 2
        %v6375 = vsel %vm6240, %v6373, %v6374
        %v6376 = vrot.slane %v6323, 2
        %v6377 = vsel %vm6240, %v6374, %v6376
        %v6378 = vrot.slane %v6324, 2
        %v6379 = vrot.slane %v6325, 2
        %v6380 = vsel %vm6240, %v6378, %v6379
        %v6381 = vrot.slane %v6326, 2
        %v6382 = vsel %vm6240, %v6379, %v6381
        %v6383 = vrot.slane %v6327, 2
        %v6384 = vrot.slane %v6328, 2
        %v6385 = vsel %vm6240, %v6383, %v6384
        %v6386 = vrot.slane %v6329, 2
        %v6387 = vsel %vm6240, %v6384, %v6386
        %v6388 = vrot.slane %v6330, 2
        %v6389 = vrot.slane %v6331, 2
        %v6390 = vsel %vm6240, %v6388, %v6389
        %v6391 = vrot.slane %v6332, 2
        %v6392 = vsel %vm6240, %v6389, %v6391
        %v6393 = vrot.slane %v6333, 2
        %v6394 = vrot.slane %v6334, 2
        %v6395 = vsel %vm6240, %v6393, %v6394
        %v6396 = vrot.slane %v6335, 2
        %v6397 = vsel %vm6240, %v6394, %v6396
        %v6398 = vrot.slane %v6336, 2
        %v6399 = vrot.slane %v6337, 2
        %v6400 = vsel %vm6240, %v6398, %v6399
        %v6401 = vrot.slane %v6338, 2
        %v6402 = vsel %vm6240, %v6399, %v6401
        %6403 = vrot.lane.b32.xlu0 %v6365, 127
        %v6404 = vpop.permute.xlu0 %6403
        %6405 = vrot.lane.b32.xlu0 %v6367, 127
        %v6406 = vpop.permute.xlu0 %6405
        %6407 = vrot.lane.b32.xlu0 %v6370, 127
        %v6408 = vpop.permute.xlu0 %6407
        %6409 = vrot.lane.b32.xlu0 %v6372, 127
        %v6410 = vpop.permute.xlu0 %6409
        %6411 = vrot.lane.b32.xlu0 %v6375, 127
        %v6412 = vpop.permute.xlu0 %6411
        %6413 = vrot.lane.b32.xlu0 %v6377, 127
        %v6414 = vpop.permute.xlu0 %6413
        %6415 = vrot.lane.b32.xlu0 %v6380, 127
        %v6416 = vpop.permute.xlu0 %6415
        %6417 = vrot.lane.b32.xlu0 %v6382, 127
        %v6418 = vpop.permute.xlu0 %6417
        %6419 = vrot.lane.b32.xlu0 %v6385, 127
        %v6420 = vpop.permute.xlu0 %6419
        %6421 = vrot.lane.b32.xlu0 %v6387, 127
        %v6422 = vpop.permute.xlu0 %6421
        %6423 = vrot.lane.b32.xlu0 %v6390, 127
        %v6424 = vpop.permute.xlu0 %6423
        %6425 = vrot.lane.b32.xlu0 %v6392, 127
        %v6426 = vpop.permute.xlu0 %6425
        %6427 = vrot.lane.b32.xlu0 %v6395, 127
        %v6428 = vpop.permute.xlu0 %6427
        %6429 = vrot.lane.b32.xlu0 %v6397, 127
        %v6430 = vpop.permute.xlu0 %6429
        %6431 = vrot.lane.b32.xlu0 %v6400, 127
        %v6432 = vpop.permute.xlu0 %6431
        %6433 = vrot.lane.b32.xlu0 %v6402, 127
        %v6434 = vpop.permute.xlu0 %6433
        %v6451 = vadd.f32 %v6297, %v6404
        %v6452 = vadd.f32 %v6298, %v6406
        %v6453 = vadd.f32 %v6299, %v6408
        %v6454 = vadd.f32 %v6300, %v6410
        %v6455 = vadd.f32 %v6301, %v6412
        %v6456 = vadd.f32 %v6302, %v6414
        %v6457 = vadd.f32 %v6303, %v6416
        %v6458 = vadd.f32 %v6304, %v6418
        %v6459 = vadd.f32 %v6305, %v6420
        %v6460 = vadd.f32 %v6306, %v6422
        %v6461 = vadd.f32 %v6307, %v6424
        %v6462 = vadd.f32 %v6308, %v6426
        %v6463 = vadd.f32 %v6309, %v6428
        %v6464 = vadd.f32 %v6310, %v6430
        %v6465 = vadd.f32 %v6311, %v6432
        %v6466 = vadd.f32 %v6312, %v6434
        %s6467 = sld [smem:[#allocation9 + $0x8]]
        %v6468 = vstv %s6467
        %v6469 = vmul.f32 %v6468, %v4097
        %v6470 = vmul.f32 %v6468, %v4098
        %v6471 = vmul.f32 %v6468, %v4099
        %v6472 = vmul.f32 %v6468, %v4100
        %v6473 = vmul.f32 %v6468, %v4101
        %v6474 = vmul.f32 %v6468, %v4102
        %v6475 = vmul.f32 %v6468, %v4103
        %v6476 = vmul.f32 %v6468, %v4104
        %v6477 = vmul.f32 %v6468, %v4105
        %v6478 = vmul.f32 %v6468, %v4106
        %v6479 = vmul.f32 %v6468, %v4107
        %v6480 = vmul.f32 %v6468, %v4108
        %v6481 = vmul.f32 %v6468, %v4109
        %v6482 = vmul.f32 %v6468, %v4110
        %v6483 = vmul.f32 %v6468, %v4111
        %v6484 = vmul.f32 %v6468, %v4112
        %v6485 = vmul.f32 %v6468, %v4113
        %v6486 = vmul.f32 %v6468, %v4114
        %v6487 = vmul.f32 %v6468, %v4115
        %v6488 = vmul.f32 %v6468, %v4116
        %v6489 = vmul.f32 %v6468, %v4117
        %v6490 = vmul.f32 %v6468, %v4118
        %v6491 = vmul.f32 %v6468, %v4119
        %v6492 = vmul.f32 %v6468, %v4120
        %v6517 = vrot.slane %v6469, 2
        %v6518 = vrot.slane %v6470, 2
        %v6519 = vsel %vm6240, %v6517, %v6518
        %v6520 = vrot.slane %v6471, 2
        %v6521 = vsel %vm6240, %v6518, %v6520
        %v6522 = vrot.slane %v6472, 2
        %v6523 = vrot.slane %v6473, 2
        %v6524 = vsel %vm6240, %v6522, %v6523
        %v6525 = vrot.slane %v6474, 2
        %v6526 = vsel %vm6240, %v6523, %v6525
        %v6527 = vrot.slane %v6475, 2
        %v6528 = vrot.slane %v6476, 2
        %v6529 = vsel %vm6240, %v6527, %v6528
        %v6530 = vrot.slane %v6477, 2
        %v6531 = vsel %vm6240, %v6528, %v6530
        %v6532 = vrot.slane %v6478, 2
        %v6533 = vrot.slane %v6479, 2
        %v6534 = vsel %vm6240, %v6532, %v6533
        %v6535 = vrot.slane %v6480, 2
        %v6536 = vsel %vm6240, %v6533, %v6535
        %v6537 = vrot.slane %v6481, 2
        %v6538 = vrot.slane %v6482, 2
        %v6539 = vsel %vm6240, %v6537, %v6538
        %v6540 = vrot.slane %v6483, 2
        %v6541 = vsel %vm6240, %v6538, %v6540
        %v6542 = vrot.slane %v6484, 2
        %v6543 = vrot.slane %v6485, 2
        %v6544 = vsel %vm6240, %v6542, %v6543
        %v6545 = vrot.slane %v6486, 2
        %v6546 = vsel %vm6240, %v6543, %v6545
        %v6547 = vrot.slane %v6487, 2
        %v6548 = vrot.slane %v6488, 2
        %v6549 = vsel %vm6240, %v6547, %v6548
        %v6550 = vrot.slane %v6489, 2
        %v6551 = vsel %vm6240, %v6548, %v6550
        %v6552 = vrot.slane %v6490, 2
        %v6553 = vrot.slane %v6491, 2
        %v6554 = vsel %vm6240, %v6552, %v6553
        %v6555 = vrot.slane %v6492, 2
        %v6556 = vsel %vm6240, %v6553, %v6555
        %6557 = vrot.lane.b32.xlu0 %v6519, 126
        %v6558 = vpop.permute.xlu0 %6557
        %6559 = vrot.lane.b32.xlu0 %v6521, 126
        %v6560 = vpop.permute.xlu0 %6559
        %6561 = vrot.lane.b32.xlu0 %v6524, 126
        %v6562 = vpop.permute.xlu0 %6561
        %6563 = vrot.lane.b32.xlu0 %v6526, 126
        %v6564 = vpop.permute.xlu0 %6563
        %6565 = vrot.lane.b32.xlu0 %v6529, 126
        %v6566 = vpop.permute.xlu0 %6565
        %6567 = vrot.lane.b32.xlu0 %v6531, 126
        %v6568 = vpop.permute.xlu0 %6567
        %6569 = vrot.lane.b32.xlu0 %v6534, 126
        %v6570 = vpop.permute.xlu0 %6569
        %6571 = vrot.lane.b32.xlu0 %v6536, 126
        %v6572 = vpop.permute.xlu0 %6571
        %6573 = vrot.lane.b32.xlu0 %v6539, 126
        %v6574 = vpop.permute.xlu0 %6573
        %6575 = vrot.lane.b32.xlu0 %v6541, 126
        %v6576 = vpop.permute.xlu0 %6575
        %6577 = vrot.lane.b32.xlu0 %v6544, 126
        %v6578 = vpop.permute.xlu0 %6577
        %6579 = vrot.lane.b32.xlu0 %v6546, 126
        %v6580 = vpop.permute.xlu0 %6579
        %6581 = vrot.lane.b32.xlu0 %v6549, 126
        %v6582 = vpop.permute.xlu0 %6581
        %6583 = vrot.lane.b32.xlu0 %v6551, 126
        %v6584 = vpop.permute.xlu0 %6583
        %6585 = vrot.lane.b32.xlu0 %v6554, 126
        %v6586 = vpop.permute.xlu0 %6585
        %6587 = vrot.lane.b32.xlu0 %v6556, 126
        %v6588 = vpop.permute.xlu0 %6587
        %v6605 = vadd.f32 %v6451, %v6558
        %v6606 = vadd.f32 %v6452, %v6560
        %v6607 = vadd.f32 %v6453, %v6562
        %v6608 = vadd.f32 %v6454, %v6564
        %v6609 = vadd.f32 %v6455, %v6566
        %v6610 = vadd.f32 %v6456, %v6568
        %v6611 = vadd.f32 %v6457, %v6570
        %v6612 = vadd.f32 %v6458, %v6572
        %v6613 = vadd.f32 %v6459, %v6574
        %v6614 = vadd.f32 %v6460, %v6576
        %v6615 = vadd.f32 %v6461, %v6578
        %v6616 = vadd.f32 %v6462, %v6580
        %v6617 = vadd.f32 %v6463, %v6582
        %v6618 = vadd.f32 %v6464, %v6584
        %v6619 = vadd.f32 %v6465, %v6586
        %v6620 = vadd.f32 %v6466, %v6588
        %s6621 = sld [smem:[#allocation9 + $0x9]]
        %v6622 = vstv %s6621
        %v6623 = vmul.f32 %v6622, %v5521
        %v6624 = vmul.f32 %v6622, %v5522
        %v6625 = vmul.f32 %v6622, %v5524
        %v6626 = vmul.f32 %v6622, %v5525
        %v6627 = vmul.f32 %v6622, %v5527
        %v6628 = vmul.f32 %v6622, %v5528
        %v6629 = vmul.f32 %v6622, %v5530
        %v6630 = vmul.f32 %v6622, %v5531
        %v6631 = vmul.f32 %v6622, %v5533
        %v6632 = vmul.f32 %v6622, %v5534
        %v6633 = vmul.f32 %v6622, %v5536
        %v6634 = vmul.f32 %v6622, %v5537
        %v6635 = vmul.f32 %v6622, %v5539
        %v6636 = vmul.f32 %v6622, %v5540
        %v6637 = vmul.f32 %v6622, %v5542
        %v6638 = vmul.f32 %v6622, %v5543
        %v6639 = vadd.f32 %v6605, %v6623
        %v6640 = vadd.f32 %v6606, %v6624
        %v6641 = vadd.f32 %v6607, %v6625
        %v6642 = vadd.f32 %v6608, %v6626
        %v6643 = vadd.f32 %v6609, %v6627
        %v6644 = vadd.f32 %v6610, %v6628
        %v6645 = vadd.f32 %v6611, %v6629
        %v6646 = vadd.f32 %v6612, %v6630
        %v6647 = vadd.f32 %v6613, %v6631
        %v6648 = vadd.f32 %v6614, %v6632
        %v6649 = vadd.f32 %v6615, %v6633
        %v6650 = vadd.f32 %v6616, %v6634
        %v6651 = vadd.f32 %v6617, %v6635
        %v6652 = vadd.f32 %v6618, %v6636
        %v6653 = vadd.f32 %v6619, %v6637
        %v6654 = vadd.f32 %v6620, %v6638
        %s6655 = sld [smem:[#allocation9 + $0xa]]
        %v6656 = vstv %s6655
        %v6657 = vmul.f32 %v6656, %v5521
        %v6658 = vmul.f32 %v6656, %v5522
        %v6659 = vmul.f32 %v6656, %v5524
        %v6660 = vmul.f32 %v6656, %v5525
        %v6661 = vmul.f32 %v6656, %v5527
        %v6662 = vmul.f32 %v6656, %v5528
        %v6663 = vmul.f32 %v6656, %v5530
        %v6664 = vmul.f32 %v6656, %v5531
        %v6665 = vmul.f32 %v6656, %v5533
        %v6666 = vmul.f32 %v6656, %v5534
        %v6667 = vmul.f32 %v6656, %v5536
        %v6668 = vmul.f32 %v6656, %v5537
        %v6669 = vmul.f32 %v6656, %v5539
        %v6670 = vmul.f32 %v6656, %v5540
        %v6671 = vmul.f32 %v6656, %v5542
        %v6672 = vmul.f32 %v6656, %v5543
        %6689 = vrot.lane.b32.xlu0 %v6657, 127
        %v6690 = vpop.permute.xlu0 %6689
        %6691 = vrot.lane.b32.xlu0 %v6658, 127
        %v6692 = vpop.permute.xlu0 %6691
        %6693 = vrot.lane.b32.xlu0 %v6659, 127
        %v6694 = vpop.permute.xlu0 %6693
        %6695 = vrot.lane.b32.xlu0 %v6660, 127
        %v6696 = vpop.permute.xlu0 %6695
        %6697 = vrot.lane.b32.xlu0 %v6661, 127
        %v6698 = vpop.permute.xlu0 %6697
        %6699 = vrot.lane.b32.xlu0 %v6662, 127
        %v6700 = vpop.permute.xlu0 %6699
        %6701 = vrot.lane.b32.xlu0 %v6663, 127
        %v6702 = vpop.permute.xlu0 %6701
        %6703 = vrot.lane.b32.xlu0 %v6664, 127
        %v6704 = vpop.permute.xlu0 %6703
        %6705 = vrot.lane.b32.xlu0 %v6665, 127
        %v6706 = vpop.permute.xlu0 %6705
        %6707 = vrot.lane.b32.xlu0 %v6666, 127
        %v6708 = vpop.permute.xlu0 %6707
        %6709 = vrot.lane.b32.xlu0 %v6667, 127
        %v6710 = vpop.permute.xlu0 %6709
        %6711 = vrot.lane.b32.xlu0 %v6668, 127
        %v6712 = vpop.permute.xlu0 %6711
        %6713 = vrot.lane.b32.xlu0 %v6669, 127
        %v6714 = vpop.permute.xlu0 %6713
        %6715 = vrot.lane.b32.xlu0 %v6670, 127
        %v6716 = vpop.permute.xlu0 %6715
        %6717 = vrot.lane.b32.xlu0 %v6671, 127
        %v6718 = vpop.permute.xlu0 %6717
        %6719 = vrot.lane.b32.xlu0 %v6672, 127
        %v6720 = vpop.permute.xlu0 %6719
        %v6737 = vadd.f32 %v6639, %v6690
        %v6738 = vadd.f32 %v6640, %v6692
        %v6739 = vadd.f32 %v6641, %v6694
        %v6740 = vadd.f32 %v6642, %v6696
        %v6741 = vadd.f32 %v6643, %v6698
        %v6742 = vadd.f32 %v6644, %v6700
        %v6743 = vadd.f32 %v6645, %v6702
        %v6744 = vadd.f32 %v6646, %v6704
        %v6745 = vadd.f32 %v6647, %v6706
        %v6746 = vadd.f32 %v6648, %v6708
        %v6747 = vadd.f32 %v6649, %v6710
        %v6748 = vadd.f32 %v6650, %v6712
        %v6749 = vadd.f32 %v6651, %v6714
        %v6750 = vadd.f32 %v6652, %v6716
        %v6751 = vadd.f32 %v6653, %v6718
        %v6752 = vadd.f32 %v6654, %v6720
        %s6753 = sld [smem:[#allocation9 + $0xb]]
        %v6754 = vstv %s6753
        %v6755 = vmul.f32 %v6754, %v5521
        %v6756 = vmul.f32 %v6754, %v5522
        %v6757 = vmul.f32 %v6754, %v5524
        %v6758 = vmul.f32 %v6754, %v5525
        %v6759 = vmul.f32 %v6754, %v5527
        %v6760 = vmul.f32 %v6754, %v5528
        %v6761 = vmul.f32 %v6754, %v5530
        %v6762 = vmul.f32 %v6754, %v5531
        %v6763 = vmul.f32 %v6754, %v5533
        %v6764 = vmul.f32 %v6754, %v5534
        %v6765 = vmul.f32 %v6754, %v5536
        %v6766 = vmul.f32 %v6754, %v5537
        %v6767 = vmul.f32 %v6754, %v5539
        %v6768 = vmul.f32 %v6754, %v5540
        %v6769 = vmul.f32 %v6754, %v5542
        %v6770 = vmul.f32 %v6754, %v5543
        %6787 = vrot.lane.b32.xlu0 %v6755, 126
        %v6788 = vpop.permute.xlu0 %6787
        %6789 = vrot.lane.b32.xlu0 %v6756, 126
        %v6790 = vpop.permute.xlu0 %6789
        %6791 = vrot.lane.b32.xlu0 %v6757, 126
        %v6792 = vpop.permute.xlu0 %6791
        %6793 = vrot.lane.b32.xlu0 %v6758, 126
        %v6794 = vpop.permute.xlu0 %6793
        %6795 = vrot.lane.b32.xlu0 %v6759, 126
        %v6796 = vpop.permute.xlu0 %6795
        %6797 = vrot.lane.b32.xlu0 %v6760, 126
        %v6798 = vpop.permute.xlu0 %6797
        %6799 = vrot.lane.b32.xlu0 %v6761, 126
        %v6800 = vpop.permute.xlu0 %6799
        %6801 = vrot.lane.b32.xlu0 %v6762, 126
        %v6802 = vpop.permute.xlu0 %6801
        %6803 = vrot.lane.b32.xlu0 %v6763, 126
        %v6804 = vpop.permute.xlu0 %6803
        %6805 = vrot.lane.b32.xlu0 %v6764, 126
        %v6806 = vpop.permute.xlu0 %6805
        %6807 = vrot.lane.b32.xlu0 %v6765, 126
        %v6808 = vpop.permute.xlu0 %6807
        %6809 = vrot.lane.b32.xlu0 %v6766, 126
        %v6810 = vpop.permute.xlu0 %6809
        %6811 = vrot.lane.b32.xlu0 %v6767, 126
        %v6812 = vpop.permute.xlu0 %6811
        %6813 = vrot.lane.b32.xlu0 %v6768, 126
        %v6814 = vpop.permute.xlu0 %6813
        %6815 = vrot.lane.b32.xlu0 %v6769, 126
        %v6816 = vpop.permute.xlu0 %6815
        %6817 = vrot.lane.b32.xlu0 %v6770, 126
        %v6818 = vpop.permute.xlu0 %6817
        %v6835 = vadd.f32 %v6737, %v6788
        %v6836 = vadd.f32 %v6738, %v6790
        %v6837 = vadd.f32 %v6739, %v6792
        %v6838 = vadd.f32 %v6740, %v6794
        %v6839 = vadd.f32 %v6741, %v6796
        %v6840 = vadd.f32 %v6742, %v6798
        %v6841 = vadd.f32 %v6743, %v6800
        %v6842 = vadd.f32 %v6744, %v6802
        %v6843 = vadd.f32 %v6745, %v6804
        %v6844 = vadd.f32 %v6746, %v6806
        %v6845 = vadd.f32 %v6747, %v6808
        %v6846 = vadd.f32 %v6748, %v6810
        %v6847 = vadd.f32 %v6749, %v6812
        %v6848 = vadd.f32 %v6750, %v6814
        %v6849 = vadd.f32 %v6751, %v6816
        %v6850 = vadd.f32 %v6752, %v6818
        %s6851 = sld [smem:[#allocation9 + $0xc]]
        %v6852 = vstv %s6851
        %v6853 = vmul.f32 %v6852, %v5521
        %v6854 = vmul.f32 %v6852, %v5522
        %v6855 = vmul.f32 %v6852, %v5523
        %v6856 = vmul.f32 %v6852, %v5524
        %v6857 = vmul.f32 %v6852, %v5525
        %v6858 = vmul.f32 %v6852, %v5526
        %v6859 = vmul.f32 %v6852, %v5527
        %v6860 = vmul.f32 %v6852, %v5528
        %v6861 = vmul.f32 %v6852, %v5529
        %v6862 = vmul.f32 %v6852, %v5530
        %v6863 = vmul.f32 %v6852, %v5531
        %v6864 = vmul.f32 %v6852, %v5532
        %v6865 = vmul.f32 %v6852, %v5533
        %v6866 = vmul.f32 %v6852, %v5534
        %v6867 = vmul.f32 %v6852, %v5535
        %v6868 = vmul.f32 %v6852, %v5536
        %v6869 = vmul.f32 %v6852, %v5537
        %v6870 = vmul.f32 %v6852, %v5538
        %v6871 = vmul.f32 %v6852, %v5539
        %v6872 = vmul.f32 %v6852, %v5540
        %v6873 = vmul.f32 %v6852, %v5541
        %v6874 = vmul.f32 %v6852, %v5542
        %v6875 = vmul.f32 %v6852, %v5543
        %v6876 = vmul.f32 %v6852, %v5544
        %v6901 = vrot.slane %v6853, 1
        %v6902 = vrot.slane %v6854, 1
        %v6903 = vsel %vm5809, %v6901, %v6902
        %v6904 = vrot.slane %v6855, 1
        %v6905 = vsel %vm5809, %v6902, %v6904
        %v6906 = vrot.slane %v6856, 1
        %v6907 = vrot.slane %v6857, 1
        %v6908 = vsel %vm5809, %v6906, %v6907
        %v6909 = vrot.slane %v6858, 1
        %v6910 = vsel %vm5809, %v6907, %v6909
        %v6911 = vrot.slane %v6859, 1
        %v6912 = vrot.slane %v6860, 1
        %v6913 = vsel %vm5809, %v6911, %v6912
        %v6914 = vrot.slane %v6861, 1
        %v6915 = vsel %vm5809, %v6912, %v6914
        %v6916 = vrot.slane %v6862, 1
        %v6917 = vrot.slane %v6863, 1
        %v6918 = vsel %vm5809, %v6916, %v6917
        %v6919 = vrot.slane %v6864, 1
        %v6920 = vsel %vm5809, %v6917, %v6919
        %v6921 = vrot.slane %v6865, 1
        %v6922 = vrot.slane %v6866, 1
        %v6923 = vsel %vm5809, %v6921, %v6922
        %v6924 = vrot.slane %v6867, 1
        %v6925 = vsel %vm5809, %v6922, %v6924
        %v6926 = vrot.slane %v6868, 1
        %v6927 = vrot.slane %v6869, 1
        %v6928 = vsel %vm5809, %v6926, %v6927
        %v6929 = vrot.slane %v6870, 1
        %v6930 = vsel %vm5809, %v6927, %v6929
        %v6931 = vrot.slane %v6871, 1
        %v6932 = vrot.slane %v6872, 1
        %v6933 = vsel %vm5809, %v6931, %v6932
        %v6934 = vrot.slane %v6873, 1
        %v6935 = vsel %vm5809, %v6932, %v6934
        %v6936 = vrot.slane %v6874, 1
        %v6937 = vrot.slane %v6875, 1
        %v6938 = vsel %vm5809, %v6936, %v6937
        %v6939 = vrot.slane %v6876, 1
        %v6940 = vsel %vm5809, %v6937, %v6939
        %v6957 = vadd.f32 %v6835, %v6903
        %v6958 = vadd.f32 %v6836, %v6905
        %v6959 = vadd.f32 %v6837, %v6908
        %v6960 = vadd.f32 %v6838, %v6910
        %v6961 = vadd.f32 %v6839, %v6913
        %v6962 = vadd.f32 %v6840, %v6915
        %v6963 = vadd.f32 %v6841, %v6918
        %v6964 = vadd.f32 %v6842, %v6920
        %v6965 = vadd.f32 %v6843, %v6923
        %v6966 = vadd.f32 %v6844, %v6925
        %v6967 = vadd.f32 %v6845, %v6928
        %v6968 = vadd.f32 %v6846, %v6930
        %v6969 = vadd.f32 %v6847, %v6933
        %v6970 = vadd.f32 %v6848, %v6935
        %v6971 = vadd.f32 %v6849, %v6938
        %v6972 = vadd.f32 %v6850, %v6940
        %s6973 = sld [smem:[#allocation9 + $0xd]]
        %v6974 = vstv %s6973
        %v6975 = vmul.f32 %v6974, %v5521
        %v6976 = vmul.f32 %v6974, %v5522
        %v6977 = vmul.f32 %v6974, %v5523
        %v6978 = vmul.f32 %v6974, %v5524
        %v6979 = vmul.f32 %v6974, %v5525
        %v6980 = vmul.f32 %v6974, %v5526
        %v6981 = vmul.f32 %v6974, %v5527
        %v6982 = vmul.f32 %v6974, %v5528
        %v6983 = vmul.f32 %v6974, %v5529
        %v6984 = vmul.f32 %v6974, %v5530
        %v6985 = vmul.f32 %v6974, %v5531
        %v6986 = vmul.f32 %v6974, %v5532
        %v6987 = vmul.f32 %v6974, %v5533
        %v6988 = vmul.f32 %v6974, %v5534
        %v6989 = vmul.f32 %v6974, %v5535
        %v6990 = vmul.f32 %v6974, %v5536
        %v6991 = vmul.f32 %v6974, %v5537
        %v6992 = vmul.f32 %v6974, %v5538
        %v6993 = vmul.f32 %v6974, %v5539
        %v6994 = vmul.f32 %v6974, %v5540
        %v6995 = vmul.f32 %v6974, %v5541
        %v6996 = vmul.f32 %v6974, %v5542
        %v6997 = vmul.f32 %v6974, %v5543
        %v6998 = vmul.f32 %v6974, %v5544
        %v7023 = vrot.slane %v6975, 1
        %v7024 = vrot.slane %v6976, 1
        %v7025 = vsel %vm5809, %v7023, %v7024
        %v7026 = vrot.slane %v6977, 1
        %v7027 = vsel %vm5809, %v7024, %v7026
        %v7028 = vrot.slane %v6978, 1
        %v7029 = vrot.slane %v6979, 1
        %v7030 = vsel %vm5809, %v7028, %v7029
        %v7031 = vrot.slane %v6980, 1
        %v7032 = vsel %vm5809, %v7029, %v7031
        %v7033 = vrot.slane %v6981, 1
        %v7034 = vrot.slane %v6982, 1
        %v7035 = vsel %vm5809, %v7033, %v7034
        %v7036 = vrot.slane %v6983, 1
        %v7037 = vsel %vm5809, %v7034, %v7036
        %v7038 = vrot.slane %v6984, 1
        %v7039 = vrot.slane %v6985, 1
        %v7040 = vsel %vm5809, %v7038, %v7039
        %v7041 = vrot.slane %v6986, 1
        %v7042 = vsel %vm5809, %v7039, %v7041
        %v7043 = vrot.slane %v6987, 1
        %v7044 = vrot.slane %v6988, 1
        %v7045 = vsel %vm5809, %v7043, %v7044
        %v7046 = vrot.slane %v6989, 1
        %v7047 = vsel %vm5809, %v7044, %v7046
        %v7048 = vrot.slane %v6990, 1
        %v7049 = vrot.slane %v6991, 1
        %v7050 = vsel %vm5809, %v7048, %v7049
        %v7051 = vrot.slane %v6992, 1
        %v7052 = vsel %vm5809, %v7049, %v7051
        %v7053 = vrot.slane %v6993, 1
        %v7054 = vrot.slane %v6994, 1
        %v7055 = vsel %vm5809, %v7053, %v7054
        %v7056 = vrot.slane %v6995, 1
        %v7057 = vsel %vm5809, %v7054, %v7056
        %v7058 = vrot.slane %v6996, 1
        %v7059 = vrot.slane %v6997, 1
        %v7060 = vsel %vm5809, %v7058, %v7059
        %v7061 = vrot.slane %v6998, 1
        %v7062 = vsel %vm5809, %v7059, %v7061
        %7063 = vrot.lane.b32.xlu0 %v7025, 127
        %v7064 = vpop.permute.xlu0 %7063
        %7065 = vrot.lane.b32.xlu0 %v7027, 127
        %v7066 = vpop.permute.xlu0 %7065
        %7067 = vrot.lane.b32.xlu0 %v7030, 127
        %v7068 = vpop.permute.xlu0 %7067
        %7069 = vrot.lane.b32.xlu0 %v7032, 127
        %v7070 = vpop.permute.xlu0 %7069
        %7071 = vrot.lane.b32.xlu0 %v7035, 127
        %v7072 = vpop.permute.xlu0 %7071
        %7073 = vrot.lane.b32.xlu0 %v7037, 127
        %v7074 = vpop.permute.xlu0 %7073
        %7075 = vrot.lane.b32.xlu0 %v7040, 127
        %v7076 = vpop.permute.xlu0 %7075
        %7077 = vrot.lane.b32.xlu0 %v7042, 127
        %v7078 = vpop.permute.xlu0 %7077
        %7079 = vrot.lane.b32.xlu0 %v7045, 127
        %v7080 = vpop.permute.xlu0 %7079
        %7081 = vrot.lane.b32.xlu0 %v7047, 127
        %v7082 = vpop.permute.xlu0 %7081
        %7083 = vrot.lane.b32.xlu0 %v7050, 127
        %v7084 = vpop.permute.xlu0 %7083
        %7085 = vrot.lane.b32.xlu0 %v7052, 127
        %v7086 = vpop.permute.xlu0 %7085
        %7087 = vrot.lane.b32.xlu0 %v7055, 127
        %v7088 = vpop.permute.xlu0 %7087
        %7089 = vrot.lane.b32.xlu0 %v7057, 127
        %v7090 = vpop.permute.xlu0 %7089
        %7091 = vrot.lane.b32.xlu0 %v7060, 127
        %v7092 = vpop.permute.xlu0 %7091
        %7093 = vrot.lane.b32.xlu0 %v7062, 127
        %v7094 = vpop.permute.xlu0 %7093
        %v7111 = vadd.f32 %v6957, %v7064
        %v7112 = vadd.f32 %v6958, %v7066
        %v7113 = vadd.f32 %v6959, %v7068
        %v7114 = vadd.f32 %v6960, %v7070
        %v7115 = vadd.f32 %v6961, %v7072
        %v7116 = vadd.f32 %v6962, %v7074
        %v7117 = vadd.f32 %v6963, %v7076
        %v7118 = vadd.f32 %v6964, %v7078
        %v7119 = vadd.f32 %v6965, %v7080
        %v7120 = vadd.f32 %v6966, %v7082
        %v7121 = vadd.f32 %v6967, %v7084
        %v7122 = vadd.f32 %v6968, %v7086
        %v7123 = vadd.f32 %v6969, %v7088
        %v7124 = vadd.f32 %v6970, %v7090
        %v7125 = vadd.f32 %v6971, %v7092
        %v7126 = vadd.f32 %v6972, %v7094
        %s7127 = sld [smem:[#allocation9 + $0xe]]
        %v7128 = vstv %s7127
        %v7129 = vmul.f32 %v7128, %v5521
        %v7130 = vmul.f32 %v7128, %v5522
        %v7131 = vmul.f32 %v7128, %v5523
        %v7132 = vmul.f32 %v7128, %v5524
        %v7133 = vmul.f32 %v7128, %v5525
        %v7134 = vmul.f32 %v7128, %v5526
        %v7135 = vmul.f32 %v7128, %v5527
        %v7136 = vmul.f32 %v7128, %v5528
        %v7137 = vmul.f32 %v7128, %v5529
        %v7138 = vmul.f32 %v7128, %v5530
        %v7139 = vmul.f32 %v7128, %v5531
        %v7140 = vmul.f32 %v7128, %v5532
        %v7141 = vmul.f32 %v7128, %v5533
        %v7142 = vmul.f32 %v7128, %v5534
        %v7143 = vmul.f32 %v7128, %v5535
        %v7144 = vmul.f32 %v7128, %v5536
        %v7145 = vmul.f32 %v7128, %v5537
        %v7146 = vmul.f32 %v7128, %v5538
        %v7147 = vmul.f32 %v7128, %v5539
        %v7148 = vmul.f32 %v7128, %v5540
        %v7149 = vmul.f32 %v7128, %v5541
        %v7150 = vmul.f32 %v7128, %v5542
        %v7151 = vmul.f32 %v7128, %v5543
        %v7152 = vmul.f32 %v7128, %v5544
        %v7177 = vrot.slane %v7129, 1
        %v7178 = vrot.slane %v7130, 1
        %v7179 = vsel %vm5809, %v7177, %v7178
        %v7180 = vrot.slane %v7131, 1
        %v7181 = vsel %vm5809, %v7178, %v7180
        %v7182 = vrot.slane %v7132, 1
        %v7183 = vrot.slane %v7133, 1
        %v7184 = vsel %vm5809, %v7182, %v7183
        %v7185 = vrot.slane %v7134, 1
        %v7186 = vsel %vm5809, %v7183, %v7185
        %v7187 = vrot.slane %v7135, 1
        %v7188 = vrot.slane %v7136, 1
        %v7189 = vsel %vm5809, %v7187, %v7188
        %v7190 = vrot.slane %v7137, 1
        %v7191 = vsel %vm5809, %v7188, %v7190
        %v7192 = vrot.slane %v7138, 1
        %v7193 = vrot.slane %v7139, 1
        %v7194 = vsel %vm5809, %v7192, %v7193
        %v7195 = vrot.slane %v7140, 1
        %v7196 = vsel %vm5809, %v7193, %v7195
        %v7197 = vrot.slane %v7141, 1
        %v7198 = vrot.slane %v7142, 1
        %v7199 = vsel %vm5809, %v7197, %v7198
        %v7200 = vrot.slane %v7143, 1
        %v7201 = vsel %vm5809, %v7198, %v7200
        %v7202 = vrot.slane %v7144, 1
        %v7203 = vrot.slane %v7145, 1
        %v7204 = vsel %vm5809, %v7202, %v7203
        %v7205 = vrot.slane %v7146, 1
        %v7206 = vsel %vm5809, %v7203, %v7205
        %v7207 = vrot.slane %v7147, 1
        %v7208 = vrot.slane %v7148, 1
        %v7209 = vsel %vm5809, %v7207, %v7208
        %v7210 = vrot.slane %v7149, 1
        %v7211 = vsel %vm5809, %v7208, %v7210
        %v7212 = vrot.slane %v7150, 1
        %v7213 = vrot.slane %v7151, 1
        %v7214 = vsel %vm5809, %v7212, %v7213
        %v7215 = vrot.slane %v7152, 1
        %v7216 = vsel %vm5809, %v7213, %v7215
        %7217 = vrot.lane.b32.xlu0 %v7179, 126
        %v7218 = vpop.permute.xlu0 %7217
        %7219 = vrot.lane.b32.xlu0 %v7181, 126
        %v7220 = vpop.permute.xlu0 %7219
        %7221 = vrot.lane.b32.xlu0 %v7184, 126
        %v7222 = vpop.permute.xlu0 %7221
        %7223 = vrot.lane.b32.xlu0 %v7186, 126
        %v7224 = vpop.permute.xlu0 %7223
        %7225 = vrot.lane.b32.xlu0 %v7189, 126
        %v7226 = vpop.permute.xlu0 %7225
        %7227 = vrot.lane.b32.xlu0 %v7191, 126
        %v7228 = vpop.permute.xlu0 %7227
        %7229 = vrot.lane.b32.xlu0 %v7194, 126
        %v7230 = vpop.permute.xlu0 %7229
        %7231 = vrot.lane.b32.xlu0 %v7196, 126
        %v7232 = vpop.permute.xlu0 %7231
        %7233 = vrot.lane.b32.xlu0 %v7199, 126
        %v7234 = vpop.permute.xlu0 %7233
        %7235 = vrot.lane.b32.xlu0 %v7201, 126
        %v7236 = vpop.permute.xlu0 %7235
        %7237 = vrot.lane.b32.xlu0 %v7204, 126
        %v7238 = vpop.permute.xlu0 %7237
        %7239 = vrot.lane.b32.xlu0 %v7206, 126
        %v7240 = vpop.permute.xlu0 %7239
        %7241 = vrot.lane.b32.xlu0 %v7209, 126
        %v7242 = vpop.permute.xlu0 %7241
        %7243 = vrot.lane.b32.xlu0 %v7211, 126
        %v7244 = vpop.permute.xlu0 %7243
        %7245 = vrot.lane.b32.xlu0 %v7214, 126
        %v7246 = vpop.permute.xlu0 %7245
        %7247 = vrot.lane.b32.xlu0 %v7216, 126
        %v7248 = vpop.permute.xlu0 %7247
        %v7265 = vadd.f32 %v7111, %v7218
        %v7266 = vadd.f32 %v7112, %v7220
        %v7267 = vadd.f32 %v7113, %v7222
        %v7268 = vadd.f32 %v7114, %v7224
        %v7269 = vadd.f32 %v7115, %v7226
        %v7270 = vadd.f32 %v7116, %v7228
        %v7271 = vadd.f32 %v7117, %v7230
        %v7272 = vadd.f32 %v7118, %v7232
        %v7273 = vadd.f32 %v7119, %v7234
        %v7274 = vadd.f32 %v7120, %v7236
        %v7275 = vadd.f32 %v7121, %v7238
        %v7276 = vadd.f32 %v7122, %v7240
        %v7277 = vadd.f32 %v7123, %v7242
        %v7278 = vadd.f32 %v7124, %v7244
        %v7279 = vadd.f32 %v7125, %v7246
        %v7280 = vadd.f32 %v7126, %v7248
        %s7281 = sld [smem:[#allocation9 + $0xf]]
        %v7282 = vstv %s7281
        %v7283 = vmul.f32 %v7282, %v5521
        %v7284 = vmul.f32 %v7282, %v5522
        %v7285 = vmul.f32 %v7282, %v5523
        %v7286 = vmul.f32 %v7282, %v5524
        %v7287 = vmul.f32 %v7282, %v5525
        %v7288 = vmul.f32 %v7282, %v5526
        %v7289 = vmul.f32 %v7282, %v5527
        %v7290 = vmul.f32 %v7282, %v5528
        %v7291 = vmul.f32 %v7282, %v5529
        %v7292 = vmul.f32 %v7282, %v5530
        %v7293 = vmul.f32 %v7282, %v5531
        %v7294 = vmul.f32 %v7282, %v5532
        %v7295 = vmul.f32 %v7282, %v5533
        %v7296 = vmul.f32 %v7282, %v5534
        %v7297 = vmul.f32 %v7282, %v5535
        %v7298 = vmul.f32 %v7282, %v5536
        %v7299 = vmul.f32 %v7282, %v5537
        %v7300 = vmul.f32 %v7282, %v5538
        %v7301 = vmul.f32 %v7282, %v5539
        %v7302 = vmul.f32 %v7282, %v5540
        %v7303 = vmul.f32 %v7282, %v5541
        %v7304 = vmul.f32 %v7282, %v5542
        %v7305 = vmul.f32 %v7282, %v5543
        %v7306 = vmul.f32 %v7282, %v5544
        %v7331 = vrot.slane %v7283, 2
        %v7332 = vrot.slane %v7284, 2
        %v7333 = vsel %vm6240, %v7331, %v7332
        %v7334 = vrot.slane %v7285, 2
        %v7335 = vsel %vm6240, %v7332, %v7334
        %v7336 = vrot.slane %v7286, 2
        %v7337 = vrot.slane %v7287, 2
        %v7338 = vsel %vm6240, %v7336, %v7337
        %v7339 = vrot.slane %v7288, 2
        %v7340 = vsel %vm6240, %v7337, %v7339
        %v7341 = vrot.slane %v7289, 2
        %v7342 = vrot.slane %v7290, 2
        %v7343 = vsel %vm6240, %v7341, %v7342
        %v7344 = vrot.slane %v7291, 2
        %v7345 = vsel %vm6240, %v7342, %v7344
        %v7346 = vrot.slane %v7292, 2
        %v7347 = vrot.slane %v7293, 2
        %v7348 = vsel %vm6240, %v7346, %v7347
        %v7349 = vrot.slane %v7294, 2
        %v7350 = vsel %vm6240, %v7347, %v7349
        %v7351 = vrot.slane %v7295, 2
        %v7352 = vrot.slane %v7296, 2
        %v7353 = vsel %vm6240, %v7351, %v7352
        %v7354 = vrot.slane %v7297, 2
        %v7355 = vsel %vm6240, %v7352, %v7354
        %v7356 = vrot.slane %v7298, 2
        %v7357 = vrot.slane %v7299, 2
        %v7358 = vsel %vm6240, %v7356, %v7357
        %v7359 = vrot.slane %v7300, 2
        %v7360 = vsel %vm6240, %v7357, %v7359
        %v7361 = vrot.slane %v7301, 2
        %v7362 = vrot.slane %v7302, 2
        %v7363 = vsel %vm6240, %v7361, %v7362
        %v7364 = vrot.slane %v7303, 2
        %v7365 = vsel %vm6240, %v7362, %v7364
        %v7366 = vrot.slane %v7304, 2
        %v7367 = vrot.slane %v7305, 2
        %v7368 = vsel %vm6240, %v7366, %v7367
        %v7369 = vrot.slane %v7306, 2
        %v7370 = vsel %vm6240, %v7367, %v7369
        %v7387 = vadd.f32 %v7265, %v7333
        %v7388 = vadd.f32 %v7266, %v7335
        %v7389 = vadd.f32 %v7267, %v7338
        %v7390 = vadd.f32 %v7268, %v7340
        %v7391 = vadd.f32 %v7269, %v7343
        %v7392 = vadd.f32 %v7270, %v7345
        %v7393 = vadd.f32 %v7271, %v7348
        %v7394 = vadd.f32 %v7272, %v7350
        %v7395 = vadd.f32 %v7273, %v7353
        %v7396 = vadd.f32 %v7274, %v7355
        %v7397 = vadd.f32 %v7275, %v7358
        %v7398 = vadd.f32 %v7276, %v7360
        %v7399 = vadd.f32 %v7277, %v7363
        %v7400 = vadd.f32 %v7278, %v7365
        %v7401 = vadd.f32 %v7279, %v7368
        %v7402 = vadd.f32 %v7280, %v7370
        %s7403 = sld [smem:[#allocation9 + $0x10]]
        %v7404 = vstv %s7403
        %v7405 = vmul.f32 %v7404, %v5521
        %v7406 = vmul.f32 %v7404, %v5522
        %v7407 = vmul.f32 %v7404, %v5523
        %v7408 = vmul.f32 %v7404, %v5524
        %v7409 = vmul.f32 %v7404, %v5525
        %v7410 = vmul.f32 %v7404, %v5526
        %v7411 = vmul.f32 %v7404, %v5527
        %v7412 = vmul.f32 %v7404, %v5528
        %v7413 = vmul.f32 %v7404, %v5529
        %v7414 = vmul.f32 %v7404, %v5530
        %v7415 = vmul.f32 %v7404, %v5531
        %v7416 = vmul.f32 %v7404, %v5532
        %v7417 = vmul.f32 %v7404, %v5533
        %v7418 = vmul.f32 %v7404, %v5534
        %v7419 = vmul.f32 %v7404, %v5535
        %v7420 = vmul.f32 %v7404, %v5536
        %v7421 = vmul.f32 %v7404, %v5537
        %v7422 = vmul.f32 %v7404, %v5538
        %v7423 = vmul.f32 %v7404, %v5539
        %v7424 = vmul.f32 %v7404, %v5540
        %v7425 = vmul.f32 %v7404, %v5541
        %v7426 = vmul.f32 %v7404, %v5542
        %v7427 = vmul.f32 %v7404, %v5543
        %v7428 = vmul.f32 %v7404, %v5544
        %v7453 = vrot.slane %v7405, 2
        %v7454 = vrot.slane %v7406, 2
        %v7455 = vsel %vm6240, %v7453, %v7454
        %v7456 = vrot.slane %v7407, 2
        %v7457 = vsel %vm6240, %v7454, %v7456
        %v7458 = vrot.slane %v7408, 2
        %v7459 = vrot.slane %v7409, 2
        %v7460 = vsel %vm6240, %v7458, %v7459
        %v7461 = vrot.slane %v7410, 2
        %v7462 = vsel %vm6240, %v7459, %v7461
        %v7463 = vrot.slane %v7411, 2
        %v7464 = vrot.slane %v7412, 2
        %v7465 = vsel %vm6240, %v7463, %v7464
        %v7466 = vrot.slane %v7413, 2
        %v7467 = vsel %vm6240, %v7464, %v7466
        %v7468 = vrot.slane %v7414, 2
        %v7469 = vrot.slane %v7415, 2
        %v7470 = vsel %vm6240, %v7468, %v7469
        %v7471 = vrot.slane %v7416, 2
        %v7472 = vsel %vm6240, %v7469, %v7471
        %v7473 = vrot.slane %v7417, 2
        %v7474 = vrot.slane %v7418, 2
        %v7475 = vsel %vm6240, %v7473, %v7474
        %v7476 = vrot.slane %v7419, 2
        %v7477 = vsel %vm6240, %v7474, %v7476
        %v7478 = vrot.slane %v7420, 2
        %v7479 = vrot.slane %v7421, 2
        %v7480 = vsel %vm6240, %v7478, %v7479
        %v7481 = vrot.slane %v7422, 2
        %v7482 = vsel %vm6240, %v7479, %v7481
        %v7483 = vrot.slane %v7423, 2
        %v7484 = vrot.slane %v7424, 2
        %v7485 = vsel %vm6240, %v7483, %v7484
        %v7486 = vrot.slane %v7425, 2
        %v7487 = vsel %vm6240, %v7484, %v7486
        %v7488 = vrot.slane %v7426, 2
        %v7489 = vrot.slane %v7427, 2
        %v7490 = vsel %vm6240, %v7488, %v7489
        %v7491 = vrot.slane %v7428, 2
        %v7492 = vsel %vm6240, %v7489, %v7491
        %7493 = vrot.lane.b32.xlu0 %v7455, 127
        %v7494 = vpop.permute.xlu0 %7493
        %7495 = vrot.lane.b32.xlu0 %v7457, 127
        %v7496 = vpop.permute.xlu0 %7495
        %7497 = vrot.lane.b32.xlu0 %v7460, 127
        %v7498 = vpop.permute.xlu0 %7497
        %7499 = vrot.lane.b32.xlu0 %v7462, 127
        %v7500 = vpop.permute.xlu0 %7499
        %7501 = vrot.lane.b32.xlu0 %v7465, 127
        %v7502 = vpop.permute.xlu0 %7501
        %7503 = vrot.lane.b32.xlu0 %v7467, 127
        %v7504 = vpop.permute.xlu0 %7503
        %7505 = vrot.lane.b32.xlu0 %v7470, 127
        %v7506 = vpop.permute.xlu0 %7505
        %7507 = vrot.lane.b32.xlu0 %v7472, 127
        %v7508 = vpop.permute.xlu0 %7507
        %7509 = vrot.lane.b32.xlu0 %v7475, 127
        %v7510 = vpop.permute.xlu0 %7509
        %7511 = vrot.lane.b32.xlu0 %v7477, 127
        %v7512 = vpop.permute.xlu0 %7511
        %7513 = vrot.lane.b32.xlu0 %v7480, 127
        %v7514 = vpop.permute.xlu0 %7513
        %7515 = vrot.lane.b32.xlu0 %v7482, 127
        %v7516 = vpop.permute.xlu0 %7515
        %7517 = vrot.lane.b32.xlu0 %v7485, 127
        %v7518 = vpop.permute.xlu0 %7517
        %7519 = vrot.lane.b32.xlu0 %v7487, 127
        %v7520 = vpop.permute.xlu0 %7519
        %7521 = vrot.lane.b32.xlu0 %v7490, 127
        %v7522 = vpop.permute.xlu0 %7521
        %7523 = vrot.lane.b32.xlu0 %v7492, 127
        %v7524 = vpop.permute.xlu0 %7523
        %v7541 = vadd.f32 %v7387, %v7494
        %v7542 = vadd.f32 %v7388, %v7496
        %v7543 = vadd.f32 %v7389, %v7498
        %v7544 = vadd.f32 %v7390, %v7500
        %v7545 = vadd.f32 %v7391, %v7502
        %v7546 = vadd.f32 %v7392, %v7504
        %v7547 = vadd.f32 %v7393, %v7506
        %v7548 = vadd.f32 %v7394, %v7508
        %v7549 = vadd.f32 %v7395, %v7510
        %v7550 = vadd.f32 %v7396, %v7512
        %v7551 = vadd.f32 %v7397, %v7514
        %v7552 = vadd.f32 %v7398, %v7516
        %v7553 = vadd.f32 %v7399, %v7518
        %v7554 = vadd.f32 %v7400, %v7520
        %v7555 = vadd.f32 %v7401, %v7522
        %v7556 = vadd.f32 %v7402, %v7524
        %s7557 = sld [smem:[#allocation9 + $0x11]]
        %v7558 = vstv %s7557
        %v7559 = vmul.f32 %v7558, %v5521
        %v7560 = vmul.f32 %v7558, %v5522
        %v7561 = vmul.f32 %v7558, %v5523
        %v7562 = vmul.f32 %v7558, %v5524
        %v7563 = vmul.f32 %v7558, %v5525
        %v7564 = vmul.f32 %v7558, %v5526
        %v7565 = vmul.f32 %v7558, %v5527
        %v7566 = vmul.f32 %v7558, %v5528
        %v7567 = vmul.f32 %v7558, %v5529
        %v7568 = vmul.f32 %v7558, %v5530
        %v7569 = vmul.f32 %v7558, %v5531
        %v7570 = vmul.f32 %v7558, %v5532
        %v7571 = vmul.f32 %v7558, %v5533
        %v7572 = vmul.f32 %v7558, %v5534
        %v7573 = vmul.f32 %v7558, %v5535
        %v7574 = vmul.f32 %v7558, %v5536
        %v7575 = vmul.f32 %v7558, %v5537
        %v7576 = vmul.f32 %v7558, %v5538
        %v7577 = vmul.f32 %v7558, %v5539
        %v7578 = vmul.f32 %v7558, %v5540
        %v7579 = vmul.f32 %v7558, %v5541
        %v7580 = vmul.f32 %v7558, %v5542
        %v7581 = vmul.f32 %v7558, %v5543
        %v7582 = vmul.f32 %v7558, %v5544
        %v7607 = vrot.slane %v7559, 2
        %v7608 = vrot.slane %v7560, 2
        %v7609 = vsel %vm6240, %v7607, %v7608
        %v7610 = vrot.slane %v7561, 2
        %v7611 = vsel %vm6240, %v7608, %v7610
        %v7612 = vrot.slane %v7562, 2
        %v7613 = vrot.slane %v7563, 2
        %v7614 = vsel %vm6240, %v7612, %v7613
        %v7615 = vrot.slane %v7564, 2
        %v7616 = vsel %vm6240, %v7613, %v7615
        %v7617 = vrot.slane %v7565, 2
        %v7618 = vrot.slane %v7566, 2
        %v7619 = vsel %vm6240, %v7617, %v7618
        %v7620 = vrot.slane %v7567, 2
        %v7621 = vsel %vm6240, %v7618, %v7620
        %v7622 = vrot.slane %v7568, 2
        %v7623 = vrot.slane %v7569, 2
        %v7624 = vsel %vm6240, %v7622, %v7623
        %v7625 = vrot.slane %v7570, 2
        %v7626 = vsel %vm6240, %v7623, %v7625
        %v7627 = vrot.slane %v7571, 2
        %v7628 = vrot.slane %v7572, 2
        %v7629 = vsel %vm6240, %v7627, %v7628
        %v7630 = vrot.slane %v7573, 2
        %v7631 = vsel %vm6240, %v7628, %v7630
        %v7632 = vrot.slane %v7574, 2
        %v7633 = vrot.slane %v7575, 2
        %v7634 = vsel %vm6240, %v7632, %v7633
        %v7635 = vrot.slane %v7576, 2
        %v7636 = vsel %vm6240, %v7633, %v7635
        %v7637 = vrot.slane %v7577, 2
        %v7638 = vrot.slane %v7578, 2
        %v7639 = vsel %vm6240, %v7637, %v7638
        %v7640 = vrot.slane %v7579, 2
        %v7641 = vsel %vm6240, %v7638, %v7640
        %v7642 = vrot.slane %v7580, 2
        %v7643 = vrot.slane %v7581, 2
        %v7644 = vsel %vm6240, %v7642, %v7643
        %v7645 = vrot.slane %v7582, 2
        %v7646 = vsel %vm6240, %v7643, %v7645
        %7647 = vrot.lane.b32.xlu0 %v7609, 126
        %v7648 = vpop.permute.xlu0 %7647
        %7649 = vrot.lane.b32.xlu0 %v7611, 126
        %v7650 = vpop.permute.xlu0 %7649
        %7651 = vrot.lane.b32.xlu0 %v7614, 126
        %v7652 = vpop.permute.xlu0 %7651
        %7653 = vrot.lane.b32.xlu0 %v7616, 126
        %v7654 = vpop.permute.xlu0 %7653
        %7655 = vrot.lane.b32.xlu0 %v7619, 126
        %v7656 = vpop.permute.xlu0 %7655
        %7657 = vrot.lane.b32.xlu0 %v7621, 126
        %v7658 = vpop.permute.xlu0 %7657
        %7659 = vrot.lane.b32.xlu0 %v7624, 126
        %v7660 = vpop.permute.xlu0 %7659
        %7661 = vrot.lane.b32.xlu0 %v7626, 126
        %v7662 = vpop.permute.xlu0 %7661
        %7663 = vrot.lane.b32.xlu0 %v7629, 126
        %v7664 = vpop.permute.xlu0 %7663
        %7665 = vrot.lane.b32.xlu0 %v7631, 126
        %v7666 = vpop.permute.xlu0 %7665
        %7667 = vrot.lane.b32.xlu0 %v7634, 126
        %v7668 = vpop.permute.xlu0 %7667
        %7669 = vrot.lane.b32.xlu0 %v7636, 126
        %v7670 = vpop.permute.xlu0 %7669
        %7671 = vrot.lane.b32.xlu0 %v7639, 126
        %v7672 = vpop.permute.xlu0 %7671
        %7673 = vrot.lane.b32.xlu0 %v7641, 126
        %v7674 = vpop.permute.xlu0 %7673
        %7675 = vrot.lane.b32.xlu0 %v7644, 126
        %v7676 = vpop.permute.xlu0 %7675
        %7677 = vrot.lane.b32.xlu0 %v7646, 126
        %v7678 = vpop.permute.xlu0 %7677
        %v7695 = vadd.f32 %v7541, %v7648
        %v7696 = vadd.f32 %v7542, %v7650
        %v7697 = vadd.f32 %v7543, %v7652
        %v7698 = vadd.f32 %v7544, %v7654
        %v7699 = vadd.f32 %v7545, %v7656
        %v7700 = vadd.f32 %v7546, %v7658
        %v7701 = vadd.f32 %v7547, %v7660
        %v7702 = vadd.f32 %v7548, %v7662
        %v7703 = vadd.f32 %v7549, %v7664
        %v7704 = vadd.f32 %v7550, %v7666
        %v7705 = vadd.f32 %v7551, %v7668
        %v7706 = vadd.f32 %v7552, %v7670
        %v7707 = vadd.f32 %v7553, %v7672
        %v7708 = vadd.f32 %v7554, %v7674
        %v7709 = vadd.f32 %v7555, %v7676
        %v7710 = vadd.f32 %v7556, %v7678
        %s7711 = sld [smem:[#allocation10]]
        %v7712 = vstv %s7711
        %v7713 = vadd.f32 %v7695, %v7712
        %v7714 = vadd.f32 %v7696, %v7712
        %v7715 = vadd.f32 %v7697, %v7712
        %v7716 = vadd.f32 %v7698, %v7712
        %v7717 = vadd.f32 %v7699, %v7712
        %v7718 = vadd.f32 %v7700, %v7712
        %v7719 = vadd.f32 %v7701, %v7712
        %v7720 = vadd.f32 %v7702, %v7712
        %v7721 = vadd.f32 %v7703, %v7712
        %v7722 = vadd.f32 %v7704, %v7712
        %v7723 = vadd.f32 %v7705, %v7712
        %v7724 = vadd.f32 %v7706, %v7712
        %v7725 = vadd.f32 %v7707, %v7712
        %v7726 = vadd.f32 %v7708, %v7712
        %v7727 = vadd.f32 %v7709, %v7712
        %v7728 = vadd.f32 %v7710, %v7712
        %v7729 = vcombine.low %v7713, %v7717
        %v7730 = vcombine.high %v7713, %v7717
        %v7732 = vunpack.c.l.s4 1983009808
        %v7733 = vunpack.c.0.s8 %v7732
        %v7734 = vlaneseq
        %v7735 = vshrl.u32 %v7734, 7
        %v7736 = vsub.s32 %v7733, %v7735
        %v7737 = vrot.slane %v7729, %v7736
        %v7739 = vunpack.c.l.s4 1983009808
        %v7740 = vunpack.c.0.s8 %v7739
        %v7741 = vlaneseq
        %v7742 = vshrl.u32 %v7741, 7
        %v7743 = vsub.s32 %v7740, %v7742
        %v7744 = vrot.slane %v7730, %v7743
        %v7745 = vcombine.low %v7715, %v7719
        %v7746 = vcombine.high %v7715, %v7719
        %v7748 = vunpack.c.l.s4 1983009808
        %v7749 = vunpack.c.0.s8 %v7748
        %v7750 = vlaneseq
        %v7751 = vshrl.u32 %v7750, 7
        %v7752 = vsub.s32 %v7749, %v7751
        %v7753 = vrot.slane %v7745, %v7752
        %v7755 = vunpack.c.l.s4 1983009808
        %v7756 = vunpack.c.0.s8 %v7755
        %v7757 = vlaneseq
        %v7758 = vshrl.u32 %v7757, 7
        %v7759 = vsub.s32 %v7756, %v7758
        %v7760 = vrot.slane %v7746, %v7759
        %v7761 = vcombine.low %v7721, %v7725
        %v7762 = vcombine.high %v7721, %v7725
        %v7764 = vunpack.c.l.s4 1983009808
        %v7765 = vunpack.c.0.s8 %v7764
        %v7766 = vlaneseq
        %v7767 = vshrl.u32 %v7766, 7
        %v7768 = vsub.s32 %v7765, %v7767
        %v7769 = vrot.slane %v7761, %v7768
        %v7771 = vunpack.c.l.s4 1983009808
        %v7772 = vunpack.c.0.s8 %v7771
        %v7773 = vlaneseq
        %v7774 = vshrl.u32 %v7773, 7
        %v7775 = vsub.s32 %v7772, %v7774
        %v7776 = vrot.slane %v7762, %v7775
        %v7777 = vcombine.low %v7723, %v7727
        %v7778 = vcombine.high %v7723, %v7727
        %v7780 = vunpack.c.l.s4 1983009808
        %v7781 = vunpack.c.0.s8 %v7780
        %v7782 = vlaneseq
        %v7783 = vshrl.u32 %v7782, 7
        %v7784 = vsub.s32 %v7781, %v7783
        %v7785 = vrot.slane %v7777, %v7784
        %v7787 = vunpack.c.l.s4 1983009808
        %v7788 = vunpack.c.0.s8 %v7787
        %v7789 = vlaneseq
        %v7790 = vshrl.u32 %v7789, 7
        %v7791 = vsub.s32 %v7788, %v7790
        %v7792 = vrot.slane %v7778, %v7791
        %v7793 = vcombine.low %v7737, %v7753
        %v7794 = vcombine.high %v7737, %v7753
        %v7796 = vunpack.c.l.s4 1934713408
        %v7797 = vunpack.c.0.s8 %v7796
        %v7798 = vlaneseq
        %v7799 = vshrl.u32 %v7798, 7
        %v7800 = vsub.s32 %v7797, %v7799
        %v7801 = vrot.slane %v7793, %v7800
        %v7803 = vunpack.c.l.s4 1934713408
        %v7804 = vunpack.c.0.s8 %v7803
        %v7805 = vlaneseq
        %v7806 = vshrl.u32 %v7805, 7
        %v7807 = vsub.s32 %v7804, %v7806
        %v7808 = vrot.slane %v7794, %v7807
        %v7809 = vcombine.low %v7744, %v7760
        %v7810 = vcombine.high %v7744, %v7760
        %v7812 = vunpack.c.l.s4 1934713408
        %v7813 = vunpack.c.0.s8 %v7812
        %v7814 = vlaneseq
        %v7815 = vshrl.u32 %v7814, 7
        %v7816 = vsub.s32 %v7813, %v7815
        %v7817 = vrot.slane %v7809, %v7816
        %v7819 = vunpack.c.l.s4 1934713408
        %v7820 = vunpack.c.0.s8 %v7819
        %v7821 = vlaneseq
        %v7822 = vshrl.u32 %v7821, 7
        %v7823 = vsub.s32 %v7820, %v7822
        %v7824 = vrot.slane %v7810, %v7823
        %v7825 = vcombine.low %v7769, %v7785
        %v7826 = vcombine.high %v7769, %v7785
        %v7828 = vunpack.c.l.s4 1934713408
        %v7829 = vunpack.c.0.s8 %v7828
        %v7830 = vlaneseq
        %v7831 = vshrl.u32 %v7830, 7
        %v7832 = vsub.s32 %v7829, %v7831
        %v7833 = vrot.slane %v7825, %v7832
        %v7835 = vunpack.c.l.s4 1934713408
        %v7836 = vunpack.c.0.s8 %v7835
        %v7837 = vlaneseq
        %v7838 = vshrl.u32 %v7837, 7
        %v7839 = vsub.s32 %v7836, %v7838
        %v7840 = vrot.slane %v7826, %v7839
        %v7841 = vcombine.low %v7776, %v7792
        %v7842 = vcombine.high %v7776, %v7792
        %v7844 = vunpack.c.l.s4 1934713408
        %v7845 = vunpack.c.0.s8 %v7844
        %v7846 = vlaneseq
        %v7847 = vshrl.u32 %v7846, 7
        %v7848 = vsub.s32 %v7845, %v7847
        %v7849 = vrot.slane %v7841, %v7848
        %v7851 = vunpack.c.l.s4 1934713408
        %v7852 = vunpack.c.0.s8 %v7851
        %v7853 = vlaneseq
        %v7854 = vshrl.u32 %v7853, 7
        %v7855 = vsub.s32 %v7852, %v7854
        %v7856 = vrot.slane %v7842, %v7855
        %v7857 = vcombine.low %v7801, %v7833
        %v7858 = vcombine.high %v7801, %v7833
        %v7859 = vcombine.low %v7808, %v7840
        %v7860 = vcombine.high %v7808, %v7840
        %v7861 = vcombine.low %v7817, %v7849
        %v7862 = vcombine.high %v7817, %v7849
        %v7863 = vcombine.low %v7824, %v7856
        %v7864 = vcombine.high %v7824, %v7856
        %v7865 = vcombine.low %v7714, %v7718
        %v7866 = vcombine.high %v7714, %v7718
        %v7868 = vunpack.c.l.s4 1983009808
        %v7869 = vunpack.c.0.s8 %v7868
        %v7870 = vlaneseq
        %v7871 = vshrl.u32 %v7870, 7
        %v7872 = vsub.s32 %v7869, %v7871
        %v7873 = vrot.slane %v7865, %v7872
        %v7875 = vunpack.c.l.s4 1983009808
        %v7876 = vunpack.c.0.s8 %v7875
        %v7877 = vlaneseq
        %v7878 = vshrl.u32 %v7877, 7
        %v7879 = vsub.s32 %v7876, %v7878
        %v7880 = vrot.slane %v7866, %v7879
        %v7881 = vcombine.low %v7716, %v7720
        %v7882 = vcombine.high %v7716, %v7720
        %v7884 = vunpack.c.l.s4 1983009808
        %v7885 = vunpack.c.0.s8 %v7884
        %v7886 = vlaneseq
        %v7887 = vshrl.u32 %v7886, 7
        %v7888 = vsub.s32 %v7885, %v7887
        %v7889 = vrot.slane %v7881, %v7888
        %v7891 = vunpack.c.l.s4 1983009808
        %v7892 = vunpack.c.0.s8 %v7891
        %v7893 = vlaneseq
        %v7894 = vshrl.u32 %v7893, 7
        %v7895 = vsub.s32 %v7892, %v7894
        %v7896 = vrot.slane %v7882, %v7895
        %v7897 = vcombine.low %v7722, %v7726
        %v7898 = vcombine.high %v7722, %v7726
        %v7900 = vunpack.c.l.s4 1983009808
        %v7901 = vunpack.c.0.s8 %v7900
        %v7902 = vlaneseq
        %v7903 = vshrl.u32 %v7902, 7
        %v7904 = vsub.s32 %v7901, %v7903
        %v7905 = vrot.slane %v7897, %v7904
        %v7907 = vunpack.c.l.s4 1983009808
        %v7908 = vunpack.c.0.s8 %v7907
        %v7909 = vlaneseq
        %v7910 = vshrl.u32 %v7909, 7
        %v7911 = vsub.s32 %v7908, %v7910
        %v7912 = vrot.slane %v7898, %v7911
        %v7913 = vcombine.low %v7724, %v7728
        %v7914 = vcombine.high %v7724, %v7728
        %v7916 = vunpack.c.l.s4 1983009808
        %v7917 = vunpack.c.0.s8 %v7916
        %v7918 = vlaneseq
        %v7919 = vshrl.u32 %v7918, 7
        %v7920 = vsub.s32 %v7917, %v7919
        %v7921 = vrot.slane %v7913, %v7920
        %v7923 = vunpack.c.l.s4 1983009808
        %v7924 = vunpack.c.0.s8 %v7923
        %v7925 = vlaneseq
        %v7926 = vshrl.u32 %v7925, 7
        %v7927 = vsub.s32 %v7924, %v7926
        %v7928 = vrot.slane %v7914, %v7927
        %v7929 = vcombine.low %v7873, %v7889
        %v7930 = vcombine.high %v7873, %v7889
        %v7932 = vunpack.c.l.s4 1934713408
        %v7933 = vunpack.c.0.s8 %v7932
        %v7934 = vlaneseq
        %v7935 = vshrl.u32 %v7934, 7
        %v7936 = vsub.s32 %v7933, %v7935
        %v7937 = vrot.slane %v7929, %v7936
        %v7939 = vunpack.c.l.s4 1934713408
        %v7940 = vunpack.c.0.s8 %v7939
        %v7941 = vlaneseq
        %v7942 = vshrl.u32 %v7941, 7
        %v7943 = vsub.s32 %v7940, %v7942
        %v7944 = vrot.slane %v7930, %v7943
        %v7945 = vcombine.low %v7880, %v7896
        %v7946 = vcombine.high %v7880, %v7896
        %v7948 = vunpack.c.l.s4 1934713408
        %v7949 = vunpack.c.0.s8 %v7948
        %v7950 = vlaneseq
        %v7951 = vshrl.u32 %v7950, 7
        %v7952 = vsub.s32 %v7949, %v7951
        %v7953 = vrot.slane %v7945, %v7952
        %v7955 = vunpack.c.l.s4 1934713408
        %v7956 = vunpack.c.0.s8 %v7955
        %v7957 = vlaneseq
        %v7958 = vshrl.u32 %v7957, 7
        %v7959 = vsub.s32 %v7956, %v7958
        %v7960 = vrot.slane %v7946, %v7959
        %v7961 = vcombine.low %v7905, %v7921
        %v7962 = vcombine.high %v7905, %v7921
        %v7964 = vunpack.c.l.s4 1934713408
        %v7965 = vunpack.c.0.s8 %v7964
        %v7966 = vlaneseq
        %v7967 = vshrl.u32 %v7966, 7
        %v7968 = vsub.s32 %v7965, %v7967
        %v7969 = vrot.slane %v7961, %v7968
        %v7971 = vunpack.c.l.s4 1934713408
        %v7972 = vunpack.c.0.s8 %v7971
        %v7973 = vlaneseq
        %v7974 = vshrl.u32 %v7973, 7
        %v7975 = vsub.s32 %v7972, %v7974
        %v7976 = vrot.slane %v7962, %v7975
        %v7977 = vcombine.low %v7912, %v7928
        %v7978 = vcombine.high %v7912, %v7928
        %v7980 = vunpack.c.l.s4 1934713408
        %v7981 = vunpack.c.0.s8 %v7980
        %v7982 = vlaneseq
        %v7983 = vshrl.u32 %v7982, 7
        %v7984 = vsub.s32 %v7981, %v7983
        %v7985 = vrot.slane %v7977, %v7984
        %v7987 = vunpack.c.l.s4 1934713408
        %v7988 = vunpack.c.0.s8 %v7987
        %v7989 = vlaneseq
        %v7990 = vshrl.u32 %v7989, 7
        %v7991 = vsub.s32 %v7988, %v7990
        %v7992 = vrot.slane %v7978, %v7991
        %v7993 = vcombine.low %v7937, %v7969
        %v7994 = vcombine.high %v7937, %v7969
        %v7995 = vcombine.low %v7944, %v7976
        %v7996 = vcombine.high %v7944, %v7976
        %v7997 = vcombine.low %v7953, %v7985
        %v7998 = vcombine.high %v7953, %v7985
        %v7999 = vcombine.low %v7960, %v7992
        %v8000 = vcombine.high %v7960, %v7992
        %8002 = vrot.lane.b32.xlu0 %v7858, 16
        %v8003 = vpop.permute.xlu0 %8002
        %8006 = vrot.lane.b32.xlu0 %v7859, 32
        %v8007 = vpop.permute.xlu0 %8006
        %8010 = vrot.lane.b32.xlu0 %v7860, 48
        %v8011 = vpop.permute.xlu0 %8010
        %8014 = vrot.lane.b32.xlu0 %v7861, 64
        %v8015 = vpop.permute.xlu0 %8014
        %8018 = vrot.lane.b32.xlu0 %v7862, 80
        %v8019 = vpop.permute.xlu0 %8018
        %8022 = vrot.lane.b32.xlu0 %v7863, 96
        %v8023 = vpop.permute.xlu0 %8022
        %8026 = vrot.lane.b32.xlu0 %v7864, 112
        %v8027 = vpop.permute.xlu0 %8026
        %8030 = vrot.lane.b32.xlu0 %v7994, 16
        %v8031 = vpop.permute.xlu0 %8030
        %8034 = vrot.lane.b32.xlu0 %v7995, 32
        %v8035 = vpop.permute.xlu0 %8034
        %8038 = vrot.lane.b32.xlu0 %v7996, 48
        %v8039 = vpop.permute.xlu0 %8038
        %8042 = vrot.lane.b32.xlu0 %v7997, 64
        %v8043 = vpop.permute.xlu0 %8042
        %8046 = vrot.lane.b32.xlu0 %v7998, 80
        %v8047 = vpop.permute.xlu0 %8046
        %8050 = vrot.lane.b32.xlu0 %v7999, 96
        %v8051 = vpop.permute.xlu0 %8050
        %8054 = vrot.lane.b32.xlu0 %v8000, 112
        %v8055 = vpop.permute.xlu0 %8054
        %v8057 = vsel %vm845, %v7857, %v8003
        %vm8058 = vcmask 261120
        %v8059 = vsel %vm8058, %v8057, %v8007
        %vm8060 = vcmask 392192
        %v8061 = vsel %vm8060, %v8059, %v8011
        %vm8062 = vcmask 523264
        %v8063 = vsel %vm8062, %v8061, %v8015
        %vm8064 = vcmask 654336
        %v8065 = vsel %vm8064, %v8063, %v8019
        %vm8066 = vcmask 785408
        %v8067 = vsel %vm8066, %v8065, %v8023
        %vm8068 = vcmask 916480
        %v8069 = vsel %vm8068, %v8067, %v8027
        %v8070 = vsel %vm845, %v7993, %v8031
        %v8071 = vsel %vm8058, %v8070, %v8035
        %v8072 = vsel %vm8060, %v8071, %v8039
        %v8073 = vsel %vm8062, %v8072, %v8043
        %v8074 = vsel %vm8064, %v8073, %v8047
        %v8075 = vsel %vm8066, %v8074, %v8051
        %v8076 = vsel %vm8068, %v8075, %v8055
        %s8077 = sld [smem:[#allocation9 + $0x12]]
        %v8078 = vstv %s8077
        %v8079 = vmul.f32 %v8078, %v4097
        %v8080 = vmul.f32 %v8078, %v4098
        %v8081 = vmul.f32 %v8078, %v4100
        %v8082 = vmul.f32 %v8078, %v4101
        %v8083 = vmul.f32 %v8078, %v4103
        %v8084 = vmul.f32 %v8078, %v4104
        %v8085 = vmul.f32 %v8078, %v4106
        %v8086 = vmul.f32 %v8078, %v4107
        %v8087 = vmul.f32 %v8078, %v4109
        %v8088 = vmul.f32 %v8078, %v4110
        %v8089 = vmul.f32 %v8078, %v4112
        %v8090 = vmul.f32 %v8078, %v4113
        %v8091 = vmul.f32 %v8078, %v4115
        %v8092 = vmul.f32 %v8078, %v4116
        %v8093 = vmul.f32 %v8078, %v4118
        %v8094 = vmul.f32 %v8078, %v4119
        %s8095 = sld [smem:[#allocation9 + $0x13]]
        %v8096 = vstv %s8095
        %v8097 = vmul.f32 %v8096, %v4097
        %v8098 = vmul.f32 %v8096, %v4098
        %v8099 = vmul.f32 %v8096, %v4100
        %v8100 = vmul.f32 %v8096, %v4101
        %v8101 = vmul.f32 %v8096, %v4103
        %v8102 = vmul.f32 %v8096, %v4104
        %v8103 = vmul.f32 %v8096, %v4106
        %v8104 = vmul.f32 %v8096, %v4107
        %v8105 = vmul.f32 %v8096, %v4109
        %v8106 = vmul.f32 %v8096, %v4110
        %v8107 = vmul.f32 %v8096, %v4112
        %v8108 = vmul.f32 %v8096, %v4113
        %v8109 = vmul.f32 %v8096, %v4115
        %v8110 = vmul.f32 %v8096, %v4116
        %v8111 = vmul.f32 %v8096, %v4118
        %v8112 = vmul.f32 %v8096, %v4119
        %8129 = vrot.lane.b32.xlu0 %v8097, 127
        %v8130 = vpop.permute.xlu0 %8129
        %8131 = vrot.lane.b32.xlu0 %v8098, 127
        %v8132 = vpop.permute.xlu0 %8131
        %8133 = vrot.lane.b32.xlu0 %v8099, 127
        %v8134 = vpop.permute.xlu0 %8133
        %8135 = vrot.lane.b32.xlu0 %v8100, 127
        %v8136 = vpop.permute.xlu0 %8135
        %8137 = vrot.lane.b32.xlu0 %v8101, 127
        %v8138 = vpop.permute.xlu0 %8137
        %8139 = vrot.lane.b32.xlu0 %v8102, 127
        %v8140 = vpop.permute.xlu0 %8139
        %8141 = vrot.lane.b32.xlu0 %v8103, 127
        %v8142 = vpop.permute.xlu0 %8141
        %8143 = vrot.lane.b32.xlu0 %v8104, 127
        %v8144 = vpop.permute.xlu0 %8143
        %8145 = vrot.lane.b32.xlu0 %v8105, 127
        %v8146 = vpop.permute.xlu0 %8145
        %8147 = vrot.lane.b32.xlu0 %v8106, 127
        %v8148 = vpop.permute.xlu0 %8147
        %8149 = vrot.lane.b32.xlu0 %v8107, 127
        %v8150 = vpop.permute.xlu0 %8149
        %8151 = vrot.lane.b32.xlu0 %v8108, 127
        %v8152 = vpop.permute.xlu0 %8151
        %8153 = vrot.lane.b32.xlu0 %v8109, 127
        %v8154 = vpop.permute.xlu0 %8153
        %8155 = vrot.lane.b32.xlu0 %v8110, 127
        %v8156 = vpop.permute.xlu0 %8155
        %8157 = vrot.lane.b32.xlu0 %v8111, 127
        %v8158 = vpop.permute.xlu0 %8157
        %8159 = vrot.lane.b32.xlu0 %v8112, 127
        %v8160 = vpop.permute.xlu0 %8159
        %v8177 = vadd.f32 %v8079, %v8130
        %v8178 = vadd.f32 %v8080, %v8132
        %v8179 = vadd.f32 %v8081, %v8134
        %v8180 = vadd.f32 %v8082, %v8136
        %v8181 = vadd.f32 %v8083, %v8138
        %v8182 = vadd.f32 %v8084, %v8140
        %v8183 = vadd.f32 %v8085, %v8142
        %v8184 = vadd.f32 %v8086, %v8144
        %v8185 = vadd.f32 %v8087, %v8146
        %v8186 = vadd.f32 %v8088, %v8148
        %v8187 = vadd.f32 %v8089, %v8150
        %v8188 = vadd.f32 %v8090, %v8152
        %v8189 = vadd.f32 %v8091, %v8154
        %v8190 = vadd.f32 %v8092, %v8156
        %v8191 = vadd.f32 %v8093, %v8158
        %v8192 = vadd.f32 %v8094, %v8160
        %s8193 = sld [smem:[#allocation9 + $0x14]]
        %v8194 = vstv %s8193
        %v8195 = vmul.f32 %v8194, %v4097
        %v8196 = vmul.f32 %v8194, %v4098
        %v8197 = vmul.f32 %v8194, %v4100
        %v8198 = vmul.f32 %v8194, %v4101
        %v8199 = vmul.f32 %v8194, %v4103
        %v8200 = vmul.f32 %v8194, %v4104
        %v8201 = vmul.f32 %v8194, %v4106
        %v8202 = vmul.f32 %v8194, %v4107
        %v8203 = vmul.f32 %v8194, %v4109
        %v8204 = vmul.f32 %v8194, %v4110
        %v8205 = vmul.f32 %v8194, %v4112
        %v8206 = vmul.f32 %v8194, %v4113
        %v8207 = vmul.f32 %v8194, %v4115
        %v8208 = vmul.f32 %v8194, %v4116
        %v8209 = vmul.f32 %v8194, %v4118
        %v8210 = vmul.f32 %v8194, %v4119
        %8227 = vrot.lane.b32.xlu0 %v8195, 126
        %v8228 = vpop.permute.xlu0 %8227
        %8229 = vrot.lane.b32.xlu0 %v8196, 126
        %v8230 = vpop.permute.xlu0 %8229
        %8231 = vrot.lane.b32.xlu0 %v8197, 126
        %v8232 = vpop.permute.xlu0 %8231
        %8233 = vrot.lane.b32.xlu0 %v8198, 126
        %v8234 = vpop.permute.xlu0 %8233
        %8235 = vrot.lane.b32.xlu0 %v8199, 126
        %v8236 = vpop.permute.xlu0 %8235
        %8237 = vrot.lane.b32.xlu0 %v8200, 126
        %v8238 = vpop.permute.xlu0 %8237
        %8239 = vrot.lane.b32.xlu0 %v8201, 126
        %v8240 = vpop.permute.xlu0 %8239
        %8241 = vrot.lane.b32.xlu0 %v8202, 126
        %v8242 = vpop.permute.xlu0 %8241
        %8243 = vrot.lane.b32.xlu0 %v8203, 126
        %v8244 = vpop.permute.xlu0 %8243
        %8245 = vrot.lane.b32.xlu0 %v8204, 126
        %v8246 = vpop.permute.xlu0 %8245
        %8247 = vrot.lane.b32.xlu0 %v8205, 126
        %v8248 = vpop.permute.xlu0 %8247
        %8249 = vrot.lane.b32.xlu0 %v8206, 126
        %v8250 = vpop.permute.xlu0 %8249
        %8251 = vrot.lane.b32.xlu0 %v8207, 126
        %v8252 = vpop.permute.xlu0 %8251
        %8253 = vrot.lane.b32.xlu0 %v8208, 126
        %v8254 = vpop.permute.xlu0 %8253
        %8255 = vrot.lane.b32.xlu0 %v8209, 126
        %v8256 = vpop.permute.xlu0 %8255
        %8257 = vrot.lane.b32.xlu0 %v8210, 126
        %v8258 = vpop.permute.xlu0 %8257
        %v8275 = vadd.f32 %v8177, %v8228
        %v8276 = vadd.f32 %v8178, %v8230
        %v8277 = vadd.f32 %v8179, %v8232
        %v8278 = vadd.f32 %v8180, %v8234
        %v8279 = vadd.f32 %v8181, %v8236
        %v8280 = vadd.f32 %v8182, %v8238
        %v8281 = vadd.f32 %v8183, %v8240
        %v8282 = vadd.f32 %v8184, %v8242
        %v8283 = vadd.f32 %v8185, %v8244
        %v8284 = vadd.f32 %v8186, %v8246
        %v8285 = vadd.f32 %v8187, %v8248
        %v8286 = vadd.f32 %v8188, %v8250
        %v8287 = vadd.f32 %v8189, %v8252
        %v8288 = vadd.f32 %v8190, %v8254
        %v8289 = vadd.f32 %v8191, %v8256
        %v8290 = vadd.f32 %v8192, %v8258
        %s8291 = sld [smem:[#allocation9 + $0x15]]
        %v8292 = vstv %s8291
        %v8293 = vmul.f32 %v8292, %v4097
        %v8294 = vmul.f32 %v8292, %v4098
        %v8295 = vmul.f32 %v8292, %v4099
        %v8296 = vmul.f32 %v8292, %v4100
        %v8297 = vmul.f32 %v8292, %v4101
        %v8298 = vmul.f32 %v8292, %v4102
        %v8299 = vmul.f32 %v8292, %v4103
        %v8300 = vmul.f32 %v8292, %v4104
        %v8301 = vmul.f32 %v8292, %v4105
        %v8302 = vmul.f32 %v8292, %v4106
        %v8303 = vmul.f32 %v8292, %v4107
        %v8304 = vmul.f32 %v8292, %v4108
        %v8305 = vmul.f32 %v8292, %v4109
        %v8306 = vmul.f32 %v8292, %v4110
        %v8307 = vmul.f32 %v8292, %v4111
        %v8308 = vmul.f32 %v8292, %v4112
        %v8309 = vmul.f32 %v8292, %v4113
        %v8310 = vmul.f32 %v8292, %v4114
        %v8311 = vmul.f32 %v8292, %v4115
        %v8312 = vmul.f32 %v8292, %v4116
        %v8313 = vmul.f32 %v8292, %v4117
        %v8314 = vmul.f32 %v8292, %v4118
        %v8315 = vmul.f32 %v8292, %v4119
        %v8316 = vmul.f32 %v8292, %v4120
        %v8341 = vrot.slane %v8293, 1
        %v8342 = vrot.slane %v8294, 1
        %v8343 = vsel %vm5809, %v8341, %v8342
        %v8344 = vrot.slane %v8295, 1
        %v8345 = vsel %vm5809, %v8342, %v8344
        %v8346 = vrot.slane %v8296, 1
        %v8347 = vrot.slane %v8297, 1
        %v8348 = vsel %vm5809, %v8346, %v8347
        %v8349 = vrot.slane %v8298, 1
        %v8350 = vsel %vm5809, %v8347, %v8349
        %v8351 = vrot.slane %v8299, 1
        %v8352 = vrot.slane %v8300, 1
        %v8353 = vsel %vm5809, %v8351, %v8352
        %v8354 = vrot.slane %v8301, 1
        %v8355 = vsel %vm5809, %v8352, %v8354
        %v8356 = vrot.slane %v8302, 1
        %v8357 = vrot.slane %v8303, 1
        %v8358 = vsel %vm5809, %v8356, %v8357
        %v8359 = vrot.slane %v8304, 1
        %v8360 = vsel %vm5809, %v8357, %v8359
        %v8361 = vrot.slane %v8305, 1
        %v8362 = vrot.slane %v8306, 1
        %v8363 = vsel %vm5809, %v8361, %v8362
        %v8364 = vrot.slane %v8307, 1
        %v8365 = vsel %vm5809, %v8362, %v8364
        %v8366 = vrot.slane %v8308, 1
        %v8367 = vrot.slane %v8309, 1
        %v8368 = vsel %vm5809, %v8366, %v8367
        %v8369 = vrot.slane %v8310, 1
        %v8370 = vsel %vm5809, %v8367, %v8369
        %v8371 = vrot.slane %v8311, 1
        %v8372 = vrot.slane %v8312, 1
        %v8373 = vsel %vm5809, %v8371, %v8372
        %v8374 = vrot.slane %v8313, 1
        %v8375 = vsel %vm5809, %v8372, %v8374
        %v8376 = vrot.slane %v8314, 1
        %v8377 = vrot.slane %v8315, 1
        %v8378 = vsel %vm5809, %v8376, %v8377
        %v8379 = vrot.slane %v8316, 1
        %v8380 = vsel %vm5809, %v8377, %v8379
        %v8397 = vadd.f32 %v8275, %v8343
        %v8398 = vadd.f32 %v8276, %v8345
        %v8399 = vadd.f32 %v8277, %v8348
        %v8400 = vadd.f32 %v8278, %v8350
        %v8401 = vadd.f32 %v8279, %v8353
        %v8402 = vadd.f32 %v8280, %v8355
        %v8403 = vadd.f32 %v8281, %v8358
        %v8404 = vadd.f32 %v8282, %v8360
        %v8405 = vadd.f32 %v8283, %v8363
        %v8406 = vadd.f32 %v8284, %v8365
        %v8407 = vadd.f32 %v8285, %v8368
        %v8408 = vadd.f32 %v8286, %v8370
        %v8409 = vadd.f32 %v8287, %v8373
        %v8410 = vadd.f32 %v8288, %v8375
        %v8411 = vadd.f32 %v8289, %v8378
        %v8412 = vadd.f32 %v8290, %v8380
        %s8413 = sld [smem:[#allocation9 + $0x16]]
        %v8414 = vstv %s8413
        %v8415 = vmul.f32 %v8414, %v4097
        %v8416 = vmul.f32 %v8414, %v4098
        %v8417 = vmul.f32 %v8414, %v4099
        %v8418 = vmul.f32 %v8414, %v4100
        %v8419 = vmul.f32 %v8414, %v4101
        %v8420 = vmul.f32 %v8414, %v4102
        %v8421 = vmul.f32 %v8414, %v4103
        %v8422 = vmul.f32 %v8414, %v4104
        %v8423 = vmul.f32 %v8414, %v4105
        %v8424 = vmul.f32 %v8414, %v4106
        %v8425 = vmul.f32 %v8414, %v4107
        %v8426 = vmul.f32 %v8414, %v4108
        %v8427 = vmul.f32 %v8414, %v4109
        %v8428 = vmul.f32 %v8414, %v4110
        %v8429 = vmul.f32 %v8414, %v4111
        %v8430 = vmul.f32 %v8414, %v4112
        %v8431 = vmul.f32 %v8414, %v4113
        %v8432 = vmul.f32 %v8414, %v4114
        %v8433 = vmul.f32 %v8414, %v4115
        %v8434 = vmul.f32 %v8414, %v4116
        %v8435 = vmul.f32 %v8414, %v4117
        %v8436 = vmul.f32 %v8414, %v4118
        %v8437 = vmul.f32 %v8414, %v4119
        %v8438 = vmul.f32 %v8414, %v4120
        %v8463 = vrot.slane %v8415, 1
        %v8464 = vrot.slane %v8416, 1
        %v8465 = vsel %vm5809, %v8463, %v8464
        %v8466 = vrot.slane %v8417, 1
        %v8467 = vsel %vm5809, %v8464, %v8466
        %v8468 = vrot.slane %v8418, 1
        %v8469 = vrot.slane %v8419, 1
        %v8470 = vsel %vm5809, %v8468, %v8469
        %v8471 = vrot.slane %v8420, 1
        %v8472 = vsel %vm5809, %v8469, %v8471
        %v8473 = vrot.slane %v8421, 1
        %v8474 = vrot.slane %v8422, 1
        %v8475 = vsel %vm5809, %v8473, %v8474
        %v8476 = vrot.slane %v8423, 1
        %v8477 = vsel %vm5809, %v8474, %v8476
        %v8478 = vrot.slane %v8424, 1
        %v8479 = vrot.slane %v8425, 1
        %v8480 = vsel %vm5809, %v8478, %v8479
        %v8481 = vrot.slane %v8426, 1
        %v8482 = vsel %vm5809, %v8479, %v8481
        %v8483 = vrot.slane %v8427, 1
        %v8484 = vrot.slane %v8428, 1
        %v8485 = vsel %vm5809, %v8483, %v8484
        %v8486 = vrot.slane %v8429, 1
        %v8487 = vsel %vm5809, %v8484, %v8486
        %v8488 = vrot.slane %v8430, 1
        %v8489 = vrot.slane %v8431, 1
        %v8490 = vsel %vm5809, %v8488, %v8489
        %v8491 = vrot.slane %v8432, 1
        %v8492 = vsel %vm5809, %v8489, %v8491
        %v8493 = vrot.slane %v8433, 1
        %v8494 = vrot.slane %v8434, 1
        %v8495 = vsel %vm5809, %v8493, %v8494
        %v8496 = vrot.slane %v8435, 1
        %v8497 = vsel %vm5809, %v8494, %v8496
        %v8498 = vrot.slane %v8436, 1
        %v8499 = vrot.slane %v8437, 1
        %v8500 = vsel %vm5809, %v8498, %v8499
        %v8501 = vrot.slane %v8438, 1
        %v8502 = vsel %vm5809, %v8499, %v8501
        %8503 = vrot.lane.b32.xlu0 %v8465, 127
        %v8504 = vpop.permute.xlu0 %8503
        %8505 = vrot.lane.b32.xlu0 %v8467, 127
        %v8506 = vpop.permute.xlu0 %8505
        %8507 = vrot.lane.b32.xlu0 %v8470, 127
        %v8508 = vpop.permute.xlu0 %8507
        %8509 = vrot.lane.b32.xlu0 %v8472, 127
        %v8510 = vpop.permute.xlu0 %8509
        %8511 = vrot.lane.b32.xlu0 %v8475, 127
        %v8512 = vpop.permute.xlu0 %8511
        %8513 = vrot.lane.b32.xlu0 %v8477, 127
        %v8514 = vpop.permute.xlu0 %8513
        %8515 = vrot.lane.b32.xlu0 %v8480, 127
        %v8516 = vpop.permute.xlu0 %8515
        %8517 = vrot.lane.b32.xlu0 %v8482, 127
        %v8518 = vpop.permute.xlu0 %8517
        %8519 = vrot.lane.b32.xlu0 %v8485, 127
        %v8520 = vpop.permute.xlu0 %8519
        %8521 = vrot.lane.b32.xlu0 %v8487, 127
        %v8522 = vpop.permute.xlu0 %8521
        %8523 = vrot.lane.b32.xlu0 %v8490, 127
        %v8524 = vpop.permute.xlu0 %8523
        %8525 = vrot.lane.b32.xlu0 %v8492, 127
        %v8526 = vpop.permute.xlu0 %8525
        %8527 = vrot.lane.b32.xlu0 %v8495, 127
        %v8528 = vpop.permute.xlu0 %8527
        %8529 = vrot.lane.b32.xlu0 %v8497, 127
        %v8530 = vpop.permute.xlu0 %8529
        %8531 = vrot.lane.b32.xlu0 %v8500, 127
        %v8532 = vpop.permute.xlu0 %8531
        %8533 = vrot.lane.b32.xlu0 %v8502, 127
        %v8534 = vpop.permute.xlu0 %8533
        %v8551 = vadd.f32 %v8397, %v8504
        %v8552 = vadd.f32 %v8398, %v8506
        %v8553 = vadd.f32 %v8399, %v8508
        %v8554 = vadd.f32 %v8400, %v8510
        %v8555 = vadd.f32 %v8401, %v8512
        %v8556 = vadd.f32 %v8402, %v8514
        %v8557 = vadd.f32 %v8403, %v8516
        %v8558 = vadd.f32 %v8404, %v8518
        %v8559 = vadd.f32 %v8405, %v8520
        %v8560 = vadd.f32 %v8406, %v8522
        %v8561 = vadd.f32 %v8407, %v8524
        %v8562 = vadd.f32 %v8408, %v8526
        %v8563 = vadd.f32 %v8409, %v8528
        %v8564 = vadd.f32 %v8410, %v8530
        %v8565 = vadd.f32 %v8411, %v8532
        %v8566 = vadd.f32 %v8412, %v8534
        %s8567 = sld [smem:[#allocation9 + $0x17]]
        %v8568 = vstv %s8567
        %v8569 = vmul.f32 %v8568, %v4097
        %v8570 = vmul.f32 %v8568, %v4098
        %v8571 = vmul.f32 %v8568, %v4099
        %v8572 = vmul.f32 %v8568, %v4100
        %v8573 = vmul.f32 %v8568, %v4101
        %v8574 = vmul.f32 %v8568, %v4102
        %v8575 = vmul.f32 %v8568, %v4103
        %v8576 = vmul.f32 %v8568, %v4104
        %v8577 = vmul.f32 %v8568, %v4105
        %v8578 = vmul.f32 %v8568, %v4106
        %v8579 = vmul.f32 %v8568, %v4107
        %v8580 = vmul.f32 %v8568, %v4108
        %v8581 = vmul.f32 %v8568, %v4109
        %v8582 = vmul.f32 %v8568, %v4110
        %v8583 = vmul.f32 %v8568, %v4111
        %v8584 = vmul.f32 %v8568, %v4112
        %v8585 = vmul.f32 %v8568, %v4113
        %v8586 = vmul.f32 %v8568, %v4114
        %v8587 = vmul.f32 %v8568, %v4115
        %v8588 = vmul.f32 %v8568, %v4116
        %v8589 = vmul.f32 %v8568, %v4117
        %v8590 = vmul.f32 %v8568, %v4118
        %v8591 = vmul.f32 %v8568, %v4119
        %v8592 = vmul.f32 %v8568, %v4120
        %v8617 = vrot.slane %v8569, 1
        %v8618 = vrot.slane %v8570, 1
        %v8619 = vsel %vm5809, %v8617, %v8618
        %v8620 = vrot.slane %v8571, 1
        %v8621 = vsel %vm5809, %v8618, %v8620
        %v8622 = vrot.slane %v8572, 1
        %v8623 = vrot.slane %v8573, 1
        %v8624 = vsel %vm5809, %v8622, %v8623
        %v8625 = vrot.slane %v8574, 1
        %v8626 = vsel %vm5809, %v8623, %v8625
        %v8627 = vrot.slane %v8575, 1
        %v8628 = vrot.slane %v8576, 1
        %v8629 = vsel %vm5809, %v8627, %v8628
        %v8630 = vrot.slane %v8577, 1
        %v8631 = vsel %vm5809, %v8628, %v8630
        %v8632 = vrot.slane %v8578, 1
        %v8633 = vrot.slane %v8579, 1
        %v8634 = vsel %vm5809, %v8632, %v8633
        %v8635 = vrot.slane %v8580, 1
        %v8636 = vsel %vm5809, %v8633, %v8635
        %v8637 = vrot.slane %v8581, 1
        %v8638 = vrot.slane %v8582, 1
        %v8639 = vsel %vm5809, %v8637, %v8638
        %v8640 = vrot.slane %v8583, 1
        %v8641 = vsel %vm5809, %v8638, %v8640
        %v8642 = vrot.slane %v8584, 1
        %v8643 = vrot.slane %v8585, 1
        %v8644 = vsel %vm5809, %v8642, %v8643
        %v8645 = vrot.slane %v8586, 1
        %v8646 = vsel %vm5809, %v8643, %v8645
        %v8647 = vrot.slane %v8587, 1
        %v8648 = vrot.slane %v8588, 1
        %v8649 = vsel %vm5809, %v8647, %v8648
        %v8650 = vrot.slane %v8589, 1
        %v8651 = vsel %vm5809, %v8648, %v8650
        %v8652 = vrot.slane %v8590, 1
        %v8653 = vrot.slane %v8591, 1
        %v8654 = vsel %vm5809, %v8652, %v8653
        %v8655 = vrot.slane %v8592, 1
        %v8656 = vsel %vm5809, %v8653, %v8655
        %8657 = vrot.lane.b32.xlu0 %v8619, 126
        %v8658 = vpop.permute.xlu0 %8657
        %8659 = vrot.lane.b32.xlu0 %v8621, 126
        %v8660 = vpop.permute.xlu0 %8659
        %8661 = vrot.lane.b32.xlu0 %v8624, 126
        %v8662 = vpop.permute.xlu0 %8661
        %8663 = vrot.lane.b32.xlu0 %v8626, 126
        %v8664 = vpop.permute.xlu0 %8663
        %8665 = vrot.lane.b32.xlu0 %v8629, 126
        %v8666 = vpop.permute.xlu0 %8665
        %8667 = vrot.lane.b32.xlu0 %v8631, 126
        %v8668 = vpop.permute.xlu0 %8667
        %8669 = vrot.lane.b32.xlu0 %v8634, 126
        %v8670 = vpop.permute.xlu0 %8669
        %8671 = vrot.lane.b32.xlu0 %v8636, 126
        %v8672 = vpop.permute.xlu0 %8671
        %8673 = vrot.lane.b32.xlu0 %v8639, 126
        %v8674 = vpop.permute.xlu0 %8673
        %8675 = vrot.lane.b32.xlu0 %v8641, 126
        %v8676 = vpop.permute.xlu0 %8675
        %8677 = vrot.lane.b32.xlu0 %v8644, 126
        %v8678 = vpop.permute.xlu0 %8677
        %8679 = vrot.lane.b32.xlu0 %v8646, 126
        %v8680 = vpop.permute.xlu0 %8679
        %8681 = vrot.lane.b32.xlu0 %v8649, 126
        %v8682 = vpop.permute.xlu0 %8681
        %8683 = vrot.lane.b32.xlu0 %v8651, 126
        %v8684 = vpop.permute.xlu0 %8683
        %8685 = vrot.lane.b32.xlu0 %v8654, 126
        %v8686 = vpop.permute.xlu0 %8685
        %8687 = vrot.lane.b32.xlu0 %v8656, 126
        %v8688 = vpop.permute.xlu0 %8687
        %v8705 = vadd.f32 %v8551, %v8658
        %v8706 = vadd.f32 %v8552, %v8660
        %v8707 = vadd.f32 %v8553, %v8662
        %v8708 = vadd.f32 %v8554, %v8664
        %v8709 = vadd.f32 %v8555, %v8666
        %v8710 = vadd.f32 %v8556, %v8668
        %v8711 = vadd.f32 %v8557, %v8670
        %v8712 = vadd.f32 %v8558, %v8672
        %v8713 = vadd.f32 %v8559, %v8674
        %v8714 = vadd.f32 %v8560, %v8676
        %v8715 = vadd.f32 %v8561, %v8678
        %v8716 = vadd.f32 %v8562, %v8680
        %v8717 = vadd.f32 %v8563, %v8682
        %v8718 = vadd.f32 %v8564, %v8684
        %v8719 = vadd.f32 %v8565, %v8686
        %v8720 = vadd.f32 %v8566, %v8688
        %s8721 = sld [smem:[#allocation9 + $0x18]]
        %v8722 = vstv %s8721
        %v8723 = vmul.f32 %v8722, %v4097
        %v8724 = vmul.f32 %v8722, %v4098
        %v8725 = vmul.f32 %v8722, %v4099
        %v8726 = vmul.f32 %v8722, %v4100
        %v8727 = vmul.f32 %v8722, %v4101
        %v8728 = vmul.f32 %v8722, %v4102
        %v8729 = vmul.f32 %v8722, %v4103
        %v8730 = vmul.f32 %v8722, %v4104
        %v8731 = vmul.f32 %v8722, %v4105
        %v8732 = vmul.f32 %v8722, %v4106
        %v8733 = vmul.f32 %v8722, %v4107
        %v8734 = vmul.f32 %v8722, %v4108
        %v8735 = vmul.f32 %v8722, %v4109
        %v8736 = vmul.f32 %v8722, %v4110
        %v8737 = vmul.f32 %v8722, %v4111
        %v8738 = vmul.f32 %v8722, %v4112
        %v8739 = vmul.f32 %v8722, %v4113
        %v8740 = vmul.f32 %v8722, %v4114
        %v8741 = vmul.f32 %v8722, %v4115
        %v8742 = vmul.f32 %v8722, %v4116
        %v8743 = vmul.f32 %v8722, %v4117
        %v8744 = vmul.f32 %v8722, %v4118
        %v8745 = vmul.f32 %v8722, %v4119
        %v8746 = vmul.f32 %v8722, %v4120
        %v8771 = vrot.slane %v8723, 2
        %v8772 = vrot.slane %v8724, 2
        %v8773 = vsel %vm6240, %v8771, %v8772
        %v8774 = vrot.slane %v8725, 2
        %v8775 = vsel %vm6240, %v8772, %v8774
        %v8776 = vrot.slane %v8726, 2
        %v8777 = vrot.slane %v8727, 2
        %v8778 = vsel %vm6240, %v8776, %v8777
        %v8779 = vrot.slane %v8728, 2
        %v8780 = vsel %vm6240, %v8777, %v8779
        %v8781 = vrot.slane %v8729, 2
        %v8782 = vrot.slane %v8730, 2
        %v8783 = vsel %vm6240, %v8781, %v8782
        %v8784 = vrot.slane %v8731, 2
        %v8785 = vsel %vm6240, %v8782, %v8784
        %v8786 = vrot.slane %v8732, 2
        %v8787 = vrot.slane %v8733, 2
        %v8788 = vsel %vm6240, %v8786, %v8787
        %v8789 = vrot.slane %v8734, 2
        %v8790 = vsel %vm6240, %v8787, %v8789
        %v8791 = vrot.slane %v8735, 2
        %v8792 = vrot.slane %v8736, 2
        %v8793 = vsel %vm6240, %v8791, %v8792
        %v8794 = vrot.slane %v8737, 2
        %v8795 = vsel %vm6240, %v8792, %v8794
        %v8796 = vrot.slane %v8738, 2
        %v8797 = vrot.slane %v8739, 2
        %v8798 = vsel %vm6240, %v8796, %v8797
        %v8799 = vrot.slane %v8740, 2
        %v8800 = vsel %vm6240, %v8797, %v8799
        %v8801 = vrot.slane %v8741, 2
        %v8802 = vrot.slane %v8742, 2
        %v8803 = vsel %vm6240, %v8801, %v8802
        %v8804 = vrot.slane %v8743, 2
        %v8805 = vsel %vm6240, %v8802, %v8804
        %v8806 = vrot.slane %v8744, 2
        %v8807 = vrot.slane %v8745, 2
        %v8808 = vsel %vm6240, %v8806, %v8807
        %v8809 = vrot.slane %v8746, 2
        %v8810 = vsel %vm6240, %v8807, %v8809
        %v8827 = vadd.f32 %v8705, %v8773
        %v8828 = vadd.f32 %v8706, %v8775
        %v8829 = vadd.f32 %v8707, %v8778
        %v8830 = vadd.f32 %v8708, %v8780
        %v8831 = vadd.f32 %v8709, %v8783
        %v8832 = vadd.f32 %v8710, %v8785
        %v8833 = vadd.f32 %v8711, %v8788
        %v8834 = vadd.f32 %v8712, %v8790
        %v8835 = vadd.f32 %v8713, %v8793
        %v8836 = vadd.f32 %v8714, %v8795
        %v8837 = vadd.f32 %v8715, %v8798
        %v8838 = vadd.f32 %v8716, %v8800
        %v8839 = vadd.f32 %v8717, %v8803
        %v8840 = vadd.f32 %v8718, %v8805
        %v8841 = vadd.f32 %v8719, %v8808
        %v8842 = vadd.f32 %v8720, %v8810
        %s8843 = sld [smem:[#allocation9 + $0x19]]
        %v8844 = vstv %s8843
        %v8845 = vmul.f32 %v8844, %v4097
        %v8846 = vmul.f32 %v8844, %v4098
        %v8847 = vmul.f32 %v8844, %v4099
        %v8848 = vmul.f32 %v8844, %v4100
        %v8849 = vmul.f32 %v8844, %v4101
        %v8850 = vmul.f32 %v8844, %v4102
        %v8851 = vmul.f32 %v8844, %v4103
        %v8852 = vmul.f32 %v8844, %v4104
        %v8853 = vmul.f32 %v8844, %v4105
        %v8854 = vmul.f32 %v8844, %v4106
        %v8855 = vmul.f32 %v8844, %v4107
        %v8856 = vmul.f32 %v8844, %v4108
        %v8857 = vmul.f32 %v8844, %v4109
        %v8858 = vmul.f32 %v8844, %v4110
        %v8859 = vmul.f32 %v8844, %v4111
        %v8860 = vmul.f32 %v8844, %v4112
        %v8861 = vmul.f32 %v8844, %v4113
        %v8862 = vmul.f32 %v8844, %v4114
        %v8863 = vmul.f32 %v8844, %v4115
        %v8864 = vmul.f32 %v8844, %v4116
        %v8865 = vmul.f32 %v8844, %v4117
        %v8866 = vmul.f32 %v8844, %v4118
        %v8867 = vmul.f32 %v8844, %v4119
        %v8868 = vmul.f32 %v8844, %v4120
        %v8893 = vrot.slane %v8845, 2
        %v8894 = vrot.slane %v8846, 2
        %v8895 = vsel %vm6240, %v8893, %v8894
        %v8896 = vrot.slane %v8847, 2
        %v8897 = vsel %vm6240, %v8894, %v8896
        %v8898 = vrot.slane %v8848, 2
        %v8899 = vrot.slane %v8849, 2
        %v8900 = vsel %vm6240, %v8898, %v8899
        %v8901 = vrot.slane %v8850, 2
        %v8902 = vsel %vm6240, %v8899, %v8901
        %v8903 = vrot.slane %v8851, 2
        %v8904 = vrot.slane %v8852, 2
        %v8905 = vsel %vm6240, %v8903, %v8904
        %v8906 = vrot.slane %v8853, 2
        %v8907 = vsel %vm6240, %v8904, %v8906
        %v8908 = vrot.slane %v8854, 2
        %v8909 = vrot.slane %v8855, 2
        %v8910 = vsel %vm6240, %v8908, %v8909
        %v8911 = vrot.slane %v8856, 2
        %v8912 = vsel %vm6240, %v8909, %v8911
        %v8913 = vrot.slane %v8857, 2
        %v8914 = vrot.slane %v8858, 2
        %v8915 = vsel %vm6240, %v8913, %v8914
        %v8916 = vrot.slane %v8859, 2
        %v8917 = vsel %vm6240, %v8914, %v8916
        %v8918 = vrot.slane %v8860, 2
        %v8919 = vrot.slane %v8861, 2
        %v8920 = vsel %vm6240, %v8918, %v8919
        %v8921 = vrot.slane %v8862, 2
        %v8922 = vsel %vm6240, %v8919, %v8921
        %v8923 = vrot.slane %v8863, 2
        %v8924 = vrot.slane %v8864, 2
        %v8925 = vsel %vm6240, %v8923, %v8924
        %v8926 = vrot.slane %v8865, 2
        %v8927 = vsel %vm6240, %v8924, %v8926
        %v8928 = vrot.slane %v8866, 2
        %v8929 = vrot.slane %v8867, 2
        %v8930 = vsel %vm6240, %v8928, %v8929
        %v8931 = vrot.slane %v8868, 2
        %v8932 = vsel %vm6240, %v8929, %v8931
        %8933 = vrot.lane.b32.xlu0 %v8895, 127
        %v8934 = vpop.permute.xlu0 %8933
        %8935 = vrot.lane.b32.xlu0 %v8897, 127
        %v8936 = vpop.permute.xlu0 %8935
        %8937 = vrot.lane.b32.xlu0 %v8900, 127
        %v8938 = vpop.permute.xlu0 %8937
        %8939 = vrot.lane.b32.xlu0 %v8902, 127
        %v8940 = vpop.permute.xlu0 %8939
        %8941 = vrot.lane.b32.xlu0 %v8905, 127
        %v8942 = vpop.permute.xlu0 %8941
        %8943 = vrot.lane.b32.xlu0 %v8907, 127
        %v8944 = vpop.permute.xlu0 %8943
        %8945 = vrot.lane.b32.xlu0 %v8910, 127
        %v8946 = vpop.permute.xlu0 %8945
        %8947 = vrot.lane.b32.xlu0 %v8912, 127
        %v8948 = vpop.permute.xlu0 %8947
        %8949 = vrot.lane.b32.xlu0 %v8915, 127
        %v8950 = vpop.permute.xlu0 %8949
        %8951 = vrot.lane.b32.xlu0 %v8917, 127
        %v8952 = vpop.permute.xlu0 %8951
        %8953 = vrot.lane.b32.xlu0 %v8920, 127
        %v8954 = vpop.permute.xlu0 %8953
        %8955 = vrot.lane.b32.xlu0 %v8922, 127
        %v8956 = vpop.permute.xlu0 %8955
        %8957 = vrot.lane.b32.xlu0 %v8925, 127
        %v8958 = vpop.permute.xlu0 %8957
        %8959 = vrot.lane.b32.xlu0 %v8927, 127
        %v8960 = vpop.permute.xlu0 %8959
        %8961 = vrot.lane.b32.xlu0 %v8930, 127
        %v8962 = vpop.permute.xlu0 %8961
        %8963 = vrot.lane.b32.xlu0 %v8932, 127
        %v8964 = vpop.permute.xlu0 %8963
        %v8981 = vadd.f32 %v8827, %v8934
        %v8982 = vadd.f32 %v8828, %v8936
        %v8983 = vadd.f32 %v8829, %v8938
        %v8984 = vadd.f32 %v8830, %v8940
        %v8985 = vadd.f32 %v8831, %v8942
        %v8986 = vadd.f32 %v8832, %v8944
        %v8987 = vadd.f32 %v8833, %v8946
        %v8988 = vadd.f32 %v8834, %v8948
        %v8989 = vadd.f32 %v8835, %v8950
        %v8990 = vadd.f32 %v8836, %v8952
        %v8991 = vadd.f32 %v8837, %v8954
        %v8992 = vadd.f32 %v8838, %v8956
        %v8993 = vadd.f32 %v8839, %v8958
        %v8994 = vadd.f32 %v8840, %v8960
        %v8995 = vadd.f32 %v8841, %v8962
        %v8996 = vadd.f32 %v8842, %v8964
        %s8997 = sld [smem:[#allocation9 + $0x1a]]
        %v8998 = vstv %s8997
        %v8999 = vmul.f32 %v8998, %v4097
        %v9000 = vmul.f32 %v8998, %v4098
        %v9001 = vmul.f32 %v8998, %v4099
        %v9002 = vmul.f32 %v8998, %v4100
        %v9003 = vmul.f32 %v8998, %v4101
        %v9004 = vmul.f32 %v8998, %v4102
        %v9005 = vmul.f32 %v8998, %v4103
        %v9006 = vmul.f32 %v8998, %v4104
        %v9007 = vmul.f32 %v8998, %v4105
        %v9008 = vmul.f32 %v8998, %v4106
        %v9009 = vmul.f32 %v8998, %v4107
        %v9010 = vmul.f32 %v8998, %v4108
        %v9011 = vmul.f32 %v8998, %v4109
        %v9012 = vmul.f32 %v8998, %v4110
        %v9013 = vmul.f32 %v8998, %v4111
        %v9014 = vmul.f32 %v8998, %v4112
        %v9015 = vmul.f32 %v8998, %v4113
        %v9016 = vmul.f32 %v8998, %v4114
        %v9017 = vmul.f32 %v8998, %v4115
        %v9018 = vmul.f32 %v8998, %v4116
        %v9019 = vmul.f32 %v8998, %v4117
        %v9020 = vmul.f32 %v8998, %v4118
        %v9021 = vmul.f32 %v8998, %v4119
        %v9022 = vmul.f32 %v8998, %v4120
        %v9047 = vrot.slane %v8999, 2
        %v9048 = vrot.slane %v9000, 2
        %v9049 = vsel %vm6240, %v9047, %v9048
        %v9050 = vrot.slane %v9001, 2
        %v9051 = vsel %vm6240, %v9048, %v9050
        %v9052 = vrot.slane %v9002, 2
        %v9053 = vrot.slane %v9003, 2
        %v9054 = vsel %vm6240, %v9052, %v9053
        %v9055 = vrot.slane %v9004, 2
        %v9056 = vsel %vm6240, %v9053, %v9055
        %v9057 = vrot.slane %v9005, 2
        %v9058 = vrot.slane %v9006, 2
        %v9059 = vsel %vm6240, %v9057, %v9058
        %v9060 = vrot.slane %v9007, 2
        %v9061 = vsel %vm6240, %v9058, %v9060
        %v9062 = vrot.slane %v9008, 2
        %v9063 = vrot.slane %v9009, 2
        %v9064 = vsel %vm6240, %v9062, %v9063
        %v9065 = vrot.slane %v9010, 2
        %v9066 = vsel %vm6240, %v9063, %v9065
        %v9067 = vrot.slane %v9011, 2
        %v9068 = vrot.slane %v9012, 2
        %v9069 = vsel %vm6240, %v9067, %v9068
        %v9070 = vrot.slane %v9013, 2
        %v9071 = vsel %vm6240, %v9068, %v9070
        %v9072 = vrot.slane %v9014, 2
        %v9073 = vrot.slane %v9015, 2
        %v9074 = vsel %vm6240, %v9072, %v9073
        %v9075 = vrot.slane %v9016, 2
        %v9076 = vsel %vm6240, %v9073, %v9075
        %v9077 = vrot.slane %v9017, 2
        %v9078 = vrot.slane %v9018, 2
        %v9079 = vsel %vm6240, %v9077, %v9078
        %v9080 = vrot.slane %v9019, 2
        %v9081 = vsel %vm6240, %v9078, %v9080
        %v9082 = vrot.slane %v9020, 2
        %v9083 = vrot.slane %v9021, 2
        %v9084 = vsel %vm6240, %v9082, %v9083
        %v9085 = vrot.slane %v9022, 2
        %v9086 = vsel %vm6240, %v9083, %v9085
        %9087 = vrot.lane.b32.xlu0 %v9049, 126
        %v9088 = vpop.permute.xlu0 %9087
        %9089 = vrot.lane.b32.xlu0 %v9051, 126
        %v9090 = vpop.permute.xlu0 %9089
        %9091 = vrot.lane.b32.xlu0 %v9054, 126
        %v9092 = vpop.permute.xlu0 %9091
        %9093 = vrot.lane.b32.xlu0 %v9056, 126
        %v9094 = vpop.permute.xlu0 %9093
        %9095 = vrot.lane.b32.xlu0 %v9059, 126
        %v9096 = vpop.permute.xlu0 %9095
        %9097 = vrot.lane.b32.xlu0 %v9061, 126
        %v9098 = vpop.permute.xlu0 %9097
        %9099 = vrot.lane.b32.xlu0 %v9064, 126
        %v9100 = vpop.permute.xlu0 %9099
        %9101 = vrot.lane.b32.xlu0 %v9066, 126
        %v9102 = vpop.permute.xlu0 %9101
        %9103 = vrot.lane.b32.xlu0 %v9069, 126
        %v9104 = vpop.permute.xlu0 %9103
        %9105 = vrot.lane.b32.xlu0 %v9071, 126
        %v9106 = vpop.permute.xlu0 %9105
        %9107 = vrot.lane.b32.xlu0 %v9074, 126
        %v9108 = vpop.permute.xlu0 %9107
        %9109 = vrot.lane.b32.xlu0 %v9076, 126
        %v9110 = vpop.permute.xlu0 %9109
        %9111 = vrot.lane.b32.xlu0 %v9079, 126
        %v9112 = vpop.permute.xlu0 %9111
        %9113 = vrot.lane.b32.xlu0 %v9081, 126
        %v9114 = vpop.permute.xlu0 %9113
        %9115 = vrot.lane.b32.xlu0 %v9084, 126
        %v9116 = vpop.permute.xlu0 %9115
        %9117 = vrot.lane.b32.xlu0 %v9086, 126
        %v9118 = vpop.permute.xlu0 %9117
        %v9135 = vadd.f32 %v8981, %v9088
        %v9136 = vadd.f32 %v8982, %v9090
        %v9137 = vadd.f32 %v8983, %v9092
        %v9138 = vadd.f32 %v8984, %v9094
        %v9139 = vadd.f32 %v8985, %v9096
        %v9140 = vadd.f32 %v8986, %v9098
        %v9141 = vadd.f32 %v8987, %v9100
        %v9142 = vadd.f32 %v8988, %v9102
        %v9143 = vadd.f32 %v8989, %v9104
        %v9144 = vadd.f32 %v8990, %v9106
        %v9145 = vadd.f32 %v8991, %v9108
        %v9146 = vadd.f32 %v8992, %v9110
        %v9147 = vadd.f32 %v8993, %v9112
        %v9148 = vadd.f32 %v8994, %v9114
        %v9149 = vadd.f32 %v8995, %v9116
        %v9150 = vadd.f32 %v8996, %v9118
        %s9151 = sld [smem:[#allocation9 + $0x1b]]
        %v9152 = vstv %s9151
        %v9153 = vmul.f32 %v9152, %v5521
        %v9154 = vmul.f32 %v9152, %v5522
        %v9155 = vmul.f32 %v9152, %v5524
        %v9156 = vmul.f32 %v9152, %v5525
        %v9157 = vmul.f32 %v9152, %v5527
        %v9158 = vmul.f32 %v9152, %v5528
        %v9159 = vmul.f32 %v9152, %v5530
        %v9160 = vmul.f32 %v9152, %v5531
        %v9161 = vmul.f32 %v9152, %v5533
        %v9162 = vmul.f32 %v9152, %v5534
        %v9163 = vmul.f32 %v9152, %v5536
        %v9164 = vmul.f32 %v9152, %v5537
        %v9165 = vmul.f32 %v9152, %v5539
        %v9166 = vmul.f32 %v9152, %v5540
        %v9167 = vmul.f32 %v9152, %v5542
        %v9168 = vmul.f32 %v9152, %v5543
        %v9169 = vadd.f32 %v9135, %v9153
        %v9170 = vadd.f32 %v9136, %v9154
        %v9171 = vadd.f32 %v9137, %v9155
        %v9172 = vadd.f32 %v9138, %v9156
        %v9173 = vadd.f32 %v9139, %v9157
        %v9174 = vadd.f32 %v9140, %v9158
        %v9175 = vadd.f32 %v9141, %v9159
        %v9176 = vadd.f32 %v9142, %v9160
        %v9177 = vadd.f32 %v9143, %v9161
        %v9178 = vadd.f32 %v9144, %v9162
        %v9179 = vadd.f32 %v9145, %v9163
        %v9180 = vadd.f32 %v9146, %v9164
        %v9181 = vadd.f32 %v9147, %v9165
        %v9182 = vadd.f32 %v9148, %v9166
        %v9183 = vadd.f32 %v9149, %v9167
        %v9184 = vadd.f32 %v9150, %v9168
        %s9185 = sld [smem:[#allocation9 + $0x1c]]
        %v9186 = vstv %s9185
        %v9187 = vmul.f32 %v9186, %v5521
        %v9188 = vmul.f32 %v9186, %v5522
        %v9189 = vmul.f32 %v9186, %v5524
        %v9190 = vmul.f32 %v9186, %v5525
        %v9191 = vmul.f32 %v9186, %v5527
        %v9192 = vmul.f32 %v9186, %v5528
        %v9193 = vmul.f32 %v9186, %v5530
        %v9194 = vmul.f32 %v9186, %v5531
        %v9195 = vmul.f32 %v9186, %v5533
        %v9196 = vmul.f32 %v9186, %v5534
        %v9197 = vmul.f32 %v9186, %v5536
        %v9198 = vmul.f32 %v9186, %v5537
        %v9199 = vmul.f32 %v9186, %v5539
        %v9200 = vmul.f32 %v9186, %v5540
        %v9201 = vmul.f32 %v9186, %v5542
        %v9202 = vmul.f32 %v9186, %v5543
        %9219 = vrot.lane.b32.xlu0 %v9187, 127
        %v9220 = vpop.permute.xlu0 %9219
        %9221 = vrot.lane.b32.xlu0 %v9188, 127
        %v9222 = vpop.permute.xlu0 %9221
        %9223 = vrot.lane.b32.xlu0 %v9189, 127
        %v9224 = vpop.permute.xlu0 %9223
        %9225 = vrot.lane.b32.xlu0 %v9190, 127
        %v9226 = vpop.permute.xlu0 %9225
        %9227 = vrot.lane.b32.xlu0 %v9191, 127
        %v9228 = vpop.permute.xlu0 %9227
        %9229 = vrot.lane.b32.xlu0 %v9192, 127
        %v9230 = vpop.permute.xlu0 %9229
        %9231 = vrot.lane.b32.xlu0 %v9193, 127
        %v9232 = vpop.permute.xlu0 %9231
        %9233 = vrot.lane.b32.xlu0 %v9194, 127
        %v9234 = vpop.permute.xlu0 %9233
        %9235 = vrot.lane.b32.xlu0 %v9195, 127
        %v9236 = vpop.permute.xlu0 %9235
        %9237 = vrot.lane.b32.xlu0 %v9196, 127
        %v9238 = vpop.permute.xlu0 %9237
        %9239 = vrot.lane.b32.xlu0 %v9197, 127
        %v9240 = vpop.permute.xlu0 %9239
        %9241 = vrot.lane.b32.xlu0 %v9198, 127
        %v9242 = vpop.permute.xlu0 %9241
        %9243 = vrot.lane.b32.xlu0 %v9199, 127
        %v9244 = vpop.permute.xlu0 %9243
        %9245 = vrot.lane.b32.xlu0 %v9200, 127
        %v9246 = vpop.permute.xlu0 %9245
        %9247 = vrot.lane.b32.xlu0 %v9201, 127
        %v9248 = vpop.permute.xlu0 %9247
        %9249 = vrot.lane.b32.xlu0 %v9202, 127
        %v9250 = vpop.permute.xlu0 %9249
        %v9267 = vadd.f32 %v9169, %v9220
        %v9268 = vadd.f32 %v9170, %v9222
        %v9269 = vadd.f32 %v9171, %v9224
        %v9270 = vadd.f32 %v9172, %v9226
        %v9271 = vadd.f32 %v9173, %v9228
        %v9272 = vadd.f32 %v9174, %v9230
        %v9273 = vadd.f32 %v9175, %v9232
        %v9274 = vadd.f32 %v9176, %v9234
        %v9275 = vadd.f32 %v9177, %v9236
        %v9276 = vadd.f32 %v9178, %v9238
        %v9277 = vadd.f32 %v9179, %v9240
        %v9278 = vadd.f32 %v9180, %v9242
        %v9279 = vadd.f32 %v9181, %v9244
        %v9280 = vadd.f32 %v9182, %v9246
        %v9281 = vadd.f32 %v9183, %v9248
        %v9282 = vadd.f32 %v9184, %v9250
        %s9283 = sld [smem:[#allocation9 + $0x1d]]
        %v9284 = vstv %s9283
        %v9285 = vmul.f32 %v9284, %v5521
        %v9286 = vmul.f32 %v9284, %v5522
        %v9287 = vmul.f32 %v9284, %v5524
        %v9288 = vmul.f32 %v9284, %v5525
        %v9289 = vmul.f32 %v9284, %v5527
        %v9290 = vmul.f32 %v9284, %v5528
        %v9291 = vmul.f32 %v9284, %v5530
        %v9292 = vmul.f32 %v9284, %v5531
        %v9293 = vmul.f32 %v9284, %v5533
        %v9294 = vmul.f32 %v9284, %v5534
        %v9295 = vmul.f32 %v9284, %v5536
        %v9296 = vmul.f32 %v9284, %v5537
        %v9297 = vmul.f32 %v9284, %v5539
        %v9298 = vmul.f32 %v9284, %v5540
        %v9299 = vmul.f32 %v9284, %v5542
        %v9300 = vmul.f32 %v9284, %v5543
        %9317 = vrot.lane.b32.xlu0 %v9285, 126
        %v9318 = vpop.permute.xlu0 %9317
        %9319 = vrot.lane.b32.xlu0 %v9286, 126
        %v9320 = vpop.permute.xlu0 %9319
        %9321 = vrot.lane.b32.xlu0 %v9287, 126
        %v9322 = vpop.permute.xlu0 %9321
        %9323 = vrot.lane.b32.xlu0 %v9288, 126
        %v9324 = vpop.permute.xlu0 %9323
        %9325 = vrot.lane.b32.xlu0 %v9289, 126
        %v9326 = vpop.permute.xlu0 %9325
        %9327 = vrot.lane.b32.xlu0 %v9290, 126
        %v9328 = vpop.permute.xlu0 %9327
        %9329 = vrot.lane.b32.xlu0 %v9291, 126
        %v9330 = vpop.permute.xlu0 %9329
        %9331 = vrot.lane.b32.xlu0 %v9292, 126
        %v9332 = vpop.permute.xlu0 %9331
        %9333 = vrot.lane.b32.xlu0 %v9293, 126
        %v9334 = vpop.permute.xlu0 %9333
        %9335 = vrot.lane.b32.xlu0 %v9294, 126
        %v9336 = vpop.permute.xlu0 %9335
        %9337 = vrot.lane.b32.xlu0 %v9295, 126
        %v9338 = vpop.permute.xlu0 %9337
        %9339 = vrot.lane.b32.xlu0 %v9296, 126
        %v9340 = vpop.permute.xlu0 %9339
        %9341 = vrot.lane.b32.xlu0 %v9297, 126
        %v9342 = vpop.permute.xlu0 %9341
        %9343 = vrot.lane.b32.xlu0 %v9298, 126
        %v9344 = vpop.permute.xlu0 %9343
        %9345 = vrot.lane.b32.xlu0 %v9299, 126
        %v9346 = vpop.permute.xlu0 %9345
        %9347 = vrot.lane.b32.xlu0 %v9300, 126
        %v9348 = vpop.permute.xlu0 %9347
        %v9365 = vadd.f32 %v9267, %v9318
        %v9366 = vadd.f32 %v9268, %v9320
        %v9367 = vadd.f32 %v9269, %v9322
        %v9368 = vadd.f32 %v9270, %v9324
        %v9369 = vadd.f32 %v9271, %v9326
        %v9370 = vadd.f32 %v9272, %v9328
        %v9371 = vadd.f32 %v9273, %v9330
        %v9372 = vadd.f32 %v9274, %v9332
        %v9373 = vadd.f32 %v9275, %v9334
        %v9374 = vadd.f32 %v9276, %v9336
        %v9375 = vadd.f32 %v9277, %v9338
        %v9376 = vadd.f32 %v9278, %v9340
        %v9377 = vadd.f32 %v9279, %v9342
        %v9378 = vadd.f32 %v9280, %v9344
        %v9379 = vadd.f32 %v9281, %v9346
        %v9380 = vadd.f32 %v9282, %v9348
        %s9381 = sld [smem:[#allocation9 + $0x1e]]
        %v9382 = vstv %s9381
        %v9383 = vmul.f32 %v9382, %v5521
        %v9384 = vmul.f32 %v9382, %v5522
        %v9385 = vmul.f32 %v9382, %v5523
        %v9386 = vmul.f32 %v9382, %v5524
        %v9387 = vmul.f32 %v9382, %v5525
        %v9388 = vmul.f32 %v9382, %v5526
        %v9389 = vmul.f32 %v9382, %v5527
        %v9390 = vmul.f32 %v9382, %v5528
        %v9391 = vmul.f32 %v9382, %v5529
        %v9392 = vmul.f32 %v9382, %v5530
        %v9393 = vmul.f32 %v9382, %v5531
        %v9394 = vmul.f32 %v9382, %v5532
        %v9395 = vmul.f32 %v9382, %v5533
        %v9396 = vmul.f32 %v9382, %v5534
        %v9397 = vmul.f32 %v9382, %v5535
        %v9398 = vmul.f32 %v9382, %v5536
        %v9399 = vmul.f32 %v9382, %v5537
        %v9400 = vmul.f32 %v9382, %v5538
        %v9401 = vmul.f32 %v9382, %v5539
        %v9402 = vmul.f32 %v9382, %v5540
        %v9403 = vmul.f32 %v9382, %v5541
        %v9404 = vmul.f32 %v9382, %v5542
        %v9405 = vmul.f32 %v9382, %v5543
        %v9406 = vmul.f32 %v9382, %v5544
        %v9431 = vrot.slane %v9383, 1
        %v9432 = vrot.slane %v9384, 1
        %v9433 = vsel %vm5809, %v9431, %v9432
        %v9434 = vrot.slane %v9385, 1
        %v9435 = vsel %vm5809, %v9432, %v9434
        %v9436 = vrot.slane %v9386, 1
        %v9437 = vrot.slane %v9387, 1
        %v9438 = vsel %vm5809, %v9436, %v9437
        %v9439 = vrot.slane %v9388, 1
        %v9440 = vsel %vm5809, %v9437, %v9439
        %v9441 = vrot.slane %v9389, 1
        %v9442 = vrot.slane %v9390, 1
        %v9443 = vsel %vm5809, %v9441, %v9442
        %v9444 = vrot.slane %v9391, 1
        %v9445 = vsel %vm5809, %v9442, %v9444
        %v9446 = vrot.slane %v9392, 1
        %v9447 = vrot.slane %v9393, 1
        %v9448 = vsel %vm5809, %v9446, %v9447
        %v9449 = vrot.slane %v9394, 1
        %v9450 = vsel %vm5809, %v9447, %v9449
        %v9451 = vrot.slane %v9395, 1
        %v9452 = vrot.slane %v9396, 1
        %v9453 = vsel %vm5809, %v9451, %v9452
        %v9454 = vrot.slane %v9397, 1
        %v9455 = vsel %vm5809, %v9452, %v9454
        %v9456 = vrot.slane %v9398, 1
        %v9457 = vrot.slane %v9399, 1
        %v9458 = vsel %vm5809, %v9456, %v9457
        %v9459 = vrot.slane %v9400, 1
        %v9460 = vsel %vm5809, %v9457, %v9459
        %v9461 = vrot.slane %v9401, 1
        %v9462 = vrot.slane %v9402, 1
        %v9463 = vsel %vm5809, %v9461, %v9462
        %v9464 = vrot.slane %v9403, 1
        %v9465 = vsel %vm5809, %v9462, %v9464
        %v9466 = vrot.slane %v9404, 1
        %v9467 = vrot.slane %v9405, 1
        %v9468 = vsel %vm5809, %v9466, %v9467
        %v9469 = vrot.slane %v9406, 1
        %v9470 = vsel %vm5809, %v9467, %v9469
        %v9487 = vadd.f32 %v9365, %v9433
        %v9488 = vadd.f32 %v9366, %v9435
        %v9489 = vadd.f32 %v9367, %v9438
        %v9490 = vadd.f32 %v9368, %v9440
        %v9491 = vadd.f32 %v9369, %v9443
        %v9492 = vadd.f32 %v9370, %v9445
        %v9493 = vadd.f32 %v9371, %v9448
        %v9494 = vadd.f32 %v9372, %v9450
        %v9495 = vadd.f32 %v9373, %v9453
        %v9496 = vadd.f32 %v9374, %v9455
        %v9497 = vadd.f32 %v9375, %v9458
        %v9498 = vadd.f32 %v9376, %v9460
        %v9499 = vadd.f32 %v9377, %v9463
        %v9500 = vadd.f32 %v9378, %v9465
        %v9501 = vadd.f32 %v9379, %v9468
        %v9502 = vadd.f32 %v9380, %v9470
        %s9503 = sld [smem:[#allocation9 + $0x1f]]
        %v9504 = vstv %s9503
        %v9505 = vmul.f32 %v9504, %v5521
        %v9506 = vmul.f32 %v9504, %v5522
        %v9507 = vmul.f32 %v9504, %v5523
        %v9508 = vmul.f32 %v9504, %v5524
        %v9509 = vmul.f32 %v9504, %v5525
        %v9510 = vmul.f32 %v9504, %v5526
        %v9511 = vmul.f32 %v9504, %v5527
        %v9512 = vmul.f32 %v9504, %v5528
        %v9513 = vmul.f32 %v9504, %v5529
        %v9514 = vmul.f32 %v9504, %v5530
        %v9515 = vmul.f32 %v9504, %v5531
        %v9516 = vmul.f32 %v9504, %v5532
        %v9517 = vmul.f32 %v9504, %v5533
        %v9518 = vmul.f32 %v9504, %v5534
        %v9519 = vmul.f32 %v9504, %v5535
        %v9520 = vmul.f32 %v9504, %v5536
        %v9521 = vmul.f32 %v9504, %v5537
        %v9522 = vmul.f32 %v9504, %v5538
        %v9523 = vmul.f32 %v9504, %v5539
        %v9524 = vmul.f32 %v9504, %v5540
        %v9525 = vmul.f32 %v9504, %v5541
        %v9526 = vmul.f32 %v9504, %v5542
        %v9527 = vmul.f32 %v9504, %v5543
        %v9528 = vmul.f32 %v9504, %v5544
        %v9553 = vrot.slane %v9505, 1
        %v9554 = vrot.slane %v9506, 1
        %v9555 = vsel %vm5809, %v9553, %v9554
        %v9556 = vrot.slane %v9507, 1
        %v9557 = vsel %vm5809, %v9554, %v9556
        %v9558 = vrot.slane %v9508, 1
        %v9559 = vrot.slane %v9509, 1
        %v9560 = vsel %vm5809, %v9558, %v9559
        %v9561 = vrot.slane %v9510, 1
        %v9562 = vsel %vm5809, %v9559, %v9561
        %v9563 = vrot.slane %v9511, 1
        %v9564 = vrot.slane %v9512, 1
        %v9565 = vsel %vm5809, %v9563, %v9564
        %v9566 = vrot.slane %v9513, 1
        %v9567 = vsel %vm5809, %v9564, %v9566
        %v9568 = vrot.slane %v9514, 1
        %v9569 = vrot.slane %v9515, 1
        %v9570 = vsel %vm5809, %v9568, %v9569
        %v9571 = vrot.slane %v9516, 1
        %v9572 = vsel %vm5809, %v9569, %v9571
        %v9573 = vrot.slane %v9517, 1
        %v9574 = vrot.slane %v9518, 1
        %v9575 = vsel %vm5809, %v9573, %v9574
        %v9576 = vrot.slane %v9519, 1
        %v9577 = vsel %vm5809, %v9574, %v9576
        %v9578 = vrot.slane %v9520, 1
        %v9579 = vrot.slane %v9521, 1
        %v9580 = vsel %vm5809, %v9578, %v9579
        %v9581 = vrot.slane %v9522, 1
        %v9582 = vsel %vm5809, %v9579, %v9581
        %v9583 = vrot.slane %v9523, 1
        %v9584 = vrot.slane %v9524, 1
        %v9585 = vsel %vm5809, %v9583, %v9584
        %v9586 = vrot.slane %v9525, 1
        %v9587 = vsel %vm5809, %v9584, %v9586
        %v9588 = vrot.slane %v9526, 1
        %v9589 = vrot.slane %v9527, 1
        %v9590 = vsel %vm5809, %v9588, %v9589
        %v9591 = vrot.slane %v9528, 1
        %v9592 = vsel %vm5809, %v9589, %v9591
        %9593 = vrot.lane.b32.xlu0 %v9555, 127
        %v9594 = vpop.permute.xlu0 %9593
        %9595 = vrot.lane.b32.xlu0 %v9557, 127
        %v9596 = vpop.permute.xlu0 %9595
        %9597 = vrot.lane.b32.xlu0 %v9560, 127
        %v9598 = vpop.permute.xlu0 %9597
        %9599 = vrot.lane.b32.xlu0 %v9562, 127
        %v9600 = vpop.permute.xlu0 %9599
        %9601 = vrot.lane.b32.xlu0 %v9565, 127
        %v9602 = vpop.permute.xlu0 %9601
        %9603 = vrot.lane.b32.xlu0 %v9567, 127
        %v9604 = vpop.permute.xlu0 %9603
        %9605 = vrot.lane.b32.xlu0 %v9570, 127
        %v9606 = vpop.permute.xlu0 %9605
        %9607 = vrot.lane.b32.xlu0 %v9572, 127
        %v9608 = vpop.permute.xlu0 %9607
        %9609 = vrot.lane.b32.xlu0 %v9575, 127
        %v9610 = vpop.permute.xlu0 %9609
        %9611 = vrot.lane.b32.xlu0 %v9577, 127
        %v9612 = vpop.permute.xlu0 %9611
        %9613 = vrot.lane.b32.xlu0 %v9580, 127
        %v9614 = vpop.permute.xlu0 %9613
        %9615 = vrot.lane.b32.xlu0 %v9582, 127
        %v9616 = vpop.permute.xlu0 %9615
        %9617 = vrot.lane.b32.xlu0 %v9585, 127
        %v9618 = vpop.permute.xlu0 %9617
        %9619 = vrot.lane.b32.xlu0 %v9587, 127
        %v9620 = vpop.permute.xlu0 %9619
        %9621 = vrot.lane.b32.xlu0 %v9590, 127
        %v9622 = vpop.permute.xlu0 %9621
        %9623 = vrot.lane.b32.xlu0 %v9592, 127
        %v9624 = vpop.permute.xlu0 %9623
        %v9641 = vadd.f32 %v9487, %v9594
        %v9642 = vadd.f32 %v9488, %v9596
        %v9643 = vadd.f32 %v9489, %v9598
        %v9644 = vadd.f32 %v9490, %v9600
        %v9645 = vadd.f32 %v9491, %v9602
        %v9646 = vadd.f32 %v9492, %v9604
        %v9647 = vadd.f32 %v9493, %v9606
        %v9648 = vadd.f32 %v9494, %v9608
        %v9649 = vadd.f32 %v9495, %v9610
        %v9650 = vadd.f32 %v9496, %v9612
        %v9651 = vadd.f32 %v9497, %v9614
        %v9652 = vadd.f32 %v9498, %v9616
        %v9653 = vadd.f32 %v9499, %v9618
        %v9654 = vadd.f32 %v9500, %v9620
        %v9655 = vadd.f32 %v9501, %v9622
        %v9656 = vadd.f32 %v9502, %v9624
        %s9657 = sld [smem:[#allocation9 + $0x20]]
        %v9658 = vstv %s9657
        %v9659 = vmul.f32 %v9658, %v5521
        %v9660 = vmul.f32 %v9658, %v5522
        %v9661 = vmul.f32 %v9658, %v5523
        %v9662 = vmul.f32 %v9658, %v5524
        %v9663 = vmul.f32 %v9658, %v5525
        %v9664 = vmul.f32 %v9658, %v5526
        %v9665 = vmul.f32 %v9658, %v5527
        %v9666 = vmul.f32 %v9658, %v5528
        %v9667 = vmul.f32 %v9658, %v5529
        %v9668 = vmul.f32 %v9658, %v5530
        %v9669 = vmul.f32 %v9658, %v5531
        %v9670 = vmul.f32 %v9658, %v5532
        %v9671 = vmul.f32 %v9658, %v5533
        %v9672 = vmul.f32 %v9658, %v5534
        %v9673 = vmul.f32 %v9658, %v5535
        %v9674 = vmul.f32 %v9658, %v5536
        %v9675 = vmul.f32 %v9658, %v5537
        %v9676 = vmul.f32 %v9658, %v5538
        %v9677 = vmul.f32 %v9658, %v5539
        %v9678 = vmul.f32 %v9658, %v5540
        %v9679 = vmul.f32 %v9658, %v5541
        %v9680 = vmul.f32 %v9658, %v5542
        %v9681 = vmul.f32 %v9658, %v5543
        %v9682 = vmul.f32 %v9658, %v5544
        %v9707 = vrot.slane %v9659, 1
        %v9708 = vrot.slane %v9660, 1
        %v9709 = vsel %vm5809, %v9707, %v9708
        %v9710 = vrot.slane %v9661, 1
        %v9711 = vsel %vm5809, %v9708, %v9710
        %v9712 = vrot.slane %v9662, 1
        %v9713 = vrot.slane %v9663, 1
        %v9714 = vsel %vm5809, %v9712, %v9713
        %v9715 = vrot.slane %v9664, 1
        %v9716 = vsel %vm5809, %v9713, %v9715
        %v9717 = vrot.slane %v9665, 1
        %v9718 = vrot.slane %v9666, 1
        %v9719 = vsel %vm5809, %v9717, %v9718
        %v9720 = vrot.slane %v9667, 1
        %v9721 = vsel %vm5809, %v9718, %v9720
        %v9722 = vrot.slane %v9668, 1
        %v9723 = vrot.slane %v9669, 1
        %v9724 = vsel %vm5809, %v9722, %v9723
        %v9725 = vrot.slane %v9670, 1
        %v9726 = vsel %vm5809, %v9723, %v9725
        %v9727 = vrot.slane %v9671, 1
        %v9728 = vrot.slane %v9672, 1
        %v9729 = vsel %vm5809, %v9727, %v9728
        %v9730 = vrot.slane %v9673, 1
        %v9731 = vsel %vm5809, %v9728, %v9730
        %v9732 = vrot.slane %v9674, 1
        %v9733 = vrot.slane %v9675, 1
        %v9734 = vsel %vm5809, %v9732, %v9733
        %v9735 = vrot.slane %v9676, 1
        %v9736 = vsel %vm5809, %v9733, %v9735
        %v9737 = vrot.slane %v9677, 1
        %v9738 = vrot.slane %v9678, 1
        %v9739 = vsel %vm5809, %v9737, %v9738
        %v9740 = vrot.slane %v9679, 1
        %v9741 = vsel %vm5809, %v9738, %v9740
        %v9742 = vrot.slane %v9680, 1
        %v9743 = vrot.slane %v9681, 1
        %v9744 = vsel %vm5809, %v9742, %v9743
        %v9745 = vrot.slane %v9682, 1
        %v9746 = vsel %vm5809, %v9743, %v9745
        %9747 = vrot.lane.b32.xlu0 %v9709, 126
        %v9748 = vpop.permute.xlu0 %9747
        %9749 = vrot.lane.b32.xlu0 %v9711, 126
        %v9750 = vpop.permute.xlu0 %9749
        %9751 = vrot.lane.b32.xlu0 %v9714, 126
        %v9752 = vpop.permute.xlu0 %9751
        %9753 = vrot.lane.b32.xlu0 %v9716, 126
        %v9754 = vpop.permute.xlu0 %9753
        %9755 = vrot.lane.b32.xlu0 %v9719, 126
        %v9756 = vpop.permute.xlu0 %9755
        %9757 = vrot.lane.b32.xlu0 %v9721, 126
        %v9758 = vpop.permute.xlu0 %9757
        %9759 = vrot.lane.b32.xlu0 %v9724, 126
        %v9760 = vpop.permute.xlu0 %9759
        %9761 = vrot.lane.b32.xlu0 %v9726, 126
        %v9762 = vpop.permute.xlu0 %9761
        %9763 = vrot.lane.b32.xlu0 %v9729, 126
        %v9764 = vpop.permute.xlu0 %9763
        %9765 = vrot.lane.b32.xlu0 %v9731, 126
        %v9766 = vpop.permute.xlu0 %9765
        %9767 = vrot.lane.b32.xlu0 %v9734, 126
        %v9768 = vpop.permute.xlu0 %9767
        %9769 = vrot.lane.b32.xlu0 %v9736, 126
        %v9770 = vpop.permute.xlu0 %9769
        %9771 = vrot.lane.b32.xlu0 %v9739, 126
        %v9772 = vpop.permute.xlu0 %9771
        %9773 = vrot.lane.b32.xlu0 %v9741, 126
        %v9774 = vpop.permute.xlu0 %9773
        %9775 = vrot.lane.b32.xlu0 %v9744, 126
        %v9776 = vpop.permute.xlu0 %9775
        %9777 = vrot.lane.b32.xlu0 %v9746, 126
        %v9778 = vpop.permute.xlu0 %9777
        %v9795 = vadd.f32 %v9641, %v9748
        %v9796 = vadd.f32 %v9642, %v9750
        %v9797 = vadd.f32 %v9643, %v9752
        %v9798 = vadd.f32 %v9644, %v9754
        %v9799 = vadd.f32 %v9645, %v9756
        %v9800 = vadd.f32 %v9646, %v9758
        %v9801 = vadd.f32 %v9647, %v9760
        %v9802 = vadd.f32 %v9648, %v9762
        %v9803 = vadd.f32 %v9649, %v9764
        %v9804 = vadd.f32 %v9650, %v9766
        %v9805 = vadd.f32 %v9651, %v9768
        %v9806 = vadd.f32 %v9652, %v9770
        %v9807 = vadd.f32 %v9653, %v9772
        %v9808 = vadd.f32 %v9654, %v9774
        %v9809 = vadd.f32 %v9655, %v9776
        %v9810 = vadd.f32 %v9656, %v9778
        %s9811 = sld [smem:[#allocation9 + $0x21]]
        %v9812 = vstv %s9811
        %v9813 = vmul.f32 %v9812, %v5521
        %v9814 = vmul.f32 %v9812, %v5522
        %v9815 = vmul.f32 %v9812, %v5523
        %v9816 = vmul.f32 %v9812, %v5524
        %v9817 = vmul.f32 %v9812, %v5525
        %v9818 = vmul.f32 %v9812, %v5526
        %v9819 = vmul.f32 %v9812, %v5527
        %v9820 = vmul.f32 %v9812, %v5528
        %v9821 = vmul.f32 %v9812, %v5529
        %v9822 = vmul.f32 %v9812, %v5530
        %v9823 = vmul.f32 %v9812, %v5531
        %v9824 = vmul.f32 %v9812, %v5532
        %v9825 = vmul.f32 %v9812, %v5533
        %v9826 = vmul.f32 %v9812, %v5534
        %v9827 = vmul.f32 %v9812, %v5535
        %v9828 = vmul.f32 %v9812, %v5536
        %v9829 = vmul.f32 %v9812, %v5537
        %v9830 = vmul.f32 %v9812, %v5538
        %v9831 = vmul.f32 %v9812, %v5539
        %v9832 = vmul.f32 %v9812, %v5540
        %v9833 = vmul.f32 %v9812, %v5541
        %v9834 = vmul.f32 %v9812, %v5542
        %v9835 = vmul.f32 %v9812, %v5543
        %v9836 = vmul.f32 %v9812, %v5544
        %v9861 = vrot.slane %v9813, 2
        %v9862 = vrot.slane %v9814, 2
        %v9863 = vsel %vm6240, %v9861, %v9862
        %v9864 = vrot.slane %v9815, 2
        %v9865 = vsel %vm6240, %v9862, %v9864
        %v9866 = vrot.slane %v9816, 2
        %v9867 = vrot.slane %v9817, 2
        %v9868 = vsel %vm6240, %v9866, %v9867
        %v9869 = vrot.slane %v9818, 2
        %v9870 = vsel %vm6240, %v9867, %v9869
        %v9871 = vrot.slane %v9819, 2
        %v9872 = vrot.slane %v9820, 2
        %v9873 = vsel %vm6240, %v9871, %v9872
        %v9874 = vrot.slane %v9821, 2
        %v9875 = vsel %vm6240, %v9872, %v9874
        %v9876 = vrot.slane %v9822, 2
        %v9877 = vrot.slane %v9823, 2
        %v9878 = vsel %vm6240, %v9876, %v9877
        %v9879 = vrot.slane %v9824, 2
        %v9880 = vsel %vm6240, %v9877, %v9879
        %v9881 = vrot.slane %v9825, 2
        %v9882 = vrot.slane %v9826, 2
        %v9883 = vsel %vm6240, %v9881, %v9882
        %v9884 = vrot.slane %v9827, 2
        %v9885 = vsel %vm6240, %v9882, %v9884
        %v9886 = vrot.slane %v9828, 2
        %v9887 = vrot.slane %v9829, 2
        %v9888 = vsel %vm6240, %v9886, %v9887
        %v9889 = vrot.slane %v9830, 2
        %v9890 = vsel %vm6240, %v9887, %v9889
        %v9891 = vrot.slane %v9831, 2
        %v9892 = vrot.slane %v9832, 2
        %v9893 = vsel %vm6240, %v9891, %v9892
        %v9894 = vrot.slane %v9833, 2
        %v9895 = vsel %vm6240, %v9892, %v9894
        %v9896 = vrot.slane %v9834, 2
        %v9897 = vrot.slane %v9835, 2
        %v9898 = vsel %vm6240, %v9896, %v9897
        %v9899 = vrot.slane %v9836, 2
        %v9900 = vsel %vm6240, %v9897, %v9899
        %v9917 = vadd.f32 %v9795, %v9863
        %v9918 = vadd.f32 %v9796, %v9865
        %v9919 = vadd.f32 %v9797, %v9868
        %v9920 = vadd.f32 %v9798, %v9870
        %v9921 = vadd.f32 %v9799, %v9873
        %v9922 = vadd.f32 %v9800, %v9875
        %v9923 = vadd.f32 %v9801, %v9878
        %v9924 = vadd.f32 %v9802, %v9880
        %v9925 = vadd.f32 %v9803, %v9883
        %v9926 = vadd.f32 %v9804, %v9885
        %v9927 = vadd.f32 %v9805, %v9888
        %v9928 = vadd.f32 %v9806, %v9890
        %v9929 = vadd.f32 %v9807, %v9893
        %v9930 = vadd.f32 %v9808, %v9895
        %v9931 = vadd.f32 %v9809, %v9898
        %v9932 = vadd.f32 %v9810, %v9900
        %s9933 = sld [smem:[#allocation9 + $0x22]]
        %v9934 = vstv %s9933
        %v9935 = vmul.f32 %v9934, %v5521
        %v9936 = vmul.f32 %v9934, %v5522
        %v9937 = vmul.f32 %v9934, %v5523
        %v9938 = vmul.f32 %v9934, %v5524
        %v9939 = vmul.f32 %v9934, %v5525
        %v9940 = vmul.f32 %v9934, %v5526
        %v9941 = vmul.f32 %v9934, %v5527
        %v9942 = vmul.f32 %v9934, %v5528
        %v9943 = vmul.f32 %v9934, %v5529
        %v9944 = vmul.f32 %v9934, %v5530
        %v9945 = vmul.f32 %v9934, %v5531
        %v9946 = vmul.f32 %v9934, %v5532
        %v9947 = vmul.f32 %v9934, %v5533
        %v9948 = vmul.f32 %v9934, %v5534
        %v9949 = vmul.f32 %v9934, %v5535
        %v9950 = vmul.f32 %v9934, %v5536
        %v9951 = vmul.f32 %v9934, %v5537
        %v9952 = vmul.f32 %v9934, %v5538
        %v9953 = vmul.f32 %v9934, %v5539
        %v9954 = vmul.f32 %v9934, %v5540
        %v9955 = vmul.f32 %v9934, %v5541
        %v9956 = vmul.f32 %v9934, %v5542
        %v9957 = vmul.f32 %v9934, %v5543
        %v9958 = vmul.f32 %v9934, %v5544
        %v9983 = vrot.slane %v9935, 2
        %v9984 = vrot.slane %v9936, 2
        %v9985 = vsel %vm6240, %v9983, %v9984
        %v9986 = vrot.slane %v9937, 2
        %v9987 = vsel %vm6240, %v9984, %v9986
        %v9988 = vrot.slane %v9938, 2
        %v9989 = vrot.slane %v9939, 2
        %v9990 = vsel %vm6240, %v9988, %v9989
        %v9991 = vrot.slane %v9940, 2
        %v9992 = vsel %vm6240, %v9989, %v9991
        %v9993 = vrot.slane %v9941, 2
        %v9994 = vrot.slane %v9942, 2
        %v9995 = vsel %vm6240, %v9993, %v9994
        %v9996 = vrot.slane %v9943, 2
        %v9997 = vsel %vm6240, %v9994, %v9996
        %v9998 = vrot.slane %v9944, 2
        %v9999 = vrot.slane %v9945, 2
        %v10000 = vsel %vm6240, %v9998, %v9999
        %v10001 = vrot.slane %v9946, 2
        %v10002 = vsel %vm6240, %v9999, %v10001
        %v10003 = vrot.slane %v9947, 2
        %v10004 = vrot.slane %v9948, 2
        %v10005 = vsel %vm6240, %v10003, %v10004
        %v10006 = vrot.slane %v9949, 2
        %v10007 = vsel %vm6240, %v10004, %v10006
        %v10008 = vrot.slane %v9950, 2
        %v10009 = vrot.slane %v9951, 2
        %v10010 = vsel %vm6240, %v10008, %v10009
        %v10011 = vrot.slane %v9952, 2
        %v10012 = vsel %vm6240, %v10009, %v10011
        %v10013 = vrot.slane %v9953, 2
        %v10014 = vrot.slane %v9954, 2
        %v10015 = vsel %vm6240, %v10013, %v10014
        %v10016 = vrot.slane %v9955, 2
        %v10017 = vsel %vm6240, %v10014, %v10016
        %v10018 = vrot.slane %v9956, 2
        %v10019 = vrot.slane %v9957, 2
        %v10020 = vsel %vm6240, %v10018, %v10019
        %v10021 = vrot.slane %v9958, 2
        %v10022 = vsel %vm6240, %v10019, %v10021
        %10023 = vrot.lane.b32.xlu0 %v9985, 127
        %v10024 = vpop.permute.xlu0 %10023
        %10025 = vrot.lane.b32.xlu0 %v9987, 127
        %v10026 = vpop.permute.xlu0 %10025
        %10027 = vrot.lane.b32.xlu0 %v9990, 127
        %v10028 = vpop.permute.xlu0 %10027
        %10029 = vrot.lane.b32.xlu0 %v9992, 127
        %v10030 = vpop.permute.xlu0 %10029
        %10031 = vrot.lane.b32.xlu0 %v9995, 127
        %v10032 = vpop.permute.xlu0 %10031
        %10033 = vrot.lane.b32.xlu0 %v9997, 127
        %v10034 = vpop.permute.xlu0 %10033
        %10035 = vrot.lane.b32.xlu0 %v10000, 127
        %v10036 = vpop.permute.xlu0 %10035
        %10037 = vrot.lane.b32.xlu0 %v10002, 127
        %v10038 = vpop.permute.xlu0 %10037
        %10039 = vrot.lane.b32.xlu0 %v10005, 127
        %v10040 = vpop.permute.xlu0 %10039
        %10041 = vrot.lane.b32.xlu0 %v10007, 127
        %v10042 = vpop.permute.xlu0 %10041
        %10043 = vrot.lane.b32.xlu0 %v10010, 127
        %v10044 = vpop.permute.xlu0 %10043
        %10045 = vrot.lane.b32.xlu0 %v10012, 127
        %v10046 = vpop.permute.xlu0 %10045
        %10047 = vrot.lane.b32.xlu0 %v10015, 127
        %v10048 = vpop.permute.xlu0 %10047
        %10049 = vrot.lane.b32.xlu0 %v10017, 127
        %v10050 = vpop.permute.xlu0 %10049
        %10051 = vrot.lane.b32.xlu0 %v10020, 127
        %v10052 = vpop.permute.xlu0 %10051
        %10053 = vrot.lane.b32.xlu0 %v10022, 127
        %v10054 = vpop.permute.xlu0 %10053
        %v10071 = vadd.f32 %v9917, %v10024
        %v10072 = vadd.f32 %v9918, %v10026
        %v10073 = vadd.f32 %v9919, %v10028
        %v10074 = vadd.f32 %v9920, %v10030
        %v10075 = vadd.f32 %v9921, %v10032
        %v10076 = vadd.f32 %v9922, %v10034
        %v10077 = vadd.f32 %v9923, %v10036
        %v10078 = vadd.f32 %v9924, %v10038
        %v10079 = vadd.f32 %v9925, %v10040
        %v10080 = vadd.f32 %v9926, %v10042
        %v10081 = vadd.f32 %v9927, %v10044
        %v10082 = vadd.f32 %v9928, %v10046
        %v10083 = vadd.f32 %v9929, %v10048
        %v10084 = vadd.f32 %v9930, %v10050
        %v10085 = vadd.f32 %v9931, %v10052
        %v10086 = vadd.f32 %v9932, %v10054
        %s10087 = sld [smem:[#allocation9 + $0x23]]
        %v10088 = vstv %s10087
        %v10089 = vmul.f32 %v10088, %v5521
        %v10090 = vmul.f32 %v10088, %v5522
        %v10091 = vmul.f32 %v10088, %v5523
        %v10092 = vmul.f32 %v10088, %v5524
        %v10093 = vmul.f32 %v10088, %v5525
        %v10094 = vmul.f32 %v10088, %v5526
        %v10095 = vmul.f32 %v10088, %v5527
        %v10096 = vmul.f32 %v10088, %v5528
        %v10097 = vmul.f32 %v10088, %v5529
        %v10098 = vmul.f32 %v10088, %v5530
        %v10099 = vmul.f32 %v10088, %v5531
        %v10100 = vmul.f32 %v10088, %v5532
        %v10101 = vmul.f32 %v10088, %v5533
        %v10102 = vmul.f32 %v10088, %v5534
        %v10103 = vmul.f32 %v10088, %v5535
        %v10104 = vmul.f32 %v10088, %v5536
        %v10105 = vmul.f32 %v10088, %v5537
        %v10106 = vmul.f32 %v10088, %v5538
        %v10107 = vmul.f32 %v10088, %v5539
        %v10108 = vmul.f32 %v10088, %v5540
        %v10109 = vmul.f32 %v10088, %v5541
        %v10110 = vmul.f32 %v10088, %v5542
        %v10111 = vmul.f32 %v10088, %v5543
        %v10112 = vmul.f32 %v10088, %v5544
        %v10137 = vrot.slane %v10089, 2
        %v10138 = vrot.slane %v10090, 2
        %v10139 = vsel %vm6240, %v10137, %v10138
        %v10140 = vrot.slane %v10091, 2
        %v10141 = vsel %vm6240, %v10138, %v10140
        %v10142 = vrot.slane %v10092, 2
        %v10143 = vrot.slane %v10093, 2
        %v10144 = vsel %vm6240, %v10142, %v10143
        %v10145 = vrot.slane %v10094, 2
        %v10146 = vsel %vm6240, %v10143, %v10145
        %v10147 = vrot.slane %v10095, 2
        %v10148 = vrot.slane %v10096, 2
        %v10149 = vsel %vm6240, %v10147, %v10148
        %v10150 = vrot.slane %v10097, 2
        %v10151 = vsel %vm6240, %v10148, %v10150
        %v10152 = vrot.slane %v10098, 2
        %v10153 = vrot.slane %v10099, 2
        %v10154 = vsel %vm6240, %v10152, %v10153
        %v10155 = vrot.slane %v10100, 2
        %v10156 = vsel %vm6240, %v10153, %v10155
        %v10157 = vrot.slane %v10101, 2
        %v10158 = vrot.slane %v10102, 2
        %v10159 = vsel %vm6240, %v10157, %v10158
        %v10160 = vrot.slane %v10103, 2
        %v10161 = vsel %vm6240, %v10158, %v10160
        %v10162 = vrot.slane %v10104, 2
        %v10163 = vrot.slane %v10105, 2
        %v10164 = vsel %vm6240, %v10162, %v10163
        %v10165 = vrot.slane %v10106, 2
        %v10166 = vsel %vm6240, %v10163, %v10165
        %v10167 = vrot.slane %v10107, 2
        %v10168 = vrot.slane %v10108, 2
        %v10169 = vsel %vm6240, %v10167, %v10168
        %v10170 = vrot.slane %v10109, 2
        %v10171 = vsel %vm6240, %v10168, %v10170
        %v10172 = vrot.slane %v10110, 2
        %v10173 = vrot.slane %v10111, 2
        %v10174 = vsel %vm6240, %v10172, %v10173
        %v10175 = vrot.slane %v10112, 2
        %v10176 = vsel %vm6240, %v10173, %v10175
        %10177 = vrot.lane.b32.xlu0 %v10139, 126
        %v10178 = vpop.permute.xlu0 %10177
        %10179 = vrot.lane.b32.xlu0 %v10141, 126
        %v10180 = vpop.permute.xlu0 %10179
        %10181 = vrot.lane.b32.xlu0 %v10144, 126
        %v10182 = vpop.permute.xlu0 %10181
        %10183 = vrot.lane.b32.xlu0 %v10146, 126
        %v10184 = vpop.permute.xlu0 %10183
        %10185 = vrot.lane.b32.xlu0 %v10149, 126
        %v10186 = vpop.permute.xlu0 %10185
        %10187 = vrot.lane.b32.xlu0 %v10151, 126
        %v10188 = vpop.permute.xlu0 %10187
        %10189 = vrot.lane.b32.xlu0 %v10154, 126
        %v10190 = vpop.permute.xlu0 %10189
        %10191 = vrot.lane.b32.xlu0 %v10156, 126
        %v10192 = vpop.permute.xlu0 %10191
        %10193 = vrot.lane.b32.xlu0 %v10159, 126
        %v10194 = vpop.permute.xlu0 %10193
        %10195 = vrot.lane.b32.xlu0 %v10161, 126
        %v10196 = vpop.permute.xlu0 %10195
        %10197 = vrot.lane.b32.xlu0 %v10164, 126
        %v10198 = vpop.permute.xlu0 %10197
        %10199 = vrot.lane.b32.xlu0 %v10166, 126
        %v10200 = vpop.permute.xlu0 %10199
        %10201 = vrot.lane.b32.xlu0 %v10169, 126
        %v10202 = vpop.permute.xlu0 %10201
        %10203 = vrot.lane.b32.xlu0 %v10171, 126
        %v10204 = vpop.permute.xlu0 %10203
        %10205 = vrot.lane.b32.xlu0 %v10174, 126
        %v10206 = vpop.permute.xlu0 %10205
        %10207 = vrot.lane.b32.xlu0 %v10176, 126
        %v10208 = vpop.permute.xlu0 %10207
        %v10225 = vadd.f32 %v10071, %v10178
        %v10226 = vadd.f32 %v10072, %v10180
        %v10227 = vadd.f32 %v10073, %v10182
        %v10228 = vadd.f32 %v10074, %v10184
        %v10229 = vadd.f32 %v10075, %v10186
        %v10230 = vadd.f32 %v10076, %v10188
        %v10231 = vadd.f32 %v10077, %v10190
        %v10232 = vadd.f32 %v10078, %v10192
        %v10233 = vadd.f32 %v10079, %v10194
        %v10234 = vadd.f32 %v10080, %v10196
        %v10235 = vadd.f32 %v10081, %v10198
        %v10236 = vadd.f32 %v10082, %v10200
        %v10237 = vadd.f32 %v10083, %v10202
        %v10238 = vadd.f32 %v10084, %v10204
        %v10239 = vadd.f32 %v10085, %v10206
        %v10240 = vadd.f32 %v10086, %v10208
        %s10241 = sld [smem:[#allocation10 + $0x1]]
        %v10242 = vstv %s10241
        %v10243 = vadd.f32 %v10225, %v10242
        %v10244 = vadd.f32 %v10226, %v10242
        %v10245 = vadd.f32 %v10227, %v10242
        %v10246 = vadd.f32 %v10228, %v10242
        %v10247 = vadd.f32 %v10229, %v10242
        %v10248 = vadd.f32 %v10230, %v10242
        %v10249 = vadd.f32 %v10231, %v10242
        %v10250 = vadd.f32 %v10232, %v10242
        %v10251 = vadd.f32 %v10233, %v10242
        %v10252 = vadd.f32 %v10234, %v10242
        %v10253 = vadd.f32 %v10235, %v10242
        %v10254 = vadd.f32 %v10236, %v10242
        %v10255 = vadd.f32 %v10237, %v10242
        %v10256 = vadd.f32 %v10238, %v10242
        %v10257 = vadd.f32 %v10239, %v10242
        %v10258 = vadd.f32 %v10240, %v10242
        %v10259 = vcombine.low %v10243, %v10247
        %v10260 = vcombine.high %v10243, %v10247
        %v10262 = vunpack.c.l.s4 1983009808
        %v10263 = vunpack.c.0.s8 %v10262
        %v10264 = vlaneseq
        %v10265 = vshrl.u32 %v10264, 7
        %v10266 = vsub.s32 %v10263, %v10265
        %v10267 = vrot.slane %v10259, %v10266
        %v10269 = vunpack.c.l.s4 1983009808
        %v10270 = vunpack.c.0.s8 %v10269
        %v10271 = vlaneseq
        %v10272 = vshrl.u32 %v10271, 7
        %v10273 = vsub.s32 %v10270, %v10272
        %v10274 = vrot.slane %v10260, %v10273
        %v10275 = vcombine.low %v10245, %v10249
        %v10276 = vcombine.high %v10245, %v10249
        %v10278 = vunpack.c.l.s4 1983009808
        %v10279 = vunpack.c.0.s8 %v10278
        %v10280 = vlaneseq
        %v10281 = vshrl.u32 %v10280, 7
        %v10282 = vsub.s32 %v10279, %v10281
        %v10283 = vrot.slane %v10275, %v10282
        %v10285 = vunpack.c.l.s4 1983009808
        %v10286 = vunpack.c.0.s8 %v10285
        %v10287 = vlaneseq
        %v10288 = vshrl.u32 %v10287, 7
        %v10289 = vsub.s32 %v10286, %v10288
        %v10290 = vrot.slane %v10276, %v10289
        %v10291 = vcombine.low %v10251, %v10255
        %v10292 = vcombine.high %v10251, %v10255
        %v10294 = vunpack.c.l.s4 1983009808
        %v10295 = vunpack.c.0.s8 %v10294
        %v10296 = vlaneseq
        %v10297 = vshrl.u32 %v10296, 7
        %v10298 = vsub.s32 %v10295, %v10297
        %v10299 = vrot.slane %v10291, %v10298
        %v10301 = vunpack.c.l.s4 1983009808
        %v10302 = vunpack.c.0.s8 %v10301
        %v10303 = vlaneseq
        %v10304 = vshrl.u32 %v10303, 7
        %v10305 = vsub.s32 %v10302, %v10304
        %v10306 = vrot.slane %v10292, %v10305
        %v10307 = vcombine.low %v10253, %v10257
        %v10308 = vcombine.high %v10253, %v10257
        %v10310 = vunpack.c.l.s4 1983009808
        %v10311 = vunpack.c.0.s8 %v10310
        %v10312 = vlaneseq
        %v10313 = vshrl.u32 %v10312, 7
        %v10314 = vsub.s32 %v10311, %v10313
        %v10315 = vrot.slane %v10307, %v10314
        %v10317 = vunpack.c.l.s4 1983009808
        %v10318 = vunpack.c.0.s8 %v10317
        %v10319 = vlaneseq
        %v10320 = vshrl.u32 %v10319, 7
        %v10321 = vsub.s32 %v10318, %v10320
        %v10322 = vrot.slane %v10308, %v10321
        %v10323 = vcombine.low %v10267, %v10283
        %v10324 = vcombine.high %v10267, %v10283
        %v10326 = vunpack.c.l.s4 1934713408
        %v10327 = vunpack.c.0.s8 %v10326
        %v10328 = vlaneseq
        %v10329 = vshrl.u32 %v10328, 7
        %v10330 = vsub.s32 %v10327, %v10329
        %v10331 = vrot.slane %v10323, %v10330
        %v10333 = vunpack.c.l.s4 1934713408
        %v10334 = vunpack.c.0.s8 %v10333
        %v10335 = vlaneseq
        %v10336 = vshrl.u32 %v10335, 7
        %v10337 = vsub.s32 %v10334, %v10336
        %v10338 = vrot.slane %v10324, %v10337
        %v10339 = vcombine.low %v10274, %v10290
        %v10340 = vcombine.high %v10274, %v10290
        %v10342 = vunpack.c.l.s4 1934713408
        %v10343 = vunpack.c.0.s8 %v10342
        %v10344 = vlaneseq
        %v10345 = vshrl.u32 %v10344, 7
        %v10346 = vsub.s32 %v10343, %v10345
        %v10347 = vrot.slane %v10339, %v10346
        %v10349 = vunpack.c.l.s4 1934713408
        %v10350 = vunpack.c.0.s8 %v10349
        %v10351 = vlaneseq
        %v10352 = vshrl.u32 %v10351, 7
        %v10353 = vsub.s32 %v10350, %v10352
        %v10354 = vrot.slane %v10340, %v10353
        %v10355 = vcombine.low %v10299, %v10315
        %v10356 = vcombine.high %v10299, %v10315
        %v10358 = vunpack.c.l.s4 1934713408
        %v10359 = vunpack.c.0.s8 %v10358
        %v10360 = vlaneseq
        %v10361 = vshrl.u32 %v10360, 7
        %v10362 = vsub.s32 %v10359, %v10361
        %v10363 = vrot.slane %v10355, %v10362
        %v10365 = vunpack.c.l.s4 1934713408
        %v10366 = vunpack.c.0.s8 %v10365
        %v10367 = vlaneseq
        %v10368 = vshrl.u32 %v10367, 7
        %v10369 = vsub.s32 %v10366, %v10368
        %v10370 = vrot.slane %v10356, %v10369
        %v10371 = vcombine.low %v10306, %v10322
        %v10372 = vcombine.high %v10306, %v10322
        %v10374 = vunpack.c.l.s4 1934713408
        %v10375 = vunpack.c.0.s8 %v10374
        %v10376 = vlaneseq
        %v10377 = vshrl.u32 %v10376, 7
        %v10378 = vsub.s32 %v10375, %v10377
        %v10379 = vrot.slane %v10371, %v10378
        %v10381 = vunpack.c.l.s4 1934713408
        %v10382 = vunpack.c.0.s8 %v10381
        %v10383 = vlaneseq
        %v10384 = vshrl.u32 %v10383, 7
        %v10385 = vsub.s32 %v10382, %v10384
        %v10386 = vrot.slane %v10372, %v10385
        %v10387 = vcombine.low %v10331, %v10363
        %v10388 = vcombine.high %v10331, %v10363
        %v10389 = vcombine.low %v10338, %v10370
        %v10390 = vcombine.high %v10338, %v10370
        %v10391 = vcombine.low %v10347, %v10379
        %v10392 = vcombine.high %v10347, %v10379
        %v10393 = vcombine.low %v10354, %v10386
        %v10394 = vcombine.high %v10354, %v10386
        %v10395 = vcombine.low %v10244, %v10248
        %v10396 = vcombine.high %v10244, %v10248
        %v10398 = vunpack.c.l.s4 1983009808
        %v10399 = vunpack.c.0.s8 %v10398
        %v10400 = vlaneseq
        %v10401 = vshrl.u32 %v10400, 7
        %v10402 = vsub.s32 %v10399, %v10401
        %v10403 = vrot.slane %v10395, %v10402
        %v10405 = vunpack.c.l.s4 1983009808
        %v10406 = vunpack.c.0.s8 %v10405
        %v10407 = vlaneseq
        %v10408 = vshrl.u32 %v10407, 7
        %v10409 = vsub.s32 %v10406, %v10408
        %v10410 = vrot.slane %v10396, %v10409
        %v10411 = vcombine.low %v10246, %v10250
        %v10412 = vcombine.high %v10246, %v10250
        %v10414 = vunpack.c.l.s4 1983009808
        %v10415 = vunpack.c.0.s8 %v10414
        %v10416 = vlaneseq
        %v10417 = vshrl.u32 %v10416, 7
        %v10418 = vsub.s32 %v10415, %v10417
        %v10419 = vrot.slane %v10411, %v10418
        %v10421 = vunpack.c.l.s4 1983009808
        %v10422 = vunpack.c.0.s8 %v10421
        %v10423 = vlaneseq
        %v10424 = vshrl.u32 %v10423, 7
        %v10425 = vsub.s32 %v10422, %v10424
        %v10426 = vrot.slane %v10412, %v10425
        %v10427 = vcombine.low %v10252, %v10256
        %v10428 = vcombine.high %v10252, %v10256
        %v10430 = vunpack.c.l.s4 1983009808
        %v10431 = vunpack.c.0.s8 %v10430
        %v10432 = vlaneseq
        %v10433 = vshrl.u32 %v10432, 7
        %v10434 = vsub.s32 %v10431, %v10433
        %v10435 = vrot.slane %v10427, %v10434
        %v10437 = vunpack.c.l.s4 1983009808
        %v10438 = vunpack.c.0.s8 %v10437
        %v10439 = vlaneseq
        %v10440 = vshrl.u32 %v10439, 7
        %v10441 = vsub.s32 %v10438, %v10440
        %v10442 = vrot.slane %v10428, %v10441
        %v10443 = vcombine.low %v10254, %v10258
        %v10444 = vcombine.high %v10254, %v10258
        %v10446 = vunpack.c.l.s4 1983009808
        %v10447 = vunpack.c.0.s8 %v10446
        %v10448 = vlaneseq
        %v10449 = vshrl.u32 %v10448, 7
        %v10450 = vsub.s32 %v10447, %v10449
        %v10451 = vrot.slane %v10443, %v10450
        %v10453 = vunpack.c.l.s4 1983009808
        %v10454 = vunpack.c.0.s8 %v10453
        %v10455 = vlaneseq
        %v10456 = vshrl.u32 %v10455, 7
        %v10457 = vsub.s32 %v10454, %v10456
        %v10458 = vrot.slane %v10444, %v10457
        %v10459 = vcombine.low %v10403, %v10419
        %v10460 = vcombine.high %v10403, %v10419
        %v10462 = vunpack.c.l.s4 1934713408
        %v10463 = vunpack.c.0.s8 %v10462
        %v10464 = vlaneseq
        %v10465 = vshrl.u32 %v10464, 7
        %v10466 = vsub.s32 %v10463, %v10465
        %v10467 = vrot.slane %v10459, %v10466
        %v10469 = vunpack.c.l.s4 1934713408
        %v10470 = vunpack.c.0.s8 %v10469
        %v10471 = vlaneseq
        %v10472 = vshrl.u32 %v10471, 7
        %v10473 = vsub.s32 %v10470, %v10472
        %v10474 = vrot.slane %v10460, %v10473
        %v10475 = vcombine.low %v10410, %v10426
        %v10476 = vcombine.high %v10410, %v10426
        %v10478 = vunpack.c.l.s4 1934713408
        %v10479 = vunpack.c.0.s8 %v10478
        %v10480 = vlaneseq
        %v10481 = vshrl.u32 %v10480, 7
        %v10482 = vsub.s32 %v10479, %v10481
        %v10483 = vrot.slane %v10475, %v10482
        %v10485 = vunpack.c.l.s4 1934713408
        %v10486 = vunpack.c.0.s8 %v10485
        %v10487 = vlaneseq
        %v10488 = vshrl.u32 %v10487, 7
        %v10489 = vsub.s32 %v10486, %v10488
        %v10490 = vrot.slane %v10476, %v10489
        %v10491 = vcombine.low %v10435, %v10451
        %v10492 = vcombine.high %v10435, %v10451
        %v10494 = vunpack.c.l.s4 1934713408
        %v10495 = vunpack.c.0.s8 %v10494
        %v10496 = vlaneseq
        %v10497 = vshrl.u32 %v10496, 7
        %v10498 = vsub.s32 %v10495, %v10497
        %v10499 = vrot.slane %v10491, %v10498
        %v10501 = vunpack.c.l.s4 1934713408
        %v10502 = vunpack.c.0.s8 %v10501
        %v10503 = vlaneseq
        %v10504 = vshrl.u32 %v10503, 7
        %v10505 = vsub.s32 %v10502, %v10504
        %v10506 = vrot.slane %v10492, %v10505
        %v10507 = vcombine.low %v10442, %v10458
        %v10508 = vcombine.high %v10442, %v10458
        %v10510 = vunpack.c.l.s4 1934713408
        %v10511 = vunpack.c.0.s8 %v10510
        %v10512 = vlaneseq
        %v10513 = vshrl.u32 %v10512, 7
        %v10514 = vsub.s32 %v10511, %v10513
        %v10515 = vrot.slane %v10507, %v10514
        %v10517 = vunpack.c.l.s4 1934713408
        %v10518 = vunpack.c.0.s8 %v10517
        %v10519 = vlaneseq
        %v10520 = vshrl.u32 %v10519, 7
        %v10521 = vsub.s32 %v10518, %v10520
        %v10522 = vrot.slane %v10508, %v10521
        %v10523 = vcombine.low %v10467, %v10499
        %v10524 = vcombine.high %v10467, %v10499
        %v10525 = vcombine.low %v10474, %v10506
        %v10526 = vcombine.high %v10474, %v10506
        %v10527 = vcombine.low %v10483, %v10515
        %v10528 = vcombine.high %v10483, %v10515
        %v10529 = vcombine.low %v10490, %v10522
        %v10530 = vcombine.high %v10490, %v10522
        %10532 = vrot.lane.b32.xlu0 %v10388, 16
        %v10533 = vpop.permute.xlu0 %10532
        %10536 = vrot.lane.b32.xlu0 %v10389, 32
        %v10537 = vpop.permute.xlu0 %10536
        %10540 = vrot.lane.b32.xlu0 %v10390, 48
        %v10541 = vpop.permute.xlu0 %10540
        %10544 = vrot.lane.b32.xlu0 %v10391, 64
        %v10545 = vpop.permute.xlu0 %10544
        %10548 = vrot.lane.b32.xlu0 %v10392, 80
        %v10549 = vpop.permute.xlu0 %10548
        %10552 = vrot.lane.b32.xlu0 %v10393, 96
        %v10553 = vpop.permute.xlu0 %10552
        %10556 = vrot.lane.b32.xlu0 %v10394, 112
        %v10557 = vpop.permute.xlu0 %10556
        %10560 = vrot.lane.b32.xlu0 %v10524, 16
        %v10561 = vpop.permute.xlu0 %10560
        %10564 = vrot.lane.b32.xlu0 %v10525, 32
        %v10565 = vpop.permute.xlu0 %10564
        %10568 = vrot.lane.b32.xlu0 %v10526, 48
        %v10569 = vpop.permute.xlu0 %10568
        %10572 = vrot.lane.b32.xlu0 %v10527, 64
        %v10573 = vpop.permute.xlu0 %10572
        %10576 = vrot.lane.b32.xlu0 %v10528, 80
        %v10577 = vpop.permute.xlu0 %10576
        %10580 = vrot.lane.b32.xlu0 %v10529, 96
        %v10581 = vpop.permute.xlu0 %10580
        %10584 = vrot.lane.b32.xlu0 %v10530, 112
        %v10585 = vpop.permute.xlu0 %10584
        %v10587 = vsel %vm845, %v10387, %v10533
        %v10588 = vsel %vm8058, %v10587, %v10537
        %v10589 = vsel %vm8060, %v10588, %v10541
        %v10590 = vsel %vm8062, %v10589, %v10545
        %v10591 = vsel %vm8064, %v10590, %v10549
        %v10592 = vsel %vm8066, %v10591, %v10553
        %v10593 = vsel %vm8068, %v10592, %v10557
        %v10594 = vsel %vm845, %v10523, %v10561
        %v10595 = vsel %vm8058, %v10594, %v10565
        %v10596 = vsel %vm8060, %v10595, %v10569
        %v10597 = vsel %vm8062, %v10596, %v10573
        %v10598 = vsel %vm8064, %v10597, %v10577
        %v10599 = vsel %vm8066, %v10598, %v10581
        %v10600 = vsel %vm8068, %v10599, %v10585
        %v10601 = vadd.f32 %v8069, %v8076
        %10602 = vadd.xlane.f32.xlu0 %v10601
        %v10603 = vpop.xlane.xlu0 %10602
        %v10604 = vmul.f32 %v10603, %v1976
        %v10605 = vadd.f32 %v10593, %v10600
        %10606 = vadd.xlane.f32.xlu0 %v10605
        %v10607 = vpop.xlane.xlu0 %10606
        %v10608 = vmul.f32 %v10607, %v1976
        %v10609 = vmax.f32 %v10604, %v10608
        %v10610 = vsub.f32 %v10604, %v10609
        %v10611 = vmul.f32 %v10610, 1.442695
        %v10612 = vpow.pop %v10611
        %v10613 = vsub.f32 %v10608, %v10609
        %v10614 = vmul.f32 %v10613, 1.442695
        %v10615 = vpow.pop %v10614
        %v10616 = vadd.f32 %v10612, %v10615
        %v10617 = vrcp.pop %v10616
        %v10618 = vmul.f32 1.0, %v10617
        %v10619 = vmul.f32 %v10612, %v10618
        %v10620 = vmul.f32 %v10615, %v10618
        %s10621 = sld [smem:[#allocation12]]
        %v10622 = vstv %s10621
        %v10623 = vmul.f32 %v10622, %v8069
        %v10624 = vmul.f32 %v10622, %v8076
        %v10633 = vlaneseq
        %v10634 = vshrl.u32 %v10633, 7
        %v10635 = vsub.s32 0, %v10634
        %v10636 = vrot.slane %v2190, %v10635
        %v10637 = vlaneseq
        %v10638 = vshrl.u32 %v10637, 7
        %v10639 = vsub.s32 2, %v10638
        %v10640 = vrot.slane %v2190, %v10639
        %v10641 = vlaneseq
        %v10642 = vshrl.u32 %v10641, 7
        %v10643 = vsub.s32 0, %v10642
        %v10644 = vrot.slane %v2191, %v10643
        %v10645 = vlaneseq
        %v10646 = vshrl.u32 %v10645, 7
        %v10647 = vsub.s32 2, %v10646
        %v10648 = vrot.slane %v2191, %v10647
        %v10649 = vlaneseq
        %v10650 = vshrl.u32 %v10649, 7
        %v10651 = vsub.s32 0, %v10650
        %v10652 = vrot.slane %v2192, %v10651
        %v10653 = vlaneseq
        %v10654 = vshrl.u32 %v10653, 7
        %v10655 = vsub.s32 2, %v10654
        %v10656 = vrot.slane %v2192, %v10655
        %v10657 = vlaneseq
        %v10658 = vshrl.u32 %v10657, 7
        %v10659 = vsub.s32 0, %v10658
        %v10660 = vrot.slane %v2193, %v10659
        %v10661 = vlaneseq
        %v10662 = vshrl.u32 %v10661, 7
        %v10663 = vsub.s32 2, %v10662
        %v10664 = vrot.slane %v2193, %v10663
        %v10665 = vlaneseq
        %v10666 = vshrl.u32 %v10665, 7
        %v10667 = vsub.s32 0, %v10666
        %v10668 = vrot.slane %v2194, %v10667
        %v10669 = vlaneseq
        %v10670 = vshrl.u32 %v10669, 7
        %v10671 = vsub.s32 2, %v10670
        %v10672 = vrot.slane %v2194, %v10671
        %v10673 = vlaneseq
        %v10674 = vshrl.u32 %v10673, 7
        %v10675 = vsub.s32 0, %v10674
        %v10676 = vrot.slane %v2195, %v10675
        %v10677 = vlaneseq
        %v10678 = vshrl.u32 %v10677, 7
        %v10679 = vsub.s32 2, %v10678
        %v10680 = vrot.slane %v2195, %v10679
        %v10681 = vlaneseq
        %v10682 = vshrl.u32 %v10681, 7
        %v10683 = vsub.s32 0, %v10682
        %v10684 = vrot.slane %v2196, %v10683
        %v10685 = vlaneseq
        %v10686 = vshrl.u32 %v10685, 7
        %v10687 = vsub.s32 2, %v10686
        %v10688 = vrot.slane %v2196, %v10687
        %v10689 = vlaneseq
        %v10690 = vshrl.u32 %v10689, 7
        %v10691 = vsub.s32 0, %v10690
        %v10692 = vrot.slane %v2197, %v10691
        %v10693 = vlaneseq
        %v10694 = vshrl.u32 %v10693, 7
        %v10695 = vsub.s32 2, %v10694
        %v10696 = vrot.slane %v2197, %v10695
        %v10697 = vsel %vm1681, %v10644, %v10636
        %v10698 = vsel %vm1683, %v10652, %v10697
        %v10699 = vsel %vm1685, %v10660, %v10698
        %v10700 = vsel %vm1687, %v10668, %v10699
        %v10701 = vsel %vm1689, %v10676, %v10700
        %v10702 = vsel %vm1691, %v10684, %v10701
        %v10703 = vsel %vm1693, %v10692, %v10702
        %v10704 = vsel %vm1681, %v10648, %v10640
        %v10705 = vsel %vm1683, %v10656, %v10704
        %v10706 = vsel %vm1685, %v10664, %v10705
        %v10707 = vsel %vm1687, %v10672, %v10706
        %v10708 = vsel %vm1689, %v10680, %v10707
        %v10709 = vsel %vm1691, %v10688, %v10708
        %v10710 = vsel %vm1693, %v10696, %v10709
        %v10713 = vmul.f32 %v10619, %v10703
        %v10714 = vmul.f32 %v10619, %v10710
        %v10715 = vadd.f32 %v10623, %v10713
        %v10716 = vadd.f32 %v10624, %v10714
        %s10717 = sld [smem:[#allocation12 + $0x1]]
        %v10718 = vstv %s10717
        %v10719 = vmul.f32 %v10718, %v10593
        %v10720 = vmul.f32 %v10718, %v10600
        %v10721 = vadd.f32 %v10715, %v10719
        %v10722 = vadd.f32 %v10716, %v10720
        %v10731 = vlaneseq
        %v10732 = vshrl.u32 %v10731, 7
        %v10733 = vsub.s32 1, %v10732
        %v10734 = vrot.slane %v2775, %v10733
        %v10735 = vlaneseq
        %v10736 = vshrl.u32 %v10735, 7
        %v10737 = vsub.s32 3, %v10736
        %v10738 = vrot.slane %v2775, %v10737
        %v10739 = vlaneseq
        %v10740 = vshrl.u32 %v10739, 7
        %v10741 = vsub.s32 1, %v10740
        %v10742 = vrot.slane %v2776, %v10741
        %v10743 = vlaneseq
        %v10744 = vshrl.u32 %v10743, 7
        %v10745 = vsub.s32 3, %v10744
        %v10746 = vrot.slane %v2776, %v10745
        %v10747 = vlaneseq
        %v10748 = vshrl.u32 %v10747, 7
        %v10749 = vsub.s32 1, %v10748
        %v10750 = vrot.slane %v2777, %v10749
        %v10751 = vlaneseq
        %v10752 = vshrl.u32 %v10751, 7
        %v10753 = vsub.s32 3, %v10752
        %v10754 = vrot.slane %v2777, %v10753
        %v10755 = vlaneseq
        %v10756 = vshrl.u32 %v10755, 7
        %v10757 = vsub.s32 1, %v10756
        %v10758 = vrot.slane %v2778, %v10757
        %v10759 = vlaneseq
        %v10760 = vshrl.u32 %v10759, 7
        %v10761 = vsub.s32 3, %v10760
        %v10762 = vrot.slane %v2778, %v10761
        %v10763 = vlaneseq
        %v10764 = vshrl.u32 %v10763, 7
        %v10765 = vsub.s32 1, %v10764
        %v10766 = vrot.slane %v2779, %v10765
        %v10767 = vlaneseq
        %v10768 = vshrl.u32 %v10767, 7
        %v10769 = vsub.s32 3, %v10768
        %v10770 = vrot.slane %v2779, %v10769
        %v10771 = vlaneseq
        %v10772 = vshrl.u32 %v10771, 7
        %v10773 = vsub.s32 1, %v10772
        %v10774 = vrot.slane %v2780, %v10773
        %v10775 = vlaneseq
        %v10776 = vshrl.u32 %v10775, 7
        %v10777 = vsub.s32 3, %v10776
        %v10778 = vrot.slane %v2780, %v10777
        %v10779 = vlaneseq
        %v10780 = vshrl.u32 %v10779, 7
        %v10781 = vsub.s32 1, %v10780
        %v10782 = vrot.slane %v2781, %v10781
        %v10783 = vlaneseq
        %v10784 = vshrl.u32 %v10783, 7
        %v10785 = vsub.s32 3, %v10784
        %v10786 = vrot.slane %v2781, %v10785
        %v10787 = vlaneseq
        %v10788 = vshrl.u32 %v10787, 7
        %v10789 = vsub.s32 1, %v10788
        %v10790 = vrot.slane %v2782, %v10789
        %v10791 = vlaneseq
        %v10792 = vshrl.u32 %v10791, 7
        %v10793 = vsub.s32 3, %v10792
        %v10794 = vrot.slane %v2782, %v10793
        %v10795 = vsel %vm1681, %v10742, %v10734
        %v10796 = vsel %vm1683, %v10750, %v10795
        %v10797 = vsel %vm1685, %v10758, %v10796
        %v10798 = vsel %vm1687, %v10766, %v10797
        %v10799 = vsel %vm1689, %v10774, %v10798
        %v10800 = vsel %vm1691, %v10782, %v10799
        %v10801 = vsel %vm1693, %v10790, %v10800
        %v10802 = vsel %vm1681, %v10746, %v10738
        %v10803 = vsel %vm1683, %v10754, %v10802
        %v10804 = vsel %vm1685, %v10762, %v10803
        %v10805 = vsel %vm1687, %v10770, %v10804
        %v10806 = vsel %vm1689, %v10778, %v10805
        %v10807 = vsel %vm1691, %v10786, %v10806
        %v10808 = vsel %vm1693, %v10794, %v10807
        %v10811 = vmul.f32 %v10620, %v10801
        %v10812 = vmul.f32 %v10620, %v10808
        %v10813 = vadd.f32 %v10721, %v10811
        %v10814 = vadd.f32 %v10722, %v10812
        %v10815 = vxor.u32 %v10813, 2147483648
        %v10816 = vxor.u32 %v10814, 2147483648
        %v10817 = vmul.f32 %v10815, 1.442695
        %v10818 = vpow.pop %v10817
        %v10819 = vmul.f32 %v10816, 1.442695
        %v10820 = vpow.pop %v10819
        %v10821 = vadd.f32 %v10818, 1.0
        %v10822 = vadd.f32 %v10820, 1.0
        %v10823 = vrcp.pop %v10821
        %v10824 = vmul.f32 1.0, %v10823
        %v10825 = vrcp.pop %v10822
        %v10826 = vmul.f32 1.0, %v10825
        %v10827 = vld [vmem:[%s10] sm:$0xff]
        %v10828 = vld [vmem:[%s10 + $0x8] sm:$0xff]
        %v10829 = vld [vmem:[%s10 + $0x10] sm:$0xff]
        %v10830 = vld [vmem:[%s10 + $0x18] sm:$0xff]
        %v10831 = vmul.f32 %v719, %v1309
        %v10832 = vmul.f32 %v720, %v1310
        %v10833 = vmul.f32 %v721, %v1311
        %v10834 = vmul.f32 %v722, %v1312
        %v10835 = vld [vmem:[%s12] sm:$0xff]
        %v10836 = vld [vmem:[%s12 + $0x8] sm:$0xff]
        %v10837 = vld [vmem:[%s12 + $0x10] sm:$0xff]
        %v10838 = vld [vmem:[%s12 + $0x18] sm:$0xff]
        %10840 = vset.pattern.permute.xlu0 0
        %10841 = vperm.xlu0 %10840, %v10835
        %v10842 = vpop.permute.xlu0 %10841
        %10845 = vset.pattern.permute.xlu0 0
        %10846 = vperm.xlu0 %10845, %v10836
        %v10847 = vpop.permute.xlu0 %10846
        %10850 = vset.pattern.permute.xlu0 0
        %10851 = vperm.xlu0 %10850, %v10837
        %v10852 = vpop.permute.xlu0 %10851
        %10855 = vset.pattern.permute.xlu0 0
        %10856 = vperm.xlu0 %10855, %v10838
        %v10857 = vpop.permute.xlu0 %10856
        %v10860 = vsel %vm845, %v10827, 0
        %v10863 = vsel %vm845, %v10828, 0
        %v10866 = vsel %vm845, %v10829, 0
        %v10869 = vsel %vm845, %v10830, 0
        %10871 = vmatprep.subr.mxu0 %v10832
        %10872 = vmatpush1.msra.mxu0 %v10831
        %10873 = vmatprep.subr.mxu0 %v10834
        %10874 = vmatpush1.msra.mxu0 %v10833
        %10875 = vmatprep.subr.mxu0 0.0
        %10876 = vmatpush1.msra.mxu0 0.0
        %10877 = vmatprep.subr.mxu0 0.0
        %10878 = vmatpush1.msra.mxu0 0.0
        %10879 = vmatprep.subr.mxu0 0.0
        %10880 = vmatpush1.msra.mxu0 0.0
        %10881 = vmatprep.subr.mxu0 0.0
        %10882 = vmatpush1.msra.mxu0 0.0
        %10883 = vmatprep.subr.mxu0 0.0
        %10884 = vmatpush1.msra.mxu0 0.0
        %10885 = vmatprep.subr.mxu0 0.0
        %10886 = vmatpush1.msra.mxu0 0.0
        %10887 = vmatprep.subr.mxu0 0.0
        %10888 = vmatpush1.msra.mxu0 0.0
        %10889 = vmatprep.subr.mxu0 0.0
        %10890 = vmatpush1.msra.mxu0 0.0
        %10891 = vmatprep.subr.mxu0 0.0
        %10892 = vmatpush1.msra.mxu0 0.0
        %10893 = vmatprep.subr.mxu0 0.0
        %10894 = vmatpush1.msra.mxu0 0.0
        %10895 = vmatprep.subr.mxu0 0.0
        %10896 = vmatpush1.msra.mxu0 0.0
        %10897 = vmatprep.subr.mxu0 0.0
        %10898 = vmatpush1.msra.mxu0 0.0
        %10899 = vmatprep.subr.mxu0 0.0
        %10900 = vmatpush1.msra.mxu0 0.0
        %10901 = vmatprep.subr.mxu0 0.0
        %10902 = vmatpush1.msra.mxu0 0.0
        %10903 = vmatprep.subr.mxu0 0.0
        %10904 = vmatpush1.msra.mxu0 0.0
        %10905 = vmatprep.subr.mxu0 0.0
        %10906 = vmatpush1.msra.mxu0 0.0
        %10907 = vmatprep.subr.mxu0 0.0
        %10908 = vmatpush1.msra.mxu0 0.0
        %10909 = vmatprep.subr.mxu0 0.0
        %10910 = vmatpush1.msra.mxu0 0.0
        %10911 = vmatprep.subr.mxu0 0.0
        %10912 = vmatpush1.msra.mxu0 0.0
        %10913 = vmatprep.subr.mxu0 0.0
        %10914 = vmatpush1.msra.mxu0 0.0
        %10915 = vmatprep.subr.mxu0 0.0
        %10916 = vmatpush1.msra.mxu0 0.0
        %10917 = vmatprep.subr.mxu0 0.0
        %10918 = vmatpush1.msra.mxu0 0.0
        %10919 = vmatprep.subr.mxu0 0.0
        %10920 = vmatpush1.msra.mxu0 0.0
        %10921 = vmatprep.subr.mxu0 0.0
        %10922 = vmatpush1.msra.mxu0 0.0
        %10923 = vmatprep.subr.mxu0 0.0
        %10924 = vmatpush1.msra.mxu0 0.0
        %10925 = vmatprep.subr.mxu0 0.0
        %10926 = vmatpush1.msra.mxu0 0.0
        %10927 = vmatprep.subr.mxu0 0.0
        %10928 = vmatpush1.msra.mxu0 0.0
        %10929 = vmatprep.subr.mxu0 0.0
        %10930 = vmatpush1.msra.mxu0 0.0
        %10931 = vmatprep.subr.mxu0 0.0
        %10932 = vmatpush1.msra.mxu0 0.0
        %10933 = vmatprep.subr.mxu0 0.0
        %10934 = vmatpush1.msra.mxu0 0.0
        %10935 = vmatprep.mubr.f32.mxu0 0.0
        %10936 = vmatmul.mubr.f32.gmra.mrb[0].mxu0 %v10860
        %v10937 = vpop.f32.mrb[0].mxu0
        %v10938 = vadd.f32 %v10842, %v10937
        %v10939 = vpop.f32.mrb[0].mxu0
        %v10940 = vadd.f32 %v10842, %v10939
        %10941 = vmatprep.mubr.f32.mxu0 0.0
        %10942 = vmatmul.mubr.f32.gmra.mrb[0].mxu0 %v10863
        %v10943 = vpop.f32.mrb[0].mxu0
        %v10944 = vadd.f32 %v10847, %v10943
        %v10945 = vpop.f32.mrb[0].mxu0
        %v10946 = vadd.f32 %v10847, %v10945
        %10947 = vmatprep.mubr.f32.mxu0 0.0
        %10948 = vmatmul.mubr.f32.gmra.mrb[0].mxu0 %v10866
        %v10949 = vpop.f32.mrb[0].mxu0
        %v10950 = vadd.f32 %v10852, %v10949
        %v10951 = vpop.f32.mrb[0].mxu0
        %v10952 = vadd.f32 %v10852, %v10951
        %10953 = vmatprep.mubr.f32.mxu0 0.0
        %10954 = vmatmul.mubr.f32.gmra.mrb[0].mxu0 %v10869
        %v10955 = vpop.f32.mrb[0].mxu0
        %v10956 = vadd.f32 %v10857, %v10955
        %v10957 = vpop.f32.mrb[0].mxu0
        %v10958 = vadd.f32 %v10857, %v10957
        %10959 = vdwg.mxu0
        %v10960 = vld [vmem:[%s11] sm:$0xff]
        %v10961 = vld [vmem:[%s11 + $0x8] sm:$0xff]
        %v10962 = vld [vmem:[%s11 + $0x10] sm:$0xff]
        %v10963 = vld [vmem:[%s11 + $0x18] sm:$0xff]
        %v10966 = vcombine.low %v10824, %v10826
        %v10967 = vcombine.high %v10824, %v10826
        %v10969 = vunpack.c.l.s4 1983009808
        %v10970 = vunpack.c.0.s8 %v10969
        %v10971 = vlaneseq
        %v10972 = vshrl.u32 %v10971, 7
        %v10973 = vsub.s32 %v10970, %v10972
        %v10974 = vrot.slane %v10966, %v10973
        %v10976 = vunpack.c.l.s4 1983009808
        %v10977 = vunpack.c.0.s8 %v10976
        %v10978 = vlaneseq
        %v10979 = vshrl.u32 %v10978, 7
        %v10980 = vsub.s32 %v10977, %v10979
        %v10981 = vrot.slane %v10967, %v10980
        %v10982 = vcombine.high %v10974, %v10974
        %v10983 = vcombine.high %v10981, %v10981
        %v10984 = vrot.slane %v10974, 1
        %v10985 = vrot.slane %v10982, 1
        %v10986 = vrot.slane %v10981, 1
        %v10987 = vrot.slane %v10983, 1
        %v10996 = vmul.f32 %v1325, %v10974
        %v10997 = vmul.f32 %v1333, %v10984
        %v10998 = vmul.f32 %v1332, %v10982
        %v10999 = vmul.f32 %v1334, %v10985
        %v11000 = vmul.f32 %v1343, %v10981
        %v11001 = vmul.f32 %v1351, %v10986
        %v11002 = vmul.f32 %v1350, %v10983
        %v11003 = vmul.f32 %v1352, %v10987
        %v11012 = vlaneseq
        %v11013 = vshrl.u32 %v11012, 7
        %v11014 = vsub.s32 0, %v11013
        %v11015 = vrot.slane %v10996, %v11014
        %v11016 = vlaneseq
        %v11017 = vshrl.u32 %v11016, 7
        %v11018 = vsub.s32 2, %v11017
        %v11019 = vrot.slane %v10996, %v11018
        %v11020 = vlaneseq
        %v11021 = vshrl.u32 %v11020, 7
        %v11022 = vsub.s32 0, %v11021
        %v11023 = vrot.slane %v10997, %v11022
        %v11024 = vlaneseq
        %v11025 = vshrl.u32 %v11024, 7
        %v11026 = vsub.s32 2, %v11025
        %v11027 = vrot.slane %v10997, %v11026
        %v11028 = vlaneseq
        %v11029 = vshrl.u32 %v11028, 7
        %v11030 = vsub.s32 0, %v11029
        %v11031 = vrot.slane %v10998, %v11030
        %v11032 = vlaneseq
        %v11033 = vshrl.u32 %v11032, 7
        %v11034 = vsub.s32 2, %v11033
        %v11035 = vrot.slane %v10998, %v11034
        %v11036 = vlaneseq
        %v11037 = vshrl.u32 %v11036, 7
        %v11038 = vsub.s32 0, %v11037
        %v11039 = vrot.slane %v10999, %v11038
        %v11040 = vlaneseq
        %v11041 = vshrl.u32 %v11040, 7
        %v11042 = vsub.s32 2, %v11041
        %v11043 = vrot.slane %v10999, %v11042
        %v11044 = vlaneseq
        %v11045 = vshrl.u32 %v11044, 7
        %v11046 = vsub.s32 0, %v11045
        %v11047 = vrot.slane %v11000, %v11046
        %v11048 = vlaneseq
        %v11049 = vshrl.u32 %v11048, 7
        %v11050 = vsub.s32 2, %v11049
        %v11051 = vrot.slane %v11000, %v11050
        %v11052 = vlaneseq
        %v11053 = vshrl.u32 %v11052, 7
        %v11054 = vsub.s32 0, %v11053
        %v11055 = vrot.slane %v11001, %v11054
        %v11056 = vlaneseq
        %v11057 = vshrl.u32 %v11056, 7
        %v11058 = vsub.s32 2, %v11057
        %v11059 = vrot.slane %v11001, %v11058
        %v11060 = vlaneseq
        %v11061 = vshrl.u32 %v11060, 7
        %v11062 = vsub.s32 0, %v11061
        %v11063 = vrot.slane %v11002, %v11062
        %v11064 = vlaneseq
        %v11065 = vshrl.u32 %v11064, 7
        %v11066 = vsub.s32 2, %v11065
        %v11067 = vrot.slane %v11002, %v11066
        %v11068 = vlaneseq
        %v11069 = vshrl.u32 %v11068, 7
        %v11070 = vsub.s32 0, %v11069
        %v11071 = vrot.slane %v11003, %v11070
        %v11072 = vlaneseq
        %v11073 = vshrl.u32 %v11072, 7
        %v11074 = vsub.s32 2, %v11073
        %v11075 = vrot.slane %v11003, %v11074
        %v11076 = vsel %vm1681, %v11023, %v11015
        %v11077 = vsel %vm1683, %v11031, %v11076
        %v11078 = vsel %vm1685, %v11039, %v11077
        %v11079 = vsel %vm1687, %v11047, %v11078
        %v11080 = vsel %vm1689, %v11055, %v11079
        %v11081 = vsel %vm1691, %v11063, %v11080
        %v11082 = vsel %vm1693, %v11071, %v11081
        %v11083 = vsel %vm1681, %v11027, %v11019
        %v11084 = vsel %vm1683, %v11035, %v11083
        %v11085 = vsel %vm1685, %v11043, %v11084
        %v11086 = vsel %vm1687, %v11051, %v11085
        %v11087 = vsel %vm1689, %v11059, %v11086
        %v11088 = vsel %vm1691, %v11067, %v11087
        %v11089 = vsel %vm1693, %v11075, %v11088
        %v11093 = vsel %vm938, %v10960, 0
        %v11096 = vsel %vm938, %v10961, 0
        %v11099 = vsel %vm938, %v10962, 0
        %v11102 = vsel %vm938, %v10963, 0
        %11104 = vmatprep.subr.mxu0 %v11089
        %11105 = vmatpush1.msra.mxu0 %v11082
        %11106 = vmatprep.subr.mxu0 0.0
        %11107 = vmatpush1.msra.mxu0 0.0
        %11108 = vmatprep.subr.mxu0 0.0
        %11109 = vmatpush1.msra.mxu0 0.0
        %11110 = vmatprep.subr.mxu0 0.0
        %11111 = vmatpush1.msra.mxu0 0.0
        %11112 = vmatprep.subr.mxu0 0.0
        %11113 = vmatpush1.msra.mxu0 0.0
        %11114 = vmatprep.subr.mxu0 0.0
        %11115 = vmatpush1.msra.mxu0 0.0
        %11116 = vmatprep.subr.mxu0 0.0
        %11117 = vmatpush1.msra.mxu0 0.0
        %11118 = vmatprep.subr.mxu0 0.0
        %11119 = vmatpush1.msra.mxu0 0.0
        %11120 = vmatprep.subr.mxu0 0.0
        %11121 = vmatpush1.msra.mxu0 0.0
        %11122 = vmatprep.subr.mxu0 0.0
        %11123 = vmatpush1.msra.mxu0 0.0
        %11124 = vmatprep.subr.mxu0 0.0
        %11125 = vmatpush1.msra.mxu0 0.0
        %11126 = vmatprep.subr.mxu0 0.0
        %11127 = vmatpush1.msra.mxu0 0.0
        %11128 = vmatprep.subr.mxu0 0.0
        %11129 = vmatpush1.msra.mxu0 0.0
        %11130 = vmatprep.subr.mxu0 0.0
        %11131 = vmatpush1.msra.mxu0 0.0
        %11132 = vmatprep.subr.mxu0 0.0
        %11133 = vmatpush1.msra.mxu0 0.0
        %11134 = vmatprep.subr.mxu0 0.0
        %11135 = vmatpush1.msra.mxu0 0.0
        %11136 = vmatprep.subr.mxu0 0.0
        %11137 = vmatpush1.msra.mxu0 0.0
        %11138 = vmatprep.subr.mxu0 0.0
        %11139 = vmatpush1.msra.mxu0 0.0
        %11140 = vmatprep.subr.mxu0 0.0
        %11141 = vmatpush1.msra.mxu0 0.0
        %11142 = vmatprep.subr.mxu0 0.0
        %11143 = vmatpush1.msra.mxu0 0.0
        %11144 = vmatprep.subr.mxu0 0.0
        %11145 = vmatpush1.msra.mxu0 0.0
        %11146 = vmatprep.subr.mxu0 0.0
        %11147 = vmatpush1.msra.mxu0 0.0
        %11148 = vmatprep.subr.mxu0 0.0
        %11149 = vmatpush1.msra.mxu0 0.0
        %11150 = vmatprep.subr.mxu0 0.0
        %11151 = vmatpush1.msra.mxu0 0.0
        %11152 = vmatprep.subr.mxu0 0.0
        %11153 = vmatpush1.msra.mxu0 0.0
        %11154 = vmatprep.subr.mxu0 0.0
        %11155 = vmatpush1.msra.mxu0 0.0
        %11156 = vmatprep.subr.mxu0 0.0
        %11157 = vmatpush1.msra.mxu0 0.0
        %11158 = vmatprep.subr.mxu0 0.0
        %11159 = vmatpush1.msra.mxu0 0.0
        %11160 = vmatprep.subr.mxu0 0.0
        %11161 = vmatpush1.msra.mxu0 0.0
        %11162 = vmatprep.subr.mxu0 0.0
        %11163 = vmatpush1.msra.mxu0 0.0
        %11164 = vmatprep.subr.mxu0 0.0
        %11165 = vmatpush1.msra.mxu0 0.0
        %11166 = vmatprep.subr.mxu0 0.0
        %11167 = vmatpush1.msra.mxu0 0.0
        %11168 = vmatprep.mubr.f32.mxu0 0.0
        %11169 = vmatmul.mubr.f32.gmra.mrb[0].mxu0 %v11093
        %v11170 = vpop.f32.mrb[0].mxu0
        %v11171 = vadd.f32 0.0, %v11170
        %v11172 = vpop.f32.mrb[0].mxu0
        %v11173 = vadd.f32 0.0, %v11172
        %11174 = vmatprep.mubr.f32.mxu0 0.0
        %11175 = vmatmul.mubr.f32.gmra.mrb[0].mxu0 %v11096
        %v11176 = vpop.f32.mrb[0].mxu0
        %v11177 = vadd.f32 0.0, %v11176
        %v11178 = vpop.f32.mrb[0].mxu0
        %v11179 = vadd.f32 0.0, %v11178
        %11180 = vmatprep.mubr.f32.mxu0 0.0
        %11181 = vmatmul.mubr.f32.gmra.mrb[0].mxu0 %v11099
        %v11182 = vpop.f32.mrb[0].mxu0
        %v11183 = vadd.f32 0.0, %v11182
        %v11184 = vpop.f32.mrb[0].mxu0
        %v11185 = vadd.f32 0.0, %v11184
        %11186 = vmatprep.mubr.f32.mxu0 0.0
        %11187 = vmatmul.mubr.f32.gmra.mrb[0].mxu0 %v11102
        %v11188 = vpop.f32.mrb[0].mxu0
        %v11189 = vadd.f32 0.0, %v11188
        %v11190 = vpop.f32.mrb[0].mxu0
        %v11191 = vadd.f32 0.0, %v11190
        %11192 = vdwg.mxu0
        %v11193 = vadd.f32 %v10938, %v11171
        %v11194 = vadd.f32 %v10940, %v11173
        %v11195 = vadd.f32 %v10944, %v11177
        %v11196 = vadd.f32 %v10946, %v11179
        %v11197 = vadd.f32 %v10950, %v11183
        %v11198 = vadd.f32 %v10952, %v11185
        %v11199 = vadd.f32 %v10956, %v11189
        %v11200 = vadd.f32 %v10958, %v11191
        %s11201 = scalar_lea.vmem %s11, 32
        %v11202 = vld [vmem:[%s11201] sm:$0xff]
        %v11203 = vld [vmem:[%s11201 + $0x8] sm:$0xff]
        %v11204 = vld [vmem:[%s11201 + $0x10] sm:$0xff]
        %v11205 = vld [vmem:[%s11201 + $0x18] sm:$0xff]
        %v11206 = vrot.slane %v10974, 7
        %v11207 = vrot.slane %v10982, 7
        %v11208 = vrot.slane %v10981, 7
        %v11209 = vrot.slane %v10983, 7
        %v11214 = vmul.f32 %v1325, %v11206
        %v11215 = vmul.f32 %v1333, %v10974
        %v11216 = vmul.f32 %v1332, %v11207
        %v11217 = vmul.f32 %v1334, %v10982
        %v11218 = vmul.f32 %v1343, %v11208
        %v11219 = vmul.f32 %v1351, %v10981
        %v11220 = vmul.f32 %v1350, %v11209
        %v11221 = vmul.f32 %v1352, %v10983
        %v11230 = vlaneseq
        %v11231 = vshrl.u32 %v11230, 7
        %v11232 = vsub.s32 1, %v11231
        %v11233 = vrot.slane %v11214, %v11232
        %v11234 = vlaneseq
        %v11235 = vshrl.u32 %v11234, 7
        %v11236 = vsub.s32 3, %v11235
        %v11237 = vrot.slane %v11214, %v11236
        %v11238 = vlaneseq
        %v11239 = vshrl.u32 %v11238, 7
        %v11240 = vsub.s32 1, %v11239
        %v11241 = vrot.slane %v11215, %v11240
        %v11242 = vlaneseq
        %v11243 = vshrl.u32 %v11242, 7
        %v11244 = vsub.s32 3, %v11243
        %v11245 = vrot.slane %v11215, %v11244
        %v11246 = vlaneseq
        %v11247 = vshrl.u32 %v11246, 7
        %v11248 = vsub.s32 1, %v11247
        %v11249 = vrot.slane %v11216, %v11248
        %v11250 = vlaneseq
        %v11251 = vshrl.u32 %v11250, 7
        %v11252 = vsub.s32 3, %v11251
        %v11253 = vrot.slane %v11216, %v11252
        %v11254 = vlaneseq
        %v11255 = vshrl.u32 %v11254, 7
        %v11256 = vsub.s32 1, %v11255
        %v11257 = vrot.slane %v11217, %v11256
        %v11258 = vlaneseq
        %v11259 = vshrl.u32 %v11258, 7
        %v11260 = vsub.s32 3, %v11259
        %v11261 = vrot.slane %v11217, %v11260
        %v11262 = vlaneseq
        %v11263 = vshrl.u32 %v11262, 7
        %v11264 = vsub.s32 1, %v11263
        %v11265 = vrot.slane %v11218, %v11264
        %v11266 = vlaneseq
        %v11267 = vshrl.u32 %v11266, 7
        %v11268 = vsub.s32 3, %v11267
        %v11269 = vrot.slane %v11218, %v11268
        %v11270 = vlaneseq
        %v11271 = vshrl.u32 %v11270, 7
        %v11272 = vsub.s32 1, %v11271
        %v11273 = vrot.slane %v11219, %v11272
        %v11274 = vlaneseq
        %v11275 = vshrl.u32 %v11274, 7
        %v11276 = vsub.s32 3, %v11275
        %v11277 = vrot.slane %v11219, %v11276
        %v11278 = vlaneseq
        %v11279 = vshrl.u32 %v11278, 7
        %v11280 = vsub.s32 1, %v11279
        %v11281 = vrot.slane %v11220, %v11280
        %v11282 = vlaneseq
        %v11283 = vshrl.u32 %v11282, 7
        %v11284 = vsub.s32 3, %v11283
        %v11285 = vrot.slane %v11220, %v11284
        %v11286 = vlaneseq
        %v11287 = vshrl.u32 %v11286, 7
        %v11288 = vsub.s32 1, %v11287
        %v11289 = vrot.slane %v11221, %v11288
        %v11290 = vlaneseq
        %v11291 = vshrl.u32 %v11290, 7
        %v11292 = vsub.s32 3, %v11291
        %v11293 = vrot.slane %v11221, %v11292
        %v11294 = vsel %vm1681, %v11241, %v11233
        %v11295 = vsel %vm1683, %v11249, %v11294
        %v11296 = vsel %vm1685, %v11257, %v11295
        %v11297 = vsel %vm1687, %v11265, %v11296
        %v11298 = vsel %vm1689, %v11273, %v11297
        %v11299 = vsel %vm1691, %v11281, %v11298
        %v11300 = vsel %vm1693, %v11289, %v11299
        %v11301 = vsel %vm1681, %v11245, %v11237
        %v11302 = vsel %vm1683, %v11253, %v11301
        %v11303 = vsel %vm1685, %v11261, %v11302
        %v11304 = vsel %vm1687, %v11269, %v11303
        %v11305 = vsel %vm1689, %v11277, %v11304
        %v11306 = vsel %vm1691, %v11285, %v11305
        %v11307 = vsel %vm1693, %v11293, %v11306
        %v11311 = vsel %vm938, %v11202, 0
        %v11314 = vsel %vm938, %v11203, 0
        %v11317 = vsel %vm938, %v11204, 0
        %v11320 = vsel %vm938, %v11205, 0
        %11322 = vmatprep.subr.mxu0 %v11307
        %11323 = vmatpush1.msra.mxu0 %v11300
        %11324 = vmatprep.subr.mxu0 0.0
        %11325 = vmatpush1.msra.mxu0 0.0
        %11326 = vmatprep.subr.mxu0 0.0
        %11327 = vmatpush1.msra.mxu0 0.0
        %11328 = vmatprep.subr.mxu0 0.0
        %11329 = vmatpush1.msra.mxu0 0.0
        %11330 = vmatprep.subr.mxu0 0.0
        %11331 = vmatpush1.msra.mxu0 0.0
        %11332 = vmatprep.subr.mxu0 0.0
        %11333 = vmatpush1.msra.mxu0 0.0
        %11334 = vmatprep.subr.mxu0 0.0
        %11335 = vmatpush1.msra.mxu0 0.0
        %11336 = vmatprep.subr.mxu0 0.0
        %11337 = vmatpush1.msra.mxu0 0.0
        %11338 = vmatprep.subr.mxu0 0.0
        %11339 = vmatpush1.msra.mxu0 0.0
        %11340 = vmatprep.subr.mxu0 0.0
        %11341 = vmatpush1.msra.mxu0 0.0
        %11342 = vmatprep.subr.mxu0 0.0
        %11343 = vmatpush1.msra.mxu0 0.0
        %11344 = vmatprep.subr.mxu0 0.0
        %11345 = vmatpush1.msra.mxu0 0.0
        %11346 = vmatprep.subr.mxu0 0.0
        %11347 = vmatpush1.msra.mxu0 0.0
        %11348 = vmatprep.subr.mxu0 0.0
        %11349 = vmatpush1.msra.mxu0 0.0
        %11350 = vmatprep.subr.mxu0 0.0
        %11351 = vmatpush1.msra.mxu0 0.0
        %11352 = vmatprep.subr.mxu0 0.0
        %11353 = vmatpush1.msra.mxu0 0.0
        %11354 = vmatprep.subr.mxu0 0.0
        %11355 = vmatpush1.msra.mxu0 0.0
        %11356 = vmatprep.subr.mxu0 0.0
        %11357 = vmatpush1.msra.mxu0 0.0
        %11358 = vmatprep.subr.mxu0 0.0
        %11359 = vmatpush1.msra.mxu0 0.0
        %11360 = vmatprep.subr.mxu0 0.0
        %11361 = vmatpush1.msra.mxu0 0.0
        %11362 = vmatprep.subr.mxu0 0.0
        %11363 = vmatpush1.msra.mxu0 0.0
        %11364 = vmatprep.subr.mxu0 0.0
        %11365 = vmatpush1.msra.mxu0 0.0
        %11366 = vmatprep.subr.mxu0 0.0
        %11367 = vmatpush1.msra.mxu0 0.0
        %11368 = vmatprep.subr.mxu0 0.0
        %11369 = vmatpush1.msra.mxu0 0.0
        %11370 = vmatprep.subr.mxu0 0.0
        %11371 = vmatpush1.msra.mxu0 0.0
        %11372 = vmatprep.subr.mxu0 0.0
        %11373 = vmatpush1.msra.mxu0 0.0
        %11374 = vmatprep.subr.mxu0 0.0
        %11375 = vmatpush1.msra.mxu0 0.0
        %11376 = vmatprep.subr.mxu0 0.0
        %11377 = vmatpush1.msra.mxu0 0.0
        %11378 = vmatprep.subr.mxu0 0.0
        %11379 = vmatpush1.msra.mxu0 0.0
        %11380 = vmatprep.subr.mxu0 0.0
        %11381 = vmatpush1.msra.mxu0 0.0
        %11382 = vmatprep.subr.mxu0 0.0
        %11383 = vmatpush1.msra.mxu0 0.0
        %11384 = vmatprep.subr.mxu0 0.0
        %11385 = vmatpush1.msra.mxu0 0.0
        %11386 = vmatprep.mubr.f32.mxu0 0.0
        %11387 = vmatmul.mubr.f32.gmra.mrb[0].mxu0 %v11311
        %v11388 = vpop.f32.mrb[0].mxu0
        %v11389 = vadd.f32 0.0, %v11388
        %v11390 = vpop.f32.mrb[0].mxu0
        %v11391 = vadd.f32 0.0, %v11390
        %11392 = vmatprep.mubr.f32.mxu0 0.0
        %11393 = vmatmul.mubr.f32.gmra.mrb[0].mxu0 %v11314
        %v11394 = vpop.f32.mrb[0].mxu0
        %v11395 = vadd.f32 0.0, %v11394
        %v11396 = vpop.f32.mrb[0].mxu0
        %v11397 = vadd.f32 0.0, %v11396
        %11398 = vmatprep.mubr.f32.mxu0 0.0
        %11399 = vmatmul.mubr.f32.gmra.mrb[0].mxu0 %v11317
        %v11400 = vpop.f32.mrb[0].mxu0
        %v11401 = vadd.f32 0.0, %v11400
        %v11402 = vpop.f32.mrb[0].mxu0
        %v11403 = vadd.f32 0.0, %v11402
        %11404 = vmatprep.mubr.f32.mxu0 0.0
        %11405 = vmatmul.mubr.f32.gmra.mrb[0].mxu0 %v11320
        %v11406 = vpop.f32.mrb[0].mxu0
        %v11407 = vadd.f32 0.0, %v11406
        %v11408 = vpop.f32.mrb[0].mxu0
        %v11409 = vadd.f32 0.0, %v11408
        %11410 = vdwg.mxu0
        %v11411 = vadd.f32 %v11193, %v11389
        %v11412 = vadd.f32 %v11194, %v11391
        %v11413 = vadd.f32 %v11195, %v11395
        %v11414 = vadd.f32 %v11196, %v11397
        %v11415 = vadd.f32 %v11197, %v11401
        %v11416 = vadd.f32 %v11198, %v11403
        %v11417 = vadd.f32 %v11199, %v11407
        %v11418 = vadd.f32 %v11200, %v11409
        %v11419 = vxor.u32 %v11411, 2147483648
        %v11420 = vxor.u32 %v11412, 2147483648
        %v11421 = vxor.u32 %v11413, 2147483648
        %v11422 = vxor.u32 %v11414, 2147483648
        %v11423 = vxor.u32 %v11415, 2147483648
        %v11424 = vxor.u32 %v11416, 2147483648
        %v11425 = vxor.u32 %v11417, 2147483648
        %v11426 = vxor.u32 %v11418, 2147483648
        %v11427 = vmul.f32 %v11419, 1.442695
        %v11428 = vpow.pop %v11427
        %v11429 = vmul.f32 %v11420, 1.442695
        %v11430 = vpow.pop %v11429
        %v11431 = vmul.f32 %v11421, 1.442695
        %v11432 = vpow.pop %v11431
        %v11433 = vmul.f32 %v11422, 1.442695
        %v11434 = vpow.pop %v11433
        %v11435 = vmul.f32 %v11423, 1.442695
        %v11436 = vpow.pop %v11435
        %v11437 = vmul.f32 %v11424, 1.442695
        %v11438 = vpow.pop %v11437
        %v11439 = vmul.f32 %v11425, 1.442695
        %v11440 = vpow.pop %v11439
        %v11441 = vmul.f32 %v11426, 1.442695
        %v11442 = vpow.pop %v11441
        %v11443 = vadd.f32 %v11428, 1.0
        %v11444 = vadd.f32 %v11430, 1.0
        %v11445 = vadd.f32 %v11432, 1.0
        %v11446 = vadd.f32 %v11434, 1.0
        %v11447 = vadd.f32 %v11436, 1.0
        %v11448 = vadd.f32 %v11438, 1.0
        %v11449 = vadd.f32 %v11440, 1.0
        %v11450 = vadd.f32 %v11442, 1.0
        %v11451 = vrcp.pop %v11443
        %v11452 = vmul.f32 1.0, %v11451
        %v11453 = vrcp.pop %v11444
        %v11454 = vmul.f32 1.0, %v11453
        %v11455 = vrcp.pop %v11445
        %v11456 = vmul.f32 1.0, %v11455
        %v11457 = vrcp.pop %v11446
        %v11458 = vmul.f32 1.0, %v11457
        %v11459 = vrcp.pop %v11447
        %v11460 = vmul.f32 1.0, %v11459
        %v11461 = vrcp.pop %v11448
        %v11462 = vmul.f32 1.0, %v11461
        %v11463 = vrcp.pop %v11449
        %v11464 = vmul.f32 1.0, %v11463
        %v11465 = vrcp.pop %v11450
        %v11466 = vmul.f32 1.0, %v11465
        %v11467 = vmul.f32 %v11411, %v11452
        %v11468 = vmul.f32 %v11412, %v11454
        %v11469 = vmul.f32 %v11413, %v11456
        %v11470 = vmul.f32 %v11414, %v11458
        %v11471 = vmul.f32 %v11415, %v11460
        %v11472 = vmul.f32 %v11416, %v11462
        %v11473 = vmul.f32 %v11417, %v11464
        %v11474 = vmul.f32 %v11418, %v11466
        %11475 = vst [vmem:[%s718] sm:$0xff] %v11467
        %11476 = vst [vmem:[%s718 + $0x8] sm:$0xff] %v11468
        %11477 = vst [vmem:[%s718 + $0x10] sm:$0xff] %v11469
        %11478 = vst [vmem:[%s718 + $0x18] sm:$0xff] %v11470
        %11479 = vst [vmem:[%s718 + $0x20] sm:$0xff] %v11471
        %11480 = vst [vmem:[%s718 + $0x28] sm:$0xff] %v11472
        %11481 = vst [vmem:[%s718 + $0x30] sm:$0xff] %v11473
        %11482 = vst [vmem:[%s718 + $0x38] sm:$0xff] %v11474
        %p11483 = scmp.lt.s32.totalorder %s35, 1
        %s11484 = scalar_select %p11483, %s35, 1
        %s11485 = smul.addr %s11484, 8
        %s11486 = smul.addr %s11485, 8
        %s11487 = scalar_lea.vmem %s20, %s11486
        // Predicated region
        $region129: #{_ec_forward.1} parent=99 // pred_check
          %p11488 = pneg %p478
        $region130: #{_ec_forward.1} parent=99 // pred_check_branch
          %11490 = sbr.rel (%p11488) target = $region132
        $region131: #{_ec_forward.1} parent=99 // pred_region
          _
        $region132: #{_ec_forward.1} parent=99 // pred_fallthru
          _
      $region100: #{_ec_forward.1} parent=5 // pred_fallthru
        _
      %p11491 = scmp.le.s32.totalorder 2, %s30
      // Predicated region
      $region133: #{_ec_forward.1} parent=5 // pred_check
        %p11492 = pneg %p11491
      $region134: #{_ec_forward.1} parent=5 // pred_check_branch
        %11494 = sbr.rel (%p11492) target = $region136
      $region135: #{_ec_forward.1} parent=5 // pred_region
        %s11495 = ssub.s32 %s30, 2
        // Predicated region
        $region137: #{_ec_forward.1} parent=135 // pred_check
          %p11496 = pneg %p484
        $region138: #{_ec_forward.1} parent=135 // pred_check_branch
          %11498 = sbr.rel (%p11496) target = $region140
        $region139: #{_ec_forward.1} parent=135 // pred_region
          %p11499 = scmp.lt.s32.totalorder %s36, 1
          %s11500 = scalar_select %p11499, %s36, 1
          %s11501 = smul.addr %s11500, 8
          %s11502 = smul.addr %s11501, 8
          %s11503 = scalar_lea.vmem %s20, %s11502
        $region140: #{_ec_forward.1} parent=135 // pred_fallthru
          _
      $region136: #{_ec_forward.1} parent=5 // pred_fallthru
        _
    $region6: #{_ec_forward.1} parent=1 // loop_footer
      %s34 = sadd.s32 1, %s30
    $region7: #{_ec_forward.1} parent=1 // loop_footer_branch
      %29 = sbr.rel target = $region3
    $region8: #{_ec_forward.1} parent=1 // loop_exit
      _
    %11504 = vsyncpa [#allocation3], 1
    %s11505 = scalar_lea.sflag [#allocation3], 1
    %11506 = vsyncpa %s11505, 1
    %11507 = vsyncpa [#allocation5], 1
    %11508 = vsyncpa [#allocation8], 1
    %11509 = vsyncpa [#allocation11], 1

</llo_original>
